<compile_context>
chip_gen: v5e
topology: v5e:2x2
jax: 0.10.0
libtpu: 0.0.40
codegen_flags: <defaults>
</compile_context>

<pallas_src>
import jax
import jax.numpy as jnp
from jax.experimental import pallas as pl
from jax.experimental.pallas import tpu as pltpu


def _round_up(a, m):
    return (a + m - 1) // m * m


# ---------------------------------------------------------------------------
# Fused kernel: conv1+BN1+ReLU -> conv2+BN2 -> +x -> ReLU   (one image / step)
# ---------------------------------------------------------------------------
def _basic_block_kernel(x_ref, w1_ref, b1_ref, w2_ref, b2_ref, o_ref, xp_ref):
    """x_ref : (1, H, W, Cp)   f32   input block (also the f32 residual)
       w*_ref: (9, Cp, Cp)     bf16  BN-scale-folded per-tap conv weights
       b*_ref: (1, Cp)         f32   BN-folded bias
       o_ref : (1, H, W, Cp)   f32   output block
       xp_ref: (H+2, Wp, Cp)   bf16  zero-bordered padded-activation scratch
    """
    H, W, Cp = x_ref.shape[1], x_ref.shape[2], x_ref.shape[3]
    Wp = xp_ref.shape[1]
    HW = H * W

    # --- zero ONLY the 1-wide padding border, every step ---------------------
    # (safe under megacore grid sharding; the interior is fully rewritten below
    #  so the border stays zero for conv2 as well; cols >= W+2 are never read).
    xp_ref[0:1, :, :] = jnp.zeros((1, Wp, Cp), jnp.bfloat16)
    xp_ref[H + 1:H + 2, :, :] = jnp.zeros((1, Wp, Cp), jnp.bfloat16)
    xp_ref[:, 0:1, :] = jnp.zeros((H + 2, 1, Cp), jnp.bfloat16)
    xp_ref[:, W + 1:W + 2, :] = jnp.zeros((H + 2, 1, Cp), jnp.bfloat16)

    def conv3x3(w_ref, b_ref):
        # Per-tap MXU accumulation: 9 matmuls with K = Cp, f32 accumulation in
        # registers.  No im2col scratch, no staged stores, no 9x reload.
        acc = None
        for ky in range(3):
            for kx in range(3):
                tap = xp_ref[ky:ky + H, kx:kx + W, :].reshape(HW, Cp)  # bf16
                contrib = jnp.dot(tap, w_ref[ky * 3 + kx],
                                  preferred_element_type=jnp.float32)
                acc = contrib if acc is None else acc + contrib
        return acc + b_ref[...]                                        # (HW, Cp) f32

    # ---- conv1 + BN1 + ReLU --------------------------------------------------
    xp_ref[1:H + 1, 1:W + 1, :] = x_ref[0].astype(jnp.bfloat16)
    y1 = jnp.maximum(conv3x3(w1_ref, b1_ref), 0.0)

    # ---- conv2 + BN2 (no ReLU); border of xp_ref is still zero ---------------
    xp_ref[1:H + 1, 1:W + 1, :] = y1.reshape(H, W, Cp).astype(jnp.bfloat16)
    y2 = conv3x3(w2_ref, b2_ref)

    # ---- identity skip (f32, straight from the input block) + ReLU ----------
    y2 = y2 + x_ref[0].reshape(HW, Cp)
    o_ref[...] = jnp.maximum(y2, 0.0).reshape(1, H, W, Cp).astype(o_ref.dtype)


# ---------------------------------------------------------------------------
# Wrapper
# ---------------------------------------------------------------------------
def _fold_bn_pad(w_hwio, conv_bias, gamma, beta, mean, var, cp, eps=1e-5):
    """Fold eval-mode BN into the conv (w' = w*scale, b' = beta + scale*(b - mean)),
    then zero-pad channels to cp and lay out per-tap: (9, cp_in, cp_out)."""
    scale = gamma / jnp.sqrt(var + eps)                       # (Cout,)
    kh, kw, cin, cout = w_hwio.shape
    w = w_hwio * scale[None, None, None, :]
    b = beta + scale * (conv_bias - mean)
    w = jnp.pad(w, ((0, 0), (0, 0), (0, cp - cin), (0, cp - cout)))
    b = jnp.pad(b, (0, cp - cout))
    return (w.reshape(kh * kw, cp, cp).astype(jnp.bfloat16),
            b.reshape(1, cp).astype(jnp.float32))


def basic_block_forward(x_nchw, params):
    """BasicBlock forward: ReLU(BN2(conv2(ReLU(BN1(conv1(x))))) + x)."""
    x = jnp.transpose(x_nchw, (0, 2, 3, 1)).astype(jnp.float32)   # NCHW -> NHWC
    N, H, W, C = x.shape
    assert params["conv1_w"].shape == (3, 3, C, C), "identity-skip branch only"

    # Lane-dense channel packing (no-op when C is already a multiple of 128).
    Cp = _round_up(C, 128)
    # Sublane-aligned padded-activation scratch width.
    Wp = _round_up(W + 2, 8)
    x_p = jnp.pad(x, ((0, 0), (0, 0), (0, 0), (0, Cp - C)))

    w1, b1 = _fold_bn_pad(params["conv1_w"], params["conv1_bias"],
                          params["bn1_gamma"], params["bn1_beta"],
                          params["bn1_mean"], params["bn1_var"], Cp)
    w2, b2 = _fold_bn_pad(params["conv2_w"], params["conv2_bias"],
                          params["bn2_gamma"], params["bn2_beta"],
                          params["bn2_mean"], params["bn2_var"], Cp)

    out = pl.pallas_call(
        _basic_block_kernel,
        out_shape=jax.ShapeDtypeStruct((N, H, W, Cp), jnp.float32),
        grid_spec=pltpu.PrefetchScalarGridSpec(
            num_scalar_prefetch=0,
            grid=(N,),
            in_specs=[
                pl.BlockSpec((1, H, W, Cp), lambda n: (n, 0, 0, 0)),   # x
                # Constant block index across the grid -> weights & biases are
                # fetched once and stay VMEM-resident for all images.
                pl.BlockSpec((9, Cp, Cp), lambda n: (0, 0, 0)),        # w1
                pl.BlockSpec((1, Cp), lambda n: (0, 0)),               # b1
                pl.BlockSpec((9, Cp, Cp), lambda n: (0, 0, 0)),        # w2
                pl.BlockSpec((1, Cp), lambda n: (0, 0)),               # b2
            ],
            out_specs=pl.BlockSpec((1, H, W, Cp), lambda n: (n, 0, 0, 0)),
            scratch_shapes=[
                pltpu.VMEM((H + 2, Wp, Cp), jnp.bfloat16),   # padded activations
            ],
        ),
        compiler_params=pltpu.CompilerParams(
            dimension_semantics=("parallel",),
            vmem_limit_bytes=32 * 1024 * 1024,   # footprint here is ~2 MiB
        ),
    )(x_p, w1, b1, w2, b2)

    return jnp.transpose(out[..., :C], (0, 3, 1, 2))   # NHWC -> NCHW


# ---------------------------------------------------------------------------
# Pure-JAX reference (f32, unfolded BN) — correctness check only
# ---------------------------------------------------------------------------
def _ref_forward(x_nchw, params):
    def conv_bn(x, w_hwio, cbias, gamma, beta, mean, var, relu):
        w_oihw = jnp.transpose(w_hwio, (3, 2, 0, 1))
        y = jax.lax.conv_general_dilated(
            x, w_oihw, window_strides=(1, 1), padding=((1, 1), (1, 1)),
            dimension_numbers=("NCHW", "OIHW", "NCHW"))
        y = y + cbias[None, :, None, None]
        y = (y - mean[None, :, None, None]) / jnp.sqrt(
            var[None, :, None, None] + 1e-5)
        y = y * gamma[None, :, None, None] + beta[None, :, None, None]
        return jnp.maximum(y, 0.0) if relu else y

    out = conv_bn(x_nchw, params["conv1_w"], params["conv1_bias"],
                  params["bn1_gamma"], params["bn1_beta"],
                  params["bn1_mean"], params["bn1_var"], relu=True)
    out = conv_bn(out, params["conv2_w"], params["conv2_bias"],
                  params["bn2_gamma"], params["bn2_beta"],
                  params["bn2_mean"], params["bn2_var"], relu=False)
    return jnp.maximum(out + x_nchw, 0.0)


# ---------------------------------------------------------------------------
# Main
# ---------------------------------------------------------------------------
if __name__ == "__main__":
    N, C, H, W = 2, 4, 16, 16   # in_channels == out_channels, stride=1
    key = jax.random.PRNGKey(0)
    keys = jax.random.split(key, 8)

    params = {
        # conv weights stored HWIO (3, 3, Cin, Cout)
        "conv1_w": 0.1 * jax.random.normal(keys[0], (3, 3, C, C), jnp.float32),
        "conv1_bias": 0.05 * jax.random.normal(keys[1], (C,), jnp.float32),
        "bn1_gamma": 1.0 + 0.1 * jax.random.normal(keys[2], (C,), jnp.float32),
        "bn1_beta": 0.05 * jax.random.normal(keys[3], (C,), jnp.float32),
        "bn1_mean": 0.1 * jax.random.normal(keys[4], (C,), jnp.float32),
        "bn1_var": jnp.abs(jax.random.normal(keys[5], (C,), jnp.float32)) + 0.5,
        "conv2_w": 0.1 * jax.random.normal(keys[6], (3, 3, C, C), jnp.float32),
        "conv2_bias": 0.05 * jax.random.normal(keys[7], (C,), jnp.float32),
        "bn2_gamma": jnp.linspace(0.9, 1.1, C, dtype=jnp.float32),
        "bn2_beta": jnp.linspace(-0.1, 0.1, C, dtype=jnp.float32),
        "bn2_mean": jnp.linspace(-0.05, 0.05, C, dtype=jnp.float32),
        "bn2_var": jnp.linspace(0.8, 1.2, C, dtype=jnp.float32),
    }

    x = jax.random.normal(jax.random.PRNGKey(42), (N, C, H, W), jnp.float32)

    out = basic_block_forward(x, params)
    out = jax.block_until_ready(out)

    ref = _ref_forward(x, params)
    assert out.shape == (N, C, H, W)
    # bf16 matmul operands (f32 accumulation) => relaxed tolerance vs f32 ref.
    assert jnp.allclose(out, ref, atol=5e-2, rtol=5e-2), "mismatch vs reference"

    print("KERNEL_OK")
</pallas_src>

<mosaic_0001>
module attributes {stable_mosaic.version = 11 : i64} {
  func.func @_basic_block_kernel(%arg0: i32, %arg1: memref<1x16x16x128xf32, #tpu.memory_space<vmem>>, %arg2: memref<9x128x128xbf16, #tpu.memory_space<vmem>>, %arg3: memref<1x128xf32, #tpu.memory_space<vmem>>, %arg4: memref<9x128x128xbf16, #tpu.memory_space<vmem>>, %arg5: memref<1x128xf32, #tpu.memory_space<vmem>>, %arg6: memref<1x16x16x128xf32, #tpu.memory_space<vmem>>, %arg7: memref<18x24x128xbf16, #tpu.memory_space<vmem>>) attributes {dimension_semantics = [#tpu.dimension_semantics<parallel>], iteration_bounds = array<i64: 2>, scalar_prefetch = 0 : i64, scratch_operands = 1 : i64, tpu.core_type = #tpu.core_type<tc>, window_params = [{transform_indices = @transform_0, window_bounds = array<i64: 1, 16, 16, 128>}, {pipeline_mode = #tpu.pipeline_mode<synchronous>, transform_indices = @transform_1, window_bounds = array<i64: 9, 128, 128>}, {pipeline_mode = #tpu.pipeline_mode<synchronous>, transform_indices = @transform_2, window_bounds = array<i64: 1, 128>}, {pipeline_mode = #tpu.pipeline_mode<synchronous>, transform_indices = @transform_3, window_bounds = array<i64: 9, 128, 128>}, {pipeline_mode = #tpu.pipeline_mode<synchronous>, transform_indices = @transform_4, window_bounds = array<i64: 1, 128>}, {transform_indices = @transform_5, window_bounds = array<i64: 1, 16, 16, 128>}]} {
    %cst = arith.constant 0.000000e+00 : bf16
    %0 = vector.broadcast %cst : bf16 to vector<1x24x128xbf16>
    %c0 = arith.constant 0 : index
    %c0_0 = arith.constant 0 : index
    %c0_1 = arith.constant 0 : index
    %1 = vector.load %arg7[%c0, %c0_0, %c0_1] : memref<18x24x128xbf16, #tpu.memory_space<vmem>>, vector<1x24x128xbf16>
    tpu.vector_store %arg7[%c0, %c0_0, %c0_1], %0 {strides = array<i32>} : memref<18x24x128xbf16, #tpu.memory_space<vmem>>, vector<1x24x128xbf16>,
    %cst_2 = arith.constant 0.000000e+00 : bf16
    %2 = vector.broadcast %cst_2 : bf16 to vector<1x24x128xbf16>
    %c17 = arith.constant 17 : index
    %c0_3 = arith.constant 0 : index
    %c0_4 = arith.constant 0 : index
    %3 = vector.load %arg7[%c17, %c0_3, %c0_4] : memref<18x24x128xbf16, #tpu.memory_space<vmem>>, vector<1x24x128xbf16>
    tpu.vector_store %arg7[%c17, %c0_3, %c0_4], %2 {strides = array<i32>} : memref<18x24x128xbf16, #tpu.memory_space<vmem>>, vector<1x24x128xbf16>,
    %cst_5 = arith.constant 0.000000e+00 : bf16
    %4 = vector.broadcast %cst_5 : bf16 to vector<18x1x128xbf16>
    %c0_6 = arith.constant 0 : index
    %c0_7 = arith.constant 0 : index
    %c0_8 = arith.constant 0 : index
    %5 = vector.load %arg7[%c0_6, %c0_7, %c0_8] : memref<18x24x128xbf16, #tpu.memory_space<vmem>>, vector<18x1x128xbf16>
    tpu.vector_store %arg7[%c0_6, %c0_7, %c0_8], %4 {strides = array<i32>} : memref<18x24x128xbf16, #tpu.memory_space<vmem>>, vector<18x1x128xbf16>,
    %cst_9 = arith.constant 0.000000e+00 : bf16
    %6 = vector.broadcast %cst_9 : bf16 to vector<18x1x128xbf16>
    %c0_10 = arith.constant 0 : index
    %c17_11 = arith.constant 17 : index
    %c0_12 = arith.constant 0 : index
    %7 = vector.load %arg7[%c0_10, %c17_11, %c0_12] : memref<18x24x128xbf16, #tpu.memory_space<vmem>>, vector<18x1x128xbf16>
    tpu.vector_store %arg7[%c0_10, %c17_11, %c0_12], %6 {strides = array<i32>} : memref<18x24x128xbf16, #tpu.memory_space<vmem>>, vector<18x1x128xbf16>,
    %c0_13 = arith.constant 0 : index
    %c0_14 = arith.constant 0 : index
    %c0_15 = arith.constant 0 : index
    %c0_16 = arith.constant 0 : index
    %8 = vector.load %arg1[%c0_13, %c0_14, %c0_15, %c0_16] : memref<1x16x16x128xf32, #tpu.memory_space<vmem>>, vector<1x16x16x128xf32>
    %9 = vector.shape_cast %8 : vector<1x16x16x128xf32> to vector<16x16x128xf32>
    %10 = arith.truncf %9 : vector<16x16x128xf32> to vector<16x16x128xbf16>
    %c1 = arith.constant 1 : index
    %c1_17 = arith.constant 1 : index
    %c0_18 = arith.constant 0 : index
    %11 = vector.load %arg7[%c1, %c1_17, %c0_18] : memref<18x24x128xbf16, #tpu.memory_space<vmem>>, vector<16x16x128xbf16>
    tpu.vector_store %arg7[%c1, %c1_17, %c0_18], %10 {strides = array<i32>} : memref<18x24x128xbf16, #tpu.memory_space<vmem>>, vector<16x16x128xbf16>,
    %c0_19 = arith.constant 0 : index
    %c0_20 = arith.constant 0 : index
    %c0_21 = arith.constant 0 : index
    %12 = vector.load %arg7[%c0_19, %c0_20, %c0_21] : memref<18x24x128xbf16, #tpu.memory_space<vmem>>, vector<16x16x128xbf16>
    %13 = vector.shape_cast %12 : vector<16x16x128xbf16> to vector<256x128xbf16>
    %c0_22 = arith.constant 0 : index
    %c0_23 = arith.constant 0 : index
    %c0_24 = arith.constant 0 : index
    %14 = vector.load %arg2[%c0_22, %c0_23, %c0_24] : memref<9x128x128xbf16, #tpu.memory_space<vmem>>, vector<1x128x128xbf16>
    %15 = vector.shape_cast %14 : vector<1x128x128xbf16> to vector<128x128xbf16>
    %cst_25 = arith.constant dense<0.000000e+00> : vector<256x128xf32>
    %16 = tpu.matmul %13, %15, %cst_25 {dimension_numbers = #tpu.dot_dimension_numbers<[1], [0], [0], [1], [0, 0, 1, 1], [], []>} : vector<256x128xbf16>, vector<128x128xbf16>, vector<256x128xf32> -> vector<256x128xf32>
    %c0_26 = arith.constant 0 : index
    %c1_27 = arith.constant 1 : index
    %c0_28 = arith.constant 0 : index
    %17 = vector.load %arg7[%c0_26, %c1_27, %c0_28] : memref<18x24x128xbf16, #tpu.memory_space<vmem>>, vector<16x16x128xbf16>
    %18 = vector.shape_cast %17 : vector<16x16x128xbf16> to vector<256x128xbf16>
    %c1_29 = arith.constant 1 : index
    %c0_30 = arith.constant 0 : index
    %c0_31 = arith.constant 0 : index
    %19 = vector.load %arg2[%c1_29, %c0_30, %c0_31] : memref<9x128x128xbf16, #tpu.memory_space<vmem>>, vector<1x128x128xbf16>
    %20 = vector.shape_cast %19 : vector<1x128x128xbf16> to vector<128x128xbf16>
    %cst_32 = arith.constant dense<0.000000e+00> : vector<256x128xf32>
    %21 = tpu.matmul %18, %20, %cst_32 {dimension_numbers = #tpu.dot_dimension_numbers<[1], [0], [0], [1], [0, 0, 1, 1], [], []>} : vector<256x128xbf16>, vector<128x128xbf16>, vector<256x128xf32> -> vector<256x128xf32>
    %22 = arith.addf %16, %21 : vector<256x128xf32>
    %c0_33 = arith.constant 0 : index
    %c2 = arith.constant 2 : index
    %c0_34 = arith.constant 0 : index
    %23 = vector.load %arg7[%c0_33, %c2, %c0_34] : memref<18x24x128xbf16, #tpu.memory_space<vmem>>, vector<16x16x128xbf16>
    %24 = vector.shape_cast %23 : vector<16x16x128xbf16> to vector<256x128xbf16>
    %c2_35 = arith.constant 2 : index
    %c0_36 = arith.constant 0 : index
    %c0_37 = arith.constant 0 : index
    %25 = vector.load %arg2[%c2_35, %c0_36, %c0_37] : memref<9x128x128xbf16, #tpu.memory_space<vmem>>, vector<1x128x128xbf16>
    %26 = vector.shape_cast %25 : vector<1x128x128xbf16> to vector<128x128xbf16>
    %cst_38 = arith.constant dense<0.000000e+00> : vector<256x128xf32>
    %27 = tpu.matmul %24, %26, %cst_38 {dimension_numbers = #tpu.dot_dimension_numbers<[1], [0], [0], [1], [0, 0, 1, 1], [], []>} : vector<256x128xbf16>, vector<128x128xbf16>, vector<256x128xf32> -> vector<256x128xf32>
    %28 = arith.addf %22, %27 : vector<256x128xf32>
    %c1_39 = arith.constant 1 : index
    %c0_40 = arith.constant 0 : index
    %c0_41 = arith.constant 0 : index
    %29 = vector.load %arg7[%c1_39, %c0_40, %c0_41] : memref<18x24x128xbf16, #tpu.memory_space<vmem>>, vector<16x16x128xbf16>
    %30 = vector.shape_cast %29 : vector<16x16x128xbf16> to vector<256x128xbf16>
    %c3 = arith.constant 3 : index
    %c0_42 = arith.constant 0 : index
    %c0_43 = arith.constant 0 : index
    %31 = vector.load %arg2[%c3, %c0_42, %c0_43] : memref<9x128x128xbf16, #tpu.memory_space<vmem>>, vector<1x128x128xbf16>
    %32 = vector.shape_cast %31 : vector<1x128x128xbf16> to vector<128x128xbf16>
    %cst_44 = arith.constant dense<0.000000e+00> : vector<256x128xf32>
    %33 = tpu.matmul %30, %32, %cst_44 {dimension_numbers = #tpu.dot_dimension_numbers<[1], [0], [0], [1], [0, 0, 1, 1], [], []>} : vector<256x128xbf16>, vector<128x128xbf16>, vector<256x128xf32> -> vector<256x128xf32>
    %34 = arith.addf %28, %33 : vector<256x128xf32>
    %c1_45 = arith.constant 1 : index
    %c1_46 = arith.constant 1 : index
    %c0_47 = arith.constant 0 : index
    %35 = vector.load %arg7[%c1_45, %c1_46, %c0_47] : memref<18x24x128xbf16, #tpu.memory_space<vmem>>, vector<16x16x128xbf16>
    %36 = vector.shape_cast %35 : vector<16x16x128xbf16> to vector<256x128xbf16>
    %c4 = arith.constant 4 : index
    %c0_48 = arith.constant 0 : index
    %c0_49 = arith.constant 0 : index
    %37 = vector.load %arg2[%c4, %c0_48, %c0_49] : memref<9x128x128xbf16, #tpu.memory_space<vmem>>, vector<1x128x128xbf16>
    %38 = vector.shape_cast %37 : vector<1x128x128xbf16> to vector<128x128xbf16>
    %cst_50 = arith.constant dense<0.000000e+00> : vector<256x128xf32>
    %39 = tpu.matmul %36, %38, %cst_50 {dimension_numbers = #tpu.dot_dimension_numbers<[1], [0], [0], [1], [0, 0, 1, 1], [], []>} : vector<256x128xbf16>, vector<128x128xbf16>, vector<256x128xf32> -> vector<256x128xf32>
    %40 = arith.addf %34, %39 : vector<256x128xf32>
    %c1_51 = arith.constant 1 : index
    %c2_52 = arith.constant 2 : index
    %c0_53 = arith.constant 0 : index
    %41 = vector.load %arg7[%c1_51, %c2_52, %c0_53] : memref<18x24x128xbf16, #tpu.memory_space<vmem>>, vector<16x16x128xbf16>
    %42 = vector.shape_cast %41 : vector<16x16x128xbf16> to vector<256x128xbf16>
    %c5 = arith.constant 5 : index
    %c0_54 = arith.constant 0 : index
    %c0_55 = arith.constant 0 : index
    %43 = vector.load %arg2[%c5, %c0_54, %c0_55] : memref<9x128x128xbf16, #tpu.memory_space<vmem>>, vector<1x128x128xbf16>
    %44 = vector.shape_cast %43 : vector<1x128x128xbf16> to vector<128x128xbf16>
    %cst_56 = arith.constant dense<0.000000e+00> : vector<256x128xf32>
    %45 = tpu.matmul %42, %44, %cst_56 {dimension_numbers = #tpu.dot_dimension_numbers<[1], [0], [0], [1], [0, 0, 1, 1], [], []>} : vector<256x128xbf16>, vector<128x128xbf16>, vector<256x128xf32> -> vector<256x128xf32>
    %46 = arith.addf %40, %45 : vector<256x128xf32>
    %c2_57 = arith.constant 2 : index
    %c0_58 = arith.constant 0 : index
    %c0_59 = arith.constant 0 : index
    %47 = vector.load %arg7[%c2_57, %c0_58, %c0_59] : memref<18x24x128xbf16, #tpu.memory_space<vmem>>, vector<16x16x128xbf16>
    %48 = vector.shape_cast %47 : vector<16x16x128xbf16> to vector<256x128xbf16>
    %c6 = arith.constant 6 : index
    %c0_60 = arith.constant 0 : index
    %c0_61 = arith.constant 0 : index
    %49 = vector.load %arg2[%c6, %c0_60, %c0_61] : memref<9x128x128xbf16, #tpu.memory_space<vmem>>, vector<1x128x128xbf16>
    %50 = vector.shape_cast %49 : vector<1x128x128xbf16> to vector<128x128xbf16>
    %cst_62 = arith.constant dense<0.000000e+00> : vector<256x128xf32>
    %51 = tpu.matmul %48, %50, %cst_62 {dimension_numbers = #tpu.dot_dimension_numbers<[1], [0], [0], [1], [0, 0, 1, 1], [], []>} : vector<256x128xbf16>, vector<128x128xbf16>, vector<256x128xf32> -> vector<256x128xf32>
    %52 = arith.addf %46, %51 : vector<256x128xf32>
    %c2_63 = arith.constant 2 : index
    %c1_64 = arith.constant 1 : index
    %c0_65 = arith.constant 0 : index
    %53 = vector.load %arg7[%c2_63, %c1_64, %c0_65] : memref<18x24x128xbf16, #tpu.memory_space<vmem>>, vector<16x16x128xbf16>
    %54 = vector.shape_cast %53 : vector<16x16x128xbf16> to vector<256x128xbf16>
    %c7 = arith.constant 7 : index
    %c0_66 = arith.constant 0 : index
    %c0_67 = arith.constant 0 : index
    %55 = vector.load %arg2[%c7, %c0_66, %c0_67] : memref<9x128x128xbf16, #tpu.memory_space<vmem>>, vector<1x128x128xbf16>
    %56 = vector.shape_cast %55 : vector<1x128x128xbf16> to vector<128x128xbf16>
    %cst_68 = arith.constant dense<0.000000e+00> : vector<256x128xf32>
    %57 = tpu.matmul %54, %56, %cst_68 {dimension_numbers = #tpu.dot_dimension_numbers<[1], [0], [0], [1], [0, 0, 1, 1], [], []>} : vector<256x128xbf16>, vector<128x128xbf16>, vector<256x128xf32> -> vector<256x128xf32>
    %58 = arith.addf %52, %57 : vector<256x128xf32>
    %c2_69 = arith.constant 2 : index
    %c2_70 = arith.constant 2 : index
    %c0_71 = arith.constant 0 : index
    %59 = vector.load %arg7[%c2_69, %c2_70, %c0_71] : memref<18x24x128xbf16, #tpu.memory_space<vmem>>, vector<16x16x128xbf16>
    %60 = vector.shape_cast %59 : vector<16x16x128xbf16> to vector<256x128xbf16>
    %c8 = arith.constant 8 : index
    %c0_72 = arith.constant 0 : index
    %c0_73 = arith.constant 0 : index
    %61 = vector.load %arg2[%c8, %c0_72, %c0_73] : memref<9x128x128xbf16, #tpu.memory_space<vmem>>, vector<1x128x128xbf16>
    %62 = vector.shape_cast %61 : vector<1x128x128xbf16> to vector<128x128xbf16>
    %cst_74 = arith.constant dense<0.000000e+00> : vector<256x128xf32>
    %63 = tpu.matmul %60, %62, %cst_74 {dimension_numbers = #tpu.dot_dimension_numbers<[1], [0], [0], [1], [0, 0, 1, 1], [], []>} : vector<256x128xbf16>, vector<128x128xbf16>, vector<256x128xf32> -> vector<256x128xf32>
    %64 = arith.addf %58, %63 : vector<256x128xf32>
    %c0_75 = arith.constant 0 : index
    %c0_76 = arith.constant 0 : index
    %65 = vector.load %arg3[%c0_75, %c0_76] : memref<1x128xf32, #tpu.memory_space<vmem>>, vector<1x128xf32>
    %66 = vector.broadcast %65 : vector<1x128xf32> to vector<256x128xf32>
    %67 = arith.addf %64, %66 : vector<256x128xf32>
    %cst_77 = arith.constant 0.000000e+00 : f32
    %68 = vector.broadcast %cst_77 : f32 to vector<256x128xf32>
    %69 = arith.maximumf %67, %68 : vector<256x128xf32>
    %70 = vector.shape_cast %69 : vector<256x128xf32> to vector<16x16x128xf32>
    %71 = arith.truncf %70 : vector<16x16x128xf32> to vector<16x16x128xbf16>
    %c1_78 = arith.constant 1 : index
    %c1_79 = arith.constant 1 : index
    %c0_80 = arith.constant 0 : index
    %72 = vector.load %arg7[%c1_78, %c1_79, %c0_80] : memref<18x24x128xbf16, #tpu.memory_space<vmem>>, vector<16x16x128xbf16>
    tpu.vector_store %arg7[%c1_78, %c1_79, %c0_80], %71 {strides = array<i32>} : memref<18x24x128xbf16, #tpu.memory_space<vmem>>, vector<16x16x128xbf16>,
    %c0_81 = arith.constant 0 : index
    %c0_82 = arith.constant 0 : index
    %c0_83 = arith.constant 0 : index
    %73 = vector.load %arg7[%c0_81, %c0_82, %c0_83] : memref<18x24x128xbf16, #tpu.memory_space<vmem>>, vector<16x16x128xbf16>
    %74 = vector.shape_cast %73 : vector<16x16x128xbf16> to vector<256x128xbf16>
    %c0_84 = arith.constant 0 : index
    %c0_85 = arith.constant 0 : index
    %c0_86 = arith.constant 0 : index
    %75 = vector.load %arg4[%c0_84, %c0_85, %c0_86] : memref<9x128x128xbf16, #tpu.memory_space<vmem>>, vector<1x128x128xbf16>
    %76 = vector.shape_cast %75 : vector<1x128x128xbf16> to vector<128x128xbf16>
    %cst_87 = arith.constant dense<0.000000e+00> : vector<256x128xf32>
    %77 = tpu.matmul %74, %76, %cst_87 {dimension_numbers = #tpu.dot_dimension_numbers<[1], [0], [0], [1], [0, 0, 1, 1], [], []>} : vector<256x128xbf16>, vector<128x128xbf16>, vector<256x128xf32> -> vector<256x128xf32>
    %c0_88 = arith.constant 0 : index
    %c1_89 = arith.constant 1 : index
    %c0_90 = arith.constant 0 : index
    %78 = vector.load %arg7[%c0_88, %c1_89, %c0_90] : memref<18x24x128xbf16, #tpu.memory_space<vmem>>, vector<16x16x128xbf16>
    %79 = vector.shape_cast %78 : vector<16x16x128xbf16> to vector<256x128xbf16>
    %c1_91 = arith.constant 1 : index
    %c0_92 = arith.constant 0 : index
    %c0_93 = arith.constant 0 : index
    %80 = vector.load %arg4[%c1_91, %c0_92, %c0_93] : memref<9x128x128xbf16, #tpu.memory_space<vmem>>, vector<1x128x128xbf16>
    %81 = vector.shape_cast %80 : vector<1x128x128xbf16> to vector<128x128xbf16>
    %cst_94 = arith.constant dense<0.000000e+00> : vector<256x128xf32>
    %82 = tpu.matmul %79, %81, %cst_94 {dimension_numbers = #tpu.dot_dimension_numbers<[1], [0], [0], [1], [0, 0, 1, 1], [], []>} : vector<256x128xbf16>, vector<128x128xbf16>, vector<256x128xf32> -> vector<256x128xf32>
    %83 = arith.addf %77, %82 : vector<256x128xf32>
    %c0_95 = arith.constant 0 : index
    %c2_96 = arith.constant 2 : index
    %c0_97 = arith.constant 0 : index
    %84 = vector.load %arg7[%c0_95, %c2_96, %c0_97] : memref<18x24x128xbf16, #tpu.memory_space<vmem>>, vector<16x16x128xbf16>
    %85 = vector.shape_cast %84 : vector<16x16x128xbf16> to vector<256x128xbf16>
    %c2_98 = arith.constant 2 : index
    %c0_99 = arith.constant 0 : index
    %c0_100 = arith.constant 0 : index
    %86 = vector.load %arg4[%c2_98, %c0_99, %c0_100] : memref<9x128x128xbf16, #tpu.memory_space<vmem>>, vector<1x128x128xbf16>
    %87 = vector.shape_cast %86 : vector<1x128x128xbf16> to vector<128x128xbf16>
    %cst_101 = arith.constant dense<0.000000e+00> : vector<256x128xf32>
    %88 = tpu.matmul %85, %87, %cst_101 {dimension_numbers = #tpu.dot_dimension_numbers<[1], [0], [0], [1], [0, 0, 1, 1], [], []>} : vector<256x128xbf16>, vector<128x128xbf16>, vector<256x128xf32> -> vector<256x128xf32>
    %89 = arith.addf %83, %88 : vector<256x128xf32>
    %c1_102 = arith.constant 1 : index
    %c0_103 = arith.constant 0 : index
    %c0_104 = arith.constant 0 : index
    %90 = vector.load %arg7[%c1_102, %c0_103, %c0_104] : memref<18x24x128xbf16, #tpu.memory_space<vmem>>, vector<16x16x128xbf16>
    %91 = vector.shape_cast %90 : vector<16x16x128xbf16> to vector<256x128xbf16>
    %c3_105 = arith.constant 3 : index
    %c0_106 = arith.constant 0 : index
    %c0_107 = arith.constant 0 : index
    %92 = vector.load %arg4[%c3_105, %c0_106, %c0_107] : memref<9x128x128xbf16, #tpu.memory_space<vmem>>, vector<1x128x128xbf16>
    %93 = vector.shape_cast %92 : vector<1x128x128xbf16> to vector<128x128xbf16>
    %cst_108 = arith.constant dense<0.000000e+00> : vector<256x128xf32>
    %94 = tpu.matmul %91, %93, %cst_108 {dimension_numbers = #tpu.dot_dimension_numbers<[1], [0], [0], [1], [0, 0, 1, 1], [], []>} : vector<256x128xbf16>, vector<128x128xbf16>, vector<256x128xf32> -> vector<256x128xf32>
    %95 = arith.addf %89, %94 : vector<256x128xf32>
    %c1_109 = arith.constant 1 : index
    %c1_110 = arith.constant 1 : index
    %c0_111 = arith.constant 0 : index
    %96 = vector.load %arg7[%c1_109, %c1_110, %c0_111] : memref<18x24x128xbf16, #tpu.memory_space<vmem>>, vector<16x16x128xbf16>
    %97 = vector.shape_cast %96 : vector<16x16x128xbf16> to vector<256x128xbf16>
    %c4_112 = arith.constant 4 : index
    %c0_113 = arith.constant 0 : index
    %c0_114 = arith.constant 0 : index
    %98 = vector.load %arg4[%c4_112, %c0_113, %c0_114] : memref<9x128x128xbf16, #tpu.memory_space<vmem>>, vector<1x128x128xbf16>
    %99 = vector.shape_cast %98 : vector<1x128x128xbf16> to vector<128x128xbf16>
    %cst_115 = arith.constant dense<0.000000e+00> : vector<256x128xf32>
    %100 = tpu.matmul %97, %99, %cst_115 {dimension_numbers = #tpu.dot_dimension_numbers<[1], [0], [0], [1], [0, 0, 1, 1], [], []>} : vector<256x128xbf16>, vector<128x128xbf16>, vector<256x128xf32> -> vector<256x128xf32>
    %101 = arith.addf %95, %100 : vector<256x128xf32>
    %c1_116 = arith.constant 1 : index
    %c2_117 = arith.constant 2 : index
    %c0_118 = arith.constant 0 : index
    %102 = vector.load %arg7[%c1_116, %c2_117, %c0_118] : memref<18x24x128xbf16, #tpu.memory_space<vmem>>, vector<16x16x128xbf16>
    %103 = vector.shape_cast %102 : vector<16x16x128xbf16> to vector<256x128xbf16>
    %c5_119 = arith.constant 5 : index
    %c0_120 = arith.constant 0 : index
    %c0_121 = arith.constant 0 : index
    %104 = vector.load %arg4[%c5_119, %c0_120, %c0_121] : memref<9x128x128xbf16, #tpu.memory_space<vmem>>, vector<1x128x128xbf16>
    %105 = vector.shape_cast %104 : vector<1x128x128xbf16> to vector<128x128xbf16>
    %cst_122 = arith.constant dense<0.000000e+00> : vector<256x128xf32>
    %106 = tpu.matmul %103, %105, %cst_122 {dimension_numbers = #tpu.dot_dimension_numbers<[1], [0], [0], [1], [0, 0, 1, 1], [], []>} : vector<256x128xbf16>, vector<128x128xbf16>, vector<256x128xf32> -> vector<256x128xf32>
    %107 = arith.addf %101, %106 : vector<256x128xf32>
    %c2_123 = arith.constant 2 : index
    %c0_124 = arith.constant 0 : index
    %c0_125 = arith.constant 0 : index
    %108 = vector.load %arg7[%c2_123, %c0_124, %c0_125] : memref<18x24x128xbf16, #tpu.memory_space<vmem>>, vector<16x16x128xbf16>
    %109 = vector.shape_cast %108 : vector<16x16x128xbf16> to vector<256x128xbf16>
    %c6_126 = arith.constant 6 : index
    %c0_127 = arith.constant 0 : index
    %c0_128 = arith.constant 0 : index
    %110 = vector.load %arg4[%c6_126, %c0_127, %c0_128] : memref<9x128x128xbf16, #tpu.memory_space<vmem>>, vector<1x128x128xbf16>
    %111 = vector.shape_cast %110 : vector<1x128x128xbf16> to vector<128x128xbf16>
    %cst_129 = arith.constant dense<0.000000e+00> : vector<256x128xf32>
    %112 = tpu.matmul %109, %111, %cst_129 {dimension_numbers = #tpu.dot_dimension_numbers<[1], [0], [0], [1], [0, 0, 1, 1], [], []>} : vector<256x128xbf16>, vector<128x128xbf16>, vector<256x128xf32> -> vector<256x128xf32>
    %113 = arith.addf %107, %112 : vector<256x128xf32>
    %c2_130 = arith.constant 2 : index
    %c1_131 = arith.constant 1 : index
    %c0_132 = arith.constant 0 : index
    %114 = vector.load %arg7[%c2_130, %c1_131, %c0_132] : memref<18x24x128xbf16, #tpu.memory_space<vmem>>, vector<16x16x128xbf16>
    %115 = vector.shape_cast %114 : vector<16x16x128xbf16> to vector<256x128xbf16>
    %c7_133 = arith.constant 7 : index
    %c0_134 = arith.constant 0 : index
    %c0_135 = arith.constant 0 : index
    %116 = vector.load %arg4[%c7_133, %c0_134, %c0_135] : memref<9x128x128xbf16, #tpu.memory_space<vmem>>, vector<1x128x128xbf16>
    %117 = vector.shape_cast %116 : vector<1x128x128xbf16> to vector<128x128xbf16>
    %cst_136 = arith.constant dense<0.000000e+00> : vector<256x128xf32>
    %118 = tpu.matmul %115, %117, %cst_136 {dimension_numbers = #tpu.dot_dimension_numbers<[1], [0], [0], [1], [0, 0, 1, 1], [], []>} : vector<256x128xbf16>, vector<128x128xbf16>, vector<256x128xf32> -> vector<256x128xf32>
    %119 = arith.addf %113, %118 : vector<256x128xf32>
    %c2_137 = arith.constant 2 : index
    %c2_138 = arith.constant 2 : index
    %c0_139 = arith.constant 0 : index
    %120 = vector.load %arg7[%c2_137, %c2_138, %c0_139] : memref<18x24x128xbf16, #tpu.memory_space<vmem>>, vector<16x16x128xbf16>
    %121 = vector.shape_cast %120 : vector<16x16x128xbf16> to vector<256x128xbf16>
    %c8_140 = arith.constant 8 : index
    %c0_141 = arith.constant 0 : index
    %c0_142 = arith.constant 0 : index
    %122 = vector.load %arg4[%c8_140, %c0_141, %c0_142] : memref<9x128x128xbf16, #tpu.memory_space<vmem>>, vector<1x128x128xbf16>
    %123 = vector.shape_cast %122 : vector<1x128x128xbf16> to vector<128x128xbf16>
    %cst_143 = arith.constant dense<0.000000e+00> : vector<256x128xf32>
    %124 = tpu.matmul %121, %123, %cst_143 {dimension_numbers = #tpu.dot_dimension_numbers<[1], [0], [0], [1], [0, 0, 1, 1], [], []>} : vector<256x128xbf16>, vector<128x128xbf16>, vector<256x128xf32> -> vector<256x128xf32>
    %125 = arith.addf %119, %124 : vector<256x128xf32>
    %c0_144 = arith.constant 0 : index
    %c0_145 = arith.constant 0 : index
    %126 = vector.load %arg5[%c0_144, %c0_145] : memref<1x128xf32, #tpu.memory_space<vmem>>, vector<1x128xf32>
    %127 = vector.broadcast %126 : vector<1x128xf32> to vector<256x128xf32>
    %128 = arith.addf %125, %127 : vector<256x128xf32>
    %c0_146 = arith.constant 0 : index
    %c0_147 = arith.constant 0 : index
    %c0_148 = arith.constant 0 : index
    %c0_149 = arith.constant 0 : index
    %129 = vector.load %arg1[%c0_146, %c0_147, %c0_148, %c0_149] : memref<1x16x16x128xf32, #tpu.memory_space<vmem>>, vector<1x16x16x128xf32>
    %130 = vector.shape_cast %129 : vector<1x16x16x128xf32> to vector<16x16x128xf32>
    %131 = vector.shape_cast %130 : vector<16x16x128xf32> to vector<256x128xf32>
    %132 = arith.addf %128, %131 : vector<256x128xf32>
    %cst_150 = arith.constant 0.000000e+00 : f32
    %133 = vector.broadcast %cst_150 : f32 to vector<256x128xf32>
    %134 = arith.maximumf %132, %133 : vector<256x128xf32>
    %135 = vector.shape_cast %134 : vector<256x128xf32> to vector<1x16x16x128xf32>
    %c0_151 = arith.constant 0 : index
    %c0_152 = arith.constant 0 : index
    %c0_153 = arith.constant 0 : index
    %c0_154 = arith.constant 0 : index
    %136 = vector.load %arg6[%c0_151, %c0_152, %c0_153, %c0_154] : memref<1x16x16x128xf32, #tpu.memory_space<vmem>>, vector<1x16x16x128xf32>
    tpu.vector_store %arg6[%c0_151, %c0_152, %c0_153, %c0_154], %135 {strides = array<i32>} : memref<1x16x16x128xf32, #tpu.memory_space<vmem>>, vector<1x16x16x128xf32>,
    return
  }
  func.func @transform_0(%arg0: i32) -> (i32, i32, i32, i32) {
    %c0_i32 = arith.constant 0 : i32
    %c0_i32_0 = arith.constant 0 : i32
    %c0_i32_1 = arith.constant 0 : i32
    %c0_i32_2 = arith.constant 0 : i32
    return %arg0, %c0_i32, %c0_i32_0, %c0_i32_1 : i32, i32, i32, i32
  }
  func.func @transform_1(%arg0: i32) -> (i32, i32, i32) {
    %c0_i32 = arith.constant 0 : i32
    %c0_i32_0 = arith.constant 0 : i32
    %c0_i32_1 = arith.constant 0 : i32
    %c0_i32_2 = arith.constant 0 : i32
    return %c0_i32, %c0_i32_0, %c0_i32_1 : i32, i32, i32
  }
  func.func @transform_2(%arg0: i32) -> (i32, i32) {
    %c0_i32 = arith.constant 0 : i32
    %c0_i32_0 = arith.constant 0 : i32
    %c0_i32_1 = arith.constant 0 : i32
    return %c0_i32, %c0_i32_0 : i32, i32
  }
  func.func @transform_3(%arg0: i32) -> (i32, i32, i32) {
    %c0_i32 = arith.constant 0 : i32
    %c0_i32_0 = arith.constant 0 : i32
    %c0_i32_1 = arith.constant 0 : i32
    %c0_i32_2 = arith.constant 0 : i32
    return %c0_i32, %c0_i32_0, %c0_i32_1 : i32, i32, i32
  }
  func.func @transform_4(%arg0: i32) -> (i32, i32) {
    %c0_i32 = arith.constant 0 : i32
    %c0_i32_0 = arith.constant 0 : i32
    %c0_i32_1 = arith.constant 0 : i32
    return %c0_i32, %c0_i32_0 : i32, i32
  }
  func.func @transform_5(%arg0: i32) -> (i32, i32, i32, i32) {
    %c0_i32 = arith.constant 0 : i32
    %c0_i32_0 = arith.constant 0 : i32
    %c0_i32_1 = arith.constant 0 : i32
    %c0_i32_2 = arith.constant 0 : i32
    return %arg0, %c0_i32, %c0_i32_0, %c0_i32_1 : i32, i32, i32, i32
  }
}

</mosaic_0001>

<llo_original>
// kernel: tpu_custom_call.1
$region0: #{tpu_custom_call.1}
  #allocation0 [shape = 'u32[]', space=smem, size = 0x4, offset = 0x4, fixed_abs, tag = 'smem constant byte address 0x4 - core index']
  #allocation1 [shape = 'u32[72,128]{1,0:T(1,128)}', space=vmem, size = 0x9000, scoped, tag = 'internal scratch']
  #allocation2 [shape = 'bf16[18,24,128]{2,1,0:T(8,128)(2,1)}', space=vmem, size = 0x1b000, scoped, tag = 'scratch operand']
  %s0 = inlined_call_operand.hbm [shape: f32[2,16,16,128], index: 0, kind: input, shape index: {}]
  %s1 = inlined_call_operand.hbm [shape: bf16[9,128,128], index: 1, kind: input, shape index: {}]
  %s2 = inlined_call_operand.vmem [shape: f32[1,128], index: 2, kind: input, shape index: {}]
  %s3 = inlined_call_operand.hbm [shape: bf16[9,128,128], index: 3, kind: input, shape index: {}]
  %s4 = inlined_call_operand.vmem [shape: f32[1,128], index: 4, kind: input, shape index: {}]
  %s5 = inlined_call_operand.hbm [shape: f32[2,16,16,128], index: 5, kind: output, shape index: {}]
  %s6 = sld [smem:[#allocation0]]
  $region65: #{tpu_custom_call.1} parent=0
    _
  %s8 = ssub.s32 1, %s6
  %s9 = scalar_select 0, %s8, %s6
  $region1: #{tpu_custom_call.1} parent=0
    #allocation3 [shape = 'u8[262144]{0}', space=vmem, size = 0x40000, scoped, tag = 'input window, operand 0']
    #allocation4 [shape = 's32[2]{0}', space=sflag, size = 0x8, scoped, tag = 'scoped memory for tpu_custom_call.1']
    #allocation5 [shape = 's32[2]{0}', space=sflag, size = 0x8, scoped, tag = 'scoped memory for tpu_custom_call.1']
    #allocation6 [shape = 'u8[294912]{0}', space=vmem, size = 0x48000, scoped, tag = 'input window, operand 1, single buffered']
    #allocation7 [shape = 's32[1]{0}', space=sflag, size = 0x4, scoped, tag = 'scoped memory for tpu_custom_call.1']
    #allocation8 [shape = 'u8[294912]{0}', space=vmem, size = 0x48000, scoped, tag = 'input window, operand 3, single buffered']
    #allocation9 [shape = 'u8[262144]{0}', space=vmem, size = 0x40000, scoped, tag = 'output window, operand 0']
    %10 = vsyncpa [#allocation4], 0
    %s11 = scalar_lea.sflag [#allocation4], 1
    %12 = vsyncpa %s11, 0
    %13 = vsyncpa [#allocation7], 0
    %14 = vsyncpa [#allocation5], 0
    %s15 = scalar_lea.sflag [#allocation5], 1
    %16 = vsyncpa %s15, 0
    loop: start=0, step=1, limit=4
    $region2: #{tpu_custom_call.1} parent=1 // loop_pre_header
      _
    $region3: #{tpu_custom_call.1} parent=1 // loop_header
      %s18 = sphi 0, %s22
      %p19 = scmp.ge.s32.totalorder %s18, 4
      %s28 = sphi 0, %s30
      %s31 = sphi 0, %s28
      %s32 = sphi 0, %s31
      %s48 = sphi 0, %s32
      %s52 = sphi 0, %s52
      %s54 = sphi 0, %s52
      %s55 = sphi 0, %s54
      %s69 = sphi 0, %s55
      %s73 = sphi 0, %s73
      %s75 = sphi 0, %s73
      %s76 = sphi 0, %s75
      %s90 = sphi 0, %s76
      %s94 = sphi 0, %s94
      %s96 = sphi 0, %s94
      %s97 = sphi 0, %s96
      %s111 = sphi 0, %s97
      %s115 = sphi 0, %s115
      %s117 = sphi 0, %s115
      %s118 = sphi 0, %s117
      %s132 = sphi 0, %s118
      %s138 = sphi 0, %s140
      %s141 = sphi 0, %s138
      %s142 = sphi 0, %s141
      %s158 = sphi 0, %s142
    $region4: #{tpu_custom_call.1} parent=1 // loop_header_branch
      %21 = sbr.rel (%p19) target = $region8
    $region5: #{tpu_custom_call.1} parent=1 // loop_body
      %s23 = ssub.s32 %s18, 1
      %s24 = ssub.s32 %s18, 2
      %s25 = sadd.s32 %s18, 1
      %s26 = ssub.s32 %s18, %s25
      %p27 = scmp.eq.s32.totalorder %s26, 0
      %s29 = sadd.s32 %s28, 1
      %s30 = scalar_select %p27, %s28, %s29
      %p33 = pneg %p27
      %p34 = scmp.eq.s32.totalorder %s18, 1
      %p35 = por %p33, %p34
      %p36 = scmp.ne.s32.totalorder %s28, %s31
      %p37 = scmp.eq.s32.totalorder %s18, 0
      %p38 = por %p36, %p37
      %p39 = scmp.ne.s32.totalorder %s28, %s31
      %p40 = scmp.eq.s32.totalorder %s23, 1
      %p41 = por %p39, %p40
      %p42 = scmp.ne.s32.totalorder %s31, %s32
      %p43 = scmp.eq.s32.totalorder %s23, 0
      %p44 = por %p42, %p43
      %p45 = scmp.ne.s32.totalorder %s31, %s32
      %p46 = scmp.eq.s32.totalorder %s24, 1
      %p47 = por %p45, %p46
      %p49 = scmp.ne.s32.totalorder %s32, %s48
      %p50 = scmp.eq.s32.totalorder %s24, 0
      %p51 = por %p49, %p50
      %s53 = sadd.s32 %s52, 1
      %p56 = scmp.eq.s32.totalorder %s18, 1
      %p57 = scmp.ne.s32.totalorder %s52, %s54
      %p58 = scmp.eq.s32.totalorder %s18, 0
      %p59 = por %p57, %p58
      %p60 = scmp.ne.s32.totalorder %s52, %s54
      %p61 = scmp.eq.s32.totalorder %s23, 1
      %p62 = por %p60, %p61
      %p63 = scmp.ne.s32.totalorder %s54, %s55
      %p64 = scmp.eq.s32.totalorder %s23, 0
      %p65 = por %p63, %p64
      %p66 = scmp.ne.s32.totalorder %s54, %s55
      %p67 = scmp.eq.s32.totalorder %s24, 1
      %p68 = por %p66, %p67
      %p70 = scmp.ne.s32.totalorder %s55, %s69
      %p71 = scmp.eq.s32.totalorder %s24, 0
      %p72 = por %p70, %p71
      %s74 = sadd.s32 %s73, 1
      %p77 = scmp.eq.s32.totalorder %s18, 1
      %p78 = scmp.ne.s32.totalorder %s73, %s75
      %p79 = scmp.eq.s32.totalorder %s18, 0
      %p80 = por %p78, %p79
      %p81 = scmp.ne.s32.totalorder %s73, %s75
      %p82 = scmp.eq.s32.totalorder %s23, 1
      %p83 = por %p81, %p82
      %p84 = scmp.ne.s32.totalorder %s75, %s76
      %p85 = scmp.eq.s32.totalorder %s23, 0
      %p86 = por %p84, %p85
      %p87 = scmp.ne.s32.totalorder %s75, %s76
      %p88 = scmp.eq.s32.totalorder %s24, 1
      %p89 = por %p87, %p88
      %p91 = scmp.ne.s32.totalorder %s76, %s90
      %p92 = scmp.eq.s32.totalorder %s24, 0
      %p93 = por %p91, %p92
      %s95 = sadd.s32 %s94, 1
      %p98 = scmp.eq.s32.totalorder %s18, 1
      %p99 = scmp.ne.s32.totalorder %s94, %s96
      %p100 = scmp.eq.s32.totalorder %s18, 0
      %p101 = por %p99, %p100
      %p102 = scmp.ne.s32.totalorder %s94, %s96
      %p103 = scmp.eq.s32.totalorder %s23, 1
      %p104 = por %p102, %p103
      %p105 = scmp.ne.s32.totalorder %s96, %s97
      %p106 = scmp.eq.s32.totalorder %s23, 0
      %p107 = por %p105, %p106
      %p108 = scmp.ne.s32.totalorder %s96, %s97
      %p109 = scmp.eq.s32.totalorder %s24, 1
      %p110 = por %p108, %p109
      %p112 = scmp.ne.s32.totalorder %s97, %s111
      %p113 = scmp.eq.s32.totalorder %s24, 0
      %p114 = por %p112, %p113
      %s116 = sadd.s32 %s115, 1
      %p119 = scmp.eq.s32.totalorder %s18, 1
      %p120 = scmp.ne.s32.totalorder %s115, %s117
      %p121 = scmp.eq.s32.totalorder %s18, 0
      %p122 = por %p120, %p121
      %p123 = scmp.ne.s32.totalorder %s115, %s117
      %p124 = scmp.eq.s32.totalorder %s23, 1
      %p125 = por %p123, %p124
      %p126 = scmp.ne.s32.totalorder %s117, %s118
      %p127 = scmp.eq.s32.totalorder %s23, 0
      %p128 = por %p126, %p127
      %p129 = scmp.ne.s32.totalorder %s117, %s118
      %p130 = scmp.eq.s32.totalorder %s24, 1
      %p131 = por %p129, %p130
      %p133 = scmp.ne.s32.totalorder %s118, %s132
      %p134 = scmp.eq.s32.totalorder %s24, 0
      %p135 = por %p133, %p134
      %s136 = ssub.s32 %s18, %s25
      %p137 = scmp.eq.s32.totalorder %s136, 0
      %s139 = sadd.s32 %s138, 1
      %s140 = scalar_select %p137, %s138, %s139
      %p143 = pneg %p137
      %p144 = scmp.eq.s32.totalorder %s18, 1
      %p145 = por %p143, %p144
      %p146 = scmp.ne.s32.totalorder %s138, %s141
      %p147 = scmp.eq.s32.totalorder %s18, 0
      %p148 = por %p146, %p147
      %p149 = scmp.ne.s32.totalorder %s138, %s141
      %p150 = scmp.eq.s32.totalorder %s23, 1
      %p151 = por %p149, %p150
      %p152 = scmp.ne.s32.totalorder %s141, %s142
      %p153 = scmp.eq.s32.totalorder %s23, 0
      %p154 = por %p152, %p153
      %p155 = scmp.ne.s32.totalorder %s141, %s142
      %p156 = scmp.eq.s32.totalorder %s24, 1
      %p157 = por %p155, %p156
      %p159 = scmp.ne.s32.totalorder %s142, %s158
      %p160 = scmp.eq.s32.totalorder %s24, 0
      %p161 = por %p159, %p160
      %p162 = scmp.le.s32.totalorder 1, %s18
      %p163 = scmp.lt.s32.totalorder %s18, 3
      %p164 = pnand %p162, %p163
      %p165 = pneg %p164
      // Predicated region
      $region9: #{tpu_custom_call.1} parent=5 // pred_check
        _
      $region10: #{tpu_custom_call.1} parent=5 // pred_check_branch
        %167 = sbr.rel (%p164) target = $region12
      $region11: #{tpu_custom_call.1} parent=5 // pred_region
        %s168 = ssub.s32 %s18, 1
        // Predicated region
        $region13: #{tpu_custom_call.1} parent=11 // pred_check
          %p169 = pneg %p65
        $region14: #{tpu_custom_call.1} parent=11 // pred_check_branch
          %171 = sbr.rel (%p169) target = $region16
        $region15: #{tpu_custom_call.1} parent=11 // pred_region
          %173 = vsyncadd [#allocation7], 0
          %s174 = sshll.u32 %s1, 4
          %s175 = int_to_ptr.hbm [resolvable:$true] %s174
          %s176 = sshll.u32 [#allocation6], 4
          %s177 = int_to_ptr.vmem [resolvable:$true] %s176
          %182 = dma.hbm_to_vmem [thread:$0]  %s175, 9216, %s177, [#allocation7], 64, 64, 4
        $region16: #{tpu_custom_call.1} parent=11 // pred_fallthru
          _
        // Predicated region
        $region17: #{tpu_custom_call.1} parent=11 // pred_check
          %p183 = pneg %p86
        $region18: #{tpu_custom_call.1} parent=11 // pred_check_branch
          %185 = sbr.rel (%p183) target = $region20
        $region19: #{tpu_custom_call.1} parent=11 // pred_region
          _
        $region20: #{tpu_custom_call.1} parent=11 // pred_fallthru
          _
        // Predicated region
        $region21: #{tpu_custom_call.1} parent=11 // pred_check
          %p186 = pneg %p107
        $region22: #{tpu_custom_call.1} parent=11 // pred_check_branch
          %188 = sbr.rel (%p186) target = $region24
        $region23: #{tpu_custom_call.1} parent=11 // pred_region
          %190 = vsyncadd [#allocation7], 0
          %s191 = sshll.u32 %s3, 4
          %s192 = int_to_ptr.hbm [resolvable:$true] %s191
          %s193 = sshll.u32 [#allocation8], 4
          %s194 = int_to_ptr.vmem [resolvable:$true] %s193
          %199 = dma.hbm_to_vmem [thread:$0]  %s192, 9216, %s194, [#allocation7], 64, 64, 4
        $region24: #{tpu_custom_call.1} parent=11 // pred_fallthru
          _
        // Predicated region
        $region25: #{tpu_custom_call.1} parent=11 // pred_check
          %p200 = pneg %p128
        $region26: #{tpu_custom_call.1} parent=11 // pred_check_branch
          %202 = sbr.rel (%p200) target = $region28
        $region27: #{tpu_custom_call.1} parent=11 // pred_region
          _
        $region28: #{tpu_custom_call.1} parent=11 // pred_fallthru
          _
      $region12: #{tpu_custom_call.1} parent=5 // pred_fallthru
        _
      %p203 = scmp.lt.s32.totalorder %s18, 2
      // Predicated region
      $region29: #{tpu_custom_call.1} parent=5 // pred_check
        %p204 = pneg %p203
      $region30: #{tpu_custom_call.1} parent=5 // pred_check_branch
        %206 = sbr.rel (%p204) target = $region32
      $region31: #{tpu_custom_call.1} parent=5 // pred_region
        // Predicated region
        $region33: #{tpu_custom_call.1} parent=31 // pred_check
          %p207 = pneg %p38
        $region34: #{tpu_custom_call.1} parent=31 // pred_check_branch
          %209 = sbr.rel (%p207) target = $region36
        $region35: #{tpu_custom_call.1} parent=31 // pred_region
          %s210 = sand.u32 %s28, 1
          %s211 = scalar_lea.sflag [#allocation4], %s210
          %s212 = sand.u32 %s28, 1
          %s213 = smul.addr %s212, 256
          %s214 = scalar_lea.vmem [#allocation3], %s213
          %216 = vsyncadd %s211, 0
          %s217 = smul.addr %s18, 32
          %s218 = smul.addr %s217, 8
          %s219 = scalar_lea.hbm %s0, %s218
          %s220 = sshll.u32 %s219, 4
          %s221 = int_to_ptr.hbm [resolvable:$true] %s220
          %s222 = sshll.u32 %s214, 4
          %s223 = int_to_ptr.vmem [resolvable:$true] %s222
          %228 = dma.hbm_to_vmem [thread:$0]  %s221, 4096, %s223, %s211, 128, 128, 8
        $region36: #{tpu_custom_call.1} parent=31 // pred_fallthru
          _
      $region32: #{tpu_custom_call.1} parent=5 // pred_fallthru
        _
      %p229 = scmp.le.s32.totalorder 1, %s18
      %p230 = scmp.lt.s32.totalorder %s18, 3
      %p231 = pnand %p229, %p230
      %p232 = pneg %p231
      // Predicated region
      $region37: #{tpu_custom_call.1} parent=5 // pred_check
        _
      $region38: #{tpu_custom_call.1} parent=5 // pred_check_branch
        %234 = sbr.rel (%p231) target = $region40
      $region39: #{tpu_custom_call.1} parent=5 // pred_region
        %s235 = ssub.s32 %s18, 1
        %s236 = sand.u32 %s31, 1
        %s237 = scalar_lea.sflag [#allocation4], %s236
        %s238 = sand.u32 %s31, 1
        %s239 = smul.addr %s238, 256
        %s240 = scalar_lea.vmem [#allocation3], %s239
        // Predicated region
        $region41: #{tpu_custom_call.1} parent=39 // pred_check
          %p241 = pneg %p44
        $region42: #{tpu_custom_call.1} parent=39 // pred_check_branch
          %243 = sbr.rel (%p241) target = $region44
        $region43: #{tpu_custom_call.1} parent=39 // pred_region
          %245 = dma.done %s237, 4096
        $region44: #{tpu_custom_call.1} parent=39 // pred_fallthru
          _
        // Predicated region
        $region45: #{tpu_custom_call.1} parent=39 // pred_check
          %p246 = pneg %p65
        $region46: #{tpu_custom_call.1} parent=39 // pred_check_branch
          %248 = sbr.rel (%p246) target = $region48
        $region47: #{tpu_custom_call.1} parent=39 // pred_region
          %250 = dma.done [#allocation7], 9216
        $region48: #{tpu_custom_call.1} parent=39 // pred_fallthru
          _
        // Predicated region
        $region49: #{tpu_custom_call.1} parent=39 // pred_check
          %p251 = pneg %p107
        $region50: #{tpu_custom_call.1} parent=39 // pred_check_branch
          %253 = sbr.rel (%p251) target = $region52
        $region51: #{tpu_custom_call.1} parent=39 // pred_region
          %255 = dma.done [#allocation7], 9216
        $region52: #{tpu_custom_call.1} parent=39 // pred_fallthru
          _
        %s256 = sand.u32 %s31, 1
        %s257 = scalar_lea.sflag [#allocation4], %s256
        %s258 = sand.u32 %s31, 1
        %s259 = smul.addr %s258, 256
        %s260 = scalar_lea.vmem [#allocation3], %s259
        %p261 = pneg %p44
        %p262 = pneg %p41
        %p263 = pneg %p65
        %p264 = pneg %p62
        %p265 = pneg %p86
        %p266 = pneg %p83
        %p267 = pneg %p107
        %p268 = pneg %p104
        %p269 = pneg %p128
        %p270 = pneg %p125
        %p271 = pneg %p154
        %p272 = pneg %p151
        %s273 = sand.u32 %s141, 1
        %s274 = scalar_lea.sflag [#allocation5], %s273
        %s275 = sand.u32 %s141, 1
        %s276 = smul.addr %s275, 256
        %s277 = scalar_lea.vmem [#allocation9], %s276
        %279 = vst [vmem:[#allocation2] sm:$0xf] 0
        %280 = vst [vmem:[#allocation2 + $0x4] sm:$0xf] 0
        %281 = vst [vmem:[#allocation2 + $0x8] sm:$0xf] 0
        %s282 = scalar_lea.vmem [#allocation2], 204
        %283 = vst [vmem:[%s282] sm:$0xf] 0
        %284 = vst [vmem:[%s282 + $0x4] sm:$0xf] 0
        %285 = vst [vmem:[%s282 + $0x8] sm:$0xf] 0
        %vm286 = vcmask 1040384
        %vm287 = vsmask.f32 256
        %vm288 = vmand %vm286, %vm287
        %v289 = vld [vmem:[#allocation2] sm:$0x1]
        %v290 = vsel %vm288, 0, %v289
        %291 = vst [vmem:[#allocation2] sm:$0x1] %v290
        %v292 = vld [vmem:[#allocation2 + $0xc] sm:$0x1]
        %v293 = vsel %vm288, 0, %v292
        %294 = vst [vmem:[#allocation2 + $0xc] sm:$0x1] %v293
        %v295 = vld [vmem:[#allocation2 + $0x18] sm:$0x1]
        %v296 = vsel %vm288, 0, %v295
        %297 = vst [vmem:[#allocation2 + $0x18] sm:$0x1] %v296
        %v298 = vld [vmem:[#allocation2 + $0x24] sm:$0x1]
        %v299 = vsel %vm288, 0, %v298
        %300 = vst [vmem:[#allocation2 + $0x24] sm:$0x1] %v299
        %v301 = vld [vmem:[#allocation2 + $0x30] sm:$0x1]
        %v302 = vsel %vm288, 0, %v301
        %303 = vst [vmem:[#allocation2 + $0x30] sm:$0x1] %v302
        %v304 = vld [vmem:[#allocation2 + $0x3c] sm:$0x1]
        %v305 = vsel %vm288, 0, %v304
        %306 = vst [vmem:[#allocation2 + $0x3c] sm:$0x1] %v305
        %v307 = vld [vmem:[#allocation2 + $0x48] sm:$0x1]
        %v308 = vsel %vm288, 0, %v307
        %309 = vst [vmem:[#allocation2 + $0x48] sm:$0x1] %v308
        %v310 = vld [vmem:[#allocation2 + $0x54] sm:$0x1]
        %v311 = vsel %vm288, 0, %v310
        %312 = vst [vmem:[#allocation2 + $0x54] sm:$0x1] %v311
        %v313 = vld [vmem:[#allocation2 + $0x60] sm:$0x1]
        %v314 = vsel %vm288, 0, %v313
        %315 = vst [vmem:[#allocation2 + $0x60] sm:$0x1] %v314
        %v316 = vld [vmem:[#allocation2 + $0x6c] sm:$0x1]
        %v317 = vsel %vm288, 0, %v316
        %318 = vst [vmem:[#allocation2 + $0x6c] sm:$0x1] %v317
        %v319 = vld [vmem:[#allocation2 + $0x78] sm:$0x1]
        %v320 = vsel %vm288, 0, %v319
        %321 = vst [vmem:[#allocation2 + $0x78] sm:$0x1] %v320
        %v322 = vld [vmem:[#allocation2 + $0x84] sm:$0x1]
        %v323 = vsel %vm288, 0, %v322
        %324 = vst [vmem:[#allocation2 + $0x84] sm:$0x1] %v323
        %v325 = vld [vmem:[#allocation2 + $0x90] sm:$0x1]
        %v326 = vsel %vm288, 0, %v325
        %327 = vst [vmem:[#allocation2 + $0x90] sm:$0x1] %v326
        %v328 = vld [vmem:[#allocation2 + $0x9c] sm:$0x1]
        %v329 = vsel %vm288, 0, %v328
        %330 = vst [vmem:[#allocation2 + $0x9c] sm:$0x1] %v329
        %v331 = vld [vmem:[#allocation2 + $0xa8] sm:$0x1]
        %v332 = vsel %vm288, 0, %v331
        %333 = vst [vmem:[#allocation2 + $0xa8] sm:$0x1] %v332
        %v334 = vld [vmem:[#allocation2 + $0xb4] sm:$0x1]
        %v335 = vsel %vm288, 0, %v334
        %336 = vst [vmem:[#allocation2 + $0xb4] sm:$0x1] %v335
        %v337 = vld [vmem:[#allocation2 + $0xc0] sm:$0x1]
        %v338 = vsel %vm288, 0, %v337
        %339 = vst [vmem:[#allocation2 + $0xc0] sm:$0x1] %v338
        %v340 = vld [vmem:[#allocation2 + $0xcc] sm:$0x1]
        %v341 = vsel %vm288, 0, %v340
        %342 = vst [vmem:[#allocation2 + $0xcc] sm:$0x1] %v341
        %vm343 = vsmask.f32 7938
        %vm344 = vmand %vm286, %vm343
        %v345 = vld [vmem:[#allocation2 + $0x8] sm:$0x1]
        %v346 = vsel %vm344, 0, %v345
        %347 = vst [vmem:[#allocation2 + $0x8] sm:$0x1] %v346
        %v348 = vld [vmem:[#allocation2 + $0x14] sm:$0x1]
        %v349 = vsel %vm344, 0, %v348
        %350 = vst [vmem:[#allocation2 + $0x14] sm:$0x1] %v349
        %v351 = vld [vmem:[#allocation2 + $0x20] sm:$0x1]
        %v352 = vsel %vm344, 0, %v351
        %353 = vst [vmem:[#allocation2 + $0x20] sm:$0x1] %v352
        %v354 = vld [vmem:[#allocation2 + $0x2c] sm:$0x1]
        %v355 = vsel %vm344, 0, %v354
        %356 = vst [vmem:[#allocation2 + $0x2c] sm:$0x1] %v355
        %v357 = vld [vmem:[#allocation2 + $0x38] sm:$0x1]
        %v358 = vsel %vm344, 0, %v357
        %359 = vst [vmem:[#allocation2 + $0x38] sm:$0x1] %v358
        %v360 = vld [vmem:[#allocation2 + $0x44] sm:$0x1]
        %v361 = vsel %vm344, 0, %v360
        %362 = vst [vmem:[#allocation2 + $0x44] sm:$0x1] %v361
        %v363 = vld [vmem:[#allocation2 + $0x50] sm:$0x1]
        %v364 = vsel %vm344, 0, %v363
        %365 = vst [vmem:[#allocation2 + $0x50] sm:$0x1] %v364
        %v366 = vld [vmem:[#allocation2 + $0x5c] sm:$0x1]
        %v367 = vsel %vm344, 0, %v366
        %368 = vst [vmem:[#allocation2 + $0x5c] sm:$0x1] %v367
        %v369 = vld [vmem:[#allocation2 + $0x68] sm:$0x1]
        %v370 = vsel %vm344, 0, %v369
        %371 = vst [vmem:[#allocation2 + $0x68] sm:$0x1] %v370
        %v372 = vld [vmem:[#allocation2 + $0x74] sm:$0x1]
        %v373 = vsel %vm344, 0, %v372
        %374 = vst [vmem:[#allocation2 + $0x74] sm:$0x1] %v373
        %v375 = vld [vmem:[#allocation2 + $0x80] sm:$0x1]
        %v376 = vsel %vm344, 0, %v375
        %377 = vst [vmem:[#allocation2 + $0x80] sm:$0x1] %v376
        %v378 = vld [vmem:[#allocation2 + $0x8c] sm:$0x1]
        %v379 = vsel %vm344, 0, %v378
        %380 = vst [vmem:[#allocation2 + $0x8c] sm:$0x1] %v379
        %v381 = vld [vmem:[#allocation2 + $0x98] sm:$0x1]
        %v382 = vsel %vm344, 0, %v381
        %383 = vst [vmem:[#allocation2 + $0x98] sm:$0x1] %v382
        %v384 = vld [vmem:[#allocation2 + $0xa4] sm:$0x1]
        %v385 = vsel %vm344, 0, %v384
        %386 = vst [vmem:[#allocation2 + $0xa4] sm:$0x1] %v385
        %v387 = vld [vmem:[#allocation2 + $0xb0] sm:$0x1]
        %v388 = vsel %vm344, 0, %v387
        %389 = vst [vmem:[#allocation2 + $0xb0] sm:$0x1] %v388
        %v390 = vld [vmem:[#allocation2 + $0xbc] sm:$0x1]
        %v391 = vsel %vm344, 0, %v390
        %392 = vst [vmem:[#allocation2 + $0xbc] sm:$0x1] %v391
        %v393 = vld [vmem:[#allocation2 + $0xc8] sm:$0x1]
        %v394 = vsel %vm344, 0, %v393
        %395 = vst [vmem:[#allocation2 + $0xc8] sm:$0x1] %v394
        %v396 = vld [vmem:[#allocation2 + $0xd4] sm:$0x1]
        %v397 = vsel %vm344, 0, %v396
        %398 = vst [vmem:[#allocation2 + $0xd4] sm:$0x1] %v397
        %v399 = vld [vmem:[%s240] sm:$0xff]
        %v400 = vld [vmem:[%s240 + $0x8] sm:$0xff]
        %v401 = vld [vmem:[%s240 + $0x10] sm:$0xff]
        %v402 = vld [vmem:[%s240 + $0x18] sm:$0xff]
        %v403 = vld [vmem:[%s240 + $0x20] sm:$0xff]
        %v404 = vld [vmem:[%s240 + $0x28] sm:$0xff]
        %v405 = vld [vmem:[%s240 + $0x30] sm:$0xff]
        %v406 = vld [vmem:[%s240 + $0x38] sm:$0xff]
        %v407 = vld [vmem:[%s240 + $0x40] sm:$0xff]
        %v408 = vld [vmem:[%s240 + $0x48] sm:$0xff]
        %v409 = vld [vmem:[%s240 + $0x50] sm:$0xff]
        %v410 = vld [vmem:[%s240 + $0x58] sm:$0xff]
        %v411 = vld [vmem:[%s240 + $0x60] sm:$0xff]
        %v412 = vld [vmem:[%s240 + $0x68] sm:$0xff]
        %v413 = vld [vmem:[%s240 + $0x70] sm:$0xff]
        %v414 = vld [vmem:[%s240 + $0x78] sm:$0xff]
        %v415 = vld [vmem:[%s240 + $0x80] sm:$0xff]
        %v416 = vld [vmem:[%s240 + $0x88] sm:$0xff]
        %v417 = vld [vmem:[%s240 + $0x90] sm:$0xff]
        %v418 = vld [vmem:[%s240 + $0x98] sm:$0xff]
        %v419 = vld [vmem:[%s240 + $0xa0] sm:$0xff]
        %v420 = vld [vmem:[%s240 + $0xa8] sm:$0xff]
        %v421 = vld [vmem:[%s240 + $0xb0] sm:$0xff]
        %v422 = vld [vmem:[%s240 + $0xb8] sm:$0xff]
        %v423 = vld [vmem:[%s240 + $0xc0] sm:$0xff]
        %v424 = vld [vmem:[%s240 + $0xc8] sm:$0xff]
        %v425 = vld [vmem:[%s240 + $0xd0] sm:$0xff]
        %v426 = vld [vmem:[%s240 + $0xd8] sm:$0xff]
        %v427 = vld [vmem:[%s240 + $0xe0] sm:$0xff]
        %v428 = vld [vmem:[%s240 + $0xe8] sm:$0xff]
        %v429 = vld [vmem:[%s240 + $0xf0] sm:$0xff]
        %v430 = vld [vmem:[%s240 + $0xf8] sm:$0xff]
        %v431 = vpack.c.bf16 %v399, %v399
        %v432 = vpack.c.bf16 %v400, %v400
        %v433 = vpack.c.bf16 %v401, %v401
        %v434 = vpack.c.bf16 %v402, %v402
        %v435 = vpack.c.bf16 %v403, %v403
        %v436 = vpack.c.bf16 %v404, %v404
        %v437 = vpack.c.bf16 %v405, %v405
        %v438 = vpack.c.bf16 %v406, %v406
        %v439 = vpack.c.bf16 %v407, %v407
        %v440 = vpack.c.bf16 %v408, %v408
        %v441 = vpack.c.bf16 %v409, %v409
        %v442 = vpack.c.bf16 %v410, %v410
        %v443 = vpack.c.bf16 %v411, %v411
        %v444 = vpack.c.bf16 %v412, %v412
        %v445 = vpack.c.bf16 %v413, %v413
        %v446 = vpack.c.bf16 %v414, %v414
        %v447 = vpack.c.bf16 %v415, %v415
        %v448 = vpack.c.bf16 %v416, %v416
        %v449 = vpack.c.bf16 %v417, %v417
        %v450 = vpack.c.bf16 %v418, %v418
        %v451 = vpack.c.bf16 %v419, %v419
        %v452 = vpack.c.bf16 %v420, %v420
        %v453 = vpack.c.bf16 %v421, %v421
        %v454 = vpack.c.bf16 %v422, %v422
        %v455 = vpack.c.bf16 %v423, %v423
        %v456 = vpack.c.bf16 %v424, %v424
        %v457 = vpack.c.bf16 %v425, %v425
        %v458 = vpack.c.bf16 %v426, %v426
        %v459 = vpack.c.bf16 %v427, %v427
        %v460 = vpack.c.bf16 %v428, %v428
        %v461 = vpack.c.bf16 %v429, %v429
        %v462 = vpack.c.bf16 %v430, %v430
        %vm463 = vsmask.f32 4368
        %vm464 = vmor %vm287, %vm463
        %v466 = vshrl.u32 %v431, 16
        %v468 = vrot.slane %v466, 7
        %v469 = vshll.u32 %v431, 16
        %v471 = vor.u32 %v468, %v469
        %v472 = vrot.slane %v468, 4
        %v474 = vshrl.u32 %v432, 16
        %v476 = vrot.slane %v474, 7
        %v477 = vshll.u32 %v432, 16
        %v479 = vor.u32 %v476, %v477
        %v480 = vsel %vm464, %v472, %v479
        %v481 = vrot.slane %v476, 4
        %v483 = vshrl.u32 %v433, 16
        %v485 = vrot.slane %v483, 7
        %v486 = vshll.u32 %v433, 16
        %v488 = vor.u32 %v485, %v486
        %v489 = vrot.slane %v485, 4
        %v491 = vshrl.u32 %v434, 16
        %v493 = vrot.slane %v491, 7
        %v494 = vshll.u32 %v434, 16
        %v496 = vor.u32 %v493, %v494
        %v497 = vsel %vm464, %v489, %v496
        %v498 = vrot.slane %v493, 4
        %v500 = vshrl.u32 %v435, 16
        %v502 = vrot.slane %v500, 7
        %v503 = vshll.u32 %v435, 16
        %v505 = vor.u32 %v502, %v503
        %v506 = vrot.slane %v502, 4
        %v508 = vshrl.u32 %v436, 16
        %v510 = vrot.slane %v508, 7
        %v511 = vshll.u32 %v436, 16
        %v513 = vor.u32 %v510, %v511
        %v514 = vsel %vm464, %v506, %v513
        %v515 = vrot.slane %v510, 4
        %v517 = vshrl.u32 %v437, 16
        %v519 = vrot.slane %v517, 7
        %v520 = vshll.u32 %v437, 16
        %v522 = vor.u32 %v519, %v520
        %v523 = vrot.slane %v519, 4
        %v525 = vshrl.u32 %v438, 16
        %v527 = vrot.slane %v525, 7
        %v528 = vshll.u32 %v438, 16
        %v530 = vor.u32 %v527, %v528
        %v531 = vsel %vm464, %v523, %v530
        %v532 = vrot.slane %v527, 4
        %v534 = vshrl.u32 %v439, 16
        %v536 = vrot.slane %v534, 7
        %v537 = vshll.u32 %v439, 16
        %v539 = vor.u32 %v536, %v537
        %v540 = vrot.slane %v536, 4
        %v542 = vshrl.u32 %v440, 16
        %v544 = vrot.slane %v542, 7
        %v545 = vshll.u32 %v440, 16
        %v547 = vor.u32 %v544, %v545
        %v548 = vsel %vm464, %v540, %v547
        %v549 = vrot.slane %v544, 4
        %v551 = vshrl.u32 %v441, 16
        %v553 = vrot.slane %v551, 7
        %v554 = vshll.u32 %v441, 16
        %v556 = vor.u32 %v553, %v554
        %v557 = vrot.slane %v553, 4
        %v559 = vshrl.u32 %v442, 16
        %v561 = vrot.slane %v559, 7
        %v562 = vshll.u32 %v442, 16
        %v564 = vor.u32 %v561, %v562
        %v565 = vsel %vm464, %v557, %v564
        %v566 = vrot.slane %v561, 4
        %v568 = vshrl.u32 %v443, 16
        %v570 = vrot.slane %v568, 7
        %v571 = vshll.u32 %v443, 16
        %v573 = vor.u32 %v570, %v571
        %v574 = vrot.slane %v570, 4
        %v576 = vshrl.u32 %v444, 16
        %v578 = vrot.slane %v576, 7
        %v579 = vshll.u32 %v444, 16
        %v581 = vor.u32 %v578, %v579
        %v582 = vsel %vm464, %v574, %v581
        %v583 = vrot.slane %v578, 4
        %v585 = vshrl.u32 %v445, 16
        %v587 = vrot.slane %v585, 7
        %v588 = vshll.u32 %v445, 16
        %v590 = vor.u32 %v587, %v588
        %v591 = vrot.slane %v587, 4
        %v593 = vshrl.u32 %v446, 16
        %v595 = vrot.slane %v593, 7
        %v596 = vshll.u32 %v446, 16
        %v598 = vor.u32 %v595, %v596
        %v599 = vsel %vm464, %v591, %v598
        %v600 = vrot.slane %v595, 4
        %v602 = vshrl.u32 %v447, 16
        %v604 = vrot.slane %v602, 7
        %v605 = vshll.u32 %v447, 16
        %v607 = vor.u32 %v604, %v605
        %v608 = vrot.slane %v604, 4
        %v610 = vshrl.u32 %v448, 16
        %v612 = vrot.slane %v610, 7
        %v613 = vshll.u32 %v448, 16
        %v615 = vor.u32 %v612, %v613
        %v616 = vsel %vm464, %v608, %v615
        %v617 = vrot.slane %v612, 4
        %v619 = vshrl.u32 %v449, 16
        %v621 = vrot.slane %v619, 7
        %v622 = vshll.u32 %v449, 16
        %v624 = vor.u32 %v621, %v622
        %v625 = vrot.slane %v621, 4
        %v627 = vshrl.u32 %v450, 16
        %v629 = vrot.slane %v627, 7
        %v630 = vshll.u32 %v450, 16
        %v632 = vor.u32 %v629, %v630
        %v633 = vsel %vm464, %v625, %v632
        %v634 = vrot.slane %v629, 4
        %v636 = vshrl.u32 %v451, 16
        %v638 = vrot.slane %v636, 7
        %v639 = vshll.u32 %v451, 16
        %v641 = vor.u32 %v638, %v639
        %v642 = vrot.slane %v638, 4
        %v644 = vshrl.u32 %v452, 16
        %v646 = vrot.slane %v644, 7
        %v647 = vshll.u32 %v452, 16
        %v649 = vor.u32 %v646, %v647
        %v650 = vsel %vm464, %v642, %v649
        %v651 = vrot.slane %v646, 4
        %v653 = vshrl.u32 %v453, 16
        %v655 = vrot.slane %v653, 7
        %v656 = vshll.u32 %v453, 16
        %v658 = vor.u32 %v655, %v656
        %v659 = vrot.slane %v655, 4
        %v661 = vshrl.u32 %v454, 16
        %v663 = vrot.slane %v661, 7
        %v664 = vshll.u32 %v454, 16
        %v666 = vor.u32 %v663, %v664
        %v667 = vsel %vm464, %v659, %v666
        %v668 = vrot.slane %v663, 4
        %v670 = vshrl.u32 %v455, 16
        %v672 = vrot.slane %v670, 7
        %v673 = vshll.u32 %v455, 16
        %v675 = vor.u32 %v672, %v673
        %v676 = vrot.slane %v672, 4
        %v678 = vshrl.u32 %v456, 16
        %v680 = vrot.slane %v678, 7
        %v681 = vshll.u32 %v456, 16
        %v683 = vor.u32 %v680, %v681
        %v684 = vsel %vm464, %v676, %v683
        %v685 = vrot.slane %v680, 4
        %v687 = vshrl.u32 %v457, 16
        %v689 = vrot.slane %v687, 7
        %v690 = vshll.u32 %v457, 16
        %v692 = vor.u32 %v689, %v690
        %v693 = vrot.slane %v689, 4
        %v695 = vshrl.u32 %v458, 16
        %v697 = vrot.slane %v695, 7
        %v698 = vshll.u32 %v458, 16
        %v700 = vor.u32 %v697, %v698
        %v701 = vsel %vm464, %v693, %v700
        %v702 = vrot.slane %v697, 4
        %v704 = vshrl.u32 %v459, 16
        %v706 = vrot.slane %v704, 7
        %v707 = vshll.u32 %v459, 16
        %v709 = vor.u32 %v706, %v707
        %v710 = vrot.slane %v706, 4
        %v712 = vshrl.u32 %v460, 16
        %v714 = vrot.slane %v712, 7
        %v715 = vshll.u32 %v460, 16
        %v717 = vor.u32 %v714, %v715
        %v718 = vsel %vm464, %v710, %v717
        %v719 = vrot.slane %v714, 4
        %v721 = vshrl.u32 %v461, 16
        %v723 = vrot.slane %v721, 7
        %v724 = vshll.u32 %v461, 16
        %v726 = vor.u32 %v723, %v724
        %v727 = vrot.slane %v723, 4
        %v729 = vshrl.u32 %v462, 16
        %v731 = vrot.slane %v729, 7
        %v732 = vshll.u32 %v462, 16
        %v734 = vor.u32 %v731, %v732
        %v735 = vsel %vm464, %v727, %v734
        %v736 = vrot.slane %v731, 4
        %s785 = scalar_lea.vmem [#allocation2], 12
        %vm786 = vcmask 1043456
        %vm787 = vmand %vm786, %vm343
        %v788 = vld [vmem:[%s785] sm:$0xf]
        %v789 = vsel %vm787, %v471, %v788
        %790 = vst [vmem:[%s785] sm:$0xf] %v789
        %791 = vst [vmem:[%s785 + $0x4] sm:$0xf] %v480
        %v792 = vld [vmem:[%s785 + $0x8] sm:$0x1]
        %v793 = vsel %vm288, %v481, %v792
        %794 = vst [vmem:[%s785 + $0x8] sm:$0x1] %v793
        %v795 = vld [vmem:[%s785 + $0xc] sm:$0xf]
        %v796 = vsel %vm787, %v488, %v795
        %797 = vst [vmem:[%s785 + $0xc] sm:$0xf] %v796
        %798 = vst [vmem:[%s785 + $0x10] sm:$0xf] %v497
        %v799 = vld [vmem:[%s785 + $0x14] sm:$0x1]
        %v800 = vsel %vm288, %v498, %v799
        %801 = vst [vmem:[%s785 + $0x14] sm:$0x1] %v800
        %v802 = vld [vmem:[%s785 + $0x18] sm:$0xf]
        %v803 = vsel %vm787, %v505, %v802
        %804 = vst [vmem:[%s785 + $0x18] sm:$0xf] %v803
        %805 = vst [vmem:[%s785 + $0x1c] sm:$0xf] %v514
        %v806 = vld [vmem:[%s785 + $0x20] sm:$0x1]
        %v807 = vsel %vm288, %v515, %v806
        %808 = vst [vmem:[%s785 + $0x20] sm:$0x1] %v807
        %v809 = vld [vmem:[%s785 + $0x24] sm:$0xf]
        %v810 = vsel %vm787, %v522, %v809
        %811 = vst [vmem:[%s785 + $0x24] sm:$0xf] %v810
        %812 = vst [vmem:[%s785 + $0x28] sm:$0xf] %v531
        %v813 = vld [vmem:[%s785 + $0x2c] sm:$0x1]
        %v814 = vsel %vm288, %v532, %v813
        %815 = vst [vmem:[%s785 + $0x2c] sm:$0x1] %v814
        %v816 = vld [vmem:[%s785 + $0x30] sm:$0xf]
        %v817 = vsel %vm787, %v539, %v816
        %818 = vst [vmem:[%s785 + $0x30] sm:$0xf] %v817
        %819 = vst [vmem:[%s785 + $0x34] sm:$0xf] %v548
        %v820 = vld [vmem:[%s785 + $0x38] sm:$0x1]
        %v821 = vsel %vm288, %v549, %v820
        %822 = vst [vmem:[%s785 + $0x38] sm:$0x1] %v821
        %v823 = vld [vmem:[%s785 + $0x3c] sm:$0xf]
        %v824 = vsel %vm787, %v556, %v823
        %825 = vst [vmem:[%s785 + $0x3c] sm:$0xf] %v824
        %826 = vst [vmem:[%s785 + $0x40] sm:$0xf] %v565
        %v827 = vld [vmem:[%s785 + $0x44] sm:$0x1]
        %v828 = vsel %vm288, %v566, %v827
        %829 = vst [vmem:[%s785 + $0x44] sm:$0x1] %v828
        %v830 = vld [vmem:[%s785 + $0x48] sm:$0xf]
        %v831 = vsel %vm787, %v573, %v830
        %832 = vst [vmem:[%s785 + $0x48] sm:$0xf] %v831
        %833 = vst [vmem:[%s785 + $0x4c] sm:$0xf] %v582
        %v834 = vld [vmem:[%s785 + $0x50] sm:$0x1]
        %v835 = vsel %vm288, %v583, %v834
        %836 = vst [vmem:[%s785 + $0x50] sm:$0x1] %v835
        %v837 = vld [vmem:[%s785 + $0x54] sm:$0xf]
        %v838 = vsel %vm787, %v590, %v837
        %839 = vst [vmem:[%s785 + $0x54] sm:$0xf] %v838
        %840 = vst [vmem:[%s785 + $0x58] sm:$0xf] %v599
        %v841 = vld [vmem:[%s785 + $0x5c] sm:$0x1]
        %v842 = vsel %vm288, %v600, %v841
        %843 = vst [vmem:[%s785 + $0x5c] sm:$0x1] %v842
        %v844 = vld [vmem:[%s785 + $0x60] sm:$0xf]
        %v845 = vsel %vm787, %v607, %v844
        %846 = vst [vmem:[%s785 + $0x60] sm:$0xf] %v845
        %847 = vst [vmem:[%s785 + $0x64] sm:$0xf] %v616
        %v848 = vld [vmem:[%s785 + $0x68] sm:$0x1]
        %v849 = vsel %vm288, %v617, %v848
        %850 = vst [vmem:[%s785 + $0x68] sm:$0x1] %v849
        %v851 = vld [vmem:[%s785 + $0x6c] sm:$0xf]
        %v852 = vsel %vm787, %v624, %v851
        %853 = vst [vmem:[%s785 + $0x6c] sm:$0xf] %v852
        %854 = vst [vmem:[%s785 + $0x70] sm:$0xf] %v633
        %v855 = vld [vmem:[%s785 + $0x74] sm:$0x1]
        %v856 = vsel %vm288, %v634, %v855
        %857 = vst [vmem:[%s785 + $0x74] sm:$0x1] %v856
        %v858 = vld [vmem:[%s785 + $0x78] sm:$0xf]
        %v859 = vsel %vm787, %v641, %v858
        %860 = vst [vmem:[%s785 + $0x78] sm:$0xf] %v859
        %861 = vst [vmem:[%s785 + $0x7c] sm:$0xf] %v650
        %v862 = vld [vmem:[%s785 + $0x80] sm:$0x1]
        %v863 = vsel %vm288, %v651, %v862
        %864 = vst [vmem:[%s785 + $0x80] sm:$0x1] %v863
        %v865 = vld [vmem:[%s785 + $0x84] sm:$0xf]
        %v866 = vsel %vm787, %v658, %v865
        %867 = vst [vmem:[%s785 + $0x84] sm:$0xf] %v866
        %868 = vst [vmem:[%s785 + $0x88] sm:$0xf] %v667
        %v869 = vld [vmem:[%s785 + $0x8c] sm:$0x1]
        %v870 = vsel %vm288, %v668, %v869
        %871 = vst [vmem:[%s785 + $0x8c] sm:$0x1] %v870
        %v872 = vld [vmem:[%s785 + $0x90] sm:$0xf]
        %v873 = vsel %vm787, %v675, %v872
        %874 = vst [vmem:[%s785 + $0x90] sm:$0xf] %v873
        %875 = vst [vmem:[%s785 + $0x94] sm:$0xf] %v684
        %v876 = vld [vmem:[%s785 + $0x98] sm:$0x1]
        %v877 = vsel %vm288, %v685, %v876
        %878 = vst [vmem:[%s785 + $0x98] sm:$0x1] %v877
        %v879 = vld [vmem:[%s785 + $0x9c] sm:$0xf]
        %v880 = vsel %vm787, %v692, %v879
        %881 = vst [vmem:[%s785 + $0x9c] sm:$0xf] %v880
        %882 = vst [vmem:[%s785 + $0xa0] sm:$0xf] %v701
        %v883 = vld [vmem:[%s785 + $0xa4] sm:$0x1]
        %v884 = vsel %vm288, %v702, %v883
        %885 = vst [vmem:[%s785 + $0xa4] sm:$0x1] %v884
        %v886 = vld [vmem:[%s785 + $0xa8] sm:$0xf]
        %v887 = vsel %vm787, %v709, %v886
        %888 = vst [vmem:[%s785 + $0xa8] sm:$0xf] %v887
        %889 = vst [vmem:[%s785 + $0xac] sm:$0xf] %v718
        %v890 = vld [vmem:[%s785 + $0xb0] sm:$0x1]
        %v891 = vsel %vm288, %v719, %v890
        %892 = vst [vmem:[%s785 + $0xb0] sm:$0x1] %v891
        %v893 = vld [vmem:[%s785 + $0xb4] sm:$0xf]
        %v894 = vsel %vm787, %v726, %v893
        %895 = vst [vmem:[%s785 + $0xb4] sm:$0xf] %v894
        %896 = vst [vmem:[%s785 + $0xb8] sm:$0xf] %v735
        %v897 = vld [vmem:[%s785 + $0xbc] sm:$0x1]
        %v898 = vsel %vm288, %v736, %v897
        %899 = vst [vmem:[%s785 + $0xbc] sm:$0x1] %v898
        %v900 = vld [vmem:[#allocation2] sm:$0xf]
        %v901 = vld [vmem:[#allocation2 + $0x4] sm:$0xf]
        %v902 = vld [vmem:[#allocation2 + $0xc] sm:$0xf]
        %v903 = vld [vmem:[#allocation2 + $0x10] sm:$0xf]
        %v904 = vld [vmem:[#allocation2 + $0x18] sm:$0xf]
        %v905 = vld [vmem:[#allocation2 + $0x1c] sm:$0xf]
        %v906 = vld [vmem:[#allocation2 + $0x24] sm:$0xf]
        %v907 = vld [vmem:[#allocation2 + $0x28] sm:$0xf]
        %v908 = vld [vmem:[#allocation2 + $0x30] sm:$0xf]
        %v909 = vld [vmem:[#allocation2 + $0x34] sm:$0xf]
        %v910 = vld [vmem:[#allocation2 + $0x3c] sm:$0xf]
        %v911 = vld [vmem:[#allocation2 + $0x40] sm:$0xf]
        %v912 = vld [vmem:[#allocation2 + $0x48] sm:$0xf]
        %v913 = vld [vmem:[#allocation2 + $0x4c] sm:$0xf]
        %v914 = vld [vmem:[#allocation2 + $0x54] sm:$0xf]
        %v915 = vld [vmem:[#allocation2 + $0x58] sm:$0xf]
        %v916 = vld [vmem:[#allocation2 + $0x60] sm:$0xf]
        %v917 = vld [vmem:[#allocation2 + $0x64] sm:$0xf]
        %v918 = vld [vmem:[#allocation2 + $0x6c] sm:$0xf]
        %v919 = vld [vmem:[#allocation2 + $0x70] sm:$0xf]
        %v920 = vld [vmem:[#allocation2 + $0x78] sm:$0xf]
        %v921 = vld [vmem:[#allocation2 + $0x7c] sm:$0xf]
        %v922 = vld [vmem:[#allocation2 + $0x84] sm:$0xf]
        %v923 = vld [vmem:[#allocation2 + $0x88] sm:$0xf]
        %v924 = vld [vmem:[#allocation2 + $0x90] sm:$0xf]
        %v925 = vld [vmem:[#allocation2 + $0x94] sm:$0xf]
        %v926 = vld [vmem:[#allocation2 + $0x9c] sm:$0xf]
        %v927 = vld [vmem:[#allocation2 + $0xa0] sm:$0xf]
        %v928 = vld [vmem:[#allocation2 + $0xa8] sm:$0xf]
        %v929 = vld [vmem:[#allocation2 + $0xac] sm:$0xf]
        %v930 = vld [vmem:[#allocation2 + $0xb4] sm:$0xf]
        %v931 = vld [vmem:[#allocation2 + $0xb8] sm:$0xf]
        %v932 = vld [vmem:[#allocation6] sm:$0xf]
        %v933 = vld [vmem:[#allocation6 + $0x4] sm:$0xf]
        %v934 = vld [vmem:[#allocation6 + $0x8] sm:$0xf]
        %v935 = vld [vmem:[#allocation6 + $0xc] sm:$0xf]
        %v936 = vld [vmem:[#allocation6 + $0x10] sm:$0xf]
        %v937 = vld [vmem:[#allocation6 + $0x14] sm:$0xf]
        %v938 = vld [vmem:[#allocation6 + $0x18] sm:$0xf]
        %v939 = vld [vmem:[#allocation6 + $0x1c] sm:$0xf]
        %v940 = vld [vmem:[#allocation6 + $0x20] sm:$0xf]
        %v941 = vld [vmem:[#allocation6 + $0x24] sm:$0xf]
        %v942 = vld [vmem:[#allocation6 + $0x28] sm:$0xf]
        %v943 = vld [vmem:[#allocation6 + $0x2c] sm:$0xf]
        %v944 = vld [vmem:[#allocation6 + $0x30] sm:$0xf]
        %v945 = vld [vmem:[#allocation6 + $0x34] sm:$0xf]
        %v946 = vld [vmem:[#allocation6 + $0x38] sm:$0xf]
        %v947 = vld [vmem:[#allocation6 + $0x3c] sm:$0xf]
        %v948 = vld [vmem:[#allocation2 + $0x8] sm:$0x1]
        %v949 = vld [vmem:[#allocation2 + $0x14] sm:$0x1]
        %v950 = vld [vmem:[#allocation2 + $0x20] sm:$0x1]
        %v951 = vld [vmem:[#allocation2 + $0x2c] sm:$0x1]
        %v952 = vld [vmem:[#allocation2 + $0x38] sm:$0x1]
        %v953 = vld [vmem:[#allocation2 + $0x44] sm:$0x1]
        %v954 = vld [vmem:[#allocation2 + $0x50] sm:$0x1]
        %v955 = vld [vmem:[#allocation2 + $0x5c] sm:$0x1]
        %v956 = vld [vmem:[#allocation2 + $0x68] sm:$0x1]
        %v957 = vld [vmem:[#allocation2 + $0x74] sm:$0x1]
        %v958 = vld [vmem:[#allocation2 + $0x80] sm:$0x1]
        %v959 = vld [vmem:[#allocation2 + $0x8c] sm:$0x1]
        %v960 = vld [vmem:[#allocation2 + $0x98] sm:$0x1]
        %v961 = vld [vmem:[#allocation2 + $0xa4] sm:$0x1]
        %v962 = vld [vmem:[#allocation2 + $0xb0] sm:$0x1]
        %v963 = vld [vmem:[#allocation2 + $0xbc] sm:$0x1]
        %vm964 = vsmask.f32 3328
        %vm965 = vsmask.f32 7440
        %vm966 = vmor %vm964, %vm965
        %v968 = vshrl.u32 %v900, 16
        %v970 = vrot.slane %v968, 4
        %v971 = vshll.u32 %v900, 16
        %v973 = vrot.slane %v971, 5
        %v974 = vor.u32 %v970, %v973
        %v975 = vrot.slane %v974, 4
        %v977 = vshll.u32 %v901, 16
        %v979 = vrot.slane %v977, 5
        %v980 = vsel %vm966, %v975, %v979
        %v981 = vshrl.u32 %v901, 16
        %v983 = vrot.slane %v981, 4
        %v984 = vor.u32 %v983, %v979
        %v985 = vrot.slane %v984, 4
        %v987 = vshll.u32 %v948, 16
        %v989 = vrot.slane %v987, 5
        %v990 = vsel %vm966, %v985, %v989
        %v992 = vshrl.u32 %v902, 16
        %v994 = vrot.slane %v992, 4
        %v995 = vshll.u32 %v902, 16
        %v997 = vrot.slane %v995, 5
        %v998 = vor.u32 %v994, %v997
        %v999 = vrot.slane %v998, 4
        %v1001 = vshll.u32 %v903, 16
        %v1003 = vrot.slane %v1001, 5
        %v1004 = vsel %vm966, %v999, %v1003
        %v1005 = vshrl.u32 %v903, 16
        %v1007 = vrot.slane %v1005, 4
        %v1008 = vor.u32 %v1007, %v1003
        %v1009 = vrot.slane %v1008, 4
        %v1011 = vshll.u32 %v949, 16
        %v1013 = vrot.slane %v1011, 5
        %v1014 = vsel %vm966, %v1009, %v1013
        %v1016 = vshrl.u32 %v904, 16
        %v1018 = vrot.slane %v1016, 4
        %v1019 = vshll.u32 %v904, 16
        %v1021 = vrot.slane %v1019, 5
        %v1022 = vor.u32 %v1018, %v1021
        %v1023 = vrot.slane %v1022, 4
        %v1025 = vshll.u32 %v905, 16
        %v1027 = vrot.slane %v1025, 5
        %v1028 = vsel %vm966, %v1023, %v1027
        %v1029 = vshrl.u32 %v905, 16
        %v1031 = vrot.slane %v1029, 4
        %v1032 = vor.u32 %v1031, %v1027
        %v1033 = vrot.slane %v1032, 4
        %v1035 = vshll.u32 %v950, 16
        %v1037 = vrot.slane %v1035, 5
        %v1038 = vsel %vm966, %v1033, %v1037
        %v1040 = vshrl.u32 %v906, 16
        %v1042 = vrot.slane %v1040, 4
        %v1043 = vshll.u32 %v906, 16
        %v1045 = vrot.slane %v1043, 5
        %v1046 = vor.u32 %v1042, %v1045
        %v1047 = vrot.slane %v1046, 4
        %v1049 = vshll.u32 %v907, 16
        %v1051 = vrot.slane %v1049, 5
        %v1052 = vsel %vm966, %v1047, %v1051
        %v1053 = vshrl.u32 %v907, 16
        %v1055 = vrot.slane %v1053, 4
        %v1056 = vor.u32 %v1055, %v1051
        %v1057 = vrot.slane %v1056, 4
        %v1059 = vshll.u32 %v951, 16
        %v1061 = vrot.slane %v1059, 5
        %v1062 = vsel %vm966, %v1057, %v1061
        %v1064 = vshrl.u32 %v908, 16
        %v1066 = vrot.slane %v1064, 4
        %v1067 = vshll.u32 %v908, 16
        %v1069 = vrot.slane %v1067, 5
        %v1070 = vor.u32 %v1066, %v1069
        %v1071 = vrot.slane %v1070, 4
        %v1073 = vshll.u32 %v909, 16
        %v1075 = vrot.slane %v1073, 5
        %v1076 = vsel %vm966, %v1071, %v1075
        %v1077 = vshrl.u32 %v909, 16
        %v1079 = vrot.slane %v1077, 4
        %v1080 = vor.u32 %v1079, %v1075
        %v1081 = vrot.slane %v1080, 4
        %v1083 = vshll.u32 %v952, 16
        %v1085 = vrot.slane %v1083, 5
        %v1086 = vsel %vm966, %v1081, %v1085
        %v1088 = vshrl.u32 %v910, 16
        %v1090 = vrot.slane %v1088, 4
        %v1091 = vshll.u32 %v910, 16
        %v1093 = vrot.slane %v1091, 5
        %v1094 = vor.u32 %v1090, %v1093
        %v1095 = vrot.slane %v1094, 4
        %v1097 = vshll.u32 %v911, 16
        %v1099 = vrot.slane %v1097, 5
        %v1100 = vsel %vm966, %v1095, %v1099
        %v1101 = vshrl.u32 %v911, 16
        %v1103 = vrot.slane %v1101, 4
        %v1104 = vor.u32 %v1103, %v1099
        %v1105 = vrot.slane %v1104, 4
        %v1107 = vshll.u32 %v953, 16
        %v1109 = vrot.slane %v1107, 5
        %v1110 = vsel %vm966, %v1105, %v1109
        %v1112 = vshrl.u32 %v912, 16
        %v1114 = vrot.slane %v1112, 4
        %v1115 = vshll.u32 %v912, 16
        %v1117 = vrot.slane %v1115, 5
        %v1118 = vor.u32 %v1114, %v1117
        %v1119 = vrot.slane %v1118, 4
        %v1121 = vshll.u32 %v913, 16
        %v1123 = vrot.slane %v1121, 5
        %v1124 = vsel %vm966, %v1119, %v1123
        %v1125 = vshrl.u32 %v913, 16
        %v1127 = vrot.slane %v1125, 4
        %v1128 = vor.u32 %v1127, %v1123
        %v1129 = vrot.slane %v1128, 4
        %v1131 = vshll.u32 %v954, 16
        %v1133 = vrot.slane %v1131, 5
        %v1134 = vsel %vm966, %v1129, %v1133
        %v1136 = vshrl.u32 %v914, 16
        %v1138 = vrot.slane %v1136, 4
        %v1139 = vshll.u32 %v914, 16
        %v1141 = vrot.slane %v1139, 5
        %v1142 = vor.u32 %v1138, %v1141
        %v1143 = vrot.slane %v1142, 4
        %v1145 = vshll.u32 %v915, 16
        %v1147 = vrot.slane %v1145, 5
        %v1148 = vsel %vm966, %v1143, %v1147
        %v1149 = vshrl.u32 %v915, 16
        %v1151 = vrot.slane %v1149, 4
        %v1152 = vor.u32 %v1151, %v1147
        %v1153 = vrot.slane %v1152, 4
        %v1155 = vshll.u32 %v955, 16
        %v1157 = vrot.slane %v1155, 5
        %v1158 = vsel %vm966, %v1153, %v1157
        %v1160 = vshrl.u32 %v916, 16
        %v1162 = vrot.slane %v1160, 4
        %v1163 = vshll.u32 %v916, 16
        %v1165 = vrot.slane %v1163, 5
        %v1166 = vor.u32 %v1162, %v1165
        %v1167 = vrot.slane %v1166, 4
        %v1169 = vshll.u32 %v917, 16
        %v1171 = vrot.slane %v1169, 5
        %v1172 = vsel %vm966, %v1167, %v1171
        %v1173 = vshrl.u32 %v917, 16
        %v1175 = vrot.slane %v1173, 4
        %v1176 = vor.u32 %v1175, %v1171
        %v1177 = vrot.slane %v1176, 4
        %v1179 = vshll.u32 %v956, 16
        %v1181 = vrot.slane %v1179, 5
        %v1182 = vsel %vm966, %v1177, %v1181
        %v1184 = vshrl.u32 %v918, 16
        %v1186 = vrot.slane %v1184, 4
        %v1187 = vshll.u32 %v918, 16
        %v1189 = vrot.slane %v1187, 5
        %v1190 = vor.u32 %v1186, %v1189
        %v1191 = vrot.slane %v1190, 4
        %v1193 = vshll.u32 %v919, 16
        %v1195 = vrot.slane %v1193, 5
        %v1196 = vsel %vm966, %v1191, %v1195
        %v1197 = vshrl.u32 %v919, 16
        %v1199 = vrot.slane %v1197, 4
        %v1200 = vor.u32 %v1199, %v1195
        %v1201 = vrot.slane %v1200, 4
        %v1203 = vshll.u32 %v957, 16
        %v1205 = vrot.slane %v1203, 5
        %v1206 = vsel %vm966, %v1201, %v1205
        %v1208 = vshrl.u32 %v920, 16
        %v1210 = vrot.slane %v1208, 4
        %v1211 = vshll.u32 %v920, 16
        %v1213 = vrot.slane %v1211, 5
        %v1214 = vor.u32 %v1210, %v1213
        %v1215 = vrot.slane %v1214, 4
        %v1217 = vshll.u32 %v921, 16
        %v1219 = vrot.slane %v1217, 5
        %v1220 = vsel %vm966, %v1215, %v1219
        %v1221 = vshrl.u32 %v921, 16
        %v1223 = vrot.slane %v1221, 4
        %v1224 = vor.u32 %v1223, %v1219
        %v1225 = vrot.slane %v1224, 4
        %v1227 = vshll.u32 %v958, 16
        %v1229 = vrot.slane %v1227, 5
        %v1230 = vsel %vm966, %v1225, %v1229
        %v1232 = vshrl.u32 %v922, 16
        %v1234 = vrot.slane %v1232, 4
        %v1235 = vshll.u32 %v922, 16
        %v1237 = vrot.slane %v1235, 5
        %v1238 = vor.u32 %v1234, %v1237
        %v1239 = vrot.slane %v1238, 4
        %v1241 = vshll.u32 %v923, 16
        %v1243 = vrot.slane %v1241, 5
        %v1244 = vsel %vm966, %v1239, %v1243
        %v1245 = vshrl.u32 %v923, 16
        %v1247 = vrot.slane %v1245, 4
        %v1248 = vor.u32 %v1247, %v1243
        %v1249 = vrot.slane %v1248, 4
        %v1251 = vshll.u32 %v959, 16
        %v1253 = vrot.slane %v1251, 5
        %v1254 = vsel %vm966, %v1249, %v1253
        %v1256 = vshrl.u32 %v924, 16
        %v1258 = vrot.slane %v1256, 4
        %v1259 = vshll.u32 %v924, 16
        %v1261 = vrot.slane %v1259, 5
        %v1262 = vor.u32 %v1258, %v1261
        %v1263 = vrot.slane %v1262, 4
        %v1265 = vshll.u32 %v925, 16
        %v1267 = vrot.slane %v1265, 5
        %v1268 = vsel %vm966, %v1263, %v1267
        %v1269 = vshrl.u32 %v925, 16
        %v1271 = vrot.slane %v1269, 4
        %v1272 = vor.u32 %v1271, %v1267
        %v1273 = vrot.slane %v1272, 4
        %v1275 = vshll.u32 %v960, 16
        %v1277 = vrot.slane %v1275, 5
        %v1278 = vsel %vm966, %v1273, %v1277
        %v1280 = vshrl.u32 %v926, 16
        %v1282 = vrot.slane %v1280, 4
        %v1283 = vshll.u32 %v926, 16
        %v1285 = vrot.slane %v1283, 5
        %v1286 = vor.u32 %v1282, %v1285
        %v1287 = vrot.slane %v1286, 4
        %v1289 = vshll.u32 %v927, 16
        %v1291 = vrot.slane %v1289, 5
        %v1292 = vsel %vm966, %v1287, %v1291
        %v1293 = vshrl.u32 %v927, 16
        %v1295 = vrot.slane %v1293, 4
        %v1296 = vor.u32 %v1295, %v1291
        %v1297 = vrot.slane %v1296, 4
        %v1299 = vshll.u32 %v961, 16
        %v1301 = vrot.slane %v1299, 5
        %v1302 = vsel %vm966, %v1297, %v1301
        %v1304 = vshrl.u32 %v928, 16
        %v1306 = vrot.slane %v1304, 4
        %v1307 = vshll.u32 %v928, 16
        %v1309 = vrot.slane %v1307, 5
        %v1310 = vor.u32 %v1306, %v1309
        %v1311 = vrot.slane %v1310, 4
        %v1313 = vshll.u32 %v929, 16
        %v1315 = vrot.slane %v1313, 5
        %v1316 = vsel %vm966, %v1311, %v1315
        %v1317 = vshrl.u32 %v929, 16
        %v1319 = vrot.slane %v1317, 4
        %v1320 = vor.u32 %v1319, %v1315
        %v1321 = vrot.slane %v1320, 4
        %v1323 = vshll.u32 %v962, 16
        %v1325 = vrot.slane %v1323, 5
        %v1326 = vsel %vm966, %v1321, %v1325
        %v1328 = vshrl.u32 %v930, 16
        %v1330 = vrot.slane %v1328, 4
        %v1331 = vshll.u32 %v930, 16
        %v1333 = vrot.slane %v1331, 5
        %v1334 = vor.u32 %v1330, %v1333
        %v1335 = vrot.slane %v1334, 4
        %v1337 = vshll.u32 %v931, 16
        %v1339 = vrot.slane %v1337, 5
        %v1340 = vsel %vm966, %v1335, %v1339
        %v1341 = vshrl.u32 %v931, 16
        %v1343 = vrot.slane %v1341, 4
        %v1344 = vor.u32 %v1343, %v1339
        %v1345 = vrot.slane %v1344, 4
        %v1347 = vshll.u32 %v963, 16
        %v1349 = vrot.slane %v1347, 5
        %v1350 = vsel %vm966, %v1345, %v1349
        %s1351 = scalar_lea.vmem [#allocation6], 64
        %v1352 = vld [vmem:[%s1351] sm:$0xf]
        %v1353 = vld [vmem:[%s1351 + $0x4] sm:$0xf]
        %v1354 = vld [vmem:[%s1351 + $0x8] sm:$0xf]
        %v1355 = vld [vmem:[%s1351 + $0xc] sm:$0xf]
        %v1356 = vld [vmem:[%s1351 + $0x10] sm:$0xf]
        %v1357 = vld [vmem:[%s1351 + $0x14] sm:$0xf]
        %v1358 = vld [vmem:[%s1351 + $0x18] sm:$0xf]
        %v1359 = vld [vmem:[%s1351 + $0x1c] sm:$0xf]
        %v1360 = vld [vmem:[%s1351 + $0x20] sm:$0xf]
        %v1361 = vld [vmem:[%s1351 + $0x24] sm:$0xf]
        %v1362 = vld [vmem:[%s1351 + $0x28] sm:$0xf]
        %v1363 = vld [vmem:[%s1351 + $0x2c] sm:$0xf]
        %v1364 = vld [vmem:[%s1351 + $0x30] sm:$0xf]
        %v1365 = vld [vmem:[%s1351 + $0x34] sm:$0xf]
        %v1366 = vld [vmem:[%s1351 + $0x38] sm:$0xf]
        %v1367 = vld [vmem:[%s1351 + $0x3c] sm:$0xf]
        %v1368 = vunpack.c.l.b16 %v980
        %v1369 = vunpack.c.l.b16 %v990
        %v1370 = vunpack.c.l.b16 %v1004
        %v1371 = vunpack.c.l.b16 %v1014
        %v1372 = vunpack.c.l.b16 %v1028
        %v1373 = vunpack.c.l.b16 %v1038
        %v1374 = vunpack.c.l.b16 %v1052
        %v1375 = vunpack.c.l.b16 %v1062
        %v1376 = vunpack.c.l.b16 %v1076
        %v1377 = vunpack.c.l.b16 %v1086
        %v1378 = vunpack.c.l.b16 %v1100
        %v1379 = vunpack.c.l.b16 %v1110
        %v1380 = vunpack.c.l.b16 %v1124
        %v1381 = vunpack.c.l.b16 %v1134
        %v1382 = vunpack.c.l.b16 %v1148
        %v1383 = vunpack.c.l.b16 %v1158
        %v1384 = vunpack.c.l.b16 %v1172
        %v1385 = vunpack.c.l.b16 %v1182
        %v1386 = vunpack.c.l.b16 %v1196
        %v1387 = vunpack.c.l.b16 %v1206
        %v1388 = vunpack.c.l.b16 %v1220
        %v1389 = vunpack.c.l.b16 %v1230
        %v1390 = vunpack.c.l.b16 %v1244
        %v1391 = vunpack.c.l.b16 %v1254
        %v1392 = vunpack.c.l.b16 %v1268
        %v1393 = vunpack.c.l.b16 %v1278
        %v1394 = vunpack.c.l.b16 %v1292
        %v1395 = vunpack.c.l.b16 %v1302
        %v1396 = vunpack.c.l.b16 %v1316
        %v1397 = vunpack.c.l.b16 %v1326
        %v1398 = vunpack.c.l.b16 %v1340
        %v1399 = vunpack.c.l.b16 %v1350
        %v1400 = vpack.c.b16 %v1369, %v1368
        %v1401 = vpack.c.b16 %v1371, %v1370
        %v1402 = vpack.c.b16 %v1373, %v1372
        %v1403 = vpack.c.b16 %v1375, %v1374
        %v1404 = vpack.c.b16 %v1377, %v1376
        %v1405 = vpack.c.b16 %v1379, %v1378
        %v1406 = vpack.c.b16 %v1381, %v1380
        %v1407 = vpack.c.b16 %v1383, %v1382
        %v1408 = vpack.c.b16 %v1385, %v1384
        %v1409 = vpack.c.b16 %v1387, %v1386
        %v1410 = vpack.c.b16 %v1389, %v1388
        %v1411 = vpack.c.b16 %v1391, %v1390
        %v1412 = vpack.c.b16 %v1393, %v1392
        %v1413 = vpack.c.b16 %v1395, %v1394
        %v1414 = vpack.c.b16 %v1397, %v1396
        %v1415 = vpack.c.b16 %v1399, %v1398
        %v1448 = vunpack.c.l.b16 %v1352
        %v1449 = vunpack.c.l.b16 %v1353
        %v1450 = vunpack.c.l.b16 %v1354
        %v1451 = vunpack.c.l.b16 %v1355
        %v1452 = vunpack.c.l.b16 %v1356
        %v1453 = vunpack.c.l.b16 %v1357
        %v1454 = vunpack.c.l.b16 %v1358
        %v1455 = vunpack.c.l.b16 %v1359
        %v1456 = vunpack.c.l.b16 %v1360
        %v1457 = vunpack.c.l.b16 %v1361
        %v1458 = vunpack.c.l.b16 %v1362
        %v1459 = vunpack.c.l.b16 %v1363
        %v1460 = vunpack.c.l.b16 %v1364
        %v1461 = vunpack.c.l.b16 %v1365
        %v1462 = vunpack.c.l.b16 %v1366
        %v1463 = vunpack.c.l.b16 %v1367
        %v1464 = vpack.c.b16 %v1449, %v1448
        %v1465 = vpack.c.b16 %v1451, %v1450
        %v1466 = vpack.c.b16 %v1453, %v1452
        %v1467 = vpack.c.b16 %v1455, %v1454
        %v1468 = vpack.c.b16 %v1457, %v1456
        %v1469 = vpack.c.b16 %v1459, %v1458
        %v1470 = vpack.c.b16 %v1461, %v1460
        %v1471 = vpack.c.b16 %v1463, %v1462
        %1480 = vmatpush.bf16.msra.mxu0 %v1471
        %1481 = vmatpush.bf16.msra.mxu0 %v1470
        %1482 = vmatpush.bf16.msra.mxu0 %v1469
        %1483 = vmatpush.bf16.msra.mxu0 %v1468
        %1484 = vmatpush.bf16.msra.mxu0 %v1467
        %1485 = vmatpush.bf16.msra.mxu0 %v1466
        %1486 = vmatpush.bf16.msra.mxu0 %v1465
        %1487 = vmatpush.bf16.msra.mxu0 %v1464
        %1488 = vmatmul.bf16.gmra.mxu0 %v1400
        %v1489 = vpop.f32.mrf.mxu0
        %v1490 = vadd.f32 0.0, %v1489
        %v1491 = vpop.f32.mrf.mxu0
        %v1492 = vadd.f32 0.0, %v1491
        %1493 = vmatmul.bf16.gmra.mxu0 %v1401
        %v1494 = vpop.f32.mrf.mxu0
        %v1495 = vadd.f32 0.0, %v1494
        %v1496 = vpop.f32.mrf.mxu0
        %v1497 = vadd.f32 0.0, %v1496
        %1498 = vmatmul.bf16.gmra.mxu0 %v1402
        %v1499 = vpop.f32.mrf.mxu0
        %v1500 = vadd.f32 0.0, %v1499
        %v1501 = vpop.f32.mrf.mxu0
        %v1502 = vadd.f32 0.0, %v1501
        %1503 = vmatmul.bf16.gmra.mxu0 %v1403
        %v1504 = vpop.f32.mrf.mxu0
        %v1505 = vadd.f32 0.0, %v1504
        %v1506 = vpop.f32.mrf.mxu0
        %v1507 = vadd.f32 0.0, %v1506
        %1508 = vmatmul.bf16.gmra.mxu0 %v1404
        %v1509 = vpop.f32.mrf.mxu0
        %v1510 = vadd.f32 0.0, %v1509
        %v1511 = vpop.f32.mrf.mxu0
        %v1512 = vadd.f32 0.0, %v1511
        %1513 = vmatmul.bf16.gmra.mxu0 %v1405
        %v1514 = vpop.f32.mrf.mxu0
        %v1515 = vadd.f32 0.0, %v1514
        %v1516 = vpop.f32.mrf.mxu0
        %v1517 = vadd.f32 0.0, %v1516
        %1518 = vmatmul.bf16.gmra.mxu0 %v1406
        %v1519 = vpop.f32.mrf.mxu0
        %v1520 = vadd.f32 0.0, %v1519
        %v1521 = vpop.f32.mrf.mxu0
        %v1522 = vadd.f32 0.0, %v1521
        %1523 = vmatmul.bf16.gmra.mxu0 %v1407
        %v1524 = vpop.f32.mrf.mxu0
        %v1525 = vadd.f32 0.0, %v1524
        %v1526 = vpop.f32.mrf.mxu0
        %v1527 = vadd.f32 0.0, %v1526
        %1528 = vmatmul.bf16.gmra.mxu0 %v1408
        %v1529 = vpop.f32.mrf.mxu0
        %v1530 = vadd.f32 0.0, %v1529
        %v1531 = vpop.f32.mrf.mxu0
        %v1532 = vadd.f32 0.0, %v1531
        %1533 = vmatmul.bf16.gmra.mxu0 %v1409
        %v1534 = vpop.f32.mrf.mxu0
        %v1535 = vadd.f32 0.0, %v1534
        %v1536 = vpop.f32.mrf.mxu0
        %v1537 = vadd.f32 0.0, %v1536
        %1538 = vmatmul.bf16.gmra.mxu0 %v1410
        %v1539 = vpop.f32.mrf.mxu0
        %v1540 = vadd.f32 0.0, %v1539
        %v1541 = vpop.f32.mrf.mxu0
        %v1542 = vadd.f32 0.0, %v1541
        %1543 = vmatmul.bf16.gmra.mxu0 %v1411
        %v1544 = vpop.f32.mrf.mxu0
        %v1545 = vadd.f32 0.0, %v1544
        %v1546 = vpop.f32.mrf.mxu0
        %v1547 = vadd.f32 0.0, %v1546
        %1548 = vmatmul.bf16.gmra.mxu0 %v1412
        %v1549 = vpop.f32.mrf.mxu0
        %v1550 = vadd.f32 0.0, %v1549
        %v1551 = vpop.f32.mrf.mxu0
        %v1552 = vadd.f32 0.0, %v1551
        %1553 = vmatmul.bf16.gmra.mxu0 %v1413
        %v1554 = vpop.f32.mrf.mxu0
        %v1555 = vadd.f32 0.0, %v1554
        %v1556 = vpop.f32.mrf.mxu0
        %v1557 = vadd.f32 0.0, %v1556
        %1558 = vmatmul.bf16.gmra.mxu0 %v1414
        %v1559 = vpop.f32.mrf.mxu0
        %v1560 = vadd.f32 0.0, %v1559
        %v1561 = vpop.f32.mrf.mxu0
        %v1562 = vadd.f32 0.0, %v1561
        %1563 = vmatmul.bf16.gmra.mxu0 %v1415
        %v1564 = vpop.f32.mrf.mxu0
        %v1565 = vadd.f32 0.0, %v1564
        %v1566 = vpop.f32.mrf.mxu0
        %v1567 = vadd.f32 0.0, %v1566
        %1568 = vdwg.mxu0
        %v1601 = vunpack.c.l.b16 %v900
        %v1602 = vunpack.c.l.b16 %v901
        %v1603 = vunpack.c.l.b16 %v902
        %v1604 = vunpack.c.l.b16 %v903
        %v1605 = vunpack.c.l.b16 %v904
        %v1606 = vunpack.c.l.b16 %v905
        %v1607 = vunpack.c.l.b16 %v906
        %v1608 = vunpack.c.l.b16 %v907
        %v1609 = vunpack.c.l.b16 %v908
        %v1610 = vunpack.c.l.b16 %v909
        %v1611 = vunpack.c.l.b16 %v910
        %v1612 = vunpack.c.l.b16 %v911
        %v1613 = vunpack.c.l.b16 %v912
        %v1614 = vunpack.c.l.b16 %v913
        %v1615 = vunpack.c.l.b16 %v914
        %v1616 = vunpack.c.l.b16 %v915
        %v1617 = vunpack.c.l.b16 %v916
        %v1618 = vunpack.c.l.b16 %v917
        %v1619 = vunpack.c.l.b16 %v918
        %v1620 = vunpack.c.l.b16 %v919
        %v1621 = vunpack.c.l.b16 %v920
        %v1622 = vunpack.c.l.b16 %v921
        %v1623 = vunpack.c.l.b16 %v922
        %v1624 = vunpack.c.l.b16 %v923
        %v1625 = vunpack.c.l.b16 %v924
        %v1626 = vunpack.c.l.b16 %v925
        %v1627 = vunpack.c.l.b16 %v926
        %v1628 = vunpack.c.l.b16 %v927
        %v1629 = vunpack.c.l.b16 %v928
        %v1630 = vunpack.c.l.b16 %v929
        %v1631 = vunpack.c.l.b16 %v930
        %v1632 = vunpack.c.l.b16 %v931
        %v1633 = vpack.c.b16 %v1602, %v1601
        %v1634 = vpack.c.b16 %v1604, %v1603
        %v1635 = vpack.c.b16 %v1606, %v1605
        %v1636 = vpack.c.b16 %v1608, %v1607
        %v1637 = vpack.c.b16 %v1610, %v1609
        %v1638 = vpack.c.b16 %v1612, %v1611
        %v1639 = vpack.c.b16 %v1614, %v1613
        %v1640 = vpack.c.b16 %v1616, %v1615
        %v1641 = vpack.c.b16 %v1618, %v1617
        %v1642 = vpack.c.b16 %v1620, %v1619
        %v1643 = vpack.c.b16 %v1622, %v1621
        %v1644 = vpack.c.b16 %v1624, %v1623
        %v1645 = vpack.c.b16 %v1626, %v1625
        %v1646 = vpack.c.b16 %v1628, %v1627
        %v1647 = vpack.c.b16 %v1630, %v1629
        %v1648 = vpack.c.b16 %v1632, %v1631
        %v1681 = vunpack.c.l.b16 %v932
        %v1682 = vunpack.c.l.b16 %v933
        %v1683 = vunpack.c.l.b16 %v934
        %v1684 = vunpack.c.l.b16 %v935
        %v1685 = vunpack.c.l.b16 %v936
        %v1686 = vunpack.c.l.b16 %v937
        %v1687 = vunpack.c.l.b16 %v938
        %v1688 = vunpack.c.l.b16 %v939
        %v1689 = vunpack.c.l.b16 %v940
        %v1690 = vunpack.c.l.b16 %v941
        %v1691 = vunpack.c.l.b16 %v942
        %v1692 = vunpack.c.l.b16 %v943
        %v1693 = vunpack.c.l.b16 %v944
        %v1694 = vunpack.c.l.b16 %v945
        %v1695 = vunpack.c.l.b16 %v946
        %v1696 = vunpack.c.l.b16 %v947
        %v1697 = vpack.c.b16 %v1682, %v1681
        %v1698 = vpack.c.b16 %v1684, %v1683
        %v1699 = vpack.c.b16 %v1686, %v1685
        %v1700 = vpack.c.b16 %v1688, %v1687
        %v1701 = vpack.c.b16 %v1690, %v1689
        %v1702 = vpack.c.b16 %v1692, %v1691
        %v1703 = vpack.c.b16 %v1694, %v1693
        %v1704 = vpack.c.b16 %v1696, %v1695
        %1713 = vmatpush.bf16.msra.mxu0 %v1704
        %1714 = vmatpush.bf16.msra.mxu0 %v1703
        %1715 = vmatpush.bf16.msra.mxu0 %v1702
        %1716 = vmatpush.bf16.msra.mxu0 %v1701
        %1717 = vmatpush.bf16.msra.mxu0 %v1700
        %1718 = vmatpush.bf16.msra.mxu0 %v1699
        %1719 = vmatpush.bf16.msra.mxu0 %v1698
        %1720 = vmatpush.bf16.msra.mxu0 %v1697
        %1721 = vmatmul.bf16.gmra.mxu0 %v1633
        %v1722 = vpop.f32.mrf.mxu0
        %v1723 = vadd.f32 %v1490, %v1722
        %v1724 = vpop.f32.mrf.mxu0
        %v1725 = vadd.f32 %v1492, %v1724
        %1726 = vmatmul.bf16.gmra.mxu0 %v1634
        %v1727 = vpop.f32.mrf.mxu0
        %v1728 = vadd.f32 %v1495, %v1727
        %v1729 = vpop.f32.mrf.mxu0
        %v1730 = vadd.f32 %v1497, %v1729
        %1731 = vmatmul.bf16.gmra.mxu0 %v1635
        %v1732 = vpop.f32.mrf.mxu0
        %v1733 = vadd.f32 %v1500, %v1732
        %v1734 = vpop.f32.mrf.mxu0
        %v1735 = vadd.f32 %v1502, %v1734
        %1736 = vmatmul.bf16.gmra.mxu0 %v1636
        %v1737 = vpop.f32.mrf.mxu0
        %v1738 = vadd.f32 %v1505, %v1737
        %v1739 = vpop.f32.mrf.mxu0
        %v1740 = vadd.f32 %v1507, %v1739
        %1741 = vmatmul.bf16.gmra.mxu0 %v1637
        %v1742 = vpop.f32.mrf.mxu0
        %v1743 = vadd.f32 %v1510, %v1742
        %v1744 = vpop.f32.mrf.mxu0
        %v1745 = vadd.f32 %v1512, %v1744
        %1746 = vmatmul.bf16.gmra.mxu0 %v1638
        %v1747 = vpop.f32.mrf.mxu0
        %v1748 = vadd.f32 %v1515, %v1747
        %v1749 = vpop.f32.mrf.mxu0
        %v1750 = vadd.f32 %v1517, %v1749
        %1751 = vmatmul.bf16.gmra.mxu0 %v1639
        %v1752 = vpop.f32.mrf.mxu0
        %v1753 = vadd.f32 %v1520, %v1752
        %v1754 = vpop.f32.mrf.mxu0
        %v1755 = vadd.f32 %v1522, %v1754
        %1756 = vmatmul.bf16.gmra.mxu0 %v1640
        %v1757 = vpop.f32.mrf.mxu0
        %v1758 = vadd.f32 %v1525, %v1757
        %v1759 = vpop.f32.mrf.mxu0
        %v1760 = vadd.f32 %v1527, %v1759
        %1761 = vmatmul.bf16.gmra.mxu0 %v1641
        %v1762 = vpop.f32.mrf.mxu0
        %v1763 = vadd.f32 %v1530, %v1762
        %v1764 = vpop.f32.mrf.mxu0
        %v1765 = vadd.f32 %v1532, %v1764
        %1766 = vmatmul.bf16.gmra.mxu0 %v1642
        %v1767 = vpop.f32.mrf.mxu0
        %v1768 = vadd.f32 %v1535, %v1767
        %v1769 = vpop.f32.mrf.mxu0
        %v1770 = vadd.f32 %v1537, %v1769
        %1771 = vmatmul.bf16.gmra.mxu0 %v1643
        %v1772 = vpop.f32.mrf.mxu0
        %v1773 = vadd.f32 %v1540, %v1772
        %v1774 = vpop.f32.mrf.mxu0
        %v1775 = vadd.f32 %v1542, %v1774
        %1776 = vmatmul.bf16.gmra.mxu0 %v1644
        %v1777 = vpop.f32.mrf.mxu0
        %v1778 = vadd.f32 %v1545, %v1777
        %v1779 = vpop.f32.mrf.mxu0
        %v1780 = vadd.f32 %v1547, %v1779
        %1781 = vmatmul.bf16.gmra.mxu0 %v1645
        %v1782 = vpop.f32.mrf.mxu0
        %v1783 = vadd.f32 %v1550, %v1782
        %v1784 = vpop.f32.mrf.mxu0
        %v1785 = vadd.f32 %v1552, %v1784
        %1786 = vmatmul.bf16.gmra.mxu0 %v1646
        %v1787 = vpop.f32.mrf.mxu0
        %v1788 = vadd.f32 %v1555, %v1787
        %v1789 = vpop.f32.mrf.mxu0
        %v1790 = vadd.f32 %v1557, %v1789
        %1791 = vmatmul.bf16.gmra.mxu0 %v1647
        %v1792 = vpop.f32.mrf.mxu0
        %v1793 = vadd.f32 %v1560, %v1792
        %v1794 = vpop.f32.mrf.mxu0
        %v1795 = vadd.f32 %v1562, %v1794
        %1796 = vmatmul.bf16.gmra.mxu0 %v1648
        %v1797 = vpop.f32.mrf.mxu0
        %v1798 = vadd.f32 %v1565, %v1797
        %v1799 = vpop.f32.mrf.mxu0
        %v1800 = vadd.f32 %v1567, %v1799
        %1801 = vdwg.mxu0
        %v1802 = vld [vmem:[#allocation2] sm:$0xe]
        %v1803 = vld [vmem:[#allocation2 + $0xc] sm:$0xe]
        %v1804 = vld [vmem:[#allocation2 + $0x18] sm:$0xe]
        %v1805 = vld [vmem:[#allocation2 + $0x24] sm:$0xe]
        %v1806 = vld [vmem:[#allocation2 + $0x30] sm:$0xe]
        %v1807 = vld [vmem:[#allocation2 + $0x3c] sm:$0xe]
        %v1808 = vld [vmem:[#allocation2 + $0x48] sm:$0xe]
        %v1809 = vld [vmem:[#allocation2 + $0x54] sm:$0xe]
        %v1810 = vld [vmem:[#allocation2 + $0x60] sm:$0xe]
        %v1811 = vld [vmem:[#allocation2 + $0x6c] sm:$0xe]
        %v1812 = vld [vmem:[#allocation2 + $0x78] sm:$0xe]
        %v1813 = vld [vmem:[#allocation2 + $0x84] sm:$0xe]
        %v1814 = vld [vmem:[#allocation2 + $0x90] sm:$0xe]
        %v1815 = vld [vmem:[#allocation2 + $0x9c] sm:$0xe]
        %v1816 = vld [vmem:[#allocation2 + $0xa8] sm:$0xe]
        %v1817 = vld [vmem:[#allocation2 + $0xb4] sm:$0xe]
        %vm1850 = vcmask 1042432
        %vm1851 = vcmask 1046532
        %vm1852 = vmor %vm1850, %vm1851
        %v1853 = vrot.slane %v1802, 5
        %v1854 = vrot.slane %v1853, 4
        %v1855 = vrot.slane %v901, 5
        %v1856 = vsel %vm1852, %v1854, %v1855
        %v1857 = vrot.slane %v1855, 4
        %v1858 = vrot.slane %v948, 5
        %v1859 = vsel %vm1852, %v1857, %v1858
        %v1860 = vrot.slane %v1803, 5
        %v1861 = vrot.slane %v1860, 4
        %v1862 = vrot.slane %v903, 5
        %v1863 = vsel %vm1852, %v1861, %v1862
        %v1864 = vrot.slane %v1862, 4
        %v1865 = vrot.slane %v949, 5
        %v1866 = vsel %vm1852, %v1864, %v1865
        %v1867 = vrot.slane %v1804, 5
        %v1868 = vrot.slane %v1867, 4
        %v1869 = vrot.slane %v905, 5
        %v1870 = vsel %vm1852, %v1868, %v1869
        %v1871 = vrot.slane %v1869, 4
        %v1872 = vrot.slane %v950, 5
        %v1873 = vsel %vm1852, %v1871, %v1872
        %v1874 = vrot.slane %v1805, 5
        %v1875 = vrot.slane %v1874, 4
        %v1876 = vrot.slane %v907, 5
        %v1877 = vsel %vm1852, %v1875, %v1876
        %v1878 = vrot.slane %v1876, 4
        %v1879 = vrot.slane %v951, 5
        %v1880 = vsel %vm1852, %v1878, %v1879
        %v1881 = vrot.slane %v1806, 5
        %v1882 = vrot.slane %v1881, 4
        %v1883 = vrot.slane %v909, 5
        %v1884 = vsel %vm1852, %v1882, %v1883
        %v1885 = vrot.slane %v1883, 4
        %v1886 = vrot.slane %v952, 5
        %v1887 = vsel %vm1852, %v1885, %v1886
        %v1888 = vrot.slane %v1807, 5
        %v1889 = vrot.slane %v1888, 4
        %v1890 = vrot.slane %v911, 5
        %v1891 = vsel %vm1852, %v1889, %v1890
        %v1892 = vrot.slane %v1890, 4
        %v1893 = vrot.slane %v953, 5
        %v1894 = vsel %vm1852, %v1892, %v1893
        %v1895 = vrot.slane %v1808, 5
        %v1896 = vrot.slane %v1895, 4
        %v1897 = vrot.slane %v913, 5
        %v1898 = vsel %vm1852, %v1896, %v1897
        %v1899 = vrot.slane %v1897, 4
        %v1900 = vrot.slane %v954, 5
        %v1901 = vsel %vm1852, %v1899, %v1900
        %v1902 = vrot.slane %v1809, 5
        %v1903 = vrot.slane %v1902, 4
        %v1904 = vrot.slane %v915, 5
        %v1905 = vsel %vm1852, %v1903, %v1904
        %v1906 = vrot.slane %v1904, 4
        %v1907 = vrot.slane %v955, 5
        %v1908 = vsel %vm1852, %v1906, %v1907
        %v1909 = vrot.slane %v1810, 5
        %v1910 = vrot.slane %v1909, 4
        %v1911 = vrot.slane %v917, 5
        %v1912 = vsel %vm1852, %v1910, %v1911
        %v1913 = vrot.slane %v1911, 4
        %v1914 = vrot.slane %v956, 5
        %v1915 = vsel %vm1852, %v1913, %v1914
        %v1916 = vrot.slane %v1811, 5
        %v1917 = vrot.slane %v1916, 4
        %v1918 = vrot.slane %v919, 5
        %v1919 = vsel %vm1852, %v1917, %v1918
        %v1920 = vrot.slane %v1918, 4
        %v1921 = vrot.slane %v957, 5
        %v1922 = vsel %vm1852, %v1920, %v1921
        %v1923 = vrot.slane %v1812, 5
        %v1924 = vrot.slane %v1923, 4
        %v1925 = vrot.slane %v921, 5
        %v1926 = vsel %vm1852, %v1924, %v1925
        %v1927 = vrot.slane %v1925, 4
        %v1928 = vrot.slane %v958, 5
        %v1929 = vsel %vm1852, %v1927, %v1928
        %v1930 = vrot.slane %v1813, 5
        %v1931 = vrot.slane %v1930, 4
        %v1932 = vrot.slane %v923, 5
        %v1933 = vsel %vm1852, %v1931, %v1932
        %v1934 = vrot.slane %v1932, 4
        %v1935 = vrot.slane %v959, 5
        %v1936 = vsel %vm1852, %v1934, %v1935
        %v1937 = vrot.slane %v1814, 5
        %v1938 = vrot.slane %v1937, 4
        %v1939 = vrot.slane %v925, 5
        %v1940 = vsel %vm1852, %v1938, %v1939
        %v1941 = vrot.slane %v1939, 4
        %v1942 = vrot.slane %v960, 5
        %v1943 = vsel %vm1852, %v1941, %v1942
        %v1944 = vrot.slane %v1815, 5
        %v1945 = vrot.slane %v1944, 4
        %v1946 = vrot.slane %v927, 5
        %v1947 = vsel %vm1852, %v1945, %v1946
        %v1948 = vrot.slane %v1946, 4
        %v1949 = vrot.slane %v961, 5
        %v1950 = vsel %vm1852, %v1948, %v1949
        %v1951 = vrot.slane %v1816, 5
        %v1952 = vrot.slane %v1951, 4
        %v1953 = vrot.slane %v929, 5
        %v1954 = vsel %vm1852, %v1952, %v1953
        %v1955 = vrot.slane %v1953, 4
        %v1956 = vrot.slane %v962, 5
        %v1957 = vsel %vm1852, %v1955, %v1956
        %v1958 = vrot.slane %v1817, 5
        %v1959 = vrot.slane %v1958, 4
        %v1960 = vrot.slane %v931, 5
        %v1961 = vsel %vm1852, %v1959, %v1960
        %v1962 = vrot.slane %v1960, 4
        %v1963 = vrot.slane %v963, 5
        %v1964 = vsel %vm1852, %v1962, %v1963
        %s1965 = scalar_lea.vmem [#allocation6], 128
        %v1966 = vld [vmem:[%s1965] sm:$0xf]
        %v1967 = vld [vmem:[%s1965 + $0x4] sm:$0xf]
        %v1968 = vld [vmem:[%s1965 + $0x8] sm:$0xf]
        %v1969 = vld [vmem:[%s1965 + $0xc] sm:$0xf]
        %v1970 = vld [vmem:[%s1965 + $0x10] sm:$0xf]
        %v1971 = vld [vmem:[%s1965 + $0x14] sm:$0xf]
        %v1972 = vld [vmem:[%s1965 + $0x18] sm:$0xf]
        %v1973 = vld [vmem:[%s1965 + $0x1c] sm:$0xf]
        %v1974 = vld [vmem:[%s1965 + $0x20] sm:$0xf]
        %v1975 = vld [vmem:[%s1965 + $0x24] sm:$0xf]
        %v1976 = vld [vmem:[%s1965 + $0x28] sm:$0xf]
        %v1977 = vld [vmem:[%s1965 + $0x2c] sm:$0xf]
        %v1978 = vld [vmem:[%s1965 + $0x30] sm:$0xf]
        %v1979 = vld [vmem:[%s1965 + $0x34] sm:$0xf]
        %v1980 = vld [vmem:[%s1965 + $0x38] sm:$0xf]
        %v1981 = vld [vmem:[%s1965 + $0x3c] sm:$0xf]
        %v1982 = vunpack.c.l.b16 %v1856
        %v1983 = vunpack.c.l.b16 %v1859
        %v1984 = vunpack.c.l.b16 %v1863
        %v1985 = vunpack.c.l.b16 %v1866
        %v1986 = vunpack.c.l.b16 %v1870
        %v1987 = vunpack.c.l.b16 %v1873
        %v1988 = vunpack.c.l.b16 %v1877
        %v1989 = vunpack.c.l.b16 %v1880
        %v1990 = vunpack.c.l.b16 %v1884
        %v1991 = vunpack.c.l.b16 %v1887
        %v1992 = vunpack.c.l.b16 %v1891
        %v1993 = vunpack.c.l.b16 %v1894
        %v1994 = vunpack.c.l.b16 %v1898
        %v1995 = vunpack.c.l.b16 %v1901
        %v1996 = vunpack.c.l.b16 %v1905
        %v1997 = vunpack.c.l.b16 %v1908
        %v1998 = vunpack.c.l.b16 %v1912
        %v1999 = vunpack.c.l.b16 %v1915
        %v2000 = vunpack.c.l.b16 %v1919
        %v2001 = vunpack.c.l.b16 %v1922
        %v2002 = vunpack.c.l.b16 %v1926
        %v2003 = vunpack.c.l.b16 %v1929
        %v2004 = vunpack.c.l.b16 %v1933
        %v2005 = vunpack.c.l.b16 %v1936
        %v2006 = vunpack.c.l.b16 %v1940
        %v2007 = vunpack.c.l.b16 %v1943
        %v2008 = vunpack.c.l.b16 %v1947
        %v2009 = vunpack.c.l.b16 %v1950
        %v2010 = vunpack.c.l.b16 %v1954
        %v2011 = vunpack.c.l.b16 %v1957
        %v2012 = vunpack.c.l.b16 %v1961
        %v2013 = vunpack.c.l.b16 %v1964
        %v2014 = vpack.c.b16 %v1983, %v1982
        %v2015 = vpack.c.b16 %v1985, %v1984
        %v2016 = vpack.c.b16 %v1987, %v1986
        %v2017 = vpack.c.b16 %v1989, %v1988
        %v2018 = vpack.c.b16 %v1991, %v1990
        %v2019 = vpack.c.b16 %v1993, %v1992
        %v2020 = vpack.c.b16 %v1995, %v1994
        %v2021 = vpack.c.b16 %v1997, %v1996
        %v2022 = vpack.c.b16 %v1999, %v1998
        %v2023 = vpack.c.b16 %v2001, %v2000
        %v2024 = vpack.c.b16 %v2003, %v2002
        %v2025 = vpack.c.b16 %v2005, %v2004
        %v2026 = vpack.c.b16 %v2007, %v2006
        %v2027 = vpack.c.b16 %v2009, %v2008
        %v2028 = vpack.c.b16 %v2011, %v2010
        %v2029 = vpack.c.b16 %v2013, %v2012
        %v2062 = vunpack.c.l.b16 %v1966
        %v2063 = vunpack.c.l.b16 %v1967
        %v2064 = vunpack.c.l.b16 %v1968
        %v2065 = vunpack.c.l.b16 %v1969
        %v2066 = vunpack.c.l.b16 %v1970
        %v2067 = vunpack.c.l.b16 %v1971
        %v2068 = vunpack.c.l.b16 %v1972
        %v2069 = vunpack.c.l.b16 %v1973
        %v2070 = vunpack.c.l.b16 %v1974
        %v2071 = vunpack.c.l.b16 %v1975
        %v2072 = vunpack.c.l.b16 %v1976
        %v2073 = vunpack.c.l.b16 %v1977
        %v2074 = vunpack.c.l.b16 %v1978
        %v2075 = vunpack.c.l.b16 %v1979
        %v2076 = vunpack.c.l.b16 %v1980
        %v2077 = vunpack.c.l.b16 %v1981
        %v2078 = vpack.c.b16 %v2063, %v2062
        %v2079 = vpack.c.b16 %v2065, %v2064
        %v2080 = vpack.c.b16 %v2067, %v2066
        %v2081 = vpack.c.b16 %v2069, %v2068
        %v2082 = vpack.c.b16 %v2071, %v2070
        %v2083 = vpack.c.b16 %v2073, %v2072
        %v2084 = vpack.c.b16 %v2075, %v2074
        %v2085 = vpack.c.b16 %v2077, %v2076
        %2094 = vmatpush.bf16.msra.mxu0 %v2085
        %2095 = vmatpush.bf16.msra.mxu0 %v2084
        %2096 = vmatpush.bf16.msra.mxu0 %v2083
        %2097 = vmatpush.bf16.msra.mxu0 %v2082
        %2098 = vmatpush.bf16.msra.mxu0 %v2081
        %2099 = vmatpush.bf16.msra.mxu0 %v2080
        %2100 = vmatpush.bf16.msra.mxu0 %v2079
        %2101 = vmatpush.bf16.msra.mxu0 %v2078
        %2102 = vmatmul.bf16.gmra.mxu0 %v2014
        %v2103 = vpop.f32.mrf.mxu0
        %v2104 = vadd.f32 0.0, %v2103
        %v2105 = vpop.f32.mrf.mxu0
        %v2106 = vadd.f32 0.0, %v2105
        %2107 = vmatmul.bf16.gmra.mxu0 %v2015
        %v2108 = vpop.f32.mrf.mxu0
        %v2109 = vadd.f32 0.0, %v2108
        %v2110 = vpop.f32.mrf.mxu0
        %v2111 = vadd.f32 0.0, %v2110
        %2112 = vmatmul.bf16.gmra.mxu0 %v2016
        %v2113 = vpop.f32.mrf.mxu0
        %v2114 = vadd.f32 0.0, %v2113
        %v2115 = vpop.f32.mrf.mxu0
        %v2116 = vadd.f32 0.0, %v2115
        %2117 = vmatmul.bf16.gmra.mxu0 %v2017
        %v2118 = vpop.f32.mrf.mxu0
        %v2119 = vadd.f32 0.0, %v2118
        %v2120 = vpop.f32.mrf.mxu0
        %v2121 = vadd.f32 0.0, %v2120
        %2122 = vmatmul.bf16.gmra.mxu0 %v2018
        %v2123 = vpop.f32.mrf.mxu0
        %v2124 = vadd.f32 0.0, %v2123
        %v2125 = vpop.f32.mrf.mxu0
        %v2126 = vadd.f32 0.0, %v2125
        %2127 = vmatmul.bf16.gmra.mxu0 %v2019
        %v2128 = vpop.f32.mrf.mxu0
        %v2129 = vadd.f32 0.0, %v2128
        %v2130 = vpop.f32.mrf.mxu0
        %v2131 = vadd.f32 0.0, %v2130
        %2132 = vmatmul.bf16.gmra.mxu0 %v2020
        %v2133 = vpop.f32.mrf.mxu0
        %v2134 = vadd.f32 0.0, %v2133
        %v2135 = vpop.f32.mrf.mxu0
        %v2136 = vadd.f32 0.0, %v2135
        %2137 = vmatmul.bf16.gmra.mxu0 %v2021
        %v2138 = vpop.f32.mrf.mxu0
        %v2139 = vadd.f32 0.0, %v2138
        %v2140 = vpop.f32.mrf.mxu0
        %v2141 = vadd.f32 0.0, %v2140
        %2142 = vmatmul.bf16.gmra.mxu0 %v2022
        %v2143 = vpop.f32.mrf.mxu0
        %v2144 = vadd.f32 0.0, %v2143
        %v2145 = vpop.f32.mrf.mxu0
        %v2146 = vadd.f32 0.0, %v2145
        %2147 = vmatmul.bf16.gmra.mxu0 %v2023
        %v2148 = vpop.f32.mrf.mxu0
        %v2149 = vadd.f32 0.0, %v2148
        %v2150 = vpop.f32.mrf.mxu0
        %v2151 = vadd.f32 0.0, %v2150
        %2152 = vmatmul.bf16.gmra.mxu0 %v2024
        %v2153 = vpop.f32.mrf.mxu0
        %v2154 = vadd.f32 0.0, %v2153
        %v2155 = vpop.f32.mrf.mxu0
        %v2156 = vadd.f32 0.0, %v2155
        %2157 = vmatmul.bf16.gmra.mxu0 %v2025
        %v2158 = vpop.f32.mrf.mxu0
        %v2159 = vadd.f32 0.0, %v2158
        %v2160 = vpop.f32.mrf.mxu0
        %v2161 = vadd.f32 0.0, %v2160
        %2162 = vmatmul.bf16.gmra.mxu0 %v2026
        %v2163 = vpop.f32.mrf.mxu0
        %v2164 = vadd.f32 0.0, %v2163
        %v2165 = vpop.f32.mrf.mxu0
        %v2166 = vadd.f32 0.0, %v2165
        %2167 = vmatmul.bf16.gmra.mxu0 %v2027
        %v2168 = vpop.f32.mrf.mxu0
        %v2169 = vadd.f32 0.0, %v2168
        %v2170 = vpop.f32.mrf.mxu0
        %v2171 = vadd.f32 0.0, %v2170
        %2172 = vmatmul.bf16.gmra.mxu0 %v2028
        %v2173 = vpop.f32.mrf.mxu0
        %v2174 = vadd.f32 0.0, %v2173
        %v2175 = vpop.f32.mrf.mxu0
        %v2176 = vadd.f32 0.0, %v2175
        %2177 = vmatmul.bf16.gmra.mxu0 %v2029
        %v2178 = vpop.f32.mrf.mxu0
        %v2179 = vadd.f32 0.0, %v2178
        %v2180 = vpop.f32.mrf.mxu0
        %v2181 = vadd.f32 0.0, %v2180
        %2182 = vdwg.mxu0
        %v2183 = vadd.f32 %v1723, %v2104
        %v2184 = vadd.f32 %v1725, %v2106
        %v2185 = vadd.f32 %v1728, %v2109
        %v2186 = vadd.f32 %v1730, %v2111
        %v2187 = vadd.f32 %v1733, %v2114
        %v2188 = vadd.f32 %v1735, %v2116
        %v2189 = vadd.f32 %v1738, %v2119
        %v2190 = vadd.f32 %v1740, %v2121
        %v2191 = vadd.f32 %v1743, %v2124
        %v2192 = vadd.f32 %v1745, %v2126
        %v2193 = vadd.f32 %v1748, %v2129
        %v2194 = vadd.f32 %v1750, %v2131
        %v2195 = vadd.f32 %v1753, %v2134
        %v2196 = vadd.f32 %v1755, %v2136
        %v2197 = vadd.f32 %v1758, %v2139
        %v2198 = vadd.f32 %v1760, %v2141
        %v2199 = vadd.f32 %v1763, %v2144
        %v2200 = vadd.f32 %v1765, %v2146
        %v2201 = vadd.f32 %v1768, %v2149
        %v2202 = vadd.f32 %v1770, %v2151
        %v2203 = vadd.f32 %v1773, %v2154
        %v2204 = vadd.f32 %v1775, %v2156
        %v2205 = vadd.f32 %v1778, %v2159
        %v2206 = vadd.f32 %v1780, %v2161
        %v2207 = vadd.f32 %v1783, %v2164
        %v2208 = vadd.f32 %v1785, %v2166
        %v2209 = vadd.f32 %v1788, %v2169
        %v2210 = vadd.f32 %v1790, %v2171
        %v2211 = vadd.f32 %v1793, %v2174
        %v2212 = vadd.f32 %v1795, %v2176
        %v2213 = vadd.f32 %v1798, %v2179
        %v2214 = vadd.f32 %v1800, %v2181
        %v2215 = vld [vmem:[%s785] sm:$0xf]
        %v2216 = vld [vmem:[%s785 + $0x4] sm:$0xf]
        %v2217 = vld [vmem:[%s785 + $0xc] sm:$0xf]
        %v2218 = vld [vmem:[%s785 + $0x10] sm:$0xf]
        %v2219 = vld [vmem:[%s785 + $0x18] sm:$0xf]
        %v2220 = vld [vmem:[%s785 + $0x1c] sm:$0xf]
        %v2221 = vld [vmem:[%s785 + $0x24] sm:$0xf]
        %v2222 = vld [vmem:[%s785 + $0x28] sm:$0xf]
        %v2223 = vld [vmem:[%s785 + $0x30] sm:$0xf]
        %v2224 = vld [vmem:[%s785 + $0x34] sm:$0xf]
        %v2225 = vld [vmem:[%s785 + $0x3c] sm:$0xf]
        %v2226 = vld [vmem:[%s785 + $0x40] sm:$0xf]
        %v2227 = vld [vmem:[%s785 + $0x48] sm:$0xf]
        %v2228 = vld [vmem:[%s785 + $0x4c] sm:$0xf]
        %v2229 = vld [vmem:[%s785 + $0x54] sm:$0xf]
        %v2230 = vld [vmem:[%s785 + $0x58] sm:$0xf]
        %v2231 = vld [vmem:[%s785 + $0x60] sm:$0xf]
        %v2232 = vld [vmem:[%s785 + $0x64] sm:$0xf]
        %v2233 = vld [vmem:[%s785 + $0x6c] sm:$0xf]
        %v2234 = vld [vmem:[%s785 + $0x70] sm:$0xf]
        %v2235 = vld [vmem:[%s785 + $0x78] sm:$0xf]
        %v2236 = vld [vmem:[%s785 + $0x7c] sm:$0xf]
        %v2237 = vld [vmem:[%s785 + $0x84] sm:$0xf]
        %v2238 = vld [vmem:[%s785 + $0x88] sm:$0xf]
        %v2239 = vld [vmem:[%s785 + $0x90] sm:$0xf]
        %v2240 = vld [vmem:[%s785 + $0x94] sm:$0xf]
        %v2241 = vld [vmem:[%s785 + $0x9c] sm:$0xf]
        %v2242 = vld [vmem:[%s785 + $0xa0] sm:$0xf]
        %v2243 = vld [vmem:[%s785 + $0xa8] sm:$0xf]
        %v2244 = vld [vmem:[%s785 + $0xac] sm:$0xf]
        %v2245 = vld [vmem:[%s785 + $0xb4] sm:$0xf]
        %v2246 = vld [vmem:[%s785 + $0xb8] sm:$0xf]
        %s2247 = scalar_lea.vmem [#allocation6], 192
        %v2248 = vld [vmem:[%s2247] sm:$0xf]
        %v2249 = vld [vmem:[%s2247 + $0x4] sm:$0xf]
        %v2250 = vld [vmem:[%s2247 + $0x8] sm:$0xf]
        %v2251 = vld [vmem:[%s2247 + $0xc] sm:$0xf]
        %v2252 = vld [vmem:[%s2247 + $0x10] sm:$0xf]
        %v2253 = vld [vmem:[%s2247 + $0x14] sm:$0xf]
        %v2254 = vld [vmem:[%s2247 + $0x18] sm:$0xf]
        %v2255 = vld [vmem:[%s2247 + $0x1c] sm:$0xf]
        %v2256 = vld [vmem:[%s2247 + $0x20] sm:$0xf]
        %v2257 = vld [vmem:[%s2247 + $0x24] sm:$0xf]
        %v2258 = vld [vmem:[%s2247 + $0x28] sm:$0xf]
        %v2259 = vld [vmem:[%s2247 + $0x2c] sm:$0xf]
        %v2260 = vld [vmem:[%s2247 + $0x30] sm:$0xf]
        %v2261 = vld [vmem:[%s2247 + $0x34] sm:$0xf]
        %v2262 = vld [vmem:[%s2247 + $0x38] sm:$0xf]
        %v2263 = vld [vmem:[%s2247 + $0x3c] sm:$0xf]
        %v2296 = vunpack.c.l.b16 %v2215
        %v2297 = vunpack.c.l.b16 %v2216
        %v2298 = vunpack.c.l.b16 %v2217
        %v2299 = vunpack.c.l.b16 %v2218
        %v2300 = vunpack.c.l.b16 %v2219
        %v2301 = vunpack.c.l.b16 %v2220
        %v2302 = vunpack.c.l.b16 %v2221
        %v2303 = vunpack.c.l.b16 %v2222
        %v2304 = vunpack.c.l.b16 %v2223
        %v2305 = vunpack.c.l.b16 %v2224
        %v2306 = vunpack.c.l.b16 %v2225
        %v2307 = vunpack.c.l.b16 %v2226
        %v2308 = vunpack.c.l.b16 %v2227
        %v2309 = vunpack.c.l.b16 %v2228
        %v2310 = vunpack.c.l.b16 %v2229
        %v2311 = vunpack.c.l.b16 %v2230
        %v2312 = vunpack.c.l.b16 %v2231
        %v2313 = vunpack.c.l.b16 %v2232
        %v2314 = vunpack.c.l.b16 %v2233
        %v2315 = vunpack.c.l.b16 %v2234
        %v2316 = vunpack.c.l.b16 %v2235
        %v2317 = vunpack.c.l.b16 %v2236
        %v2318 = vunpack.c.l.b16 %v2237
        %v2319 = vunpack.c.l.b16 %v2238
        %v2320 = vunpack.c.l.b16 %v2239
        %v2321 = vunpack.c.l.b16 %v2240
        %v2322 = vunpack.c.l.b16 %v2241
        %v2323 = vunpack.c.l.b16 %v2242
        %v2324 = vunpack.c.l.b16 %v2243
        %v2325 = vunpack.c.l.b16 %v2244
        %v2326 = vunpack.c.l.b16 %v2245
        %v2327 = vunpack.c.l.b16 %v2246
        %v2328 = vpack.c.b16 %v2297, %v2296
        %v2329 = vpack.c.b16 %v2299, %v2298
        %v2330 = vpack.c.b16 %v2301, %v2300
        %v2331 = vpack.c.b16 %v2303, %v2302
        %v2332 = vpack.c.b16 %v2305, %v2304
        %v2333 = vpack.c.b16 %v2307, %v2306
        %v2334 = vpack.c.b16 %v2309, %v2308
        %v2335 = vpack.c.b16 %v2311, %v2310
        %v2336 = vpack.c.b16 %v2313, %v2312
        %v2337 = vpack.c.b16 %v2315, %v2314
        %v2338 = vpack.c.b16 %v2317, %v2316
        %v2339 = vpack.c.b16 %v2319, %v2318
        %v2340 = vpack.c.b16 %v2321, %v2320
        %v2341 = vpack.c.b16 %v2323, %v2322
        %v2342 = vpack.c.b16 %v2325, %v2324
        %v2343 = vpack.c.b16 %v2327, %v2326
        %v2376 = vunpack.c.l.b16 %v2248
        %v2377 = vunpack.c.l.b16 %v2249
        %v2378 = vunpack.c.l.b16 %v2250
        %v2379 = vunpack.c.l.b16 %v2251
        %v2380 = vunpack.c.l.b16 %v2252
        %v2381 = vunpack.c.l.b16 %v2253
        %v2382 = vunpack.c.l.b16 %v2254
        %v2383 = vunpack.c.l.b16 %v2255
        %v2384 = vunpack.c.l.b16 %v2256
        %v2385 = vunpack.c.l.b16 %v2257
        %v2386 = vunpack.c.l.b16 %v2258
        %v2387 = vunpack.c.l.b16 %v2259
        %v2388 = vunpack.c.l.b16 %v2260
        %v2389 = vunpack.c.l.b16 %v2261
        %v2390 = vunpack.c.l.b16 %v2262
        %v2391 = vunpack.c.l.b16 %v2263
        %v2392 = vpack.c.b16 %v2377, %v2376
        %v2393 = vpack.c.b16 %v2379, %v2378
        %v2394 = vpack.c.b16 %v2381, %v2380
        %v2395 = vpack.c.b16 %v2383, %v2382
        %v2396 = vpack.c.b16 %v2385, %v2384
        %v2397 = vpack.c.b16 %v2387, %v2386
        %v2398 = vpack.c.b16 %v2389, %v2388
        %v2399 = vpack.c.b16 %v2391, %v2390
        %2408 = vmatpush.bf16.msra.mxu0 %v2399
        %2409 = vmatpush.bf16.msra.mxu0 %v2398
        %2410 = vmatpush.bf16.msra.mxu0 %v2397
        %2411 = vmatpush.bf16.msra.mxu0 %v2396
        %2412 = vmatpush.bf16.msra.mxu0 %v2395
        %2413 = vmatpush.bf16.msra.mxu0 %v2394
        %2414 = vmatpush.bf16.msra.mxu0 %v2393
        %2415 = vmatpush.bf16.msra.mxu0 %v2392
        %2416 = vmatmul.bf16.gmra.mxu0 %v2328
        %v2417 = vpop.f32.mrf.mxu0
        %v2418 = vadd.f32 0.0, %v2417
        %v2419 = vpop.f32.mrf.mxu0
        %v2420 = vadd.f32 0.0, %v2419
        %2421 = vmatmul.bf16.gmra.mxu0 %v2329
        %v2422 = vpop.f32.mrf.mxu0
        %v2423 = vadd.f32 0.0, %v2422
        %v2424 = vpop.f32.mrf.mxu0
        %v2425 = vadd.f32 0.0, %v2424
        %2426 = vmatmul.bf16.gmra.mxu0 %v2330
        %v2427 = vpop.f32.mrf.mxu0
        %v2428 = vadd.f32 0.0, %v2427
        %v2429 = vpop.f32.mrf.mxu0
        %v2430 = vadd.f32 0.0, %v2429
        %2431 = vmatmul.bf16.gmra.mxu0 %v2331
        %v2432 = vpop.f32.mrf.mxu0
        %v2433 = vadd.f32 0.0, %v2432
        %v2434 = vpop.f32.mrf.mxu0
        %v2435 = vadd.f32 0.0, %v2434
        %2436 = vmatmul.bf16.gmra.mxu0 %v2332
        %v2437 = vpop.f32.mrf.mxu0
        %v2438 = vadd.f32 0.0, %v2437
        %v2439 = vpop.f32.mrf.mxu0
        %v2440 = vadd.f32 0.0, %v2439
        %2441 = vmatmul.bf16.gmra.mxu0 %v2333
        %v2442 = vpop.f32.mrf.mxu0
        %v2443 = vadd.f32 0.0, %v2442
        %v2444 = vpop.f32.mrf.mxu0
        %v2445 = vadd.f32 0.0, %v2444
        %2446 = vmatmul.bf16.gmra.mxu0 %v2334
        %v2447 = vpop.f32.mrf.mxu0
        %v2448 = vadd.f32 0.0, %v2447
        %v2449 = vpop.f32.mrf.mxu0
        %v2450 = vadd.f32 0.0, %v2449
        %2451 = vmatmul.bf16.gmra.mxu0 %v2335
        %v2452 = vpop.f32.mrf.mxu0
        %v2453 = vadd.f32 0.0, %v2452
        %v2454 = vpop.f32.mrf.mxu0
        %v2455 = vadd.f32 0.0, %v2454
        %2456 = vmatmul.bf16.gmra.mxu0 %v2336
        %v2457 = vpop.f32.mrf.mxu0
        %v2458 = vadd.f32 0.0, %v2457
        %v2459 = vpop.f32.mrf.mxu0
        %v2460 = vadd.f32 0.0, %v2459
        %2461 = vmatmul.bf16.gmra.mxu0 %v2337
        %v2462 = vpop.f32.mrf.mxu0
        %v2463 = vadd.f32 0.0, %v2462
        %v2464 = vpop.f32.mrf.mxu0
        %v2465 = vadd.f32 0.0, %v2464
        %2466 = vmatmul.bf16.gmra.mxu0 %v2338
        %v2467 = vpop.f32.mrf.mxu0
        %v2468 = vadd.f32 0.0, %v2467
        %v2469 = vpop.f32.mrf.mxu0
        %v2470 = vadd.f32 0.0, %v2469
        %2471 = vmatmul.bf16.gmra.mxu0 %v2339
        %v2472 = vpop.f32.mrf.mxu0
        %v2473 = vadd.f32 0.0, %v2472
        %v2474 = vpop.f32.mrf.mxu0
        %v2475 = vadd.f32 0.0, %v2474
        %2476 = vmatmul.bf16.gmra.mxu0 %v2340
        %v2477 = vpop.f32.mrf.mxu0
        %v2478 = vadd.f32 0.0, %v2477
        %v2479 = vpop.f32.mrf.mxu0
        %v2480 = vadd.f32 0.0, %v2479
        %2481 = vmatmul.bf16.gmra.mxu0 %v2341
        %v2482 = vpop.f32.mrf.mxu0
        %v2483 = vadd.f32 0.0, %v2482
        %v2484 = vpop.f32.mrf.mxu0
        %v2485 = vadd.f32 0.0, %v2484
        %2486 = vmatmul.bf16.gmra.mxu0 %v2342
        %v2487 = vpop.f32.mrf.mxu0
        %v2488 = vadd.f32 0.0, %v2487
        %v2489 = vpop.f32.mrf.mxu0
        %v2490 = vadd.f32 0.0, %v2489
        %2491 = vmatmul.bf16.gmra.mxu0 %v2343
        %v2492 = vpop.f32.mrf.mxu0
        %v2493 = vadd.f32 0.0, %v2492
        %v2494 = vpop.f32.mrf.mxu0
        %v2495 = vadd.f32 0.0, %v2494
        %2496 = vdwg.mxu0
        %v2497 = vadd.f32 %v2183, %v2418
        %v2498 = vadd.f32 %v2184, %v2420
        %v2499 = vadd.f32 %v2185, %v2423
        %v2500 = vadd.f32 %v2186, %v2425
        %v2501 = vadd.f32 %v2187, %v2428
        %v2502 = vadd.f32 %v2188, %v2430
        %v2503 = vadd.f32 %v2189, %v2433
        %v2504 = vadd.f32 %v2190, %v2435
        %v2505 = vadd.f32 %v2191, %v2438
        %v2506 = vadd.f32 %v2192, %v2440
        %v2507 = vadd.f32 %v2193, %v2443
        %v2508 = vadd.f32 %v2194, %v2445
        %v2509 = vadd.f32 %v2195, %v2448
        %v2510 = vadd.f32 %v2196, %v2450
        %v2511 = vadd.f32 %v2197, %v2453
        %v2512 = vadd.f32 %v2198, %v2455
        %v2513 = vadd.f32 %v2199, %v2458
        %v2514 = vadd.f32 %v2200, %v2460
        %v2515 = vadd.f32 %v2201, %v2463
        %v2516 = vadd.f32 %v2202, %v2465
        %v2517 = vadd.f32 %v2203, %v2468
        %v2518 = vadd.f32 %v2204, %v2470
        %v2519 = vadd.f32 %v2205, %v2473
        %v2520 = vadd.f32 %v2206, %v2475
        %v2521 = vadd.f32 %v2207, %v2478
        %v2522 = vadd.f32 %v2208, %v2480
        %v2523 = vadd.f32 %v2209, %v2483
        %v2524 = vadd.f32 %v2210, %v2485
        %v2525 = vadd.f32 %v2211, %v2488
        %v2526 = vadd.f32 %v2212, %v2490
        %v2527 = vadd.f32 %v2213, %v2493
        %v2528 = vadd.f32 %v2214, %v2495
        %v2529 = vld [vmem:[%s785] sm:$0xf]
        %v2530 = vld [vmem:[%s785 + $0x4] sm:$0xf]
        %v2531 = vld [vmem:[%s785 + $0x8] sm:$0x1]
        %v2532 = vld [vmem:[%s785 + $0xc] sm:$0xf]
        %v2533 = vld [vmem:[%s785 + $0x10] sm:$0xf]
        %v2534 = vld [vmem:[%s785 + $0x14] sm:$0x1]
        %v2535 = vld [vmem:[%s785 + $0x18] sm:$0xf]
        %v2536 = vld [vmem:[%s785 + $0x1c] sm:$0xf]
        %v2537 = vld [vmem:[%s785 + $0x20] sm:$0x1]
        %v2538 = vld [vmem:[%s785 + $0x24] sm:$0xf]
        %v2539 = vld [vmem:[%s785 + $0x28] sm:$0xf]
        %v2540 = vld [vmem:[%s785 + $0x2c] sm:$0x1]
        %v2541 = vld [vmem:[%s785 + $0x30] sm:$0xf]
        %v2542 = vld [vmem:[%s785 + $0x34] sm:$0xf]
        %v2543 = vld [vmem:[%s785 + $0x38] sm:$0x1]
        %v2544 = vld [vmem:[%s785 + $0x3c] sm:$0xf]
        %v2545 = vld [vmem:[%s785 + $0x40] sm:$0xf]
        %v2546 = vld [vmem:[%s785 + $0x44] sm:$0x1]
        %v2547 = vld [vmem:[%s785 + $0x48] sm:$0xf]
        %v2548 = vld [vmem:[%s785 + $0x4c] sm:$0xf]
        %v2549 = vld [vmem:[%s785 + $0x50] sm:$0x1]
        %v2550 = vld [vmem:[%s785 + $0x54] sm:$0xf]
        %v2551 = vld [vmem:[%s785 + $0x58] sm:$0xf]
        %v2552 = vld [vmem:[%s785 + $0x5c] sm:$0x1]
        %v2553 = vld [vmem:[%s785 + $0x60] sm:$0xf]
        %v2554 = vld [vmem:[%s785 + $0x64] sm:$0xf]
        %v2555 = vld [vmem:[%s785 + $0x68] sm:$0x1]
        %v2556 = vld [vmem:[%s785 + $0x6c] sm:$0xf]
        %v2557 = vld [vmem:[%s785 + $0x70] sm:$0xf]
        %v2558 = vld [vmem:[%s785 + $0x74] sm:$0x1]
        %v2559 = vld [vmem:[%s785 + $0x78] sm:$0xf]
        %v2560 = vld [vmem:[%s785 + $0x7c] sm:$0xf]
        %v2561 = vld [vmem:[%s785 + $0x80] sm:$0x1]
        %v2562 = vld [vmem:[%s785 + $0x84] sm:$0xf]
        %v2563 = vld [vmem:[%s785 + $0x88] sm:$0xf]
        %v2564 = vld [vmem:[%s785 + $0x8c] sm:$0x1]
        %v2565 = vld [vmem:[%s785 + $0x90] sm:$0xf]
        %v2566 = vld [vmem:[%s785 + $0x94] sm:$0xf]
        %v2567 = vld [vmem:[%s785 + $0x98] sm:$0x1]
        %v2568 = vld [vmem:[%s785 + $0x9c] sm:$0xf]
        %v2569 = vld [vmem:[%s785 + $0xa0] sm:$0xf]
        %v2570 = vld [vmem:[%s785 + $0xa4] sm:$0x1]
        %v2571 = vld [vmem:[%s785 + $0xa8] sm:$0xf]
        %v2572 = vld [vmem:[%s785 + $0xac] sm:$0xf]
        %v2573 = vld [vmem:[%s785 + $0xb0] sm:$0x1]
        %v2574 = vld [vmem:[%s785 + $0xb4] sm:$0xf]
        %v2575 = vld [vmem:[%s785 + $0xb8] sm:$0xf]
        %v2576 = vld [vmem:[%s785 + $0xbc] sm:$0x1]
        %v2578 = vshrl.u32 %v2529, 16
        %v2580 = vrot.slane %v2578, 4
        %v2581 = vshll.u32 %v2529, 16
        %v2583 = vrot.slane %v2581, 5
        %v2584 = vor.u32 %v2580, %v2583
        %v2585 = vrot.slane %v2584, 4
        %v2587 = vshll.u32 %v2530, 16
        %v2589 = vrot.slane %v2587, 5
        %v2590 = vsel %vm966, %v2585, %v2589
        %v2591 = vshrl.u32 %v2530, 16
        %v2593 = vrot.slane %v2591, 4
        %v2594 = vor.u32 %v2593, %v2589
        %v2595 = vrot.slane %v2594, 4
        %v2597 = vshll.u32 %v2531, 16
        %v2599 = vrot.slane %v2597, 5
        %v2600 = vsel %vm966, %v2595, %v2599
        %v2602 = vshrl.u32 %v2532, 16
        %v2604 = vrot.slane %v2602, 4
        %v2605 = vshll.u32 %v2532, 16
        %v2607 = vrot.slane %v2605, 5
        %v2608 = vor.u32 %v2604, %v2607
        %v2609 = vrot.slane %v2608, 4
        %v2611 = vshll.u32 %v2533, 16
        %v2613 = vrot.slane %v2611, 5
        %v2614 = vsel %vm966, %v2609, %v2613
        %v2615 = vshrl.u32 %v2533, 16
        %v2617 = vrot.slane %v2615, 4
        %v2618 = vor.u32 %v2617, %v2613
        %v2619 = vrot.slane %v2618, 4
        %v2621 = vshll.u32 %v2534, 16
        %v2623 = vrot.slane %v2621, 5
        %v2624 = vsel %vm966, %v2619, %v2623
        %v2626 = vshrl.u32 %v2535, 16
        %v2628 = vrot.slane %v2626, 4
        %v2629 = vshll.u32 %v2535, 16
        %v2631 = vrot.slane %v2629, 5
        %v2632 = vor.u32 %v2628, %v2631
        %v2633 = vrot.slane %v2632, 4
        %v2635 = vshll.u32 %v2536, 16
        %v2637 = vrot.slane %v2635, 5
        %v2638 = vsel %vm966, %v2633, %v2637
        %v2639 = vshrl.u32 %v2536, 16
        %v2641 = vrot.slane %v2639, 4
        %v2642 = vor.u32 %v2641, %v2637
        %v2643 = vrot.slane %v2642, 4
        %v2645 = vshll.u32 %v2537, 16
        %v2647 = vrot.slane %v2645, 5
        %v2648 = vsel %vm966, %v2643, %v2647
        %v2650 = vshrl.u32 %v2538, 16
        %v2652 = vrot.slane %v2650, 4
        %v2653 = vshll.u32 %v2538, 16
        %v2655 = vrot.slane %v2653, 5
        %v2656 = vor.u32 %v2652, %v2655
        %v2657 = vrot.slane %v2656, 4
        %v2659 = vshll.u32 %v2539, 16
        %v2661 = vrot.slane %v2659, 5
        %v2662 = vsel %vm966, %v2657, %v2661
        %v2663 = vshrl.u32 %v2539, 16
        %v2665 = vrot.slane %v2663, 4
        %v2666 = vor.u32 %v2665, %v2661
        %v2667 = vrot.slane %v2666, 4
        %v2669 = vshll.u32 %v2540, 16
        %v2671 = vrot.slane %v2669, 5
        %v2672 = vsel %vm966, %v2667, %v2671
        %v2674 = vshrl.u32 %v2541, 16
        %v2676 = vrot.slane %v2674, 4
        %v2677 = vshll.u32 %v2541, 16
        %v2679 = vrot.slane %v2677, 5
        %v2680 = vor.u32 %v2676, %v2679
        %v2681 = vrot.slane %v2680, 4
        %v2683 = vshll.u32 %v2542, 16
        %v2685 = vrot.slane %v2683, 5
        %v2686 = vsel %vm966, %v2681, %v2685
        %v2687 = vshrl.u32 %v2542, 16
        %v2689 = vrot.slane %v2687, 4
        %v2690 = vor.u32 %v2689, %v2685
        %v2691 = vrot.slane %v2690, 4
        %v2693 = vshll.u32 %v2543, 16
        %v2695 = vrot.slane %v2693, 5
        %v2696 = vsel %vm966, %v2691, %v2695
        %v2698 = vshrl.u32 %v2544, 16
        %v2700 = vrot.slane %v2698, 4
        %v2701 = vshll.u32 %v2544, 16
        %v2703 = vrot.slane %v2701, 5
        %v2704 = vor.u32 %v2700, %v2703
        %v2705 = vrot.slane %v2704, 4
        %v2707 = vshll.u32 %v2545, 16
        %v2709 = vrot.slane %v2707, 5
        %v2710 = vsel %vm966, %v2705, %v2709
        %v2711 = vshrl.u32 %v2545, 16
        %v2713 = vrot.slane %v2711, 4
        %v2714 = vor.u32 %v2713, %v2709
        %v2715 = vrot.slane %v2714, 4
        %v2717 = vshll.u32 %v2546, 16
        %v2719 = vrot.slane %v2717, 5
        %v2720 = vsel %vm966, %v2715, %v2719
        %v2722 = vshrl.u32 %v2547, 16
        %v2724 = vrot.slane %v2722, 4
        %v2725 = vshll.u32 %v2547, 16
        %v2727 = vrot.slane %v2725, 5
        %v2728 = vor.u32 %v2724, %v2727
        %v2729 = vrot.slane %v2728, 4
        %v2731 = vshll.u32 %v2548, 16
        %v2733 = vrot.slane %v2731, 5
        %v2734 = vsel %vm966, %v2729, %v2733
        %v2735 = vshrl.u32 %v2548, 16
        %v2737 = vrot.slane %v2735, 4
        %v2738 = vor.u32 %v2737, %v2733
        %v2739 = vrot.slane %v2738, 4
        %v2741 = vshll.u32 %v2549, 16
        %v2743 = vrot.slane %v2741, 5
        %v2744 = vsel %vm966, %v2739, %v2743
        %v2746 = vshrl.u32 %v2550, 16
        %v2748 = vrot.slane %v2746, 4
        %v2749 = vshll.u32 %v2550, 16
        %v2751 = vrot.slane %v2749, 5
        %v2752 = vor.u32 %v2748, %v2751
        %v2753 = vrot.slane %v2752, 4
        %v2755 = vshll.u32 %v2551, 16
        %v2757 = vrot.slane %v2755, 5
        %v2758 = vsel %vm966, %v2753, %v2757
        %v2759 = vshrl.u32 %v2551, 16
        %v2761 = vrot.slane %v2759, 4
        %v2762 = vor.u32 %v2761, %v2757
        %v2763 = vrot.slane %v2762, 4
        %v2765 = vshll.u32 %v2552, 16
        %v2767 = vrot.slane %v2765, 5
        %v2768 = vsel %vm966, %v2763, %v2767
        %v2770 = vshrl.u32 %v2553, 16
        %v2772 = vrot.slane %v2770, 4
        %v2773 = vshll.u32 %v2553, 16
        %v2775 = vrot.slane %v2773, 5
        %v2776 = vor.u32 %v2772, %v2775
        %v2777 = vrot.slane %v2776, 4
        %v2779 = vshll.u32 %v2554, 16
        %v2781 = vrot.slane %v2779, 5
        %v2782 = vsel %vm966, %v2777, %v2781
        %v2783 = vshrl.u32 %v2554, 16
        %v2785 = vrot.slane %v2783, 4
        %v2786 = vor.u32 %v2785, %v2781
        %v2787 = vrot.slane %v2786, 4
        %v2789 = vshll.u32 %v2555, 16
        %v2791 = vrot.slane %v2789, 5
        %v2792 = vsel %vm966, %v2787, %v2791
        %v2794 = vshrl.u32 %v2556, 16
        %v2796 = vrot.slane %v2794, 4
        %v2797 = vshll.u32 %v2556, 16
        %v2799 = vrot.slane %v2797, 5
        %v2800 = vor.u32 %v2796, %v2799
        %v2801 = vrot.slane %v2800, 4
        %v2803 = vshll.u32 %v2557, 16
        %v2805 = vrot.slane %v2803, 5
        %v2806 = vsel %vm966, %v2801, %v2805
        %v2807 = vshrl.u32 %v2557, 16
        %v2809 = vrot.slane %v2807, 4
        %v2810 = vor.u32 %v2809, %v2805
        %v2811 = vrot.slane %v2810, 4
        %v2813 = vshll.u32 %v2558, 16
        %v2815 = vrot.slane %v2813, 5
        %v2816 = vsel %vm966, %v2811, %v2815
        %v2818 = vshrl.u32 %v2559, 16
        %v2820 = vrot.slane %v2818, 4
        %v2821 = vshll.u32 %v2559, 16
        %v2823 = vrot.slane %v2821, 5
        %v2824 = vor.u32 %v2820, %v2823
        %v2825 = vrot.slane %v2824, 4
        %v2827 = vshll.u32 %v2560, 16
        %v2829 = vrot.slane %v2827, 5
        %v2830 = vsel %vm966, %v2825, %v2829
        %v2831 = vshrl.u32 %v2560, 16
        %v2833 = vrot.slane %v2831, 4
        %v2834 = vor.u32 %v2833, %v2829
        %v2835 = vrot.slane %v2834, 4
        %v2837 = vshll.u32 %v2561, 16
        %v2839 = vrot.slane %v2837, 5
        %v2840 = vsel %vm966, %v2835, %v2839
        %v2842 = vshrl.u32 %v2562, 16
        %v2844 = vrot.slane %v2842, 4
        %v2845 = vshll.u32 %v2562, 16
        %v2847 = vrot.slane %v2845, 5
        %v2848 = vor.u32 %v2844, %v2847
        %v2849 = vrot.slane %v2848, 4
        %v2851 = vshll.u32 %v2563, 16
        %v2853 = vrot.slane %v2851, 5
        %v2854 = vsel %vm966, %v2849, %v2853
        %v2855 = vshrl.u32 %v2563, 16
        %v2857 = vrot.slane %v2855, 4
        %v2858 = vor.u32 %v2857, %v2853
        %v2859 = vrot.slane %v2858, 4
        %v2861 = vshll.u32 %v2564, 16
        %v2863 = vrot.slane %v2861, 5
        %v2864 = vsel %vm966, %v2859, %v2863
        %v2866 = vshrl.u32 %v2565, 16
        %v2868 = vrot.slane %v2866, 4
        %v2869 = vshll.u32 %v2565, 16
        %v2871 = vrot.slane %v2869, 5
        %v2872 = vor.u32 %v2868, %v2871
        %v2873 = vrot.slane %v2872, 4
        %v2875 = vshll.u32 %v2566, 16
        %v2877 = vrot.slane %v2875, 5
        %v2878 = vsel %vm966, %v2873, %v2877
        %v2879 = vshrl.u32 %v2566, 16
        %v2881 = vrot.slane %v2879, 4
        %v2882 = vor.u32 %v2881, %v2877
        %v2883 = vrot.slane %v2882, 4
        %v2885 = vshll.u32 %v2567, 16
        %v2887 = vrot.slane %v2885, 5
        %v2888 = vsel %vm966, %v2883, %v2887
        %v2890 = vshrl.u32 %v2568, 16
        %v2892 = vrot.slane %v2890, 4
        %v2893 = vshll.u32 %v2568, 16
        %v2895 = vrot.slane %v2893, 5
        %v2896 = vor.u32 %v2892, %v2895
        %v2897 = vrot.slane %v2896, 4
        %v2899 = vshll.u32 %v2569, 16
        %v2901 = vrot.slane %v2899, 5
        %v2902 = vsel %vm966, %v2897, %v2901
        %v2903 = vshrl.u32 %v2569, 16
        %v2905 = vrot.slane %v2903, 4
        %v2906 = vor.u32 %v2905, %v2901
        %v2907 = vrot.slane %v2906, 4
        %v2909 = vshll.u32 %v2570, 16
        %v2911 = vrot.slane %v2909, 5
        %v2912 = vsel %vm966, %v2907, %v2911
        %v2914 = vshrl.u32 %v2571, 16
        %v2916 = vrot.slane %v2914, 4
        %v2917 = vshll.u32 %v2571, 16
        %v2919 = vrot.slane %v2917, 5
        %v2920 = vor.u32 %v2916, %v2919
        %v2921 = vrot.slane %v2920, 4
        %v2923 = vshll.u32 %v2572, 16
        %v2925 = vrot.slane %v2923, 5
        %v2926 = vsel %vm966, %v2921, %v2925
        %v2927 = vshrl.u32 %v2572, 16
        %v2929 = vrot.slane %v2927, 4
        %v2930 = vor.u32 %v2929, %v2925
        %v2931 = vrot.slane %v2930, 4
        %v2933 = vshll.u32 %v2573, 16
        %v2935 = vrot.slane %v2933, 5
        %v2936 = vsel %vm966, %v2931, %v2935
        %v2938 = vshrl.u32 %v2574, 16
        %v2940 = vrot.slane %v2938, 4
        %v2941 = vshll.u32 %v2574, 16
        %v2943 = vrot.slane %v2941, 5
        %v2944 = vor.u32 %v2940, %v2943
        %v2945 = vrot.slane %v2944, 4
        %v2947 = vshll.u32 %v2575, 16
        %v2949 = vrot.slane %v2947, 5
        %v2950 = vsel %vm966, %v2945, %v2949
        %v2951 = vshrl.u32 %v2575, 16
        %v2953 = vrot.slane %v2951, 4
        %v2954 = vor.u32 %v2953, %v2949
        %v2955 = vrot.slane %v2954, 4
        %v2957 = vshll.u32 %v2576, 16
        %v2959 = vrot.slane %v2957, 5
        %v2960 = vsel %vm966, %v2955, %v2959
        %s2961 = scalar_lea.vmem [#allocation6], 256
        %v2962 = vld [vmem:[%s2961] sm:$0xf]
        %v2963 = vld [vmem:[%s2961 + $0x4] sm:$0xf]
        %v2964 = vld [vmem:[%s2961 + $0x8] sm:$0xf]
        %v2965 = vld [vmem:[%s2961 + $0xc] sm:$0xf]
        %v2966 = vld [vmem:[%s2961 + $0x10] sm:$0xf]
        %v2967 = vld [vmem:[%s2961 + $0x14] sm:$0xf]
        %v2968 = vld [vmem:[%s2961 + $0x18] sm:$0xf]
        %v2969 = vld [vmem:[%s2961 + $0x1c] sm:$0xf]
        %v2970 = vld [vmem:[%s2961 + $0x20] sm:$0xf]
        %v2971 = vld [vmem:[%s2961 + $0x24] sm:$0xf]
        %v2972 = vld [vmem:[%s2961 + $0x28] sm:$0xf]
        %v2973 = vld [vmem:[%s2961 + $0x2c] sm:$0xf]
        %v2974 = vld [vmem:[%s2961 + $0x30] sm:$0xf]
        %v2975 = vld [vmem:[%s2961 + $0x34] sm:$0xf]
        %v2976 = vld [vmem:[%s2961 + $0x38] sm:$0xf]
        %v2977 = vld [vmem:[%s2961 + $0x3c] sm:$0xf]
        %v2978 = vunpack.c.l.b16 %v2590
        %v2979 = vunpack.c.l.b16 %v2600
        %v2980 = vunpack.c.l.b16 %v2614
        %v2981 = vunpack.c.l.b16 %v2624
        %v2982 = vunpack.c.l.b16 %v2638
        %v2983 = vunpack.c.l.b16 %v2648
        %v2984 = vunpack.c.l.b16 %v2662
        %v2985 = vunpack.c.l.b16 %v2672
        %v2986 = vunpack.c.l.b16 %v2686
        %v2987 = vunpack.c.l.b16 %v2696
        %v2988 = vunpack.c.l.b16 %v2710
        %v2989 = vunpack.c.l.b16 %v2720
        %v2990 = vunpack.c.l.b16 %v2734
        %v2991 = vunpack.c.l.b16 %v2744
        %v2992 = vunpack.c.l.b16 %v2758
        %v2993 = vunpack.c.l.b16 %v2768
        %v2994 = vunpack.c.l.b16 %v2782
        %v2995 = vunpack.c.l.b16 %v2792
        %v2996 = vunpack.c.l.b16 %v2806
        %v2997 = vunpack.c.l.b16 %v2816
        %v2998 = vunpack.c.l.b16 %v2830
        %v2999 = vunpack.c.l.b16 %v2840
        %v3000 = vunpack.c.l.b16 %v2854
        %v3001 = vunpack.c.l.b16 %v2864
        %v3002 = vunpack.c.l.b16 %v2878
        %v3003 = vunpack.c.l.b16 %v2888
        %v3004 = vunpack.c.l.b16 %v2902
        %v3005 = vunpack.c.l.b16 %v2912
        %v3006 = vunpack.c.l.b16 %v2926
        %v3007 = vunpack.c.l.b16 %v2936
        %v3008 = vunpack.c.l.b16 %v2950
        %v3009 = vunpack.c.l.b16 %v2960
        %v3010 = vpack.c.b16 %v2979, %v2978
        %v3011 = vpack.c.b16 %v2981, %v2980
        %v3012 = vpack.c.b16 %v2983, %v2982
        %v3013 = vpack.c.b16 %v2985, %v2984
        %v3014 = vpack.c.b16 %v2987, %v2986
        %v3015 = vpack.c.b16 %v2989, %v2988
        %v3016 = vpack.c.b16 %v2991, %v2990
        %v3017 = vpack.c.b16 %v2993, %v2992
        %v3018 = vpack.c.b16 %v2995, %v2994
        %v3019 = vpack.c.b16 %v2997, %v2996
        %v3020 = vpack.c.b16 %v2999, %v2998
        %v3021 = vpack.c.b16 %v3001, %v3000
        %v3022 = vpack.c.b16 %v3003, %v3002
        %v3023 = vpack.c.b16 %v3005, %v3004
        %v3024 = vpack.c.b16 %v3007, %v3006
        %v3025 = vpack.c.b16 %v3009, %v3008
        %v3058 = vunpack.c.l.b16 %v2962
        %v3059 = vunpack.c.l.b16 %v2963
        %v3060 = vunpack.c.l.b16 %v2964
        %v3061 = vunpack.c.l.b16 %v2965
        %v3062 = vunpack.c.l.b16 %v2966
        %v3063 = vunpack.c.l.b16 %v2967
        %v3064 = vunpack.c.l.b16 %v2968
        %v3065 = vunpack.c.l.b16 %v2969
        %v3066 = vunpack.c.l.b16 %v2970
        %v3067 = vunpack.c.l.b16 %v2971
        %v3068 = vunpack.c.l.b16 %v2972
        %v3069 = vunpack.c.l.b16 %v2973
        %v3070 = vunpack.c.l.b16 %v2974
        %v3071 = vunpack.c.l.b16 %v2975
        %v3072 = vunpack.c.l.b16 %v2976
        %v3073 = vunpack.c.l.b16 %v2977
        %v3074 = vpack.c.b16 %v3059, %v3058
        %v3075 = vpack.c.b16 %v3061, %v3060
        %v3076 = vpack.c.b16 %v3063, %v3062
        %v3077 = vpack.c.b16 %v3065, %v3064
        %v3078 = vpack.c.b16 %v3067, %v3066
        %v3079 = vpack.c.b16 %v3069, %v3068
        %v3080 = vpack.c.b16 %v3071, %v3070
        %v3081 = vpack.c.b16 %v3073, %v3072
        %3090 = vmatpush.bf16.msra.mxu0 %v3081
        %3091 = vmatpush.bf16.msra.mxu0 %v3080
        %3092 = vmatpush.bf16.msra.mxu0 %v3079
        %3093 = vmatpush.bf16.msra.mxu0 %v3078
        %3094 = vmatpush.bf16.msra.mxu0 %v3077
        %3095 = vmatpush.bf16.msra.mxu0 %v3076
        %3096 = vmatpush.bf16.msra.mxu0 %v3075
        %3097 = vmatpush.bf16.msra.mxu0 %v3074
        %3098 = vmatmul.bf16.gmra.mxu0 %v3010
        %v3099 = vpop.f32.mrf.mxu0
        %v3100 = vadd.f32 0.0, %v3099
        %v3101 = vpop.f32.mrf.mxu0
        %v3102 = vadd.f32 0.0, %v3101
        %3103 = vmatmul.bf16.gmra.mxu0 %v3011
        %v3104 = vpop.f32.mrf.mxu0
        %v3105 = vadd.f32 0.0, %v3104
        %v3106 = vpop.f32.mrf.mxu0
        %v3107 = vadd.f32 0.0, %v3106
        %3108 = vmatmul.bf16.gmra.mxu0 %v3012
        %v3109 = vpop.f32.mrf.mxu0
        %v3110 = vadd.f32 0.0, %v3109
        %v3111 = vpop.f32.mrf.mxu0
        %v3112 = vadd.f32 0.0, %v3111
        %3113 = vmatmul.bf16.gmra.mxu0 %v3013
        %v3114 = vpop.f32.mrf.mxu0
        %v3115 = vadd.f32 0.0, %v3114
        %v3116 = vpop.f32.mrf.mxu0
        %v3117 = vadd.f32 0.0, %v3116
        %3118 = vmatmul.bf16.gmra.mxu0 %v3014
        %v3119 = vpop.f32.mrf.mxu0
        %v3120 = vadd.f32 0.0, %v3119
        %v3121 = vpop.f32.mrf.mxu0
        %v3122 = vadd.f32 0.0, %v3121
        %3123 = vmatmul.bf16.gmra.mxu0 %v3015
        %v3124 = vpop.f32.mrf.mxu0
        %v3125 = vadd.f32 0.0, %v3124
        %v3126 = vpop.f32.mrf.mxu0
        %v3127 = vadd.f32 0.0, %v3126
        %3128 = vmatmul.bf16.gmra.mxu0 %v3016
        %v3129 = vpop.f32.mrf.mxu0
        %v3130 = vadd.f32 0.0, %v3129
        %v3131 = vpop.f32.mrf.mxu0
        %v3132 = vadd.f32 0.0, %v3131
        %3133 = vmatmul.bf16.gmra.mxu0 %v3017
        %v3134 = vpop.f32.mrf.mxu0
        %v3135 = vadd.f32 0.0, %v3134
        %v3136 = vpop.f32.mrf.mxu0
        %v3137 = vadd.f32 0.0, %v3136
        %3138 = vmatmul.bf16.gmra.mxu0 %v3018
        %v3139 = vpop.f32.mrf.mxu0
        %v3140 = vadd.f32 0.0, %v3139
        %v3141 = vpop.f32.mrf.mxu0
        %v3142 = vadd.f32 0.0, %v3141
        %3143 = vmatmul.bf16.gmra.mxu0 %v3019
        %v3144 = vpop.f32.mrf.mxu0
        %v3145 = vadd.f32 0.0, %v3144
        %v3146 = vpop.f32.mrf.mxu0
        %v3147 = vadd.f32 0.0, %v3146
        %3148 = vmatmul.bf16.gmra.mxu0 %v3020
        %v3149 = vpop.f32.mrf.mxu0
        %v3150 = vadd.f32 0.0, %v3149
        %v3151 = vpop.f32.mrf.mxu0
        %v3152 = vadd.f32 0.0, %v3151
        %3153 = vmatmul.bf16.gmra.mxu0 %v3021
        %v3154 = vpop.f32.mrf.mxu0
        %v3155 = vadd.f32 0.0, %v3154
        %v3156 = vpop.f32.mrf.mxu0
        %v3157 = vadd.f32 0.0, %v3156
        %3158 = vmatmul.bf16.gmra.mxu0 %v3022
        %v3159 = vpop.f32.mrf.mxu0
        %v3160 = vadd.f32 0.0, %v3159
        %v3161 = vpop.f32.mrf.mxu0
        %v3162 = vadd.f32 0.0, %v3161
        %3163 = vmatmul.bf16.gmra.mxu0 %v3023
        %v3164 = vpop.f32.mrf.mxu0
        %v3165 = vadd.f32 0.0, %v3164
        %v3166 = vpop.f32.mrf.mxu0
        %v3167 = vadd.f32 0.0, %v3166
        %3168 = vmatmul.bf16.gmra.mxu0 %v3024
        %v3169 = vpop.f32.mrf.mxu0
        %v3170 = vadd.f32 0.0, %v3169
        %v3171 = vpop.f32.mrf.mxu0
        %v3172 = vadd.f32 0.0, %v3171
        %3173 = vmatmul.bf16.gmra.mxu0 %v3025
        %v3174 = vpop.f32.mrf.mxu0
        %v3175 = vadd.f32 0.0, %v3174
        %v3176 = vpop.f32.mrf.mxu0
        %v3177 = vadd.f32 0.0, %v3176
        %3178 = vdwg.mxu0
        %v3179 = vadd.f32 %v2497, %v3100
        %v3180 = vadd.f32 %v2498, %v3102
        %v3181 = vadd.f32 %v2499, %v3105
        %v3182 = vadd.f32 %v2500, %v3107
        %v3183 = vadd.f32 %v2501, %v3110
        %v3184 = vadd.f32 %v2502, %v3112
        %v3185 = vadd.f32 %v2503, %v3115
        %v3186 = vadd.f32 %v2504, %v3117
        %v3187 = vadd.f32 %v2505, %v3120
        %v3188 = vadd.f32 %v2506, %v3122
        %v3189 = vadd.f32 %v2507, %v3125
        %v3190 = vadd.f32 %v2508, %v3127
        %v3191 = vadd.f32 %v2509, %v3130
        %v3192 = vadd.f32 %v2510, %v3132
        %v3193 = vadd.f32 %v2511, %v3135
        %v3194 = vadd.f32 %v2512, %v3137
        %v3195 = vadd.f32 %v2513, %v3140
        %v3196 = vadd.f32 %v2514, %v3142
        %v3197 = vadd.f32 %v2515, %v3145
        %v3198 = vadd.f32 %v2516, %v3147
        %v3199 = vadd.f32 %v2517, %v3150
        %v3200 = vadd.f32 %v2518, %v3152
        %v3201 = vadd.f32 %v2519, %v3155
        %v3202 = vadd.f32 %v2520, %v3157
        %v3203 = vadd.f32 %v2521, %v3160
        %v3204 = vadd.f32 %v2522, %v3162
        %v3205 = vadd.f32 %v2523, %v3165
        %v3206 = vadd.f32 %v2524, %v3167
        %v3207 = vadd.f32 %v2525, %v3170
        %v3208 = vadd.f32 %v2526, %v3172
        %v3209 = vadd.f32 %v2527, %v3175
        %v3210 = vadd.f32 %v2528, %v3177
        %v3211 = vld [vmem:[%s785] sm:$0xe]
        %v3212 = vld [vmem:[%s785 + $0xc] sm:$0xe]
        %v3213 = vld [vmem:[%s785 + $0x18] sm:$0xe]
        %v3214 = vld [vmem:[%s785 + $0x24] sm:$0xe]
        %v3215 = vld [vmem:[%s785 + $0x30] sm:$0xe]
        %v3216 = vld [vmem:[%s785 + $0x3c] sm:$0xe]
        %v3217 = vld [vmem:[%s785 + $0x48] sm:$0xe]
        %v3218 = vld [vmem:[%s785 + $0x54] sm:$0xe]
        %v3219 = vld [vmem:[%s785 + $0x60] sm:$0xe]
        %v3220 = vld [vmem:[%s785 + $0x6c] sm:$0xe]
        %v3221 = vld [vmem:[%s785 + $0x78] sm:$0xe]
        %v3222 = vld [vmem:[%s785 + $0x84] sm:$0xe]
        %v3223 = vld [vmem:[%s785 + $0x90] sm:$0xe]
        %v3224 = vld [vmem:[%s785 + $0x9c] sm:$0xe]
        %v3225 = vld [vmem:[%s785 + $0xa8] sm:$0xe]
        %v3226 = vld [vmem:[%s785 + $0xb4] sm:$0xe]
        %v3275 = vrot.slane %v3211, 5
        %v3276 = vrot.slane %v3275, 4
        %v3277 = vrot.slane %v2530, 5
        %v3278 = vsel %vm1852, %v3276, %v3277
        %v3279 = vrot.slane %v3277, 4
        %v3280 = vrot.slane %v2531, 5
        %v3281 = vsel %vm1852, %v3279, %v3280
        %v3282 = vrot.slane %v3212, 5
        %v3283 = vrot.slane %v3282, 4
        %v3284 = vrot.slane %v2533, 5
        %v3285 = vsel %vm1852, %v3283, %v3284
        %v3286 = vrot.slane %v3284, 4
        %v3287 = vrot.slane %v2534, 5
        %v3288 = vsel %vm1852, %v3286, %v3287
        %v3289 = vrot.slane %v3213, 5
        %v3290 = vrot.slane %v3289, 4
        %v3291 = vrot.slane %v2536, 5
        %v3292 = vsel %vm1852, %v3290, %v3291
        %v3293 = vrot.slane %v3291, 4
        %v3294 = vrot.slane %v2537, 5
        %v3295 = vsel %vm1852, %v3293, %v3294
        %v3296 = vrot.slane %v3214, 5
        %v3297 = vrot.slane %v3296, 4
        %v3298 = vrot.slane %v2539, 5
        %v3299 = vsel %vm1852, %v3297, %v3298
        %v3300 = vrot.slane %v3298, 4
        %v3301 = vrot.slane %v2540, 5
        %v3302 = vsel %vm1852, %v3300, %v3301
        %v3303 = vrot.slane %v3215, 5
        %v3304 = vrot.slane %v3303, 4
        %v3305 = vrot.slane %v2542, 5
        %v3306 = vsel %vm1852, %v3304, %v3305
        %v3307 = vrot.slane %v3305, 4
        %v3308 = vrot.slane %v2543, 5
        %v3309 = vsel %vm1852, %v3307, %v3308
        %v3310 = vrot.slane %v3216, 5
        %v3311 = vrot.slane %v3310, 4
        %v3312 = vrot.slane %v2545, 5
        %v3313 = vsel %vm1852, %v3311, %v3312
        %v3314 = vrot.slane %v3312, 4
        %v3315 = vrot.slane %v2546, 5
        %v3316 = vsel %vm1852, %v3314, %v3315
        %v3317 = vrot.slane %v3217, 5
        %v3318 = vrot.slane %v3317, 4
        %v3319 = vrot.slane %v2548, 5
        %v3320 = vsel %vm1852, %v3318, %v3319
        %v3321 = vrot.slane %v3319, 4
        %v3322 = vrot.slane %v2549, 5
        %v3323 = vsel %vm1852, %v3321, %v3322
        %v3324 = vrot.slane %v3218, 5
        %v3325 = vrot.slane %v3324, 4
        %v3326 = vrot.slane %v2551, 5
        %v3327 = vsel %vm1852, %v3325, %v3326
        %v3328 = vrot.slane %v3326, 4
        %v3329 = vrot.slane %v2552, 5
        %v3330 = vsel %vm1852, %v3328, %v3329
        %v3331 = vrot.slane %v3219, 5
        %v3332 = vrot.slane %v3331, 4
        %v3333 = vrot.slane %v2554, 5
        %v3334 = vsel %vm1852, %v3332, %v3333
        %v3335 = vrot.slane %v3333, 4
        %v3336 = vrot.slane %v2555, 5
        %v3337 = vsel %vm1852, %v3335, %v3336
        %v3338 = vrot.slane %v3220, 5
        %v3339 = vrot.slane %v3338, 4
        %v3340 = vrot.slane %v2557, 5
        %v3341 = vsel %vm1852, %v3339, %v3340
        %v3342 = vrot.slane %v3340, 4
        %v3343 = vrot.slane %v2558, 5
        %v3344 = vsel %vm1852, %v3342, %v3343
        %v3345 = vrot.slane %v3221, 5
        %v3346 = vrot.slane %v3345, 4
        %v3347 = vrot.slane %v2560, 5
        %v3348 = vsel %vm1852, %v3346, %v3347
        %v3349 = vrot.slane %v3347, 4
        %v3350 = vrot.slane %v2561, 5
        %v3351 = vsel %vm1852, %v3349, %v3350
        %v3352 = vrot.slane %v3222, 5
        %v3353 = vrot.slane %v3352, 4
        %v3354 = vrot.slane %v2563, 5
        %v3355 = vsel %vm1852, %v3353, %v3354
        %v3356 = vrot.slane %v3354, 4
        %v3357 = vrot.slane %v2564, 5
        %v3358 = vsel %vm1852, %v3356, %v3357
        %v3359 = vrot.slane %v3223, 5
        %v3360 = vrot.slane %v3359, 4
        %v3361 = vrot.slane %v2566, 5
        %v3362 = vsel %vm1852, %v3360, %v3361
        %v3363 = vrot.slane %v3361, 4
        %v3364 = vrot.slane %v2567, 5
        %v3365 = vsel %vm1852, %v3363, %v3364
        %v3366 = vrot.slane %v3224, 5
        %v3367 = vrot.slane %v3366, 4
        %v3368 = vrot.slane %v2569, 5
        %v3369 = vsel %vm1852, %v3367, %v3368
        %v3370 = vrot.slane %v3368, 4
        %v3371 = vrot.slane %v2570, 5
        %v3372 = vsel %vm1852, %v3370, %v3371
        %v3373 = vrot.slane %v3225, 5
        %v3374 = vrot.slane %v3373, 4
        %v3375 = vrot.slane %v2572, 5
        %v3376 = vsel %vm1852, %v3374, %v3375
        %v3377 = vrot.slane %v3375, 4
        %v3378 = vrot.slane %v2573, 5
        %v3379 = vsel %vm1852, %v3377, %v3378
        %v3380 = vrot.slane %v3226, 5
        %v3381 = vrot.slane %v3380, 4
        %v3382 = vrot.slane %v2575, 5
        %v3383 = vsel %vm1852, %v3381, %v3382
        %v3384 = vrot.slane %v3382, 4
        %v3385 = vrot.slane %v2576, 5
        %v3386 = vsel %vm1852, %v3384, %v3385
        %s3387 = scalar_lea.vmem [#allocation6], 320
        %v3388 = vld [vmem:[%s3387] sm:$0xf]
        %v3389 = vld [vmem:[%s3387 + $0x4] sm:$0xf]
        %v3390 = vld [vmem:[%s3387 + $0x8] sm:$0xf]
        %v3391 = vld [vmem:[%s3387 + $0xc] sm:$0xf]
        %v3392 = vld [vmem:[%s3387 + $0x10] sm:$0xf]
        %v3393 = vld [vmem:[%s3387 + $0x14] sm:$0xf]
        %v3394 = vld [vmem:[%s3387 + $0x18] sm:$0xf]
        %v3395 = vld [vmem:[%s3387 + $0x1c] sm:$0xf]
        %v3396 = vld [vmem:[%s3387 + $0x20] sm:$0xf]
        %v3397 = vld [vmem:[%s3387 + $0x24] sm:$0xf]
        %v3398 = vld [vmem:[%s3387 + $0x28] sm:$0xf]
        %v3399 = vld [vmem:[%s3387 + $0x2c] sm:$0xf]
        %v3400 = vld [vmem:[%s3387 + $0x30] sm:$0xf]
        %v3401 = vld [vmem:[%s3387 + $0x34] sm:$0xf]
        %v3402 = vld [vmem:[%s3387 + $0x38] sm:$0xf]
        %v3403 = vld [vmem:[%s3387 + $0x3c] sm:$0xf]
        %v3404 = vunpack.c.l.b16 %v3278
        %v3405 = vunpack.c.l.b16 %v3281
        %v3406 = vunpack.c.l.b16 %v3285
        %v3407 = vunpack.c.l.b16 %v3288
        %v3408 = vunpack.c.l.b16 %v3292
        %v3409 = vunpack.c.l.b16 %v3295
        %v3410 = vunpack.c.l.b16 %v3299
        %v3411 = vunpack.c.l.b16 %v3302
        %v3412 = vunpack.c.l.b16 %v3306
        %v3413 = vunpack.c.l.b16 %v3309
        %v3414 = vunpack.c.l.b16 %v3313
        %v3415 = vunpack.c.l.b16 %v3316
        %v3416 = vunpack.c.l.b16 %v3320
        %v3417 = vunpack.c.l.b16 %v3323
        %v3418 = vunpack.c.l.b16 %v3327
        %v3419 = vunpack.c.l.b16 %v3330
        %v3420 = vunpack.c.l.b16 %v3334
        %v3421 = vunpack.c.l.b16 %v3337
        %v3422 = vunpack.c.l.b16 %v3341
        %v3423 = vunpack.c.l.b16 %v3344
        %v3424 = vunpack.c.l.b16 %v3348
        %v3425 = vunpack.c.l.b16 %v3351
        %v3426 = vunpack.c.l.b16 %v3355
        %v3427 = vunpack.c.l.b16 %v3358
        %v3428 = vunpack.c.l.b16 %v3362
        %v3429 = vunpack.c.l.b16 %v3365
        %v3430 = vunpack.c.l.b16 %v3369
        %v3431 = vunpack.c.l.b16 %v3372
        %v3432 = vunpack.c.l.b16 %v3376
        %v3433 = vunpack.c.l.b16 %v3379
        %v3434 = vunpack.c.l.b16 %v3383
        %v3435 = vunpack.c.l.b16 %v3386
        %v3436 = vpack.c.b16 %v3405, %v3404
        %v3437 = vpack.c.b16 %v3407, %v3406
        %v3438 = vpack.c.b16 %v3409, %v3408
        %v3439 = vpack.c.b16 %v3411, %v3410
        %v3440 = vpack.c.b16 %v3413, %v3412
        %v3441 = vpack.c.b16 %v3415, %v3414
        %v3442 = vpack.c.b16 %v3417, %v3416
        %v3443 = vpack.c.b16 %v3419, %v3418
        %v3444 = vpack.c.b16 %v3421, %v3420
        %v3445 = vpack.c.b16 %v3423, %v3422
        %v3446 = vpack.c.b16 %v3425, %v3424
        %v3447 = vpack.c.b16 %v3427, %v3426
        %v3448 = vpack.c.b16 %v3429, %v3428
        %v3449 = vpack.c.b16 %v3431, %v3430
        %v3450 = vpack.c.b16 %v3433, %v3432
        %v3451 = vpack.c.b16 %v3435, %v3434
        %v3484 = vunpack.c.l.b16 %v3388
        %v3485 = vunpack.c.l.b16 %v3389
        %v3486 = vunpack.c.l.b16 %v3390
        %v3487 = vunpack.c.l.b16 %v3391
        %v3488 = vunpack.c.l.b16 %v3392
        %v3489 = vunpack.c.l.b16 %v3393
        %v3490 = vunpack.c.l.b16 %v3394
        %v3491 = vunpack.c.l.b16 %v3395
        %v3492 = vunpack.c.l.b16 %v3396
        %v3493 = vunpack.c.l.b16 %v3397
        %v3494 = vunpack.c.l.b16 %v3398
        %v3495 = vunpack.c.l.b16 %v3399
        %v3496 = vunpack.c.l.b16 %v3400
        %v3497 = vunpack.c.l.b16 %v3401
        %v3498 = vunpack.c.l.b16 %v3402
        %v3499 = vunpack.c.l.b16 %v3403
        %v3500 = vpack.c.b16 %v3485, %v3484
        %v3501 = vpack.c.b16 %v3487, %v3486
        %v3502 = vpack.c.b16 %v3489, %v3488
        %v3503 = vpack.c.b16 %v3491, %v3490
        %v3504 = vpack.c.b16 %v3493, %v3492
        %v3505 = vpack.c.b16 %v3495, %v3494
        %v3506 = vpack.c.b16 %v3497, %v3496
        %v3507 = vpack.c.b16 %v3499, %v3498
        %3516 = vmatpush.bf16.msra.mxu0 %v3507
        %3517 = vmatpush.bf16.msra.mxu0 %v3506
        %3518 = vmatpush.bf16.msra.mxu0 %v3505
        %3519 = vmatpush.bf16.msra.mxu0 %v3504
        %3520 = vmatpush.bf16.msra.mxu0 %v3503
        %3521 = vmatpush.bf16.msra.mxu0 %v3502
        %3522 = vmatpush.bf16.msra.mxu0 %v3501
        %3523 = vmatpush.bf16.msra.mxu0 %v3500
        %3524 = vmatmul.bf16.gmra.mxu0 %v3436
        %v3525 = vpop.f32.mrf.mxu0
        %v3526 = vadd.f32 0.0, %v3525
        %v3527 = vpop.f32.mrf.mxu0
        %v3528 = vadd.f32 0.0, %v3527
        %3529 = vmatmul.bf16.gmra.mxu0 %v3437
        %v3530 = vpop.f32.mrf.mxu0
        %v3531 = vadd.f32 0.0, %v3530
        %v3532 = vpop.f32.mrf.mxu0
        %v3533 = vadd.f32 0.0, %v3532
        %3534 = vmatmul.bf16.gmra.mxu0 %v3438
        %v3535 = vpop.f32.mrf.mxu0
        %v3536 = vadd.f32 0.0, %v3535
        %v3537 = vpop.f32.mrf.mxu0
        %v3538 = vadd.f32 0.0, %v3537
        %3539 = vmatmul.bf16.gmra.mxu0 %v3439
        %v3540 = vpop.f32.mrf.mxu0
        %v3541 = vadd.f32 0.0, %v3540
        %v3542 = vpop.f32.mrf.mxu0
        %v3543 = vadd.f32 0.0, %v3542
        %3544 = vmatmul.bf16.gmra.mxu0 %v3440
        %v3545 = vpop.f32.mrf.mxu0
        %v3546 = vadd.f32 0.0, %v3545
        %v3547 = vpop.f32.mrf.mxu0
        %v3548 = vadd.f32 0.0, %v3547
        %3549 = vmatmul.bf16.gmra.mxu0 %v3441
        %v3550 = vpop.f32.mrf.mxu0
        %v3551 = vadd.f32 0.0, %v3550
        %v3552 = vpop.f32.mrf.mxu0
        %v3553 = vadd.f32 0.0, %v3552
        %3554 = vmatmul.bf16.gmra.mxu0 %v3442
        %v3555 = vpop.f32.mrf.mxu0
        %v3556 = vadd.f32 0.0, %v3555
        %v3557 = vpop.f32.mrf.mxu0
        %v3558 = vadd.f32 0.0, %v3557
        %3559 = vmatmul.bf16.gmra.mxu0 %v3443
        %v3560 = vpop.f32.mrf.mxu0
        %v3561 = vadd.f32 0.0, %v3560
        %v3562 = vpop.f32.mrf.mxu0
        %v3563 = vadd.f32 0.0, %v3562
        %3564 = vmatmul.bf16.gmra.mxu0 %v3444
        %v3565 = vpop.f32.mrf.mxu0
        %v3566 = vadd.f32 0.0, %v3565
        %v3567 = vpop.f32.mrf.mxu0
        %v3568 = vadd.f32 0.0, %v3567
        %3569 = vmatmul.bf16.gmra.mxu0 %v3445
        %v3570 = vpop.f32.mrf.mxu0
        %v3571 = vadd.f32 0.0, %v3570
        %v3572 = vpop.f32.mrf.mxu0
        %v3573 = vadd.f32 0.0, %v3572
        %3574 = vmatmul.bf16.gmra.mxu0 %v3446
        %v3575 = vpop.f32.mrf.mxu0
        %v3576 = vadd.f32 0.0, %v3575
        %v3577 = vpop.f32.mrf.mxu0
        %v3578 = vadd.f32 0.0, %v3577
        %3579 = vmatmul.bf16.gmra.mxu0 %v3447
        %v3580 = vpop.f32.mrf.mxu0
        %v3581 = vadd.f32 0.0, %v3580
        %v3582 = vpop.f32.mrf.mxu0
        %v3583 = vadd.f32 0.0, %v3582
        %3584 = vmatmul.bf16.gmra.mxu0 %v3448
        %v3585 = vpop.f32.mrf.mxu0
        %v3586 = vadd.f32 0.0, %v3585
        %v3587 = vpop.f32.mrf.mxu0
        %v3588 = vadd.f32 0.0, %v3587
        %3589 = vmatmul.bf16.gmra.mxu0 %v3449
        %v3590 = vpop.f32.mrf.mxu0
        %v3591 = vadd.f32 0.0, %v3590
        %v3592 = vpop.f32.mrf.mxu0
        %v3593 = vadd.f32 0.0, %v3592
        %3594 = vmatmul.bf16.gmra.mxu0 %v3450
        %v3595 = vpop.f32.mrf.mxu0
        %v3596 = vadd.f32 0.0, %v3595
        %v3597 = vpop.f32.mrf.mxu0
        %v3598 = vadd.f32 0.0, %v3597
        %3599 = vmatmul.bf16.gmra.mxu0 %v3451
        %v3600 = vpop.f32.mrf.mxu0
        %v3601 = vadd.f32 0.0, %v3600
        %v3602 = vpop.f32.mrf.mxu0
        %v3603 = vadd.f32 0.0, %v3602
        %3604 = vdwg.mxu0
        %v3605 = vadd.f32 %v3179, %v3526
        %v3606 = vadd.f32 %v3180, %v3528
        %v3607 = vadd.f32 %v3181, %v3531
        %v3608 = vadd.f32 %v3182, %v3533
        %v3609 = vadd.f32 %v3183, %v3536
        %v3610 = vadd.f32 %v3184, %v3538
        %v3611 = vadd.f32 %v3185, %v3541
        %v3612 = vadd.f32 %v3186, %v3543
        %v3613 = vadd.f32 %v3187, %v3546
        %v3614 = vadd.f32 %v3188, %v3548
        %v3615 = vadd.f32 %v3189, %v3551
        %v3616 = vadd.f32 %v3190, %v3553
        %v3617 = vadd.f32 %v3191, %v3556
        %v3618 = vadd.f32 %v3192, %v3558
        %v3619 = vadd.f32 %v3193, %v3561
        %v3620 = vadd.f32 %v3194, %v3563
        %v3621 = vadd.f32 %v3195, %v3566
        %v3622 = vadd.f32 %v3196, %v3568
        %v3623 = vadd.f32 %v3197, %v3571
        %v3624 = vadd.f32 %v3198, %v3573
        %v3625 = vadd.f32 %v3199, %v3576
        %v3626 = vadd.f32 %v3200, %v3578
        %v3627 = vadd.f32 %v3201, %v3581
        %v3628 = vadd.f32 %v3202, %v3583
        %v3629 = vadd.f32 %v3203, %v3586
        %v3630 = vadd.f32 %v3204, %v3588
        %v3631 = vadd.f32 %v3205, %v3591
        %v3632 = vadd.f32 %v3206, %v3593
        %v3633 = vadd.f32 %v3207, %v3596
        %v3634 = vadd.f32 %v3208, %v3598
        %v3635 = vadd.f32 %v3209, %v3601
        %v3636 = vadd.f32 %v3210, %v3603
        %s3637 = scalar_lea.vmem [#allocation2], 24
        %v3638 = vld [vmem:[%s3637] sm:$0xf]
        %v3639 = vld [vmem:[%s3637 + $0x4] sm:$0xf]
        %v3640 = vld [vmem:[%s3637 + $0xc] sm:$0xf]
        %v3641 = vld [vmem:[%s3637 + $0x10] sm:$0xf]
        %v3642 = vld [vmem:[%s3637 + $0x18] sm:$0xf]
        %v3643 = vld [vmem:[%s3637 + $0x1c] sm:$0xf]
        %v3644 = vld [vmem:[%s3637 + $0x24] sm:$0xf]
        %v3645 = vld [vmem:[%s3637 + $0x28] sm:$0xf]
        %v3646 = vld [vmem:[%s3637 + $0x30] sm:$0xf]
        %v3647 = vld [vmem:[%s3637 + $0x34] sm:$0xf]
        %v3648 = vld [vmem:[%s3637 + $0x3c] sm:$0xf]
        %v3649 = vld [vmem:[%s3637 + $0x40] sm:$0xf]
        %v3650 = vld [vmem:[%s3637 + $0x48] sm:$0xf]
        %v3651 = vld [vmem:[%s3637 + $0x4c] sm:$0xf]
        %v3652 = vld [vmem:[%s3637 + $0x54] sm:$0xf]
        %v3653 = vld [vmem:[%s3637 + $0x58] sm:$0xf]
        %v3654 = vld [vmem:[%s3637 + $0x60] sm:$0xf]
        %v3655 = vld [vmem:[%s3637 + $0x64] sm:$0xf]
        %v3656 = vld [vmem:[%s3637 + $0x6c] sm:$0xf]
        %v3657 = vld [vmem:[%s3637 + $0x70] sm:$0xf]
        %v3658 = vld [vmem:[%s3637 + $0x78] sm:$0xf]
        %v3659 = vld [vmem:[%s3637 + $0x7c] sm:$0xf]
        %v3660 = vld [vmem:[%s3637 + $0x84] sm:$0xf]
        %v3661 = vld [vmem:[%s3637 + $0x88] sm:$0xf]
        %v3662 = vld [vmem:[%s3637 + $0x90] sm:$0xf]
        %v3663 = vld [vmem:[%s3637 + $0x94] sm:$0xf]
        %v3664 = vld [vmem:[%s3637 + $0x9c] sm:$0xf]
        %v3665 = vld [vmem:[%s3637 + $0xa0] sm:$0xf]
        %v3666 = vld [vmem:[%s3637 + $0xa8] sm:$0xf]
        %v3667 = vld [vmem:[%s3637 + $0xac] sm:$0xf]
        %v3668 = vld [vmem:[%s3637 + $0xb4] sm:$0xf]
        %v3669 = vld [vmem:[%s3637 + $0xb8] sm:$0xf]
        %s3670 = scalar_lea.vmem [#allocation6], 384
        %v3671 = vld [vmem:[%s3670] sm:$0xf]
        %v3672 = vld [vmem:[%s3670 + $0x4] sm:$0xf]
        %v3673 = vld [vmem:[%s3670 + $0x8] sm:$0xf]
        %v3674 = vld [vmem:[%s3670 + $0xc] sm:$0xf]
        %v3675 = vld [vmem:[%s3670 + $0x10] sm:$0xf]
        %v3676 = vld [vmem:[%s3670 + $0x14] sm:$0xf]
        %v3677 = vld [vmem:[%s3670 + $0x18] sm:$0xf]
        %v3678 = vld [vmem:[%s3670 + $0x1c] sm:$0xf]
        %v3679 = vld [vmem:[%s3670 + $0x20] sm:$0xf]
        %v3680 = vld [vmem:[%s3670 + $0x24] sm:$0xf]
        %v3681 = vld [vmem:[%s3670 + $0x28] sm:$0xf]
        %v3682 = vld [vmem:[%s3670 + $0x2c] sm:$0xf]
        %v3683 = vld [vmem:[%s3670 + $0x30] sm:$0xf]
        %v3684 = vld [vmem:[%s3670 + $0x34] sm:$0xf]
        %v3685 = vld [vmem:[%s3670 + $0x38] sm:$0xf]
        %v3686 = vld [vmem:[%s3670 + $0x3c] sm:$0xf]
        %v3719 = vunpack.c.l.b16 %v3638
        %v3720 = vunpack.c.l.b16 %v3639
        %v3721 = vunpack.c.l.b16 %v3640
        %v3722 = vunpack.c.l.b16 %v3641
        %v3723 = vunpack.c.l.b16 %v3642
        %v3724 = vunpack.c.l.b16 %v3643
        %v3725 = vunpack.c.l.b16 %v3644
        %v3726 = vunpack.c.l.b16 %v3645
        %v3727 = vunpack.c.l.b16 %v3646
        %v3728 = vunpack.c.l.b16 %v3647
        %v3729 = vunpack.c.l.b16 %v3648
        %v3730 = vunpack.c.l.b16 %v3649
        %v3731 = vunpack.c.l.b16 %v3650
        %v3732 = vunpack.c.l.b16 %v3651
        %v3733 = vunpack.c.l.b16 %v3652
        %v3734 = vunpack.c.l.b16 %v3653
        %v3735 = vunpack.c.l.b16 %v3654
        %v3736 = vunpack.c.l.b16 %v3655
        %v3737 = vunpack.c.l.b16 %v3656
        %v3738 = vunpack.c.l.b16 %v3657
        %v3739 = vunpack.c.l.b16 %v3658
        %v3740 = vunpack.c.l.b16 %v3659
        %v3741 = vunpack.c.l.b16 %v3660
        %v3742 = vunpack.c.l.b16 %v3661
        %v3743 = vunpack.c.l.b16 %v3662
        %v3744 = vunpack.c.l.b16 %v3663
        %v3745 = vunpack.c.l.b16 %v3664
        %v3746 = vunpack.c.l.b16 %v3665
        %v3747 = vunpack.c.l.b16 %v3666
        %v3748 = vunpack.c.l.b16 %v3667
        %v3749 = vunpack.c.l.b16 %v3668
        %v3750 = vunpack.c.l.b16 %v3669
        %v3751 = vpack.c.b16 %v3720, %v3719
        %v3752 = vpack.c.b16 %v3722, %v3721
        %v3753 = vpack.c.b16 %v3724, %v3723
        %v3754 = vpack.c.b16 %v3726, %v3725
        %v3755 = vpack.c.b16 %v3728, %v3727
        %v3756 = vpack.c.b16 %v3730, %v3729
        %v3757 = vpack.c.b16 %v3732, %v3731
        %v3758 = vpack.c.b16 %v3734, %v3733
        %v3759 = vpack.c.b16 %v3736, %v3735
        %v3760 = vpack.c.b16 %v3738, %v3737
        %v3761 = vpack.c.b16 %v3740, %v3739
        %v3762 = vpack.c.b16 %v3742, %v3741
        %v3763 = vpack.c.b16 %v3744, %v3743
        %v3764 = vpack.c.b16 %v3746, %v3745
        %v3765 = vpack.c.b16 %v3748, %v3747
        %v3766 = vpack.c.b16 %v3750, %v3749
        %v3799 = vunpack.c.l.b16 %v3671
        %v3800 = vunpack.c.l.b16 %v3672
        %v3801 = vunpack.c.l.b16 %v3673
        %v3802 = vunpack.c.l.b16 %v3674
        %v3803 = vunpack.c.l.b16 %v3675
        %v3804 = vunpack.c.l.b16 %v3676
        %v3805 = vunpack.c.l.b16 %v3677
        %v3806 = vunpack.c.l.b16 %v3678
        %v3807 = vunpack.c.l.b16 %v3679
        %v3808 = vunpack.c.l.b16 %v3680
        %v3809 = vunpack.c.l.b16 %v3681
        %v3810 = vunpack.c.l.b16 %v3682
        %v3811 = vunpack.c.l.b16 %v3683
        %v3812 = vunpack.c.l.b16 %v3684
        %v3813 = vunpack.c.l.b16 %v3685
        %v3814 = vunpack.c.l.b16 %v3686
        %v3815 = vpack.c.b16 %v3800, %v3799
        %v3816 = vpack.c.b16 %v3802, %v3801
        %v3817 = vpack.c.b16 %v3804, %v3803
        %v3818 = vpack.c.b16 %v3806, %v3805
        %v3819 = vpack.c.b16 %v3808, %v3807
        %v3820 = vpack.c.b16 %v3810, %v3809
        %v3821 = vpack.c.b16 %v3812, %v3811
        %v3822 = vpack.c.b16 %v3814, %v3813
        %3831 = vmatpush.bf16.msra.mxu0 %v3822
        %3832 = vmatpush.bf16.msra.mxu0 %v3821
        %3833 = vmatpush.bf16.msra.mxu0 %v3820
        %3834 = vmatpush.bf16.msra.mxu0 %v3819
        %3835 = vmatpush.bf16.msra.mxu0 %v3818
        %3836 = vmatpush.bf16.msra.mxu0 %v3817
        %3837 = vmatpush.bf16.msra.mxu0 %v3816
        %3838 = vmatpush.bf16.msra.mxu0 %v3815
        %3839 = vmatmul.bf16.gmra.mxu0 %v3751
        %v3840 = vpop.f32.mrf.mxu0
        %v3841 = vadd.f32 0.0, %v3840
        %v3842 = vpop.f32.mrf.mxu0
        %v3843 = vadd.f32 0.0, %v3842
        %3844 = vmatmul.bf16.gmra.mxu0 %v3752
        %v3845 = vpop.f32.mrf.mxu0
        %v3846 = vadd.f32 0.0, %v3845
        %v3847 = vpop.f32.mrf.mxu0
        %v3848 = vadd.f32 0.0, %v3847
        %3849 = vmatmul.bf16.gmra.mxu0 %v3753
        %v3850 = vpop.f32.mrf.mxu0
        %v3851 = vadd.f32 0.0, %v3850
        %v3852 = vpop.f32.mrf.mxu0
        %v3853 = vadd.f32 0.0, %v3852
        %3854 = vmatmul.bf16.gmra.mxu0 %v3754
        %v3855 = vpop.f32.mrf.mxu0
        %v3856 = vadd.f32 0.0, %v3855
        %v3857 = vpop.f32.mrf.mxu0
        %v3858 = vadd.f32 0.0, %v3857
        %3859 = vmatmul.bf16.gmra.mxu0 %v3755
        %v3860 = vpop.f32.mrf.mxu0
        %v3861 = vadd.f32 0.0, %v3860
        %v3862 = vpop.f32.mrf.mxu0
        %v3863 = vadd.f32 0.0, %v3862
        %3864 = vmatmul.bf16.gmra.mxu0 %v3756
        %v3865 = vpop.f32.mrf.mxu0
        %v3866 = vadd.f32 0.0, %v3865
        %v3867 = vpop.f32.mrf.mxu0
        %v3868 = vadd.f32 0.0, %v3867
        %3869 = vmatmul.bf16.gmra.mxu0 %v3757
        %v3870 = vpop.f32.mrf.mxu0
        %v3871 = vadd.f32 0.0, %v3870
        %v3872 = vpop.f32.mrf.mxu0
        %v3873 = vadd.f32 0.0, %v3872
        %3874 = vmatmul.bf16.gmra.mxu0 %v3758
        %v3875 = vpop.f32.mrf.mxu0
        %v3876 = vadd.f32 0.0, %v3875
        %v3877 = vpop.f32.mrf.mxu0
        %v3878 = vadd.f32 0.0, %v3877
        %3879 = vmatmul.bf16.gmra.mxu0 %v3759
        %v3880 = vpop.f32.mrf.mxu0
        %v3881 = vadd.f32 0.0, %v3880
        %v3882 = vpop.f32.mrf.mxu0
        %v3883 = vadd.f32 0.0, %v3882
        %3884 = vmatmul.bf16.gmra.mxu0 %v3760
        %v3885 = vpop.f32.mrf.mxu0
        %v3886 = vadd.f32 0.0, %v3885
        %v3887 = vpop.f32.mrf.mxu0
        %v3888 = vadd.f32 0.0, %v3887
        %3889 = vmatmul.bf16.gmra.mxu0 %v3761
        %v3890 = vpop.f32.mrf.mxu0
        %v3891 = vadd.f32 0.0, %v3890
        %v3892 = vpop.f32.mrf.mxu0
        %v3893 = vadd.f32 0.0, %v3892
        %3894 = vmatmul.bf16.gmra.mxu0 %v3762
        %v3895 = vpop.f32.mrf.mxu0
        %v3896 = vadd.f32 0.0, %v3895
        %v3897 = vpop.f32.mrf.mxu0
        %v3898 = vadd.f32 0.0, %v3897
        %3899 = vmatmul.bf16.gmra.mxu0 %v3763
        %v3900 = vpop.f32.mrf.mxu0
        %v3901 = vadd.f32 0.0, %v3900
        %v3902 = vpop.f32.mrf.mxu0
        %v3903 = vadd.f32 0.0, %v3902
        %3904 = vmatmul.bf16.gmra.mxu0 %v3764
        %v3905 = vpop.f32.mrf.mxu0
        %v3906 = vadd.f32 0.0, %v3905
        %v3907 = vpop.f32.mrf.mxu0
        %v3908 = vadd.f32 0.0, %v3907
        %3909 = vmatmul.bf16.gmra.mxu0 %v3765
        %v3910 = vpop.f32.mrf.mxu0
        %v3911 = vadd.f32 0.0, %v3910
        %v3912 = vpop.f32.mrf.mxu0
        %v3913 = vadd.f32 0.0, %v3912
        %3914 = vmatmul.bf16.gmra.mxu0 %v3766
        %v3915 = vpop.f32.mrf.mxu0
        %v3916 = vadd.f32 0.0, %v3915
        %v3917 = vpop.f32.mrf.mxu0
        %v3918 = vadd.f32 0.0, %v3917
        %3919 = vdwg.mxu0
        %v3920 = vadd.f32 %v3605, %v3841
        %v3921 = vadd.f32 %v3606, %v3843
        %v3922 = vadd.f32 %v3607, %v3846
        %v3923 = vadd.f32 %v3608, %v3848
        %v3924 = vadd.f32 %v3609, %v3851
        %v3925 = vadd.f32 %v3610, %v3853
        %v3926 = vadd.f32 %v3611, %v3856
        %v3927 = vadd.f32 %v3612, %v3858
        %v3928 = vadd.f32 %v3613, %v3861
        %v3929 = vadd.f32 %v3614, %v3863
        %v3930 = vadd.f32 %v3615, %v3866
        %v3931 = vadd.f32 %v3616, %v3868
        %v3932 = vadd.f32 %v3617, %v3871
        %v3933 = vadd.f32 %v3618, %v3873
        %v3934 = vadd.f32 %v3619, %v3876
        %v3935 = vadd.f32 %v3620, %v3878
        %v3936 = vadd.f32 %v3621, %v3881
        %v3937 = vadd.f32 %v3622, %v3883
        %v3938 = vadd.f32 %v3623, %v3886
        %v3939 = vadd.f32 %v3624, %v3888
        %v3940 = vadd.f32 %v3625, %v3891
        %v3941 = vadd.f32 %v3626, %v3893
        %v3942 = vadd.f32 %v3627, %v3896
        %v3943 = vadd.f32 %v3628, %v3898
        %v3944 = vadd.f32 %v3629, %v3901
        %v3945 = vadd.f32 %v3630, %v3903
        %v3946 = vadd.f32 %v3631, %v3906
        %v3947 = vadd.f32 %v3632, %v3908
        %v3948 = vadd.f32 %v3633, %v3911
        %v3949 = vadd.f32 %v3634, %v3913
        %v3950 = vadd.f32 %v3635, %v3916
        %v3951 = vadd.f32 %v3636, %v3918
        %v3952 = vld [vmem:[%s3637] sm:$0xf]
        %v3953 = vld [vmem:[%s3637 + $0x4] sm:$0xf]
        %v3954 = vld [vmem:[%s3637 + $0x8] sm:$0x1]
        %v3955 = vld [vmem:[%s3637 + $0xc] sm:$0xf]
        %v3956 = vld [vmem:[%s3637 + $0x10] sm:$0xf]
        %v3957 = vld [vmem:[%s3637 + $0x14] sm:$0x1]
        %v3958 = vld [vmem:[%s3637 + $0x18] sm:$0xf]
        %v3959 = vld [vmem:[%s3637 + $0x1c] sm:$0xf]
        %v3960 = vld [vmem:[%s3637 + $0x20] sm:$0x1]
        %v3961 = vld [vmem:[%s3637 + $0x24] sm:$0xf]
        %v3962 = vld [vmem:[%s3637 + $0x28] sm:$0xf]
        %v3963 = vld [vmem:[%s3637 + $0x2c] sm:$0x1]
        %v3964 = vld [vmem:[%s3637 + $0x30] sm:$0xf]
        %v3965 = vld [vmem:[%s3637 + $0x34] sm:$0xf]
        %v3966 = vld [vmem:[%s3637 + $0x38] sm:$0x1]
        %v3967 = vld [vmem:[%s3637 + $0x3c] sm:$0xf]
        %v3968 = vld [vmem:[%s3637 + $0x40] sm:$0xf]
        %v3969 = vld [vmem:[%s3637 + $0x44] sm:$0x1]
        %v3970 = vld [vmem:[%s3637 + $0x48] sm:$0xf]
        %v3971 = vld [vmem:[%s3637 + $0x4c] sm:$0xf]
        %v3972 = vld [vmem:[%s3637 + $0x50] sm:$0x1]
        %v3973 = vld [vmem:[%s3637 + $0x54] sm:$0xf]
        %v3974 = vld [vmem:[%s3637 + $0x58] sm:$0xf]
        %v3975 = vld [vmem:[%s3637 + $0x5c] sm:$0x1]
        %v3976 = vld [vmem:[%s3637 + $0x60] sm:$0xf]
        %v3977 = vld [vmem:[%s3637 + $0x64] sm:$0xf]
        %v3978 = vld [vmem:[%s3637 + $0x68] sm:$0x1]
        %v3979 = vld [vmem:[%s3637 + $0x6c] sm:$0xf]
        %v3980 = vld [vmem:[%s3637 + $0x70] sm:$0xf]
        %v3981 = vld [vmem:[%s3637 + $0x74] sm:$0x1]
        %v3982 = vld [vmem:[%s3637 + $0x78] sm:$0xf]
        %v3983 = vld [vmem:[%s3637 + $0x7c] sm:$0xf]
        %v3984 = vld [vmem:[%s3637 + $0x80] sm:$0x1]
        %v3985 = vld [vmem:[%s3637 + $0x84] sm:$0xf]
        %v3986 = vld [vmem:[%s3637 + $0x88] sm:$0xf]
        %v3987 = vld [vmem:[%s3637 + $0x8c] sm:$0x1]
        %v3988 = vld [vmem:[%s3637 + $0x90] sm:$0xf]
        %v3989 = vld [vmem:[%s3637 + $0x94] sm:$0xf]
        %v3990 = vld [vmem:[%s3637 + $0x98] sm:$0x1]
        %v3991 = vld [vmem:[%s3637 + $0x9c] sm:$0xf]
        %v3992 = vld [vmem:[%s3637 + $0xa0] sm:$0xf]
        %v3993 = vld [vmem:[%s3637 + $0xa4] sm:$0x1]
        %v3994 = vld [vmem:[%s3637 + $0xa8] sm:$0xf]
        %v3995 = vld [vmem:[%s3637 + $0xac] sm:$0xf]
        %v3996 = vld [vmem:[%s3637 + $0xb0] sm:$0x1]
        %v3997 = vld [vmem:[%s3637 + $0xb4] sm:$0xf]
        %v3998 = vld [vmem:[%s3637 + $0xb8] sm:$0xf]
        %v3999 = vld [vmem:[%s3637 + $0xbc] sm:$0x1]
        %v4001 = vshrl.u32 %v3952, 16
        %v4003 = vrot.slane %v4001, 4
        %v4004 = vshll.u32 %v3952, 16
        %v4006 = vrot.slane %v4004, 5
        %v4007 = vor.u32 %v4003, %v4006
        %v4008 = vrot.slane %v4007, 4
        %v4010 = vshll.u32 %v3953, 16
        %v4012 = vrot.slane %v4010, 5
        %v4013 = vsel %vm966, %v4008, %v4012
        %v4014 = vshrl.u32 %v3953, 16
        %v4016 = vrot.slane %v4014, 4
        %v4017 = vor.u32 %v4016, %v4012
        %v4018 = vrot.slane %v4017, 4
        %v4020 = vshll.u32 %v3954, 16
        %v4022 = vrot.slane %v4020, 5
        %v4023 = vsel %vm966, %v4018, %v4022
        %v4025 = vshrl.u32 %v3955, 16
        %v4027 = vrot.slane %v4025, 4
        %v4028 = vshll.u32 %v3955, 16
        %v4030 = vrot.slane %v4028, 5
        %v4031 = vor.u32 %v4027, %v4030
        %v4032 = vrot.slane %v4031, 4
        %v4034 = vshll.u32 %v3956, 16
        %v4036 = vrot.slane %v4034, 5
        %v4037 = vsel %vm966, %v4032, %v4036
        %v4038 = vshrl.u32 %v3956, 16
        %v4040 = vrot.slane %v4038, 4
        %v4041 = vor.u32 %v4040, %v4036
        %v4042 = vrot.slane %v4041, 4
        %v4044 = vshll.u32 %v3957, 16
        %v4046 = vrot.slane %v4044, 5
        %v4047 = vsel %vm966, %v4042, %v4046
        %v4049 = vshrl.u32 %v3958, 16
        %v4051 = vrot.slane %v4049, 4
        %v4052 = vshll.u32 %v3958, 16
        %v4054 = vrot.slane %v4052, 5
        %v4055 = vor.u32 %v4051, %v4054
        %v4056 = vrot.slane %v4055, 4
        %v4058 = vshll.u32 %v3959, 16
        %v4060 = vrot.slane %v4058, 5
        %v4061 = vsel %vm966, %v4056, %v4060
        %v4062 = vshrl.u32 %v3959, 16
        %v4064 = vrot.slane %v4062, 4
        %v4065 = vor.u32 %v4064, %v4060
        %v4066 = vrot.slane %v4065, 4
        %v4068 = vshll.u32 %v3960, 16
        %v4070 = vrot.slane %v4068, 5
        %v4071 = vsel %vm966, %v4066, %v4070
        %v4073 = vshrl.u32 %v3961, 16
        %v4075 = vrot.slane %v4073, 4
        %v4076 = vshll.u32 %v3961, 16
        %v4078 = vrot.slane %v4076, 5
        %v4079 = vor.u32 %v4075, %v4078
        %v4080 = vrot.slane %v4079, 4
        %v4082 = vshll.u32 %v3962, 16
        %v4084 = vrot.slane %v4082, 5
        %v4085 = vsel %vm966, %v4080, %v4084
        %v4086 = vshrl.u32 %v3962, 16
        %v4088 = vrot.slane %v4086, 4
        %v4089 = vor.u32 %v4088, %v4084
        %v4090 = vrot.slane %v4089, 4
        %v4092 = vshll.u32 %v3963, 16
        %v4094 = vrot.slane %v4092, 5
        %v4095 = vsel %vm966, %v4090, %v4094
        %v4097 = vshrl.u32 %v3964, 16
        %v4099 = vrot.slane %v4097, 4
        %v4100 = vshll.u32 %v3964, 16
        %v4102 = vrot.slane %v4100, 5
        %v4103 = vor.u32 %v4099, %v4102
        %v4104 = vrot.slane %v4103, 4
        %v4106 = vshll.u32 %v3965, 16
        %v4108 = vrot.slane %v4106, 5
        %v4109 = vsel %vm966, %v4104, %v4108
        %v4110 = vshrl.u32 %v3965, 16
        %v4112 = vrot.slane %v4110, 4
        %v4113 = vor.u32 %v4112, %v4108
        %v4114 = vrot.slane %v4113, 4
        %v4116 = vshll.u32 %v3966, 16
        %v4118 = vrot.slane %v4116, 5
        %v4119 = vsel %vm966, %v4114, %v4118
        %v4121 = vshrl.u32 %v3967, 16
        %v4123 = vrot.slane %v4121, 4
        %v4124 = vshll.u32 %v3967, 16
        %v4126 = vrot.slane %v4124, 5
        %v4127 = vor.u32 %v4123, %v4126
        %v4128 = vrot.slane %v4127, 4
        %v4130 = vshll.u32 %v3968, 16
        %v4132 = vrot.slane %v4130, 5
        %v4133 = vsel %vm966, %v4128, %v4132
        %v4134 = vshrl.u32 %v3968, 16
        %v4136 = vrot.slane %v4134, 4
        %v4137 = vor.u32 %v4136, %v4132
        %v4138 = vrot.slane %v4137, 4
        %v4140 = vshll.u32 %v3969, 16
        %v4142 = vrot.slane %v4140, 5
        %v4143 = vsel %vm966, %v4138, %v4142
        %v4145 = vshrl.u32 %v3970, 16
        %v4147 = vrot.slane %v4145, 4
        %v4148 = vshll.u32 %v3970, 16
        %v4150 = vrot.slane %v4148, 5
        %v4151 = vor.u32 %v4147, %v4150
        %v4152 = vrot.slane %v4151, 4
        %v4154 = vshll.u32 %v3971, 16
        %v4156 = vrot.slane %v4154, 5
        %v4157 = vsel %vm966, %v4152, %v4156
        %v4158 = vshrl.u32 %v3971, 16
        %v4160 = vrot.slane %v4158, 4
        %v4161 = vor.u32 %v4160, %v4156
        %v4162 = vrot.slane %v4161, 4
        %v4164 = vshll.u32 %v3972, 16
        %v4166 = vrot.slane %v4164, 5
        %v4167 = vsel %vm966, %v4162, %v4166
        %v4169 = vshrl.u32 %v3973, 16
        %v4171 = vrot.slane %v4169, 4
        %v4172 = vshll.u32 %v3973, 16
        %v4174 = vrot.slane %v4172, 5
        %v4175 = vor.u32 %v4171, %v4174
        %v4176 = vrot.slane %v4175, 4
        %v4178 = vshll.u32 %v3974, 16
        %v4180 = vrot.slane %v4178, 5
        %v4181 = vsel %vm966, %v4176, %v4180
        %v4182 = vshrl.u32 %v3974, 16
        %v4184 = vrot.slane %v4182, 4
        %v4185 = vor.u32 %v4184, %v4180
        %v4186 = vrot.slane %v4185, 4
        %v4188 = vshll.u32 %v3975, 16
        %v4190 = vrot.slane %v4188, 5
        %v4191 = vsel %vm966, %v4186, %v4190
        %v4193 = vshrl.u32 %v3976, 16
        %v4195 = vrot.slane %v4193, 4
        %v4196 = vshll.u32 %v3976, 16
        %v4198 = vrot.slane %v4196, 5
        %v4199 = vor.u32 %v4195, %v4198
        %v4200 = vrot.slane %v4199, 4
        %v4202 = vshll.u32 %v3977, 16
        %v4204 = vrot.slane %v4202, 5
        %v4205 = vsel %vm966, %v4200, %v4204
        %v4206 = vshrl.u32 %v3977, 16
        %v4208 = vrot.slane %v4206, 4
        %v4209 = vor.u32 %v4208, %v4204
        %v4210 = vrot.slane %v4209, 4
        %v4212 = vshll.u32 %v3978, 16
        %v4214 = vrot.slane %v4212, 5
        %v4215 = vsel %vm966, %v4210, %v4214
        %v4217 = vshrl.u32 %v3979, 16
        %v4219 = vrot.slane %v4217, 4
        %v4220 = vshll.u32 %v3979, 16
        %v4222 = vrot.slane %v4220, 5
        %v4223 = vor.u32 %v4219, %v4222
        %v4224 = vrot.slane %v4223, 4
        %v4226 = vshll.u32 %v3980, 16
        %v4228 = vrot.slane %v4226, 5
        %v4229 = vsel %vm966, %v4224, %v4228
        %v4230 = vshrl.u32 %v3980, 16
        %v4232 = vrot.slane %v4230, 4
        %v4233 = vor.u32 %v4232, %v4228
        %v4234 = vrot.slane %v4233, 4
        %v4236 = vshll.u32 %v3981, 16
        %v4238 = vrot.slane %v4236, 5
        %v4239 = vsel %vm966, %v4234, %v4238
        %v4241 = vshrl.u32 %v3982, 16
        %v4243 = vrot.slane %v4241, 4
        %v4244 = vshll.u32 %v3982, 16
        %v4246 = vrot.slane %v4244, 5
        %v4247 = vor.u32 %v4243, %v4246
        %v4248 = vrot.slane %v4247, 4
        %v4250 = vshll.u32 %v3983, 16
        %v4252 = vrot.slane %v4250, 5
        %v4253 = vsel %vm966, %v4248, %v4252
        %v4254 = vshrl.u32 %v3983, 16
        %v4256 = vrot.slane %v4254, 4
        %v4257 = vor.u32 %v4256, %v4252
        %v4258 = vrot.slane %v4257, 4
        %v4260 = vshll.u32 %v3984, 16
        %v4262 = vrot.slane %v4260, 5
        %v4263 = vsel %vm966, %v4258, %v4262
        %v4265 = vshrl.u32 %v3985, 16
        %v4267 = vrot.slane %v4265, 4
        %v4268 = vshll.u32 %v3985, 16
        %v4270 = vrot.slane %v4268, 5
        %v4271 = vor.u32 %v4267, %v4270
        %v4272 = vrot.slane %v4271, 4
        %v4274 = vshll.u32 %v3986, 16
        %v4276 = vrot.slane %v4274, 5
        %v4277 = vsel %vm966, %v4272, %v4276
        %v4278 = vshrl.u32 %v3986, 16
        %v4280 = vrot.slane %v4278, 4
        %v4281 = vor.u32 %v4280, %v4276
        %v4282 = vrot.slane %v4281, 4
        %v4284 = vshll.u32 %v3987, 16
        %v4286 = vrot.slane %v4284, 5
        %v4287 = vsel %vm966, %v4282, %v4286
        %v4289 = vshrl.u32 %v3988, 16
        %v4291 = vrot.slane %v4289, 4
        %v4292 = vshll.u32 %v3988, 16
        %v4294 = vrot.slane %v4292, 5
        %v4295 = vor.u32 %v4291, %v4294
        %v4296 = vrot.slane %v4295, 4
        %v4298 = vshll.u32 %v3989, 16
        %v4300 = vrot.slane %v4298, 5
        %v4301 = vsel %vm966, %v4296, %v4300
        %v4302 = vshrl.u32 %v3989, 16
        %v4304 = vrot.slane %v4302, 4
        %v4305 = vor.u32 %v4304, %v4300
        %v4306 = vrot.slane %v4305, 4
        %v4308 = vshll.u32 %v3990, 16
        %v4310 = vrot.slane %v4308, 5
        %v4311 = vsel %vm966, %v4306, %v4310
        %v4313 = vshrl.u32 %v3991, 16
        %v4315 = vrot.slane %v4313, 4
        %v4316 = vshll.u32 %v3991, 16
        %v4318 = vrot.slane %v4316, 5
        %v4319 = vor.u32 %v4315, %v4318
        %v4320 = vrot.slane %v4319, 4
        %v4322 = vshll.u32 %v3992, 16
        %v4324 = vrot.slane %v4322, 5
        %v4325 = vsel %vm966, %v4320, %v4324
        %v4326 = vshrl.u32 %v3992, 16
        %v4328 = vrot.slane %v4326, 4
        %v4329 = vor.u32 %v4328, %v4324
        %v4330 = vrot.slane %v4329, 4
        %v4332 = vshll.u32 %v3993, 16
        %v4334 = vrot.slane %v4332, 5
        %v4335 = vsel %vm966, %v4330, %v4334
        %v4337 = vshrl.u32 %v3994, 16
        %v4339 = vrot.slane %v4337, 4
        %v4340 = vshll.u32 %v3994, 16
        %v4342 = vrot.slane %v4340, 5
        %v4343 = vor.u32 %v4339, %v4342
        %v4344 = vrot.slane %v4343, 4
        %v4346 = vshll.u32 %v3995, 16
        %v4348 = vrot.slane %v4346, 5
        %v4349 = vsel %vm966, %v4344, %v4348
        %v4350 = vshrl.u32 %v3995, 16
        %v4352 = vrot.slane %v4350, 4
        %v4353 = vor.u32 %v4352, %v4348
        %v4354 = vrot.slane %v4353, 4
        %v4356 = vshll.u32 %v3996, 16
        %v4358 = vrot.slane %v4356, 5
        %v4359 = vsel %vm966, %v4354, %v4358
        %v4361 = vshrl.u32 %v3997, 16
        %v4363 = vrot.slane %v4361, 4
        %v4364 = vshll.u32 %v3997, 16
        %v4366 = vrot.slane %v4364, 5
        %v4367 = vor.u32 %v4363, %v4366
        %v4368 = vrot.slane %v4367, 4
        %v4370 = vshll.u32 %v3998, 16
        %v4372 = vrot.slane %v4370, 5
        %v4373 = vsel %vm966, %v4368, %v4372
        %v4374 = vshrl.u32 %v3998, 16
        %v4376 = vrot.slane %v4374, 4
        %v4377 = vor.u32 %v4376, %v4372
        %v4378 = vrot.slane %v4377, 4
        %v4380 = vshll.u32 %v3999, 16
        %v4382 = vrot.slane %v4380, 5
        %v4383 = vsel %vm966, %v4378, %v4382
        %s4384 = scalar_lea.vmem [#allocation6], 448
        %v4385 = vld [vmem:[%s4384] sm:$0xf]
        %v4386 = vld [vmem:[%s4384 + $0x4] sm:$0xf]
        %v4387 = vld [vmem:[%s4384 + $0x8] sm:$0xf]
        %v4388 = vld [vmem:[%s4384 + $0xc] sm:$0xf]
        %v4389 = vld [vmem:[%s4384 + $0x10] sm:$0xf]
        %v4390 = vld [vmem:[%s4384 + $0x14] sm:$0xf]
        %v4391 = vld [vmem:[%s4384 + $0x18] sm:$0xf]
        %v4392 = vld [vmem:[%s4384 + $0x1c] sm:$0xf]
        %v4393 = vld [vmem:[%s4384 + $0x20] sm:$0xf]
        %v4394 = vld [vmem:[%s4384 + $0x24] sm:$0xf]
        %v4395 = vld [vmem:[%s4384 + $0x28] sm:$0xf]
        %v4396 = vld [vmem:[%s4384 + $0x2c] sm:$0xf]
        %v4397 = vld [vmem:[%s4384 + $0x30] sm:$0xf]
        %v4398 = vld [vmem:[%s4384 + $0x34] sm:$0xf]
        %v4399 = vld [vmem:[%s4384 + $0x38] sm:$0xf]
        %v4400 = vld [vmem:[%s4384 + $0x3c] sm:$0xf]
        %v4401 = vunpack.c.l.b16 %v4013
        %v4402 = vunpack.c.l.b16 %v4023
        %v4403 = vunpack.c.l.b16 %v4037
        %v4404 = vunpack.c.l.b16 %v4047
        %v4405 = vunpack.c.l.b16 %v4061
        %v4406 = vunpack.c.l.b16 %v4071
        %v4407 = vunpack.c.l.b16 %v4085
        %v4408 = vunpack.c.l.b16 %v4095
        %v4409 = vunpack.c.l.b16 %v4109
        %v4410 = vunpack.c.l.b16 %v4119
        %v4411 = vunpack.c.l.b16 %v4133
        %v4412 = vunpack.c.l.b16 %v4143
        %v4413 = vunpack.c.l.b16 %v4157
        %v4414 = vunpack.c.l.b16 %v4167
        %v4415 = vunpack.c.l.b16 %v4181
        %v4416 = vunpack.c.l.b16 %v4191
        %v4417 = vunpack.c.l.b16 %v4205
        %v4418 = vunpack.c.l.b16 %v4215
        %v4419 = vunpack.c.l.b16 %v4229
        %v4420 = vunpack.c.l.b16 %v4239
        %v4421 = vunpack.c.l.b16 %v4253
        %v4422 = vunpack.c.l.b16 %v4263
        %v4423 = vunpack.c.l.b16 %v4277
        %v4424 = vunpack.c.l.b16 %v4287
        %v4425 = vunpack.c.l.b16 %v4301
        %v4426 = vunpack.c.l.b16 %v4311
        %v4427 = vunpack.c.l.b16 %v4325
        %v4428 = vunpack.c.l.b16 %v4335
        %v4429 = vunpack.c.l.b16 %v4349
        %v4430 = vunpack.c.l.b16 %v4359
        %v4431 = vunpack.c.l.b16 %v4373
        %v4432 = vunpack.c.l.b16 %v4383
        %v4433 = vpack.c.b16 %v4402, %v4401
        %v4434 = vpack.c.b16 %v4404, %v4403
        %v4435 = vpack.c.b16 %v4406, %v4405
        %v4436 = vpack.c.b16 %v4408, %v4407
        %v4437 = vpack.c.b16 %v4410, %v4409
        %v4438 = vpack.c.b16 %v4412, %v4411
        %v4439 = vpack.c.b16 %v4414, %v4413
        %v4440 = vpack.c.b16 %v4416, %v4415
        %v4441 = vpack.c.b16 %v4418, %v4417
        %v4442 = vpack.c.b16 %v4420, %v4419
        %v4443 = vpack.c.b16 %v4422, %v4421
        %v4444 = vpack.c.b16 %v4424, %v4423
        %v4445 = vpack.c.b16 %v4426, %v4425
        %v4446 = vpack.c.b16 %v4428, %v4427
        %v4447 = vpack.c.b16 %v4430, %v4429
        %v4448 = vpack.c.b16 %v4432, %v4431
        %v4481 = vunpack.c.l.b16 %v4385
        %v4482 = vunpack.c.l.b16 %v4386
        %v4483 = vunpack.c.l.b16 %v4387
        %v4484 = vunpack.c.l.b16 %v4388
        %v4485 = vunpack.c.l.b16 %v4389
        %v4486 = vunpack.c.l.b16 %v4390
        %v4487 = vunpack.c.l.b16 %v4391
        %v4488 = vunpack.c.l.b16 %v4392
        %v4489 = vunpack.c.l.b16 %v4393
        %v4490 = vunpack.c.l.b16 %v4394
        %v4491 = vunpack.c.l.b16 %v4395
        %v4492 = vunpack.c.l.b16 %v4396
        %v4493 = vunpack.c.l.b16 %v4397
        %v4494 = vunpack.c.l.b16 %v4398
        %v4495 = vunpack.c.l.b16 %v4399
        %v4496 = vunpack.c.l.b16 %v4400
        %v4497 = vpack.c.b16 %v4482, %v4481
        %v4498 = vpack.c.b16 %v4484, %v4483
        %v4499 = vpack.c.b16 %v4486, %v4485
        %v4500 = vpack.c.b16 %v4488, %v4487
        %v4501 = vpack.c.b16 %v4490, %v4489
        %v4502 = vpack.c.b16 %v4492, %v4491
        %v4503 = vpack.c.b16 %v4494, %v4493
        %v4504 = vpack.c.b16 %v4496, %v4495
        %4513 = vmatpush.bf16.msra.mxu0 %v4504
        %4514 = vmatpush.bf16.msra.mxu0 %v4503
        %4515 = vmatpush.bf16.msra.mxu0 %v4502
        %4516 = vmatpush.bf16.msra.mxu0 %v4501
        %4517 = vmatpush.bf16.msra.mxu0 %v4500
        %4518 = vmatpush.bf16.msra.mxu0 %v4499
        %4519 = vmatpush.bf16.msra.mxu0 %v4498
        %4520 = vmatpush.bf16.msra.mxu0 %v4497
        %4521 = vmatmul.bf16.gmra.mxu0 %v4433
        %v4522 = vpop.f32.mrf.mxu0
        %v4523 = vadd.f32 0.0, %v4522
        %v4524 = vpop.f32.mrf.mxu0
        %v4525 = vadd.f32 0.0, %v4524
        %4526 = vmatmul.bf16.gmra.mxu0 %v4434
        %v4527 = vpop.f32.mrf.mxu0
        %v4528 = vadd.f32 0.0, %v4527
        %v4529 = vpop.f32.mrf.mxu0
        %v4530 = vadd.f32 0.0, %v4529
        %4531 = vmatmul.bf16.gmra.mxu0 %v4435
        %v4532 = vpop.f32.mrf.mxu0
        %v4533 = vadd.f32 0.0, %v4532
        %v4534 = vpop.f32.mrf.mxu0
        %v4535 = vadd.f32 0.0, %v4534
        %4536 = vmatmul.bf16.gmra.mxu0 %v4436
        %v4537 = vpop.f32.mrf.mxu0
        %v4538 = vadd.f32 0.0, %v4537
        %v4539 = vpop.f32.mrf.mxu0
        %v4540 = vadd.f32 0.0, %v4539
        %4541 = vmatmul.bf16.gmra.mxu0 %v4437
        %v4542 = vpop.f32.mrf.mxu0
        %v4543 = vadd.f32 0.0, %v4542
        %v4544 = vpop.f32.mrf.mxu0
        %v4545 = vadd.f32 0.0, %v4544
        %4546 = vmatmul.bf16.gmra.mxu0 %v4438
        %v4547 = vpop.f32.mrf.mxu0
        %v4548 = vadd.f32 0.0, %v4547
        %v4549 = vpop.f32.mrf.mxu0
        %v4550 = vadd.f32 0.0, %v4549
        %4551 = vmatmul.bf16.gmra.mxu0 %v4439
        %v4552 = vpop.f32.mrf.mxu0
        %v4553 = vadd.f32 0.0, %v4552
        %v4554 = vpop.f32.mrf.mxu0
        %v4555 = vadd.f32 0.0, %v4554
        %4556 = vmatmul.bf16.gmra.mxu0 %v4440
        %v4557 = vpop.f32.mrf.mxu0
        %v4558 = vadd.f32 0.0, %v4557
        %v4559 = vpop.f32.mrf.mxu0
        %v4560 = vadd.f32 0.0, %v4559
        %4561 = vmatmul.bf16.gmra.mxu0 %v4441
        %v4562 = vpop.f32.mrf.mxu0
        %v4563 = vadd.f32 0.0, %v4562
        %v4564 = vpop.f32.mrf.mxu0
        %v4565 = vadd.f32 0.0, %v4564
        %4566 = vmatmul.bf16.gmra.mxu0 %v4442
        %v4567 = vpop.f32.mrf.mxu0
        %v4568 = vadd.f32 0.0, %v4567
        %v4569 = vpop.f32.mrf.mxu0
        %v4570 = vadd.f32 0.0, %v4569
        %4571 = vmatmul.bf16.gmra.mxu0 %v4443
        %v4572 = vpop.f32.mrf.mxu0
        %v4573 = vadd.f32 0.0, %v4572
        %v4574 = vpop.f32.mrf.mxu0
        %v4575 = vadd.f32 0.0, %v4574
        %4576 = vmatmul.bf16.gmra.mxu0 %v4444
        %v4577 = vpop.f32.mrf.mxu0
        %v4578 = vadd.f32 0.0, %v4577
        %v4579 = vpop.f32.mrf.mxu0
        %v4580 = vadd.f32 0.0, %v4579
        %4581 = vmatmul.bf16.gmra.mxu0 %v4445
        %v4582 = vpop.f32.mrf.mxu0
        %v4583 = vadd.f32 0.0, %v4582
        %v4584 = vpop.f32.mrf.mxu0
        %v4585 = vadd.f32 0.0, %v4584
        %4586 = vmatmul.bf16.gmra.mxu0 %v4446
        %v4587 = vpop.f32.mrf.mxu0
        %v4588 = vadd.f32 0.0, %v4587
        %v4589 = vpop.f32.mrf.mxu0
        %v4590 = vadd.f32 0.0, %v4589
        %4591 = vmatmul.bf16.gmra.mxu0 %v4447
        %v4592 = vpop.f32.mrf.mxu0
        %v4593 = vadd.f32 0.0, %v4592
        %v4594 = vpop.f32.mrf.mxu0
        %v4595 = vadd.f32 0.0, %v4594
        %4596 = vmatmul.bf16.gmra.mxu0 %v4448
        %v4597 = vpop.f32.mrf.mxu0
        %v4598 = vadd.f32 0.0, %v4597
        %v4599 = vpop.f32.mrf.mxu0
        %v4600 = vadd.f32 0.0, %v4599
        %4601 = vdwg.mxu0
        %v4602 = vadd.f32 %v3920, %v4523
        %v4603 = vadd.f32 %v3921, %v4525
        %v4604 = vadd.f32 %v3922, %v4528
        %v4605 = vadd.f32 %v3923, %v4530
        %v4606 = vadd.f32 %v3924, %v4533
        %v4607 = vadd.f32 %v3925, %v4535
        %v4608 = vadd.f32 %v3926, %v4538
        %v4609 = vadd.f32 %v3927, %v4540
        %v4610 = vadd.f32 %v3928, %v4543
        %v4611 = vadd.f32 %v3929, %v4545
        %v4612 = vadd.f32 %v3930, %v4548
        %v4613 = vadd.f32 %v3931, %v4550
        %v4614 = vadd.f32 %v3932, %v4553
        %v4615 = vadd.f32 %v3933, %v4555
        %v4616 = vadd.f32 %v3934, %v4558
        %v4617 = vadd.f32 %v3935, %v4560
        %v4618 = vadd.f32 %v3936, %v4563
        %v4619 = vadd.f32 %v3937, %v4565
        %v4620 = vadd.f32 %v3938, %v4568
        %v4621 = vadd.f32 %v3939, %v4570
        %v4622 = vadd.f32 %v3940, %v4573
        %v4623 = vadd.f32 %v3941, %v4575
        %v4624 = vadd.f32 %v3942, %v4578
        %v4625 = vadd.f32 %v3943, %v4580
        %v4626 = vadd.f32 %v3944, %v4583
        %v4627 = vadd.f32 %v3945, %v4585
        %v4628 = vadd.f32 %v3946, %v4588
        %v4629 = vadd.f32 %v3947, %v4590
        %v4630 = vadd.f32 %v3948, %v4593
        %v4631 = vadd.f32 %v3949, %v4595
        %v4632 = vadd.f32 %v3950, %v4598
        %v4633 = vadd.f32 %v3951, %v4600
        %v4634 = vld [vmem:[%s3637] sm:$0xe]
        %v4635 = vld [vmem:[%s3637 + $0xc] sm:$0xe]
        %v4636 = vld [vmem:[%s3637 + $0x18] sm:$0xe]
        %v4637 = vld [vmem:[%s3637 + $0x24] sm:$0xe]
        %v4638 = vld [vmem:[%s3637 + $0x30] sm:$0xe]
        %v4639 = vld [vmem:[%s3637 + $0x3c] sm:$0xe]
        %v4640 = vld [vmem:[%s3637 + $0x48] sm:$0xe]
        %v4641 = vld [vmem:[%s3637 + $0x54] sm:$0xe]
        %v4642 = vld [vmem:[%s3637 + $0x60] sm:$0xe]
        %v4643 = vld [vmem:[%s3637 + $0x6c] sm:$0xe]
        %v4644 = vld [vmem:[%s3637 + $0x78] sm:$0xe]
        %v4645 = vld [vmem:[%s3637 + $0x84] sm:$0xe]
        %v4646 = vld [vmem:[%s3637 + $0x90] sm:$0xe]
        %v4647 = vld [vmem:[%s3637 + $0x9c] sm:$0xe]
        %v4648 = vld [vmem:[%s3637 + $0xa8] sm:$0xe]
        %v4649 = vld [vmem:[%s3637 + $0xb4] sm:$0xe]
        %v4698 = vrot.slane %v4634, 5
        %v4699 = vrot.slane %v4698, 4
        %v4700 = vrot.slane %v3953, 5
        %v4701 = vsel %vm1852, %v4699, %v4700
        %v4702 = vrot.slane %v4700, 4
        %v4703 = vrot.slane %v3954, 5
        %v4704 = vsel %vm1852, %v4702, %v4703
        %v4705 = vrot.slane %v4635, 5
        %v4706 = vrot.slane %v4705, 4
        %v4707 = vrot.slane %v3956, 5
        %v4708 = vsel %vm1852, %v4706, %v4707
        %v4709 = vrot.slane %v4707, 4
        %v4710 = vrot.slane %v3957, 5
        %v4711 = vsel %vm1852, %v4709, %v4710
        %v4712 = vrot.slane %v4636, 5
        %v4713 = vrot.slane %v4712, 4
        %v4714 = vrot.slane %v3959, 5
        %v4715 = vsel %vm1852, %v4713, %v4714
        %v4716 = vrot.slane %v4714, 4
        %v4717 = vrot.slane %v3960, 5
        %v4718 = vsel %vm1852, %v4716, %v4717
        %v4719 = vrot.slane %v4637, 5
        %v4720 = vrot.slane %v4719, 4
        %v4721 = vrot.slane %v3962, 5
        %v4722 = vsel %vm1852, %v4720, %v4721
        %v4723 = vrot.slane %v4721, 4
        %v4724 = vrot.slane %v3963, 5
        %v4725 = vsel %vm1852, %v4723, %v4724
        %v4726 = vrot.slane %v4638, 5
        %v4727 = vrot.slane %v4726, 4
        %v4728 = vrot.slane %v3965, 5
        %v4729 = vsel %vm1852, %v4727, %v4728
        %v4730 = vrot.slane %v4728, 4
        %v4731 = vrot.slane %v3966, 5
        %v4732 = vsel %vm1852, %v4730, %v4731
        %v4733 = vrot.slane %v4639, 5
        %v4734 = vrot.slane %v4733, 4
        %v4735 = vrot.slane %v3968, 5
        %v4736 = vsel %vm1852, %v4734, %v4735
        %v4737 = vrot.slane %v4735, 4
        %v4738 = vrot.slane %v3969, 5
        %v4739 = vsel %vm1852, %v4737, %v4738
        %v4740 = vrot.slane %v4640, 5
        %v4741 = vrot.slane %v4740, 4
        %v4742 = vrot.slane %v3971, 5
        %v4743 = vsel %vm1852, %v4741, %v4742
        %v4744 = vrot.slane %v4742, 4
        %v4745 = vrot.slane %v3972, 5
        %v4746 = vsel %vm1852, %v4744, %v4745
        %v4747 = vrot.slane %v4641, 5
        %v4748 = vrot.slane %v4747, 4
        %v4749 = vrot.slane %v3974, 5
        %v4750 = vsel %vm1852, %v4748, %v4749
        %v4751 = vrot.slane %v4749, 4
        %v4752 = vrot.slane %v3975, 5
        %v4753 = vsel %vm1852, %v4751, %v4752
        %v4754 = vrot.slane %v4642, 5
        %v4755 = vrot.slane %v4754, 4
        %v4756 = vrot.slane %v3977, 5
        %v4757 = vsel %vm1852, %v4755, %v4756
        %v4758 = vrot.slane %v4756, 4
        %v4759 = vrot.slane %v3978, 5
        %v4760 = vsel %vm1852, %v4758, %v4759
        %v4761 = vrot.slane %v4643, 5
        %v4762 = vrot.slane %v4761, 4
        %v4763 = vrot.slane %v3980, 5
        %v4764 = vsel %vm1852, %v4762, %v4763
        %v4765 = vrot.slane %v4763, 4
        %v4766 = vrot.slane %v3981, 5
        %v4767 = vsel %vm1852, %v4765, %v4766
        %v4768 = vrot.slane %v4644, 5
        %v4769 = vrot.slane %v4768, 4
        %v4770 = vrot.slane %v3983, 5
        %v4771 = vsel %vm1852, %v4769, %v4770
        %v4772 = vrot.slane %v4770, 4
        %v4773 = vrot.slane %v3984, 5
        %v4774 = vsel %vm1852, %v4772, %v4773
        %v4775 = vrot.slane %v4645, 5
        %v4776 = vrot.slane %v4775, 4
        %v4777 = vrot.slane %v3986, 5
        %v4778 = vsel %vm1852, %v4776, %v4777
        %v4779 = vrot.slane %v4777, 4
        %v4780 = vrot.slane %v3987, 5
        %v4781 = vsel %vm1852, %v4779, %v4780
        %v4782 = vrot.slane %v4646, 5
        %v4783 = vrot.slane %v4782, 4
        %v4784 = vrot.slane %v3989, 5
        %v4785 = vsel %vm1852, %v4783, %v4784
        %v4786 = vrot.slane %v4784, 4
        %v4787 = vrot.slane %v3990, 5
        %v4788 = vsel %vm1852, %v4786, %v4787
        %v4789 = vrot.slane %v4647, 5
        %v4790 = vrot.slane %v4789, 4
        %v4791 = vrot.slane %v3992, 5
        %v4792 = vsel %vm1852, %v4790, %v4791
        %v4793 = vrot.slane %v4791, 4
        %v4794 = vrot.slane %v3993, 5
        %v4795 = vsel %vm1852, %v4793, %v4794
        %v4796 = vrot.slane %v4648, 5
        %v4797 = vrot.slane %v4796, 4
        %v4798 = vrot.slane %v3995, 5
        %v4799 = vsel %vm1852, %v4797, %v4798
        %v4800 = vrot.slane %v4798, 4
        %v4801 = vrot.slane %v3996, 5
        %v4802 = vsel %vm1852, %v4800, %v4801
        %v4803 = vrot.slane %v4649, 5
        %v4804 = vrot.slane %v4803, 4
        %v4805 = vrot.slane %v3998, 5
        %v4806 = vsel %vm1852, %v4804, %v4805
        %v4807 = vrot.slane %v4805, 4
        %v4808 = vrot.slane %v3999, 5
        %v4809 = vsel %vm1852, %v4807, %v4808
        %s4810 = scalar_lea.vmem [#allocation6], 512
        %v4811 = vld [vmem:[%s4810] sm:$0xf]
        %v4812 = vld [vmem:[%s4810 + $0x4] sm:$0xf]
        %v4813 = vld [vmem:[%s4810 + $0x8] sm:$0xf]
        %v4814 = vld [vmem:[%s4810 + $0xc] sm:$0xf]
        %v4815 = vld [vmem:[%s4810 + $0x10] sm:$0xf]
        %v4816 = vld [vmem:[%s4810 + $0x14] sm:$0xf]
        %v4817 = vld [vmem:[%s4810 + $0x18] sm:$0xf]
        %v4818 = vld [vmem:[%s4810 + $0x1c] sm:$0xf]
        %v4819 = vld [vmem:[%s4810 + $0x20] sm:$0xf]
        %v4820 = vld [vmem:[%s4810 + $0x24] sm:$0xf]
        %v4821 = vld [vmem:[%s4810 + $0x28] sm:$0xf]
        %v4822 = vld [vmem:[%s4810 + $0x2c] sm:$0xf]
        %v4823 = vld [vmem:[%s4810 + $0x30] sm:$0xf]
        %v4824 = vld [vmem:[%s4810 + $0x34] sm:$0xf]
        %v4825 = vld [vmem:[%s4810 + $0x38] sm:$0xf]
        %v4826 = vld [vmem:[%s4810 + $0x3c] sm:$0xf]
        %v4827 = vunpack.c.l.b16 %v4701
        %v4828 = vunpack.c.l.b16 %v4704
        %v4829 = vunpack.c.l.b16 %v4708
        %v4830 = vunpack.c.l.b16 %v4711
        %v4831 = vunpack.c.l.b16 %v4715
        %v4832 = vunpack.c.l.b16 %v4718
        %v4833 = vunpack.c.l.b16 %v4722
        %v4834 = vunpack.c.l.b16 %v4725
        %v4835 = vunpack.c.l.b16 %v4729
        %v4836 = vunpack.c.l.b16 %v4732
        %v4837 = vunpack.c.l.b16 %v4736
        %v4838 = vunpack.c.l.b16 %v4739
        %v4839 = vunpack.c.l.b16 %v4743
        %v4840 = vunpack.c.l.b16 %v4746
        %v4841 = vunpack.c.l.b16 %v4750
        %v4842 = vunpack.c.l.b16 %v4753
        %v4843 = vunpack.c.l.b16 %v4757
        %v4844 = vunpack.c.l.b16 %v4760
        %v4845 = vunpack.c.l.b16 %v4764
        %v4846 = vunpack.c.l.b16 %v4767
        %v4847 = vunpack.c.l.b16 %v4771
        %v4848 = vunpack.c.l.b16 %v4774
        %v4849 = vunpack.c.l.b16 %v4778
        %v4850 = vunpack.c.l.b16 %v4781
        %v4851 = vunpack.c.l.b16 %v4785
        %v4852 = vunpack.c.l.b16 %v4788
        %v4853 = vunpack.c.l.b16 %v4792
        %v4854 = vunpack.c.l.b16 %v4795
        %v4855 = vunpack.c.l.b16 %v4799
        %v4856 = vunpack.c.l.b16 %v4802
        %v4857 = vunpack.c.l.b16 %v4806
        %v4858 = vunpack.c.l.b16 %v4809
        %v4859 = vpack.c.b16 %v4828, %v4827
        %v4860 = vpack.c.b16 %v4830, %v4829
        %v4861 = vpack.c.b16 %v4832, %v4831
        %v4862 = vpack.c.b16 %v4834, %v4833
        %v4863 = vpack.c.b16 %v4836, %v4835
        %v4864 = vpack.c.b16 %v4838, %v4837
        %v4865 = vpack.c.b16 %v4840, %v4839
        %v4866 = vpack.c.b16 %v4842, %v4841
        %v4867 = vpack.c.b16 %v4844, %v4843
        %v4868 = vpack.c.b16 %v4846, %v4845
        %v4869 = vpack.c.b16 %v4848, %v4847
        %v4870 = vpack.c.b16 %v4850, %v4849
        %v4871 = vpack.c.b16 %v4852, %v4851
        %v4872 = vpack.c.b16 %v4854, %v4853
        %v4873 = vpack.c.b16 %v4856, %v4855
        %v4874 = vpack.c.b16 %v4858, %v4857
        %v4907 = vunpack.c.l.b16 %v4811
        %v4908 = vunpack.c.l.b16 %v4812
        %v4909 = vunpack.c.l.b16 %v4813
        %v4910 = vunpack.c.l.b16 %v4814
        %v4911 = vunpack.c.l.b16 %v4815
        %v4912 = vunpack.c.l.b16 %v4816
        %v4913 = vunpack.c.l.b16 %v4817
        %v4914 = vunpack.c.l.b16 %v4818
        %v4915 = vunpack.c.l.b16 %v4819
        %v4916 = vunpack.c.l.b16 %v4820
        %v4917 = vunpack.c.l.b16 %v4821
        %v4918 = vunpack.c.l.b16 %v4822
        %v4919 = vunpack.c.l.b16 %v4823
        %v4920 = vunpack.c.l.b16 %v4824
        %v4921 = vunpack.c.l.b16 %v4825
        %v4922 = vunpack.c.l.b16 %v4826
        %v4923 = vpack.c.b16 %v4908, %v4907
        %v4924 = vpack.c.b16 %v4910, %v4909
        %v4925 = vpack.c.b16 %v4912, %v4911
        %v4926 = vpack.c.b16 %v4914, %v4913
        %v4927 = vpack.c.b16 %v4916, %v4915
        %v4928 = vpack.c.b16 %v4918, %v4917
        %v4929 = vpack.c.b16 %v4920, %v4919
        %v4930 = vpack.c.b16 %v4922, %v4921
        %4939 = vmatpush.bf16.msra.mxu0 %v4930
        %4940 = vmatpush.bf16.msra.mxu0 %v4929
        %4941 = vmatpush.bf16.msra.mxu0 %v4928
        %4942 = vmatpush.bf16.msra.mxu0 %v4927
        %4943 = vmatpush.bf16.msra.mxu0 %v4926
        %4944 = vmatpush.bf16.msra.mxu0 %v4925
        %4945 = vmatpush.bf16.msra.mxu0 %v4924
        %4946 = vmatpush.bf16.msra.mxu0 %v4923
        %4947 = vmatmul.bf16.gmra.mxu0 %v4859
        %v4948 = vpop.f32.mrf.mxu0
        %v4949 = vadd.f32 0.0, %v4948
        %v4950 = vpop.f32.mrf.mxu0
        %v4951 = vadd.f32 0.0, %v4950
        %4952 = vmatmul.bf16.gmra.mxu0 %v4860
        %v4953 = vpop.f32.mrf.mxu0
        %v4954 = vadd.f32 0.0, %v4953
        %v4955 = vpop.f32.mrf.mxu0
        %v4956 = vadd.f32 0.0, %v4955
        %4957 = vmatmul.bf16.gmra.mxu0 %v4861
        %v4958 = vpop.f32.mrf.mxu0
        %v4959 = vadd.f32 0.0, %v4958
        %v4960 = vpop.f32.mrf.mxu0
        %v4961 = vadd.f32 0.0, %v4960
        %4962 = vmatmul.bf16.gmra.mxu0 %v4862
        %v4963 = vpop.f32.mrf.mxu0
        %v4964 = vadd.f32 0.0, %v4963
        %v4965 = vpop.f32.mrf.mxu0
        %v4966 = vadd.f32 0.0, %v4965
        %4967 = vmatmul.bf16.gmra.mxu0 %v4863
        %v4968 = vpop.f32.mrf.mxu0
        %v4969 = vadd.f32 0.0, %v4968
        %v4970 = vpop.f32.mrf.mxu0
        %v4971 = vadd.f32 0.0, %v4970
        %4972 = vmatmul.bf16.gmra.mxu0 %v4864
        %v4973 = vpop.f32.mrf.mxu0
        %v4974 = vadd.f32 0.0, %v4973
        %v4975 = vpop.f32.mrf.mxu0
        %v4976 = vadd.f32 0.0, %v4975
        %4977 = vmatmul.bf16.gmra.mxu0 %v4865
        %v4978 = vpop.f32.mrf.mxu0
        %v4979 = vadd.f32 0.0, %v4978
        %v4980 = vpop.f32.mrf.mxu0
        %v4981 = vadd.f32 0.0, %v4980
        %4982 = vmatmul.bf16.gmra.mxu0 %v4866
        %v4983 = vpop.f32.mrf.mxu0
        %v4984 = vadd.f32 0.0, %v4983
        %v4985 = vpop.f32.mrf.mxu0
        %v4986 = vadd.f32 0.0, %v4985
        %4987 = vmatmul.bf16.gmra.mxu0 %v4867
        %v4988 = vpop.f32.mrf.mxu0
        %v4989 = vadd.f32 0.0, %v4988
        %v4990 = vpop.f32.mrf.mxu0
        %v4991 = vadd.f32 0.0, %v4990
        %4992 = vmatmul.bf16.gmra.mxu0 %v4868
        %v4993 = vpop.f32.mrf.mxu0
        %v4994 = vadd.f32 0.0, %v4993
        %v4995 = vpop.f32.mrf.mxu0
        %v4996 = vadd.f32 0.0, %v4995
        %4997 = vmatmul.bf16.gmra.mxu0 %v4869
        %v4998 = vpop.f32.mrf.mxu0
        %v4999 = vadd.f32 0.0, %v4998
        %v5000 = vpop.f32.mrf.mxu0
        %v5001 = vadd.f32 0.0, %v5000
        %5002 = vmatmul.bf16.gmra.mxu0 %v4870
        %v5003 = vpop.f32.mrf.mxu0
        %v5004 = vadd.f32 0.0, %v5003
        %v5005 = vpop.f32.mrf.mxu0
        %v5006 = vadd.f32 0.0, %v5005
        %5007 = vmatmul.bf16.gmra.mxu0 %v4871
        %v5008 = vpop.f32.mrf.mxu0
        %v5009 = vadd.f32 0.0, %v5008
        %v5010 = vpop.f32.mrf.mxu0
        %v5011 = vadd.f32 0.0, %v5010
        %5012 = vmatmul.bf16.gmra.mxu0 %v4872
        %v5013 = vpop.f32.mrf.mxu0
        %v5014 = vadd.f32 0.0, %v5013
        %v5015 = vpop.f32.mrf.mxu0
        %v5016 = vadd.f32 0.0, %v5015
        %5017 = vmatmul.bf16.gmra.mxu0 %v4873
        %v5018 = vpop.f32.mrf.mxu0
        %v5019 = vadd.f32 0.0, %v5018
        %v5020 = vpop.f32.mrf.mxu0
        %v5021 = vadd.f32 0.0, %v5020
        %5022 = vmatmul.bf16.gmra.mxu0 %v4874
        %v5023 = vpop.f32.mrf.mxu0
        %v5024 = vadd.f32 0.0, %v5023
        %v5025 = vpop.f32.mrf.mxu0
        %v5026 = vadd.f32 0.0, %v5025
        %5027 = vdwg.mxu0
        %v5028 = vadd.f32 %v4602, %v4949
        %v5029 = vadd.f32 %v4603, %v4951
        %v5030 = vadd.f32 %v4604, %v4954
        %v5031 = vadd.f32 %v4605, %v4956
        %v5032 = vadd.f32 %v4606, %v4959
        %v5033 = vadd.f32 %v4607, %v4961
        %v5034 = vadd.f32 %v4608, %v4964
        %v5035 = vadd.f32 %v4609, %v4966
        %v5036 = vadd.f32 %v4610, %v4969
        %v5037 = vadd.f32 %v4611, %v4971
        %v5038 = vadd.f32 %v4612, %v4974
        %v5039 = vadd.f32 %v4613, %v4976
        %v5040 = vadd.f32 %v4614, %v4979
        %v5041 = vadd.f32 %v4615, %v4981
        %v5042 = vadd.f32 %v4616, %v4984
        %v5043 = vadd.f32 %v4617, %v4986
        %v5044 = vadd.f32 %v4618, %v4989
        %v5045 = vadd.f32 %v4619, %v4991
        %v5046 = vadd.f32 %v4620, %v4994
        %v5047 = vadd.f32 %v4621, %v4996
        %v5048 = vadd.f32 %v4622, %v4999
        %v5049 = vadd.f32 %v4623, %v5001
        %v5050 = vadd.f32 %v4624, %v5004
        %v5051 = vadd.f32 %v4625, %v5006
        %v5052 = vadd.f32 %v4626, %v5009
        %v5053 = vadd.f32 %v4627, %v5011
        %v5054 = vadd.f32 %v4628, %v5014
        %v5055 = vadd.f32 %v4629, %v5016
        %v5056 = vadd.f32 %v4630, %v5019
        %v5057 = vadd.f32 %v4631, %v5021
        %v5058 = vadd.f32 %v4632, %v5024
        %v5059 = vadd.f32 %v4633, %v5026
        %v5060 = vld [vmem:[%s2] sm:$0x1]
        %v5062 = vperm.slane %v5060, 0
        %v5064 = vadd.f32 %v5028, %v5062
        %v5065 = vadd.f32 %v5029, %v5062
        %v5066 = vadd.f32 %v5030, %v5062
        %v5067 = vadd.f32 %v5031, %v5062
        %v5068 = vadd.f32 %v5032, %v5062
        %v5069 = vadd.f32 %v5033, %v5062
        %v5070 = vadd.f32 %v5034, %v5062
        %v5071 = vadd.f32 %v5035, %v5062
        %v5072 = vadd.f32 %v5036, %v5062
        %v5073 = vadd.f32 %v5037, %v5062
        %v5074 = vadd.f32 %v5038, %v5062
        %v5075 = vadd.f32 %v5039, %v5062
        %v5076 = vadd.f32 %v5040, %v5062
        %v5077 = vadd.f32 %v5041, %v5062
        %v5078 = vadd.f32 %v5042, %v5062
        %v5079 = vadd.f32 %v5043, %v5062
        %v5080 = vadd.f32 %v5044, %v5062
        %v5081 = vadd.f32 %v5045, %v5062
        %v5082 = vadd.f32 %v5046, %v5062
        %v5083 = vadd.f32 %v5047, %v5062
        %v5084 = vadd.f32 %v5048, %v5062
        %v5085 = vadd.f32 %v5049, %v5062
        %v5086 = vadd.f32 %v5050, %v5062
        %v5087 = vadd.f32 %v5051, %v5062
        %v5088 = vadd.f32 %v5052, %v5062
        %v5089 = vadd.f32 %v5053, %v5062
        %v5090 = vadd.f32 %v5054, %v5062
        %v5091 = vadd.f32 %v5055, %v5062
        %v5092 = vadd.f32 %v5056, %v5062
        %v5093 = vadd.f32 %v5057, %v5062
        %v5094 = vadd.f32 %v5058, %v5062
        %v5095 = vadd.f32 %v5059, %v5062
        %v5096 = vmax.f32 %v5064, 0.0
        %v5097 = vmax.f32 %v5065, 0.0
        %v5098 = vmax.f32 %v5066, 0.0
        %v5099 = vmax.f32 %v5067, 0.0
        %v5100 = vmax.f32 %v5068, 0.0
        %v5101 = vmax.f32 %v5069, 0.0
        %v5102 = vmax.f32 %v5070, 0.0
        %v5103 = vmax.f32 %v5071, 0.0
        %v5104 = vmax.f32 %v5072, 0.0
        %v5105 = vmax.f32 %v5073, 0.0
        %v5106 = vmax.f32 %v5074, 0.0
        %v5107 = vmax.f32 %v5075, 0.0
        %v5108 = vmax.f32 %v5076, 0.0
        %v5109 = vmax.f32 %v5077, 0.0
        %v5110 = vmax.f32 %v5078, 0.0
        %v5111 = vmax.f32 %v5079, 0.0
        %v5112 = vmax.f32 %v5080, 0.0
        %v5113 = vmax.f32 %v5081, 0.0
        %v5114 = vmax.f32 %v5082, 0.0
        %v5115 = vmax.f32 %v5083, 0.0
        %v5116 = vmax.f32 %v5084, 0.0
        %v5117 = vmax.f32 %v5085, 0.0
        %v5118 = vmax.f32 %v5086, 0.0
        %v5119 = vmax.f32 %v5087, 0.0
        %v5120 = vmax.f32 %v5088, 0.0
        %v5121 = vmax.f32 %v5089, 0.0
        %v5122 = vmax.f32 %v5090, 0.0
        %v5123 = vmax.f32 %v5091, 0.0
        %v5124 = vmax.f32 %v5092, 0.0
        %v5125 = vmax.f32 %v5093, 0.0
        %v5126 = vmax.f32 %v5094, 0.0
        %v5127 = vmax.f32 %v5095, 0.0
        %v5128 = vpack.c.bf16 %v5096, %v5096
        %v5129 = vpack.c.bf16 %v5097, %v5097
        %v5130 = vpack.c.bf16 %v5098, %v5098
        %v5131 = vpack.c.bf16 %v5099, %v5099
        %v5132 = vpack.c.bf16 %v5100, %v5100
        %v5133 = vpack.c.bf16 %v5101, %v5101
        %v5134 = vpack.c.bf16 %v5102, %v5102
        %v5135 = vpack.c.bf16 %v5103, %v5103
        %v5136 = vpack.c.bf16 %v5104, %v5104
        %v5137 = vpack.c.bf16 %v5105, %v5105
        %v5138 = vpack.c.bf16 %v5106, %v5106
        %v5139 = vpack.c.bf16 %v5107, %v5107
        %v5140 = vpack.c.bf16 %v5108, %v5108
        %v5141 = vpack.c.bf16 %v5109, %v5109
        %v5142 = vpack.c.bf16 %v5110, %v5110
        %v5143 = vpack.c.bf16 %v5111, %v5111
        %v5144 = vpack.c.bf16 %v5112, %v5112
        %v5145 = vpack.c.bf16 %v5113, %v5113
        %v5146 = vpack.c.bf16 %v5114, %v5114
        %v5147 = vpack.c.bf16 %v5115, %v5115
        %v5148 = vpack.c.bf16 %v5116, %v5116
        %v5149 = vpack.c.bf16 %v5117, %v5117
        %v5150 = vpack.c.bf16 %v5118, %v5118
        %v5151 = vpack.c.bf16 %v5119, %v5119
        %v5152 = vpack.c.bf16 %v5120, %v5120
        %v5153 = vpack.c.bf16 %v5121, %v5121
        %v5154 = vpack.c.bf16 %v5122, %v5122
        %v5155 = vpack.c.bf16 %v5123, %v5123
        %v5156 = vpack.c.bf16 %v5124, %v5124
        %v5157 = vpack.c.bf16 %v5125, %v5125
        %v5158 = vpack.c.bf16 %v5126, %v5126
        %v5159 = vpack.c.bf16 %v5127, %v5127
        %v5161 = vshrl.u32 %v5128, 16
        %v5163 = vrot.slane %v5161, 7
        %v5164 = vshll.u32 %v5128, 16
        %v5166 = vor.u32 %v5163, %v5164
        %v5167 = vrot.slane %v5163, 4
        %v5169 = vshrl.u32 %v5129, 16
        %v5171 = vrot.slane %v5169, 7
        %v5172 = vshll.u32 %v5129, 16
        %v5174 = vor.u32 %v5171, %v5172
        %v5175 = vsel %vm464, %v5167, %v5174
        %v5176 = vrot.slane %v5171, 4
        %v5178 = vshrl.u32 %v5130, 16
        %v5180 = vrot.slane %v5178, 7
        %v5181 = vshll.u32 %v5130, 16
        %v5183 = vor.u32 %v5180, %v5181
        %v5184 = vrot.slane %v5180, 4
        %v5186 = vshrl.u32 %v5131, 16
        %v5188 = vrot.slane %v5186, 7
        %v5189 = vshll.u32 %v5131, 16
        %v5191 = vor.u32 %v5188, %v5189
        %v5192 = vsel %vm464, %v5184, %v5191
        %v5193 = vrot.slane %v5188, 4
        %v5195 = vshrl.u32 %v5132, 16
        %v5197 = vrot.slane %v5195, 7
        %v5198 = vshll.u32 %v5132, 16
        %v5200 = vor.u32 %v5197, %v5198
        %v5201 = vrot.slane %v5197, 4
        %v5203 = vshrl.u32 %v5133, 16
        %v5205 = vrot.slane %v5203, 7
        %v5206 = vshll.u32 %v5133, 16
        %v5208 = vor.u32 %v5205, %v5206
        %v5209 = vsel %vm464, %v5201, %v5208
        %v5210 = vrot.slane %v5205, 4
        %v5212 = vshrl.u32 %v5134, 16
        %v5214 = vrot.slane %v5212, 7
        %v5215 = vshll.u32 %v5134, 16
        %v5217 = vor.u32 %v5214, %v5215
        %v5218 = vrot.slane %v5214, 4
        %v5220 = vshrl.u32 %v5135, 16
        %v5222 = vrot.slane %v5220, 7
        %v5223 = vshll.u32 %v5135, 16
        %v5225 = vor.u32 %v5222, %v5223
        %v5226 = vsel %vm464, %v5218, %v5225
        %v5227 = vrot.slane %v5222, 4
        %v5229 = vshrl.u32 %v5136, 16
        %v5231 = vrot.slane %v5229, 7
        %v5232 = vshll.u32 %v5136, 16
        %v5234 = vor.u32 %v5231, %v5232
        %v5235 = vrot.slane %v5231, 4
        %v5237 = vshrl.u32 %v5137, 16
        %v5239 = vrot.slane %v5237, 7
        %v5240 = vshll.u32 %v5137, 16
        %v5242 = vor.u32 %v5239, %v5240
        %v5243 = vsel %vm464, %v5235, %v5242
        %v5244 = vrot.slane %v5239, 4
        %v5246 = vshrl.u32 %v5138, 16
        %v5248 = vrot.slane %v5246, 7
        %v5249 = vshll.u32 %v5138, 16
        %v5251 = vor.u32 %v5248, %v5249
        %v5252 = vrot.slane %v5248, 4
        %v5254 = vshrl.u32 %v5139, 16
        %v5256 = vrot.slane %v5254, 7
        %v5257 = vshll.u32 %v5139, 16
        %v5259 = vor.u32 %v5256, %v5257
        %v5260 = vsel %vm464, %v5252, %v5259
        %v5261 = vrot.slane %v5256, 4
        %v5263 = vshrl.u32 %v5140, 16
        %v5265 = vrot.slane %v5263, 7
        %v5266 = vshll.u32 %v5140, 16
        %v5268 = vor.u32 %v5265, %v5266
        %v5269 = vrot.slane %v5265, 4
        %v5271 = vshrl.u32 %v5141, 16
        %v5273 = vrot.slane %v5271, 7
        %v5274 = vshll.u32 %v5141, 16
        %v5276 = vor.u32 %v5273, %v5274
        %v5277 = vsel %vm464, %v5269, %v5276
        %v5278 = vrot.slane %v5273, 4
        %v5280 = vshrl.u32 %v5142, 16
        %v5282 = vrot.slane %v5280, 7
        %v5283 = vshll.u32 %v5142, 16
        %v5285 = vor.u32 %v5282, %v5283
        %v5286 = vrot.slane %v5282, 4
        %v5288 = vshrl.u32 %v5143, 16
        %v5290 = vrot.slane %v5288, 7
        %v5291 = vshll.u32 %v5143, 16
        %v5293 = vor.u32 %v5290, %v5291
        %v5294 = vsel %vm464, %v5286, %v5293
        %v5295 = vrot.slane %v5290, 4
        %v5297 = vshrl.u32 %v5144, 16
        %v5299 = vrot.slane %v5297, 7
        %v5300 = vshll.u32 %v5144, 16
        %v5302 = vor.u32 %v5299, %v5300
        %v5303 = vrot.slane %v5299, 4
        %v5305 = vshrl.u32 %v5145, 16
        %v5307 = vrot.slane %v5305, 7
        %v5308 = vshll.u32 %v5145, 16
        %v5310 = vor.u32 %v5307, %v5308
        %v5311 = vsel %vm464, %v5303, %v5310
        %v5312 = vrot.slane %v5307, 4
        %v5314 = vshrl.u32 %v5146, 16
        %v5316 = vrot.slane %v5314, 7
        %v5317 = vshll.u32 %v5146, 16
        %v5319 = vor.u32 %v5316, %v5317
        %v5320 = vrot.slane %v5316, 4
        %v5322 = vshrl.u32 %v5147, 16
        %v5324 = vrot.slane %v5322, 7
        %v5325 = vshll.u32 %v5147, 16
        %v5327 = vor.u32 %v5324, %v5325
        %v5328 = vsel %vm464, %v5320, %v5327
        %v5329 = vrot.slane %v5324, 4
        %v5331 = vshrl.u32 %v5148, 16
        %v5333 = vrot.slane %v5331, 7
        %v5334 = vshll.u32 %v5148, 16
        %v5336 = vor.u32 %v5333, %v5334
        %v5337 = vrot.slane %v5333, 4
        %v5339 = vshrl.u32 %v5149, 16
        %v5341 = vrot.slane %v5339, 7
        %v5342 = vshll.u32 %v5149, 16
        %v5344 = vor.u32 %v5341, %v5342
        %v5345 = vsel %vm464, %v5337, %v5344
        %v5346 = vrot.slane %v5341, 4
        %v5348 = vshrl.u32 %v5150, 16
        %v5350 = vrot.slane %v5348, 7
        %v5351 = vshll.u32 %v5150, 16
        %v5353 = vor.u32 %v5350, %v5351
        %v5354 = vrot.slane %v5350, 4
        %v5356 = vshrl.u32 %v5151, 16
        %v5358 = vrot.slane %v5356, 7
        %v5359 = vshll.u32 %v5151, 16
        %v5361 = vor.u32 %v5358, %v5359
        %v5362 = vsel %vm464, %v5354, %v5361
        %v5363 = vrot.slane %v5358, 4
        %v5365 = vshrl.u32 %v5152, 16
        %v5367 = vrot.slane %v5365, 7
        %v5368 = vshll.u32 %v5152, 16
        %v5370 = vor.u32 %v5367, %v5368
        %v5371 = vrot.slane %v5367, 4
        %v5373 = vshrl.u32 %v5153, 16
        %v5375 = vrot.slane %v5373, 7
        %v5376 = vshll.u32 %v5153, 16
        %v5378 = vor.u32 %v5375, %v5376
        %v5379 = vsel %vm464, %v5371, %v5378
        %v5380 = vrot.slane %v5375, 4
        %v5382 = vshrl.u32 %v5154, 16
        %v5384 = vrot.slane %v5382, 7
        %v5385 = vshll.u32 %v5154, 16
        %v5387 = vor.u32 %v5384, %v5385
        %v5388 = vrot.slane %v5384, 4
        %v5390 = vshrl.u32 %v5155, 16
        %v5392 = vrot.slane %v5390, 7
        %v5393 = vshll.u32 %v5155, 16
        %v5395 = vor.u32 %v5392, %v5393
        %v5396 = vsel %vm464, %v5388, %v5395
        %v5397 = vrot.slane %v5392, 4
        %v5399 = vshrl.u32 %v5156, 16
        %v5401 = vrot.slane %v5399, 7
        %v5402 = vshll.u32 %v5156, 16
        %v5404 = vor.u32 %v5401, %v5402
        %v5405 = vrot.slane %v5401, 4
        %v5407 = vshrl.u32 %v5157, 16
        %v5409 = vrot.slane %v5407, 7
        %v5410 = vshll.u32 %v5157, 16
        %v5412 = vor.u32 %v5409, %v5410
        %v5413 = vsel %vm464, %v5405, %v5412
        %v5414 = vrot.slane %v5409, 4
        %v5416 = vshrl.u32 %v5158, 16
        %v5418 = vrot.slane %v5416, 7
        %v5419 = vshll.u32 %v5158, 16
        %v5421 = vor.u32 %v5418, %v5419
        %v5422 = vrot.slane %v5418, 4
        %v5424 = vshrl.u32 %v5159, 16
        %v5426 = vrot.slane %v5424, 7
        %v5427 = vshll.u32 %v5159, 16
        %v5429 = vor.u32 %v5426, %v5427
        %v5430 = vsel %vm464, %v5422, %v5429
        %v5431 = vrot.slane %v5426, 4
        %v5480 = vsel %vm787, %v5166, %v2529
        %5481 = vst [vmem:[%s785] sm:$0xf] %v5480
        %5482 = vst [vmem:[%s785 + $0x4] sm:$0xf] %v5175
        %v5483 = vld [vmem:[%s785 + $0x8] sm:$0x1]
        %v5484 = vsel %vm288, %v5176, %v5483
        %5485 = vst [vmem:[%s785 + $0x8] sm:$0x1] %v5484
        %v5486 = vld [vmem:[%s785 + $0xc] sm:$0xf]
        %v5487 = vsel %vm787, %v5183, %v5486
        %5488 = vst [vmem:[%s785 + $0xc] sm:$0xf] %v5487
        %5489 = vst [vmem:[%s785 + $0x10] sm:$0xf] %v5192
        %v5490 = vld [vmem:[%s785 + $0x14] sm:$0x1]
        %v5491 = vsel %vm288, %v5193, %v5490
        %5492 = vst [vmem:[%s785 + $0x14] sm:$0x1] %v5491
        %v5493 = vld [vmem:[%s785 + $0x18] sm:$0xf]
        %v5494 = vsel %vm787, %v5200, %v5493
        %5495 = vst [vmem:[%s785 + $0x18] sm:$0xf] %v5494
        %5496 = vst [vmem:[%s785 + $0x1c] sm:$0xf] %v5209
        %v5497 = vld [vmem:[%s785 + $0x20] sm:$0x1]
        %v5498 = vsel %vm288, %v5210, %v5497
        %5499 = vst [vmem:[%s785 + $0x20] sm:$0x1] %v5498
        %v5500 = vld [vmem:[%s785 + $0x24] sm:$0xf]
        %v5501 = vsel %vm787, %v5217, %v5500
        %5502 = vst [vmem:[%s785 + $0x24] sm:$0xf] %v5501
        %5503 = vst [vmem:[%s785 + $0x28] sm:$0xf] %v5226
        %v5504 = vld [vmem:[%s785 + $0x2c] sm:$0x1]
        %v5505 = vsel %vm288, %v5227, %v5504
        %5506 = vst [vmem:[%s785 + $0x2c] sm:$0x1] %v5505
        %v5507 = vld [vmem:[%s785 + $0x30] sm:$0xf]
        %v5508 = vsel %vm787, %v5234, %v5507
        %5509 = vst [vmem:[%s785 + $0x30] sm:$0xf] %v5508
        %5510 = vst [vmem:[%s785 + $0x34] sm:$0xf] %v5243
        %v5511 = vld [vmem:[%s785 + $0x38] sm:$0x1]
        %v5512 = vsel %vm288, %v5244, %v5511
        %5513 = vst [vmem:[%s785 + $0x38] sm:$0x1] %v5512
        %v5514 = vld [vmem:[%s785 + $0x3c] sm:$0xf]
        %v5515 = vsel %vm787, %v5251, %v5514
        %5516 = vst [vmem:[%s785 + $0x3c] sm:$0xf] %v5515
        %5517 = vst [vmem:[%s785 + $0x40] sm:$0xf] %v5260
        %v5518 = vld [vmem:[%s785 + $0x44] sm:$0x1]
        %v5519 = vsel %vm288, %v5261, %v5518
        %5520 = vst [vmem:[%s785 + $0x44] sm:$0x1] %v5519
        %v5521 = vld [vmem:[%s785 + $0x48] sm:$0xf]
        %v5522 = vsel %vm787, %v5268, %v5521
        %5523 = vst [vmem:[%s785 + $0x48] sm:$0xf] %v5522
        %5524 = vst [vmem:[%s785 + $0x4c] sm:$0xf] %v5277
        %v5525 = vld [vmem:[%s785 + $0x50] sm:$0x1]
        %v5526 = vsel %vm288, %v5278, %v5525
        %5527 = vst [vmem:[%s785 + $0x50] sm:$0x1] %v5526
        %v5528 = vld [vmem:[%s785 + $0x54] sm:$0xf]
        %v5529 = vsel %vm787, %v5285, %v5528
        %5530 = vst [vmem:[%s785 + $0x54] sm:$0xf] %v5529
        %5531 = vst [vmem:[%s785 + $0x58] sm:$0xf] %v5294
        %v5532 = vld [vmem:[%s785 + $0x5c] sm:$0x1]
        %v5533 = vsel %vm288, %v5295, %v5532
        %5534 = vst [vmem:[%s785 + $0x5c] sm:$0x1] %v5533
        %v5535 = vld [vmem:[%s785 + $0x60] sm:$0xf]
        %v5536 = vsel %vm787, %v5302, %v5535
        %5537 = vst [vmem:[%s785 + $0x60] sm:$0xf] %v5536
        %5538 = vst [vmem:[%s785 + $0x64] sm:$0xf] %v5311
        %v5539 = vld [vmem:[%s785 + $0x68] sm:$0x1]
        %v5540 = vsel %vm288, %v5312, %v5539
        %5541 = vst [vmem:[%s785 + $0x68] sm:$0x1] %v5540
        %v5542 = vld [vmem:[%s785 + $0x6c] sm:$0xf]
        %v5543 = vsel %vm787, %v5319, %v5542
        %5544 = vst [vmem:[%s785 + $0x6c] sm:$0xf] %v5543
        %5545 = vst [vmem:[%s785 + $0x70] sm:$0xf] %v5328
        %v5546 = vld [vmem:[%s785 + $0x74] sm:$0x1]
        %v5547 = vsel %vm288, %v5329, %v5546
        %5548 = vst [vmem:[%s785 + $0x74] sm:$0x1] %v5547
        %v5549 = vld [vmem:[%s785 + $0x78] sm:$0xf]
        %v5550 = vsel %vm787, %v5336, %v5549
        %5551 = vst [vmem:[%s785 + $0x78] sm:$0xf] %v5550
        %5552 = vst [vmem:[%s785 + $0x7c] sm:$0xf] %v5345
        %v5553 = vld [vmem:[%s785 + $0x80] sm:$0x1]
        %v5554 = vsel %vm288, %v5346, %v5553
        %5555 = vst [vmem:[%s785 + $0x80] sm:$0x1] %v5554
        %v5556 = vld [vmem:[%s785 + $0x84] sm:$0xf]
        %v5557 = vsel %vm787, %v5353, %v5556
        %5558 = vst [vmem:[%s785 + $0x84] sm:$0xf] %v5557
        %5559 = vst [vmem:[%s785 + $0x88] sm:$0xf] %v5362
        %v5560 = vld [vmem:[%s785 + $0x8c] sm:$0x1]
        %v5561 = vsel %vm288, %v5363, %v5560
        %5562 = vst [vmem:[%s785 + $0x8c] sm:$0x1] %v5561
        %v5563 = vld [vmem:[%s785 + $0x90] sm:$0xf]
        %v5564 = vsel %vm787, %v5370, %v5563
        %5565 = vst [vmem:[%s785 + $0x90] sm:$0xf] %v5564
        %5566 = vst [vmem:[%s785 + $0x94] sm:$0xf] %v5379
        %v5567 = vld [vmem:[%s785 + $0x98] sm:$0x1]
        %v5568 = vsel %vm288, %v5380, %v5567
        %5569 = vst [vmem:[%s785 + $0x98] sm:$0x1] %v5568
        %v5570 = vld [vmem:[%s785 + $0x9c] sm:$0xf]
        %v5571 = vsel %vm787, %v5387, %v5570
        %5572 = vst [vmem:[%s785 + $0x9c] sm:$0xf] %v5571
        %5573 = vst [vmem:[%s785 + $0xa0] sm:$0xf] %v5396
        %v5574 = vld [vmem:[%s785 + $0xa4] sm:$0x1]
        %v5575 = vsel %vm288, %v5397, %v5574
        %5576 = vst [vmem:[%s785 + $0xa4] sm:$0x1] %v5575
        %v5577 = vld [vmem:[%s785 + $0xa8] sm:$0xf]
        %v5578 = vsel %vm787, %v5404, %v5577
        %5579 = vst [vmem:[%s785 + $0xa8] sm:$0xf] %v5578
        %5580 = vst [vmem:[%s785 + $0xac] sm:$0xf] %v5413
        %v5581 = vld [vmem:[%s785 + $0xb0] sm:$0x1]
        %v5582 = vsel %vm288, %v5414, %v5581
        %5583 = vst [vmem:[%s785 + $0xb0] sm:$0x1] %v5582
        %v5584 = vld [vmem:[%s785 + $0xb4] sm:$0xf]
        %v5585 = vsel %vm787, %v5421, %v5584
        %5586 = vst [vmem:[%s785 + $0xb4] sm:$0xf] %v5585
        %5587 = vst [vmem:[%s785 + $0xb8] sm:$0xf] %v5430
        %v5588 = vld [vmem:[%s785 + $0xbc] sm:$0x1]
        %v5589 = vsel %vm288, %v5431, %v5588
        %5590 = vst [vmem:[%s785 + $0xbc] sm:$0x1] %v5589
        %v5591 = vld [vmem:[#allocation2] sm:$0xf]
        %v5592 = vld [vmem:[#allocation2 + $0x4] sm:$0xf]
        %v5593 = vld [vmem:[#allocation2 + $0xc] sm:$0xf]
        %v5594 = vld [vmem:[#allocation2 + $0x10] sm:$0xf]
        %v5595 = vld [vmem:[#allocation2 + $0x18] sm:$0xf]
        %v5596 = vld [vmem:[#allocation2 + $0x1c] sm:$0xf]
        %v5597 = vld [vmem:[#allocation2 + $0x24] sm:$0xf]
        %v5598 = vld [vmem:[#allocation2 + $0x28] sm:$0xf]
        %v5599 = vld [vmem:[#allocation2 + $0x30] sm:$0xf]
        %v5600 = vld [vmem:[#allocation2 + $0x34] sm:$0xf]
        %v5601 = vld [vmem:[#allocation2 + $0x3c] sm:$0xf]
        %v5602 = vld [vmem:[#allocation2 + $0x40] sm:$0xf]
        %v5603 = vld [vmem:[#allocation2 + $0x48] sm:$0xf]
        %v5604 = vld [vmem:[#allocation2 + $0x4c] sm:$0xf]
        %v5605 = vld [vmem:[#allocation2 + $0x54] sm:$0xf]
        %v5606 = vld [vmem:[#allocation2 + $0x58] sm:$0xf]
        %v5607 = vld [vmem:[#allocation2 + $0x60] sm:$0xf]
        %v5608 = vld [vmem:[#allocation2 + $0x64] sm:$0xf]
        %v5609 = vld [vmem:[#allocation2 + $0x6c] sm:$0xf]
        %v5610 = vld [vmem:[#allocation2 + $0x70] sm:$0xf]
        %v5611 = vld [vmem:[#allocation2 + $0x78] sm:$0xf]
        %v5612 = vld [vmem:[#allocation2 + $0x7c] sm:$0xf]
        %v5613 = vld [vmem:[#allocation2 + $0x84] sm:$0xf]
        %v5614 = vld [vmem:[#allocation2 + $0x88] sm:$0xf]
        %v5615 = vld [vmem:[#allocation2 + $0x90] sm:$0xf]
        %v5616 = vld [vmem:[#allocation2 + $0x94] sm:$0xf]
        %v5617 = vld [vmem:[#allocation2 + $0x9c] sm:$0xf]
        %v5618 = vld [vmem:[#allocation2 + $0xa0] sm:$0xf]
        %v5619 = vld [vmem:[#allocation2 + $0xa8] sm:$0xf]
        %v5620 = vld [vmem:[#allocation2 + $0xac] sm:$0xf]
        %v5621 = vld [vmem:[#allocation2 + $0xb4] sm:$0xf]
        %v5622 = vld [vmem:[#allocation2 + $0xb8] sm:$0xf]
        %v5623 = vld [vmem:[#allocation8] sm:$0xf]
        %v5624 = vld [vmem:[#allocation8 + $0x4] sm:$0xf]
        %v5625 = vld [vmem:[#allocation8 + $0x8] sm:$0xf]
        %v5626 = vld [vmem:[#allocation8 + $0xc] sm:$0xf]
        %v5627 = vld [vmem:[#allocation8 + $0x10] sm:$0xf]
        %v5628 = vld [vmem:[#allocation8 + $0x14] sm:$0xf]
        %v5629 = vld [vmem:[#allocation8 + $0x18] sm:$0xf]
        %v5630 = vld [vmem:[#allocation8 + $0x1c] sm:$0xf]
        %v5631 = vld [vmem:[#allocation8 + $0x20] sm:$0xf]
        %v5632 = vld [vmem:[#allocation8 + $0x24] sm:$0xf]
        %v5633 = vld [vmem:[#allocation8 + $0x28] sm:$0xf]
        %v5634 = vld [vmem:[#allocation8 + $0x2c] sm:$0xf]
        %v5635 = vld [vmem:[#allocation8 + $0x30] sm:$0xf]
        %v5636 = vld [vmem:[#allocation8 + $0x34] sm:$0xf]
        %v5637 = vld [vmem:[#allocation8 + $0x38] sm:$0xf]
        %v5638 = vld [vmem:[#allocation8 + $0x3c] sm:$0xf]
        %v5639 = vld [vmem:[#allocation2 + $0x8] sm:$0x1]
        %v5640 = vld [vmem:[#allocation2 + $0x14] sm:$0x1]
        %v5641 = vld [vmem:[#allocation2 + $0x20] sm:$0x1]
        %v5642 = vld [vmem:[#allocation2 + $0x2c] sm:$0x1]
        %v5643 = vld [vmem:[#allocation2 + $0x38] sm:$0x1]
        %v5644 = vld [vmem:[#allocation2 + $0x44] sm:$0x1]
        %v5645 = vld [vmem:[#allocation2 + $0x50] sm:$0x1]
        %v5646 = vld [vmem:[#allocation2 + $0x5c] sm:$0x1]
        %v5647 = vld [vmem:[#allocation2 + $0x68] sm:$0x1]
        %v5648 = vld [vmem:[#allocation2 + $0x74] sm:$0x1]
        %v5649 = vld [vmem:[#allocation2 + $0x80] sm:$0x1]
        %v5650 = vld [vmem:[#allocation2 + $0x8c] sm:$0x1]
        %v5651 = vld [vmem:[#allocation2 + $0x98] sm:$0x1]
        %v5652 = vld [vmem:[#allocation2 + $0xa4] sm:$0x1]
        %v5653 = vld [vmem:[#allocation2 + $0xb0] sm:$0x1]
        %v5654 = vld [vmem:[#allocation2 + $0xbc] sm:$0x1]
        %v5656 = vshrl.u32 %v5591, 16
        %v5658 = vrot.slane %v5656, 4
        %v5659 = vshll.u32 %v5591, 16
        %v5661 = vrot.slane %v5659, 5
        %v5662 = vor.u32 %v5658, %v5661
        %v5663 = vrot.slane %v5662, 4
        %v5665 = vshll.u32 %v5592, 16
        %v5667 = vrot.slane %v5665, 5
        %v5668 = vsel %vm966, %v5663, %v5667
        %v5669 = vshrl.u32 %v5592, 16
        %v5671 = vrot.slane %v5669, 4
        %v5672 = vor.u32 %v5671, %v5667
        %v5673 = vrot.slane %v5672, 4
        %v5675 = vshll.u32 %v5639, 16
        %v5677 = vrot.slane %v5675, 5
        %v5678 = vsel %vm966, %v5673, %v5677
        %v5680 = vshrl.u32 %v5593, 16
        %v5682 = vrot.slane %v5680, 4
        %v5683 = vshll.u32 %v5593, 16
        %v5685 = vrot.slane %v5683, 5
        %v5686 = vor.u32 %v5682, %v5685
        %v5687 = vrot.slane %v5686, 4
        %v5689 = vshll.u32 %v5594, 16
        %v5691 = vrot.slane %v5689, 5
        %v5692 = vsel %vm966, %v5687, %v5691
        %v5693 = vshrl.u32 %v5594, 16
        %v5695 = vrot.slane %v5693, 4
        %v5696 = vor.u32 %v5695, %v5691
        %v5697 = vrot.slane %v5696, 4
        %v5699 = vshll.u32 %v5640, 16
        %v5701 = vrot.slane %v5699, 5
        %v5702 = vsel %vm966, %v5697, %v5701
        %v5704 = vshrl.u32 %v5595, 16
        %v5706 = vrot.slane %v5704, 4
        %v5707 = vshll.u32 %v5595, 16
        %v5709 = vrot.slane %v5707, 5
        %v5710 = vor.u32 %v5706, %v5709
        %v5711 = vrot.slane %v5710, 4
        %v5713 = vshll.u32 %v5596, 16
        %v5715 = vrot.slane %v5713, 5
        %v5716 = vsel %vm966, %v5711, %v5715
        %v5717 = vshrl.u32 %v5596, 16
        %v5719 = vrot.slane %v5717, 4
        %v5720 = vor.u32 %v5719, %v5715
        %v5721 = vrot.slane %v5720, 4
        %v5723 = vshll.u32 %v5641, 16
        %v5725 = vrot.slane %v5723, 5
        %v5726 = vsel %vm966, %v5721, %v5725
        %v5728 = vshrl.u32 %v5597, 16
        %v5730 = vrot.slane %v5728, 4
        %v5731 = vshll.u32 %v5597, 16
        %v5733 = vrot.slane %v5731, 5
        %v5734 = vor.u32 %v5730, %v5733
        %v5735 = vrot.slane %v5734, 4
        %v5737 = vshll.u32 %v5598, 16
        %v5739 = vrot.slane %v5737, 5
        %v5740 = vsel %vm966, %v5735, %v5739
        %v5741 = vshrl.u32 %v5598, 16
        %v5743 = vrot.slane %v5741, 4
        %v5744 = vor.u32 %v5743, %v5739
        %v5745 = vrot.slane %v5744, 4
        %v5747 = vshll.u32 %v5642, 16
        %v5749 = vrot.slane %v5747, 5
        %v5750 = vsel %vm966, %v5745, %v5749
        %v5752 = vshrl.u32 %v5599, 16
        %v5754 = vrot.slane %v5752, 4
        %v5755 = vshll.u32 %v5599, 16
        %v5757 = vrot.slane %v5755, 5
        %v5758 = vor.u32 %v5754, %v5757
        %v5759 = vrot.slane %v5758, 4
        %v5761 = vshll.u32 %v5600, 16
        %v5763 = vrot.slane %v5761, 5
        %v5764 = vsel %vm966, %v5759, %v5763
        %v5765 = vshrl.u32 %v5600, 16
        %v5767 = vrot.slane %v5765, 4
        %v5768 = vor.u32 %v5767, %v5763
        %v5769 = vrot.slane %v5768, 4
        %v5771 = vshll.u32 %v5643, 16
        %v5773 = vrot.slane %v5771, 5
        %v5774 = vsel %vm966, %v5769, %v5773
        %v5776 = vshrl.u32 %v5601, 16
        %v5778 = vrot.slane %v5776, 4
        %v5779 = vshll.u32 %v5601, 16
        %v5781 = vrot.slane %v5779, 5
        %v5782 = vor.u32 %v5778, %v5781
        %v5783 = vrot.slane %v5782, 4
        %v5785 = vshll.u32 %v5602, 16
        %v5787 = vrot.slane %v5785, 5
        %v5788 = vsel %vm966, %v5783, %v5787
        %v5789 = vshrl.u32 %v5602, 16
        %v5791 = vrot.slane %v5789, 4
        %v5792 = vor.u32 %v5791, %v5787
        %v5793 = vrot.slane %v5792, 4
        %v5795 = vshll.u32 %v5644, 16
        %v5797 = vrot.slane %v5795, 5
        %v5798 = vsel %vm966, %v5793, %v5797
        %v5800 = vshrl.u32 %v5603, 16
        %v5802 = vrot.slane %v5800, 4
        %v5803 = vshll.u32 %v5603, 16
        %v5805 = vrot.slane %v5803, 5
        %v5806 = vor.u32 %v5802, %v5805
        %v5807 = vrot.slane %v5806, 4
        %v5809 = vshll.u32 %v5604, 16
        %v5811 = vrot.slane %v5809, 5
        %v5812 = vsel %vm966, %v5807, %v5811
        %v5813 = vshrl.u32 %v5604, 16
        %v5815 = vrot.slane %v5813, 4
        %v5816 = vor.u32 %v5815, %v5811
        %v5817 = vrot.slane %v5816, 4
        %v5819 = vshll.u32 %v5645, 16
        %v5821 = vrot.slane %v5819, 5
        %v5822 = vsel %vm966, %v5817, %v5821
        %v5824 = vshrl.u32 %v5605, 16
        %v5826 = vrot.slane %v5824, 4
        %v5827 = vshll.u32 %v5605, 16
        %v5829 = vrot.slane %v5827, 5
        %v5830 = vor.u32 %v5826, %v5829
        %v5831 = vrot.slane %v5830, 4
        %v5833 = vshll.u32 %v5606, 16
        %v5835 = vrot.slane %v5833, 5
        %v5836 = vsel %vm966, %v5831, %v5835
        %v5837 = vshrl.u32 %v5606, 16
        %v5839 = vrot.slane %v5837, 4
        %v5840 = vor.u32 %v5839, %v5835
        %v5841 = vrot.slane %v5840, 4
        %v5843 = vshll.u32 %v5646, 16
        %v5845 = vrot.slane %v5843, 5
        %v5846 = vsel %vm966, %v5841, %v5845
        %v5848 = vshrl.u32 %v5607, 16
        %v5850 = vrot.slane %v5848, 4
        %v5851 = vshll.u32 %v5607, 16
        %v5853 = vrot.slane %v5851, 5
        %v5854 = vor.u32 %v5850, %v5853
        %v5855 = vrot.slane %v5854, 4
        %v5857 = vshll.u32 %v5608, 16
        %v5859 = vrot.slane %v5857, 5
        %v5860 = vsel %vm966, %v5855, %v5859
        %v5861 = vshrl.u32 %v5608, 16
        %v5863 = vrot.slane %v5861, 4
        %v5864 = vor.u32 %v5863, %v5859
        %v5865 = vrot.slane %v5864, 4
        %v5867 = vshll.u32 %v5647, 16
        %v5869 = vrot.slane %v5867, 5
        %v5870 = vsel %vm966, %v5865, %v5869
        %v5872 = vshrl.u32 %v5609, 16
        %v5874 = vrot.slane %v5872, 4
        %v5875 = vshll.u32 %v5609, 16
        %v5877 = vrot.slane %v5875, 5
        %v5878 = vor.u32 %v5874, %v5877
        %v5879 = vrot.slane %v5878, 4
        %v5881 = vshll.u32 %v5610, 16
        %v5883 = vrot.slane %v5881, 5
        %v5884 = vsel %vm966, %v5879, %v5883
        %v5885 = vshrl.u32 %v5610, 16
        %v5887 = vrot.slane %v5885, 4
        %v5888 = vor.u32 %v5887, %v5883
        %v5889 = vrot.slane %v5888, 4
        %v5891 = vshll.u32 %v5648, 16
        %v5893 = vrot.slane %v5891, 5
        %v5894 = vsel %vm966, %v5889, %v5893
        %v5896 = vshrl.u32 %v5611, 16
        %v5898 = vrot.slane %v5896, 4
        %v5899 = vshll.u32 %v5611, 16
        %v5901 = vrot.slane %v5899, 5
        %v5902 = vor.u32 %v5898, %v5901
        %v5903 = vrot.slane %v5902, 4
        %v5905 = vshll.u32 %v5612, 16
        %v5907 = vrot.slane %v5905, 5
        %v5908 = vsel %vm966, %v5903, %v5907
        %v5909 = vshrl.u32 %v5612, 16
        %v5911 = vrot.slane %v5909, 4
        %v5912 = vor.u32 %v5911, %v5907
        %v5913 = vrot.slane %v5912, 4
        %v5915 = vshll.u32 %v5649, 16
        %v5917 = vrot.slane %v5915, 5
        %v5918 = vsel %vm966, %v5913, %v5917
        %v5920 = vshrl.u32 %v5613, 16
        %v5922 = vrot.slane %v5920, 4
        %v5923 = vshll.u32 %v5613, 16
        %v5925 = vrot.slane %v5923, 5
        %v5926 = vor.u32 %v5922, %v5925
        %v5927 = vrot.slane %v5926, 4
        %v5929 = vshll.u32 %v5614, 16
        %v5931 = vrot.slane %v5929, 5
        %v5932 = vsel %vm966, %v5927, %v5931
        %v5933 = vshrl.u32 %v5614, 16
        %v5935 = vrot.slane %v5933, 4
        %v5936 = vor.u32 %v5935, %v5931
        %v5937 = vrot.slane %v5936, 4
        %v5939 = vshll.u32 %v5650, 16
        %v5941 = vrot.slane %v5939, 5
        %v5942 = vsel %vm966, %v5937, %v5941
        %v5944 = vshrl.u32 %v5615, 16
        %v5946 = vrot.slane %v5944, 4
        %v5947 = vshll.u32 %v5615, 16
        %v5949 = vrot.slane %v5947, 5
        %v5950 = vor.u32 %v5946, %v5949
        %v5951 = vrot.slane %v5950, 4
        %v5953 = vshll.u32 %v5616, 16
        %v5955 = vrot.slane %v5953, 5
        %v5956 = vsel %vm966, %v5951, %v5955
        %v5957 = vshrl.u32 %v5616, 16
        %v5959 = vrot.slane %v5957, 4
        %v5960 = vor.u32 %v5959, %v5955
        %v5961 = vrot.slane %v5960, 4
        %v5963 = vshll.u32 %v5651, 16
        %v5965 = vrot.slane %v5963, 5
        %v5966 = vsel %vm966, %v5961, %v5965
        %v5968 = vshrl.u32 %v5617, 16
        %v5970 = vrot.slane %v5968, 4
        %v5971 = vshll.u32 %v5617, 16
        %v5973 = vrot.slane %v5971, 5
        %v5974 = vor.u32 %v5970, %v5973
        %v5975 = vrot.slane %v5974, 4
        %v5977 = vshll.u32 %v5618, 16
        %v5979 = vrot.slane %v5977, 5
        %v5980 = vsel %vm966, %v5975, %v5979
        %v5981 = vshrl.u32 %v5618, 16
        %v5983 = vrot.slane %v5981, 4
        %v5984 = vor.u32 %v5983, %v5979
        %v5985 = vrot.slane %v5984, 4
        %v5987 = vshll.u32 %v5652, 16
        %v5989 = vrot.slane %v5987, 5
        %v5990 = vsel %vm966, %v5985, %v5989
        %v5992 = vshrl.u32 %v5619, 16
        %v5994 = vrot.slane %v5992, 4
        %v5995 = vshll.u32 %v5619, 16
        %v5997 = vrot.slane %v5995, 5
        %v5998 = vor.u32 %v5994, %v5997
        %v5999 = vrot.slane %v5998, 4
        %v6001 = vshll.u32 %v5620, 16
        %v6003 = vrot.slane %v6001, 5
        %v6004 = vsel %vm966, %v5999, %v6003
        %v6005 = vshrl.u32 %v5620, 16
        %v6007 = vrot.slane %v6005, 4
        %v6008 = vor.u32 %v6007, %v6003
        %v6009 = vrot.slane %v6008, 4
        %v6011 = vshll.u32 %v5653, 16
        %v6013 = vrot.slane %v6011, 5
        %v6014 = vsel %vm966, %v6009, %v6013
        %v6016 = vshrl.u32 %v5621, 16
        %v6018 = vrot.slane %v6016, 4
        %v6019 = vshll.u32 %v5621, 16
        %v6021 = vrot.slane %v6019, 5
        %v6022 = vor.u32 %v6018, %v6021
        %v6023 = vrot.slane %v6022, 4
        %v6025 = vshll.u32 %v5622, 16
        %v6027 = vrot.slane %v6025, 5
        %v6028 = vsel %vm966, %v6023, %v6027
        %v6029 = vshrl.u32 %v5622, 16
        %v6031 = vrot.slane %v6029, 4
        %v6032 = vor.u32 %v6031, %v6027
        %v6033 = vrot.slane %v6032, 4
        %v6035 = vshll.u32 %v5654, 16
        %v6037 = vrot.slane %v6035, 5
        %v6038 = vsel %vm966, %v6033, %v6037
        %s6039 = scalar_lea.vmem [#allocation8], 64
        %v6040 = vld [vmem:[%s6039] sm:$0xf]
        %v6041 = vld [vmem:[%s6039 + $0x4] sm:$0xf]
        %v6042 = vld [vmem:[%s6039 + $0x8] sm:$0xf]
        %v6043 = vld [vmem:[%s6039 + $0xc] sm:$0xf]
        %v6044 = vld [vmem:[%s6039 + $0x10] sm:$0xf]
        %v6045 = vld [vmem:[%s6039 + $0x14] sm:$0xf]
        %v6046 = vld [vmem:[%s6039 + $0x18] sm:$0xf]
        %v6047 = vld [vmem:[%s6039 + $0x1c] sm:$0xf]
        %v6048 = vld [vmem:[%s6039 + $0x20] sm:$0xf]
        %v6049 = vld [vmem:[%s6039 + $0x24] sm:$0xf]
        %v6050 = vld [vmem:[%s6039 + $0x28] sm:$0xf]
        %v6051 = vld [vmem:[%s6039 + $0x2c] sm:$0xf]
        %v6052 = vld [vmem:[%s6039 + $0x30] sm:$0xf]
        %v6053 = vld [vmem:[%s6039 + $0x34] sm:$0xf]
        %v6054 = vld [vmem:[%s6039 + $0x38] sm:$0xf]
        %v6055 = vld [vmem:[%s6039 + $0x3c] sm:$0xf]
        %v6056 = vunpack.c.l.b16 %v5668
        %v6057 = vunpack.c.l.b16 %v5678
        %v6058 = vunpack.c.l.b16 %v5692
        %v6059 = vunpack.c.l.b16 %v5702
        %v6060 = vunpack.c.l.b16 %v5716
        %v6061 = vunpack.c.l.b16 %v5726
        %v6062 = vunpack.c.l.b16 %v5740
        %v6063 = vunpack.c.l.b16 %v5750
        %v6064 = vunpack.c.l.b16 %v5764
        %v6065 = vunpack.c.l.b16 %v5774
        %v6066 = vunpack.c.l.b16 %v5788
        %v6067 = vunpack.c.l.b16 %v5798
        %v6068 = vunpack.c.l.b16 %v5812
        %v6069 = vunpack.c.l.b16 %v5822
        %v6070 = vunpack.c.l.b16 %v5836
        %v6071 = vunpack.c.l.b16 %v5846
        %v6072 = vunpack.c.l.b16 %v5860
        %v6073 = vunpack.c.l.b16 %v5870
        %v6074 = vunpack.c.l.b16 %v5884
        %v6075 = vunpack.c.l.b16 %v5894
        %v6076 = vunpack.c.l.b16 %v5908
        %v6077 = vunpack.c.l.b16 %v5918
        %v6078 = vunpack.c.l.b16 %v5932
        %v6079 = vunpack.c.l.b16 %v5942
        %v6080 = vunpack.c.l.b16 %v5956
        %v6081 = vunpack.c.l.b16 %v5966
        %v6082 = vunpack.c.l.b16 %v5980
        %v6083 = vunpack.c.l.b16 %v5990
        %v6084 = vunpack.c.l.b16 %v6004
        %v6085 = vunpack.c.l.b16 %v6014
        %v6086 = vunpack.c.l.b16 %v6028
        %v6087 = vunpack.c.l.b16 %v6038
        %v6088 = vpack.c.b16 %v6057, %v6056
        %v6089 = vpack.c.b16 %v6059, %v6058
        %v6090 = vpack.c.b16 %v6061, %v6060
        %v6091 = vpack.c.b16 %v6063, %v6062
        %v6092 = vpack.c.b16 %v6065, %v6064
        %v6093 = vpack.c.b16 %v6067, %v6066
        %v6094 = vpack.c.b16 %v6069, %v6068
        %v6095 = vpack.c.b16 %v6071, %v6070
        %v6096 = vpack.c.b16 %v6073, %v6072
        %v6097 = vpack.c.b16 %v6075, %v6074
        %v6098 = vpack.c.b16 %v6077, %v6076
        %v6099 = vpack.c.b16 %v6079, %v6078
        %v6100 = vpack.c.b16 %v6081, %v6080
        %v6101 = vpack.c.b16 %v6083, %v6082
        %v6102 = vpack.c.b16 %v6085, %v6084
        %v6103 = vpack.c.b16 %v6087, %v6086
        %v6136 = vunpack.c.l.b16 %v6040
        %v6137 = vunpack.c.l.b16 %v6041
        %v6138 = vunpack.c.l.b16 %v6042
        %v6139 = vunpack.c.l.b16 %v6043
        %v6140 = vunpack.c.l.b16 %v6044
        %v6141 = vunpack.c.l.b16 %v6045
        %v6142 = vunpack.c.l.b16 %v6046
        %v6143 = vunpack.c.l.b16 %v6047
        %v6144 = vunpack.c.l.b16 %v6048
        %v6145 = vunpack.c.l.b16 %v6049
        %v6146 = vunpack.c.l.b16 %v6050
        %v6147 = vunpack.c.l.b16 %v6051
        %v6148 = vunpack.c.l.b16 %v6052
        %v6149 = vunpack.c.l.b16 %v6053
        %v6150 = vunpack.c.l.b16 %v6054
        %v6151 = vunpack.c.l.b16 %v6055
        %v6152 = vpack.c.b16 %v6137, %v6136
        %v6153 = vpack.c.b16 %v6139, %v6138
        %v6154 = vpack.c.b16 %v6141, %v6140
        %v6155 = vpack.c.b16 %v6143, %v6142
        %v6156 = vpack.c.b16 %v6145, %v6144
        %v6157 = vpack.c.b16 %v6147, %v6146
        %v6158 = vpack.c.b16 %v6149, %v6148
        %v6159 = vpack.c.b16 %v6151, %v6150
        %6168 = vmatpush.bf16.msra.mxu0 %v6159
        %6169 = vmatpush.bf16.msra.mxu0 %v6158
        %6170 = vmatpush.bf16.msra.mxu0 %v6157
        %6171 = vmatpush.bf16.msra.mxu0 %v6156
        %6172 = vmatpush.bf16.msra.mxu0 %v6155
        %6173 = vmatpush.bf16.msra.mxu0 %v6154
        %6174 = vmatpush.bf16.msra.mxu0 %v6153
        %6175 = vmatpush.bf16.msra.mxu0 %v6152
        %6176 = vmatmul.bf16.gmra.mxu0 %v6088
        %v6177 = vpop.f32.mrf.mxu0
        %v6178 = vadd.f32 0.0, %v6177
        %v6179 = vpop.f32.mrf.mxu0
        %v6180 = vadd.f32 0.0, %v6179
        %6181 = vmatmul.bf16.gmra.mxu0 %v6089
        %v6182 = vpop.f32.mrf.mxu0
        %v6183 = vadd.f32 0.0, %v6182
        %v6184 = vpop.f32.mrf.mxu0
        %v6185 = vadd.f32 0.0, %v6184
        %6186 = vmatmul.bf16.gmra.mxu0 %v6090
        %v6187 = vpop.f32.mrf.mxu0
        %v6188 = vadd.f32 0.0, %v6187
        %v6189 = vpop.f32.mrf.mxu0
        %v6190 = vadd.f32 0.0, %v6189
        %6191 = vmatmul.bf16.gmra.mxu0 %v6091
        %v6192 = vpop.f32.mrf.mxu0
        %v6193 = vadd.f32 0.0, %v6192
        %v6194 = vpop.f32.mrf.mxu0
        %v6195 = vadd.f32 0.0, %v6194
        %6196 = vmatmul.bf16.gmra.mxu0 %v6092
        %v6197 = vpop.f32.mrf.mxu0
        %v6198 = vadd.f32 0.0, %v6197
        %v6199 = vpop.f32.mrf.mxu0
        %v6200 = vadd.f32 0.0, %v6199
        %6201 = vmatmul.bf16.gmra.mxu0 %v6093
        %v6202 = vpop.f32.mrf.mxu0
        %v6203 = vadd.f32 0.0, %v6202
        %v6204 = vpop.f32.mrf.mxu0
        %v6205 = vadd.f32 0.0, %v6204
        %6206 = vmatmul.bf16.gmra.mxu0 %v6094
        %v6207 = vpop.f32.mrf.mxu0
        %v6208 = vadd.f32 0.0, %v6207
        %v6209 = vpop.f32.mrf.mxu0
        %v6210 = vadd.f32 0.0, %v6209
        %6211 = vmatmul.bf16.gmra.mxu0 %v6095
        %v6212 = vpop.f32.mrf.mxu0
        %v6213 = vadd.f32 0.0, %v6212
        %v6214 = vpop.f32.mrf.mxu0
        %v6215 = vadd.f32 0.0, %v6214
        %6216 = vmatmul.bf16.gmra.mxu0 %v6096
        %v6217 = vpop.f32.mrf.mxu0
        %v6218 = vadd.f32 0.0, %v6217
        %v6219 = vpop.f32.mrf.mxu0
        %v6220 = vadd.f32 0.0, %v6219
        %6221 = vmatmul.bf16.gmra.mxu0 %v6097
        %v6222 = vpop.f32.mrf.mxu0
        %v6223 = vadd.f32 0.0, %v6222
        %v6224 = vpop.f32.mrf.mxu0
        %v6225 = vadd.f32 0.0, %v6224
        %6226 = vmatmul.bf16.gmra.mxu0 %v6098
        %v6227 = vpop.f32.mrf.mxu0
        %v6228 = vadd.f32 0.0, %v6227
        %v6229 = vpop.f32.mrf.mxu0
        %v6230 = vadd.f32 0.0, %v6229
        %6231 = vmatmul.bf16.gmra.mxu0 %v6099
        %v6232 = vpop.f32.mrf.mxu0
        %v6233 = vadd.f32 0.0, %v6232
        %v6234 = vpop.f32.mrf.mxu0
        %v6235 = vadd.f32 0.0, %v6234
        %6236 = vmatmul.bf16.gmra.mxu0 %v6100
        %v6237 = vpop.f32.mrf.mxu0
        %v6238 = vadd.f32 0.0, %v6237
        %v6239 = vpop.f32.mrf.mxu0
        %v6240 = vadd.f32 0.0, %v6239
        %6241 = vmatmul.bf16.gmra.mxu0 %v6101
        %v6242 = vpop.f32.mrf.mxu0
        %v6243 = vadd.f32 0.0, %v6242
        %v6244 = vpop.f32.mrf.mxu0
        %v6245 = vadd.f32 0.0, %v6244
        %6246 = vmatmul.bf16.gmra.mxu0 %v6102
        %v6247 = vpop.f32.mrf.mxu0
        %v6248 = vadd.f32 0.0, %v6247
        %v6249 = vpop.f32.mrf.mxu0
        %v6250 = vadd.f32 0.0, %v6249
        %6251 = vmatmul.bf16.gmra.mxu0 %v6103
        %v6252 = vpop.f32.mrf.mxu0
        %v6253 = vadd.f32 0.0, %v6252
        %v6254 = vpop.f32.mrf.mxu0
        %v6255 = vadd.f32 0.0, %v6254
        %6256 = vdwg.mxu0
        %v6289 = vunpack.c.l.b16 %v5591
        %v6290 = vunpack.c.l.b16 %v5592
        %v6291 = vunpack.c.l.b16 %v5593
        %v6292 = vunpack.c.l.b16 %v5594
        %v6293 = vunpack.c.l.b16 %v5595
        %v6294 = vunpack.c.l.b16 %v5596
        %v6295 = vunpack.c.l.b16 %v5597
        %v6296 = vunpack.c.l.b16 %v5598
        %v6297 = vunpack.c.l.b16 %v5599
        %v6298 = vunpack.c.l.b16 %v5600
        %v6299 = vunpack.c.l.b16 %v5601
        %v6300 = vunpack.c.l.b16 %v5602
        %v6301 = vunpack.c.l.b16 %v5603
        %v6302 = vunpack.c.l.b16 %v5604
        %v6303 = vunpack.c.l.b16 %v5605
        %v6304 = vunpack.c.l.b16 %v5606
        %v6305 = vunpack.c.l.b16 %v5607
        %v6306 = vunpack.c.l.b16 %v5608
        %v6307 = vunpack.c.l.b16 %v5609
        %v6308 = vunpack.c.l.b16 %v5610
        %v6309 = vunpack.c.l.b16 %v5611
        %v6310 = vunpack.c.l.b16 %v5612
        %v6311 = vunpack.c.l.b16 %v5613
        %v6312 = vunpack.c.l.b16 %v5614
        %v6313 = vunpack.c.l.b16 %v5615
        %v6314 = vunpack.c.l.b16 %v5616
        %v6315 = vunpack.c.l.b16 %v5617
        %v6316 = vunpack.c.l.b16 %v5618
        %v6317 = vunpack.c.l.b16 %v5619
        %v6318 = vunpack.c.l.b16 %v5620
        %v6319 = vunpack.c.l.b16 %v5621
        %v6320 = vunpack.c.l.b16 %v5622
        %v6321 = vpack.c.b16 %v6290, %v6289
        %v6322 = vpack.c.b16 %v6292, %v6291
        %v6323 = vpack.c.b16 %v6294, %v6293
        %v6324 = vpack.c.b16 %v6296, %v6295
        %v6325 = vpack.c.b16 %v6298, %v6297
        %v6326 = vpack.c.b16 %v6300, %v6299
        %v6327 = vpack.c.b16 %v6302, %v6301
        %v6328 = vpack.c.b16 %v6304, %v6303
        %v6329 = vpack.c.b16 %v6306, %v6305
        %v6330 = vpack.c.b16 %v6308, %v6307
        %v6331 = vpack.c.b16 %v6310, %v6309
        %v6332 = vpack.c.b16 %v6312, %v6311
        %v6333 = vpack.c.b16 %v6314, %v6313
        %v6334 = vpack.c.b16 %v6316, %v6315
        %v6335 = vpack.c.b16 %v6318, %v6317
        %v6336 = vpack.c.b16 %v6320, %v6319
        %v6369 = vunpack.c.l.b16 %v5623
        %v6370 = vunpack.c.l.b16 %v5624
        %v6371 = vunpack.c.l.b16 %v5625
        %v6372 = vunpack.c.l.b16 %v5626
        %v6373 = vunpack.c.l.b16 %v5627
        %v6374 = vunpack.c.l.b16 %v5628
        %v6375 = vunpack.c.l.b16 %v5629
        %v6376 = vunpack.c.l.b16 %v5630
        %v6377 = vunpack.c.l.b16 %v5631
        %v6378 = vunpack.c.l.b16 %v5632
        %v6379 = vunpack.c.l.b16 %v5633
        %v6380 = vunpack.c.l.b16 %v5634
        %v6381 = vunpack.c.l.b16 %v5635
        %v6382 = vunpack.c.l.b16 %v5636
        %v6383 = vunpack.c.l.b16 %v5637
        %v6384 = vunpack.c.l.b16 %v5638
        %v6385 = vpack.c.b16 %v6370, %v6369
        %v6386 = vpack.c.b16 %v6372, %v6371
        %v6387 = vpack.c.b16 %v6374, %v6373
        %v6388 = vpack.c.b16 %v6376, %v6375
        %v6389 = vpack.c.b16 %v6378, %v6377
        %v6390 = vpack.c.b16 %v6380, %v6379
        %v6391 = vpack.c.b16 %v6382, %v6381
        %v6392 = vpack.c.b16 %v6384, %v6383
        %6401 = vmatpush.bf16.msra.mxu0 %v6392
        %6402 = vmatpush.bf16.msra.mxu0 %v6391
        %6403 = vmatpush.bf16.msra.mxu0 %v6390
        %6404 = vmatpush.bf16.msra.mxu0 %v6389
        %6405 = vmatpush.bf16.msra.mxu0 %v6388
        %6406 = vmatpush.bf16.msra.mxu0 %v6387
        %6407 = vmatpush.bf16.msra.mxu0 %v6386
        %6408 = vmatpush.bf16.msra.mxu0 %v6385
        %6409 = vmatmul.bf16.gmra.mxu0 %v6321
        %v6410 = vpop.f32.mrf.mxu0
        %v6411 = vadd.f32 %v6178, %v6410
        %v6412 = vpop.f32.mrf.mxu0
        %v6413 = vadd.f32 %v6180, %v6412
        %6414 = vmatmul.bf16.gmra.mxu0 %v6322
        %v6415 = vpop.f32.mrf.mxu0
        %v6416 = vadd.f32 %v6183, %v6415
        %v6417 = vpop.f32.mrf.mxu0
        %v6418 = vadd.f32 %v6185, %v6417
        %6419 = vmatmul.bf16.gmra.mxu0 %v6323
        %v6420 = vpop.f32.mrf.mxu0
        %v6421 = vadd.f32 %v6188, %v6420
        %v6422 = vpop.f32.mrf.mxu0
        %v6423 = vadd.f32 %v6190, %v6422
        %6424 = vmatmul.bf16.gmra.mxu0 %v6324
        %v6425 = vpop.f32.mrf.mxu0
        %v6426 = vadd.f32 %v6193, %v6425
        %v6427 = vpop.f32.mrf.mxu0
        %v6428 = vadd.f32 %v6195, %v6427
        %6429 = vmatmul.bf16.gmra.mxu0 %v6325
        %v6430 = vpop.f32.mrf.mxu0
        %v6431 = vadd.f32 %v6198, %v6430
        %v6432 = vpop.f32.mrf.mxu0
        %v6433 = vadd.f32 %v6200, %v6432
        %6434 = vmatmul.bf16.gmra.mxu0 %v6326
        %v6435 = vpop.f32.mrf.mxu0
        %v6436 = vadd.f32 %v6203, %v6435
        %v6437 = vpop.f32.mrf.mxu0
        %v6438 = vadd.f32 %v6205, %v6437
        %6439 = vmatmul.bf16.gmra.mxu0 %v6327
        %v6440 = vpop.f32.mrf.mxu0
        %v6441 = vadd.f32 %v6208, %v6440
        %v6442 = vpop.f32.mrf.mxu0
        %v6443 = vadd.f32 %v6210, %v6442
        %6444 = vmatmul.bf16.gmra.mxu0 %v6328
        %v6445 = vpop.f32.mrf.mxu0
        %v6446 = vadd.f32 %v6213, %v6445
        %v6447 = vpop.f32.mrf.mxu0
        %v6448 = vadd.f32 %v6215, %v6447
        %6449 = vmatmul.bf16.gmra.mxu0 %v6329
        %v6450 = vpop.f32.mrf.mxu0
        %v6451 = vadd.f32 %v6218, %v6450
        %v6452 = vpop.f32.mrf.mxu0
        %v6453 = vadd.f32 %v6220, %v6452
        %6454 = vmatmul.bf16.gmra.mxu0 %v6330
        %v6455 = vpop.f32.mrf.mxu0
        %v6456 = vadd.f32 %v6223, %v6455
        %v6457 = vpop.f32.mrf.mxu0
        %v6458 = vadd.f32 %v6225, %v6457
        %6459 = vmatmul.bf16.gmra.mxu0 %v6331
        %v6460 = vpop.f32.mrf.mxu0
        %v6461 = vadd.f32 %v6228, %v6460
        %v6462 = vpop.f32.mrf.mxu0
        %v6463 = vadd.f32 %v6230, %v6462
        %6464 = vmatmul.bf16.gmra.mxu0 %v6332
        %v6465 = vpop.f32.mrf.mxu0
        %v6466 = vadd.f32 %v6233, %v6465
        %v6467 = vpop.f32.mrf.mxu0
        %v6468 = vadd.f32 %v6235, %v6467
        %6469 = vmatmul.bf16.gmra.mxu0 %v6333
        %v6470 = vpop.f32.mrf.mxu0
        %v6471 = vadd.f32 %v6238, %v6470
        %v6472 = vpop.f32.mrf.mxu0
        %v6473 = vadd.f32 %v6240, %v6472
        %6474 = vmatmul.bf16.gmra.mxu0 %v6334
        %v6475 = vpop.f32.mrf.mxu0
        %v6476 = vadd.f32 %v6243, %v6475
        %v6477 = vpop.f32.mrf.mxu0
        %v6478 = vadd.f32 %v6245, %v6477
        %6479 = vmatmul.bf16.gmra.mxu0 %v6335
        %v6480 = vpop.f32.mrf.mxu0
        %v6481 = vadd.f32 %v6248, %v6480
        %v6482 = vpop.f32.mrf.mxu0
        %v6483 = vadd.f32 %v6250, %v6482
        %6484 = vmatmul.bf16.gmra.mxu0 %v6336
        %v6485 = vpop.f32.mrf.mxu0
        %v6486 = vadd.f32 %v6253, %v6485
        %v6487 = vpop.f32.mrf.mxu0
        %v6488 = vadd.f32 %v6255, %v6487
        %6489 = vdwg.mxu0
        %v6490 = vld [vmem:[#allocation2] sm:$0xe]
        %v6491 = vld [vmem:[#allocation2 + $0xc] sm:$0xe]
        %v6492 = vld [vmem:[#allocation2 + $0x18] sm:$0xe]
        %v6493 = vld [vmem:[#allocation2 + $0x24] sm:$0xe]
        %v6494 = vld [vmem:[#allocation2 + $0x30] sm:$0xe]
        %v6495 = vld [vmem:[#allocation2 + $0x3c] sm:$0xe]
        %v6496 = vld [vmem:[#allocation2 + $0x48] sm:$0xe]
        %v6497 = vld [vmem:[#allocation2 + $0x54] sm:$0xe]
        %v6498 = vld [vmem:[#allocation2 + $0x60] sm:$0xe]
        %v6499 = vld [vmem:[#allocation2 + $0x6c] sm:$0xe]
        %v6500 = vld [vmem:[#allocation2 + $0x78] sm:$0xe]
        %v6501 = vld [vmem:[#allocation2 + $0x84] sm:$0xe]
        %v6502 = vld [vmem:[#allocation2 + $0x90] sm:$0xe]
        %v6503 = vld [vmem:[#allocation2 + $0x9c] sm:$0xe]
        %v6504 = vld [vmem:[#allocation2 + $0xa8] sm:$0xe]
        %v6505 = vld [vmem:[#allocation2 + $0xb4] sm:$0xe]
        %v6538 = vrot.slane %v6490, 5
        %v6539 = vrot.slane %v6538, 4
        %v6540 = vrot.slane %v5592, 5
        %v6541 = vsel %vm1852, %v6539, %v6540
        %v6542 = vrot.slane %v6540, 4
        %v6543 = vrot.slane %v5639, 5
        %v6544 = vsel %vm1852, %v6542, %v6543
        %v6545 = vrot.slane %v6491, 5
        %v6546 = vrot.slane %v6545, 4
        %v6547 = vrot.slane %v5594, 5
        %v6548 = vsel %vm1852, %v6546, %v6547
        %v6549 = vrot.slane %v6547, 4
        %v6550 = vrot.slane %v5640, 5
        %v6551 = vsel %vm1852, %v6549, %v6550
        %v6552 = vrot.slane %v6492, 5
        %v6553 = vrot.slane %v6552, 4
        %v6554 = vrot.slane %v5596, 5
        %v6555 = vsel %vm1852, %v6553, %v6554
        %v6556 = vrot.slane %v6554, 4
        %v6557 = vrot.slane %v5641, 5
        %v6558 = vsel %vm1852, %v6556, %v6557
        %v6559 = vrot.slane %v6493, 5
        %v6560 = vrot.slane %v6559, 4
        %v6561 = vrot.slane %v5598, 5
        %v6562 = vsel %vm1852, %v6560, %v6561
        %v6563 = vrot.slane %v6561, 4
        %v6564 = vrot.slane %v5642, 5
        %v6565 = vsel %vm1852, %v6563, %v6564
        %v6566 = vrot.slane %v6494, 5
        %v6567 = vrot.slane %v6566, 4
        %v6568 = vrot.slane %v5600, 5
        %v6569 = vsel %vm1852, %v6567, %v6568
        %v6570 = vrot.slane %v6568, 4
        %v6571 = vrot.slane %v5643, 5
        %v6572 = vsel %vm1852, %v6570, %v6571
        %v6573 = vrot.slane %v6495, 5
        %v6574 = vrot.slane %v6573, 4
        %v6575 = vrot.slane %v5602, 5
        %v6576 = vsel %vm1852, %v6574, %v6575
        %v6577 = vrot.slane %v6575, 4
        %v6578 = vrot.slane %v5644, 5
        %v6579 = vsel %vm1852, %v6577, %v6578
        %v6580 = vrot.slane %v6496, 5
        %v6581 = vrot.slane %v6580, 4
        %v6582 = vrot.slane %v5604, 5
        %v6583 = vsel %vm1852, %v6581, %v6582
        %v6584 = vrot.slane %v6582, 4
        %v6585 = vrot.slane %v5645, 5
        %v6586 = vsel %vm1852, %v6584, %v6585
        %v6587 = vrot.slane %v6497, 5
        %v6588 = vrot.slane %v6587, 4
        %v6589 = vrot.slane %v5606, 5
        %v6590 = vsel %vm1852, %v6588, %v6589
        %v6591 = vrot.slane %v6589, 4
        %v6592 = vrot.slane %v5646, 5
        %v6593 = vsel %vm1852, %v6591, %v6592
        %v6594 = vrot.slane %v6498, 5
        %v6595 = vrot.slane %v6594, 4
        %v6596 = vrot.slane %v5608, 5
        %v6597 = vsel %vm1852, %v6595, %v6596
        %v6598 = vrot.slane %v6596, 4
        %v6599 = vrot.slane %v5647, 5
        %v6600 = vsel %vm1852, %v6598, %v6599
        %v6601 = vrot.slane %v6499, 5
        %v6602 = vrot.slane %v6601, 4
        %v6603 = vrot.slane %v5610, 5
        %v6604 = vsel %vm1852, %v6602, %v6603
        %v6605 = vrot.slane %v6603, 4
        %v6606 = vrot.slane %v5648, 5
        %v6607 = vsel %vm1852, %v6605, %v6606
        %v6608 = vrot.slane %v6500, 5
        %v6609 = vrot.slane %v6608, 4
        %v6610 = vrot.slane %v5612, 5
        %v6611 = vsel %vm1852, %v6609, %v6610
        %v6612 = vrot.slane %v6610, 4
        %v6613 = vrot.slane %v5649, 5
        %v6614 = vsel %vm1852, %v6612, %v6613
        %v6615 = vrot.slane %v6501, 5
        %v6616 = vrot.slane %v6615, 4
        %v6617 = vrot.slane %v5614, 5
        %v6618 = vsel %vm1852, %v6616, %v6617
        %v6619 = vrot.slane %v6617, 4
        %v6620 = vrot.slane %v5650, 5
        %v6621 = vsel %vm1852, %v6619, %v6620
        %v6622 = vrot.slane %v6502, 5
        %v6623 = vrot.slane %v6622, 4
        %v6624 = vrot.slane %v5616, 5
        %v6625 = vsel %vm1852, %v6623, %v6624
        %v6626 = vrot.slane %v6624, 4
        %v6627 = vrot.slane %v5651, 5
        %v6628 = vsel %vm1852, %v6626, %v6627
        %v6629 = vrot.slane %v6503, 5
        %v6630 = vrot.slane %v6629, 4
        %v6631 = vrot.slane %v5618, 5
        %v6632 = vsel %vm1852, %v6630, %v6631
        %v6633 = vrot.slane %v6631, 4
        %v6634 = vrot.slane %v5652, 5
        %v6635 = vsel %vm1852, %v6633, %v6634
        %v6636 = vrot.slane %v6504, 5
        %v6637 = vrot.slane %v6636, 4
        %v6638 = vrot.slane %v5620, 5
        %v6639 = vsel %vm1852, %v6637, %v6638
        %v6640 = vrot.slane %v6638, 4
        %v6641 = vrot.slane %v5653, 5
        %v6642 = vsel %vm1852, %v6640, %v6641
        %v6643 = vrot.slane %v6505, 5
        %v6644 = vrot.slane %v6643, 4
        %v6645 = vrot.slane %v5622, 5
        %v6646 = vsel %vm1852, %v6644, %v6645
        %v6647 = vrot.slane %v6645, 4
        %v6648 = vrot.slane %v5654, 5
        %v6649 = vsel %vm1852, %v6647, %v6648
        %s6650 = scalar_lea.vmem [#allocation8], 128
        %v6651 = vld [vmem:[%s6650] sm:$0xf]
        %v6652 = vld [vmem:[%s6650 + $0x4] sm:$0xf]
        %v6653 = vld [vmem:[%s6650 + $0x8] sm:$0xf]
        %v6654 = vld [vmem:[%s6650 + $0xc] sm:$0xf]
        %v6655 = vld [vmem:[%s6650 + $0x10] sm:$0xf]
        %v6656 = vld [vmem:[%s6650 + $0x14] sm:$0xf]
        %v6657 = vld [vmem:[%s6650 + $0x18] sm:$0xf]
        %v6658 = vld [vmem:[%s6650 + $0x1c] sm:$0xf]
        %v6659 = vld [vmem:[%s6650 + $0x20] sm:$0xf]
        %v6660 = vld [vmem:[%s6650 + $0x24] sm:$0xf]
        %v6661 = vld [vmem:[%s6650 + $0x28] sm:$0xf]
        %v6662 = vld [vmem:[%s6650 + $0x2c] sm:$0xf]
        %v6663 = vld [vmem:[%s6650 + $0x30] sm:$0xf]
        %v6664 = vld [vmem:[%s6650 + $0x34] sm:$0xf]
        %v6665 = vld [vmem:[%s6650 + $0x38] sm:$0xf]
        %v6666 = vld [vmem:[%s6650 + $0x3c] sm:$0xf]
        %v6667 = vunpack.c.l.b16 %v6541
        %v6668 = vunpack.c.l.b16 %v6544
        %v6669 = vunpack.c.l.b16 %v6548
        %v6670 = vunpack.c.l.b16 %v6551
        %v6671 = vunpack.c.l.b16 %v6555
        %v6672 = vunpack.c.l.b16 %v6558
        %v6673 = vunpack.c.l.b16 %v6562
        %v6674 = vunpack.c.l.b16 %v6565
        %v6675 = vunpack.c.l.b16 %v6569
        %v6676 = vunpack.c.l.b16 %v6572
        %v6677 = vunpack.c.l.b16 %v6576
        %v6678 = vunpack.c.l.b16 %v6579
        %v6679 = vunpack.c.l.b16 %v6583
        %v6680 = vunpack.c.l.b16 %v6586
        %v6681 = vunpack.c.l.b16 %v6590
        %v6682 = vunpack.c.l.b16 %v6593
        %v6683 = vunpack.c.l.b16 %v6597
        %v6684 = vunpack.c.l.b16 %v6600
        %v6685 = vunpack.c.l.b16 %v6604
        %v6686 = vunpack.c.l.b16 %v6607
        %v6687 = vunpack.c.l.b16 %v6611
        %v6688 = vunpack.c.l.b16 %v6614
        %v6689 = vunpack.c.l.b16 %v6618
        %v6690 = vunpack.c.l.b16 %v6621
        %v6691 = vunpack.c.l.b16 %v6625
        %v6692 = vunpack.c.l.b16 %v6628
        %v6693 = vunpack.c.l.b16 %v6632
        %v6694 = vunpack.c.l.b16 %v6635
        %v6695 = vunpack.c.l.b16 %v6639
        %v6696 = vunpack.c.l.b16 %v6642
        %v6697 = vunpack.c.l.b16 %v6646
        %v6698 = vunpack.c.l.b16 %v6649
        %v6699 = vpack.c.b16 %v6668, %v6667
        %v6700 = vpack.c.b16 %v6670, %v6669
        %v6701 = vpack.c.b16 %v6672, %v6671
        %v6702 = vpack.c.b16 %v6674, %v6673
        %v6703 = vpack.c.b16 %v6676, %v6675
        %v6704 = vpack.c.b16 %v6678, %v6677
        %v6705 = vpack.c.b16 %v6680, %v6679
        %v6706 = vpack.c.b16 %v6682, %v6681
        %v6707 = vpack.c.b16 %v6684, %v6683
        %v6708 = vpack.c.b16 %v6686, %v6685
        %v6709 = vpack.c.b16 %v6688, %v6687
        %v6710 = vpack.c.b16 %v6690, %v6689
        %v6711 = vpack.c.b16 %v6692, %v6691
        %v6712 = vpack.c.b16 %v6694, %v6693
        %v6713 = vpack.c.b16 %v6696, %v6695
        %v6714 = vpack.c.b16 %v6698, %v6697
        %v6747 = vunpack.c.l.b16 %v6651
        %v6748 = vunpack.c.l.b16 %v6652
        %v6749 = vunpack.c.l.b16 %v6653
        %v6750 = vunpack.c.l.b16 %v6654
        %v6751 = vunpack.c.l.b16 %v6655
        %v6752 = vunpack.c.l.b16 %v6656
        %v6753 = vunpack.c.l.b16 %v6657
        %v6754 = vunpack.c.l.b16 %v6658
        %v6755 = vunpack.c.l.b16 %v6659
        %v6756 = vunpack.c.l.b16 %v6660
        %v6757 = vunpack.c.l.b16 %v6661
        %v6758 = vunpack.c.l.b16 %v6662
        %v6759 = vunpack.c.l.b16 %v6663
        %v6760 = vunpack.c.l.b16 %v6664
        %v6761 = vunpack.c.l.b16 %v6665
        %v6762 = vunpack.c.l.b16 %v6666
        %v6763 = vpack.c.b16 %v6748, %v6747
        %v6764 = vpack.c.b16 %v6750, %v6749
        %v6765 = vpack.c.b16 %v6752, %v6751
        %v6766 = vpack.c.b16 %v6754, %v6753
        %v6767 = vpack.c.b16 %v6756, %v6755
        %v6768 = vpack.c.b16 %v6758, %v6757
        %v6769 = vpack.c.b16 %v6760, %v6759
        %v6770 = vpack.c.b16 %v6762, %v6761
        %6779 = vmatpush.bf16.msra.mxu0 %v6770
        %6780 = vmatpush.bf16.msra.mxu0 %v6769
        %6781 = vmatpush.bf16.msra.mxu0 %v6768
        %6782 = vmatpush.bf16.msra.mxu0 %v6767
        %6783 = vmatpush.bf16.msra.mxu0 %v6766
        %6784 = vmatpush.bf16.msra.mxu0 %v6765
        %6785 = vmatpush.bf16.msra.mxu0 %v6764
        %6786 = vmatpush.bf16.msra.mxu0 %v6763
        %6787 = vmatmul.bf16.gmra.mxu0 %v6699
        %v6788 = vpop.f32.mrf.mxu0
        %v6789 = vadd.f32 0.0, %v6788
        %v6790 = vpop.f32.mrf.mxu0
        %v6791 = vadd.f32 0.0, %v6790
        %6792 = vmatmul.bf16.gmra.mxu0 %v6700
        %v6793 = vpop.f32.mrf.mxu0
        %v6794 = vadd.f32 0.0, %v6793
        %v6795 = vpop.f32.mrf.mxu0
        %v6796 = vadd.f32 0.0, %v6795
        %6797 = vmatmul.bf16.gmra.mxu0 %v6701
        %v6798 = vpop.f32.mrf.mxu0
        %v6799 = vadd.f32 0.0, %v6798
        %v6800 = vpop.f32.mrf.mxu0
        %v6801 = vadd.f32 0.0, %v6800
        %6802 = vmatmul.bf16.gmra.mxu0 %v6702
        %v6803 = vpop.f32.mrf.mxu0
        %v6804 = vadd.f32 0.0, %v6803
        %v6805 = vpop.f32.mrf.mxu0
        %v6806 = vadd.f32 0.0, %v6805
        %6807 = vmatmul.bf16.gmra.mxu0 %v6703
        %v6808 = vpop.f32.mrf.mxu0
        %v6809 = vadd.f32 0.0, %v6808
        %v6810 = vpop.f32.mrf.mxu0
        %v6811 = vadd.f32 0.0, %v6810
        %6812 = vmatmul.bf16.gmra.mxu0 %v6704
        %v6813 = vpop.f32.mrf.mxu0
        %v6814 = vadd.f32 0.0, %v6813
        %v6815 = vpop.f32.mrf.mxu0
        %v6816 = vadd.f32 0.0, %v6815
        %6817 = vmatmul.bf16.gmra.mxu0 %v6705
        %v6818 = vpop.f32.mrf.mxu0
        %v6819 = vadd.f32 0.0, %v6818
        %v6820 = vpop.f32.mrf.mxu0
        %v6821 = vadd.f32 0.0, %v6820
        %6822 = vmatmul.bf16.gmra.mxu0 %v6706
        %v6823 = vpop.f32.mrf.mxu0
        %v6824 = vadd.f32 0.0, %v6823
        %v6825 = vpop.f32.mrf.mxu0
        %v6826 = vadd.f32 0.0, %v6825
        %6827 = vmatmul.bf16.gmra.mxu0 %v6707
        %v6828 = vpop.f32.mrf.mxu0
        %v6829 = vadd.f32 0.0, %v6828
        %v6830 = vpop.f32.mrf.mxu0
        %v6831 = vadd.f32 0.0, %v6830
        %6832 = vmatmul.bf16.gmra.mxu0 %v6708
        %v6833 = vpop.f32.mrf.mxu0
        %v6834 = vadd.f32 0.0, %v6833
        %v6835 = vpop.f32.mrf.mxu0
        %v6836 = vadd.f32 0.0, %v6835
        %6837 = vmatmul.bf16.gmra.mxu0 %v6709
        %v6838 = vpop.f32.mrf.mxu0
        %v6839 = vadd.f32 0.0, %v6838
        %v6840 = vpop.f32.mrf.mxu0
        %v6841 = vadd.f32 0.0, %v6840
        %6842 = vmatmul.bf16.gmra.mxu0 %v6710
        %v6843 = vpop.f32.mrf.mxu0
        %v6844 = vadd.f32 0.0, %v6843
        %v6845 = vpop.f32.mrf.mxu0
        %v6846 = vadd.f32 0.0, %v6845
        %6847 = vmatmul.bf16.gmra.mxu0 %v6711
        %v6848 = vpop.f32.mrf.mxu0
        %v6849 = vadd.f32 0.0, %v6848
        %v6850 = vpop.f32.mrf.mxu0
        %v6851 = vadd.f32 0.0, %v6850
        %6852 = vmatmul.bf16.gmra.mxu0 %v6712
        %v6853 = vpop.f32.mrf.mxu0
        %v6854 = vadd.f32 0.0, %v6853
        %v6855 = vpop.f32.mrf.mxu0
        %v6856 = vadd.f32 0.0, %v6855
        %6857 = vmatmul.bf16.gmra.mxu0 %v6713
        %v6858 = vpop.f32.mrf.mxu0
        %v6859 = vadd.f32 0.0, %v6858
        %v6860 = vpop.f32.mrf.mxu0
        %v6861 = vadd.f32 0.0, %v6860
        %6862 = vmatmul.bf16.gmra.mxu0 %v6714
        %v6863 = vpop.f32.mrf.mxu0
        %v6864 = vadd.f32 0.0, %v6863
        %v6865 = vpop.f32.mrf.mxu0
        %v6866 = vadd.f32 0.0, %v6865
        %6867 = vdwg.mxu0
        %v6868 = vadd.f32 %v6411, %v6789
        %v6869 = vadd.f32 %v6413, %v6791
        %v6870 = vadd.f32 %v6416, %v6794
        %v6871 = vadd.f32 %v6418, %v6796
        %v6872 = vadd.f32 %v6421, %v6799
        %v6873 = vadd.f32 %v6423, %v6801
        %v6874 = vadd.f32 %v6426, %v6804
        %v6875 = vadd.f32 %v6428, %v6806
        %v6876 = vadd.f32 %v6431, %v6809
        %v6877 = vadd.f32 %v6433, %v6811
        %v6878 = vadd.f32 %v6436, %v6814
        %v6879 = vadd.f32 %v6438, %v6816
        %v6880 = vadd.f32 %v6441, %v6819
        %v6881 = vadd.f32 %v6443, %v6821
        %v6882 = vadd.f32 %v6446, %v6824
        %v6883 = vadd.f32 %v6448, %v6826
        %v6884 = vadd.f32 %v6451, %v6829
        %v6885 = vadd.f32 %v6453, %v6831
        %v6886 = vadd.f32 %v6456, %v6834
        %v6887 = vadd.f32 %v6458, %v6836
        %v6888 = vadd.f32 %v6461, %v6839
        %v6889 = vadd.f32 %v6463, %v6841
        %v6890 = vadd.f32 %v6466, %v6844
        %v6891 = vadd.f32 %v6468, %v6846
        %v6892 = vadd.f32 %v6471, %v6849
        %v6893 = vadd.f32 %v6473, %v6851
        %v6894 = vadd.f32 %v6476, %v6854
        %v6895 = vadd.f32 %v6478, %v6856
        %v6896 = vadd.f32 %v6481, %v6859
        %v6897 = vadd.f32 %v6483, %v6861
        %v6898 = vadd.f32 %v6486, %v6864
        %v6899 = vadd.f32 %v6488, %v6866
        %v6900 = vld [vmem:[%s785] sm:$0xf]
        %v6901 = vld [vmem:[%s785 + $0x4] sm:$0xf]
        %v6902 = vld [vmem:[%s785 + $0xc] sm:$0xf]
        %v6903 = vld [vmem:[%s785 + $0x10] sm:$0xf]
        %v6904 = vld [vmem:[%s785 + $0x18] sm:$0xf]
        %v6905 = vld [vmem:[%s785 + $0x1c] sm:$0xf]
        %v6906 = vld [vmem:[%s785 + $0x24] sm:$0xf]
        %v6907 = vld [vmem:[%s785 + $0x28] sm:$0xf]
        %v6908 = vld [vmem:[%s785 + $0x30] sm:$0xf]
        %v6909 = vld [vmem:[%s785 + $0x34] sm:$0xf]
        %v6910 = vld [vmem:[%s785 + $0x3c] sm:$0xf]
        %v6911 = vld [vmem:[%s785 + $0x40] sm:$0xf]
        %v6912 = vld [vmem:[%s785 + $0x48] sm:$0xf]
        %v6913 = vld [vmem:[%s785 + $0x4c] sm:$0xf]
        %v6914 = vld [vmem:[%s785 + $0x54] sm:$0xf]
        %v6915 = vld [vmem:[%s785 + $0x58] sm:$0xf]
        %v6916 = vld [vmem:[%s785 + $0x60] sm:$0xf]
        %v6917 = vld [vmem:[%s785 + $0x64] sm:$0xf]
        %v6918 = vld [vmem:[%s785 + $0x6c] sm:$0xf]
        %v6919 = vld [vmem:[%s785 + $0x70] sm:$0xf]
        %v6920 = vld [vmem:[%s785 + $0x78] sm:$0xf]
        %v6921 = vld [vmem:[%s785 + $0x7c] sm:$0xf]
        %v6922 = vld [vmem:[%s785 + $0x84] sm:$0xf]
        %v6923 = vld [vmem:[%s785 + $0x88] sm:$0xf]
        %v6924 = vld [vmem:[%s785 + $0x90] sm:$0xf]
        %v6925 = vld [vmem:[%s785 + $0x94] sm:$0xf]
        %v6926 = vld [vmem:[%s785 + $0x9c] sm:$0xf]
        %v6927 = vld [vmem:[%s785 + $0xa0] sm:$0xf]
        %v6928 = vld [vmem:[%s785 + $0xa8] sm:$0xf]
        %v6929 = vld [vmem:[%s785 + $0xac] sm:$0xf]
        %v6930 = vld [vmem:[%s785 + $0xb4] sm:$0xf]
        %v6931 = vld [vmem:[%s785 + $0xb8] sm:$0xf]
        %s6932 = scalar_lea.vmem [#allocation8], 192
        %v6933 = vld [vmem:[%s6932] sm:$0xf]
        %v6934 = vld [vmem:[%s6932 + $0x4] sm:$0xf]
        %v6935 = vld [vmem:[%s6932 + $0x8] sm:$0xf]
        %v6936 = vld [vmem:[%s6932 + $0xc] sm:$0xf]
        %v6937 = vld [vmem:[%s6932 + $0x10] sm:$0xf]
        %v6938 = vld [vmem:[%s6932 + $0x14] sm:$0xf]
        %v6939 = vld [vmem:[%s6932 + $0x18] sm:$0xf]
        %v6940 = vld [vmem:[%s6932 + $0x1c] sm:$0xf]
        %v6941 = vld [vmem:[%s6932 + $0x20] sm:$0xf]
        %v6942 = vld [vmem:[%s6932 + $0x24] sm:$0xf]
        %v6943 = vld [vmem:[%s6932 + $0x28] sm:$0xf]
        %v6944 = vld [vmem:[%s6932 + $0x2c] sm:$0xf]
        %v6945 = vld [vmem:[%s6932 + $0x30] sm:$0xf]
        %v6946 = vld [vmem:[%s6932 + $0x34] sm:$0xf]
        %v6947 = vld [vmem:[%s6932 + $0x38] sm:$0xf]
        %v6948 = vld [vmem:[%s6932 + $0x3c] sm:$0xf]
        %v6981 = vunpack.c.l.b16 %v6900
        %v6982 = vunpack.c.l.b16 %v6901
        %v6983 = vunpack.c.l.b16 %v6902
        %v6984 = vunpack.c.l.b16 %v6903
        %v6985 = vunpack.c.l.b16 %v6904
        %v6986 = vunpack.c.l.b16 %v6905
        %v6987 = vunpack.c.l.b16 %v6906
        %v6988 = vunpack.c.l.b16 %v6907
        %v6989 = vunpack.c.l.b16 %v6908
        %v6990 = vunpack.c.l.b16 %v6909
        %v6991 = vunpack.c.l.b16 %v6910
        %v6992 = vunpack.c.l.b16 %v6911
        %v6993 = vunpack.c.l.b16 %v6912
        %v6994 = vunpack.c.l.b16 %v6913
        %v6995 = vunpack.c.l.b16 %v6914
        %v6996 = vunpack.c.l.b16 %v6915
        %v6997 = vunpack.c.l.b16 %v6916
        %v6998 = vunpack.c.l.b16 %v6917
        %v6999 = vunpack.c.l.b16 %v6918
        %v7000 = vunpack.c.l.b16 %v6919
        %v7001 = vunpack.c.l.b16 %v6920
        %v7002 = vunpack.c.l.b16 %v6921
        %v7003 = vunpack.c.l.b16 %v6922
        %v7004 = vunpack.c.l.b16 %v6923
        %v7005 = vunpack.c.l.b16 %v6924
        %v7006 = vunpack.c.l.b16 %v6925
        %v7007 = vunpack.c.l.b16 %v6926
        %v7008 = vunpack.c.l.b16 %v6927
        %v7009 = vunpack.c.l.b16 %v6928
        %v7010 = vunpack.c.l.b16 %v6929
        %v7011 = vunpack.c.l.b16 %v6930
        %v7012 = vunpack.c.l.b16 %v6931
        %v7013 = vpack.c.b16 %v6982, %v6981
        %v7014 = vpack.c.b16 %v6984, %v6983
        %v7015 = vpack.c.b16 %v6986, %v6985
        %v7016 = vpack.c.b16 %v6988, %v6987
        %v7017 = vpack.c.b16 %v6990, %v6989
        %v7018 = vpack.c.b16 %v6992, %v6991
        %v7019 = vpack.c.b16 %v6994, %v6993
        %v7020 = vpack.c.b16 %v6996, %v6995
        %v7021 = vpack.c.b16 %v6998, %v6997
        %v7022 = vpack.c.b16 %v7000, %v6999
        %v7023 = vpack.c.b16 %v7002, %v7001
        %v7024 = vpack.c.b16 %v7004, %v7003
        %v7025 = vpack.c.b16 %v7006, %v7005
        %v7026 = vpack.c.b16 %v7008, %v7007
        %v7027 = vpack.c.b16 %v7010, %v7009
        %v7028 = vpack.c.b16 %v7012, %v7011
        %v7061 = vunpack.c.l.b16 %v6933
        %v7062 = vunpack.c.l.b16 %v6934
        %v7063 = vunpack.c.l.b16 %v6935
        %v7064 = vunpack.c.l.b16 %v6936
        %v7065 = vunpack.c.l.b16 %v6937
        %v7066 = vunpack.c.l.b16 %v6938
        %v7067 = vunpack.c.l.b16 %v6939
        %v7068 = vunpack.c.l.b16 %v6940
        %v7069 = vunpack.c.l.b16 %v6941
        %v7070 = vunpack.c.l.b16 %v6942
        %v7071 = vunpack.c.l.b16 %v6943
        %v7072 = vunpack.c.l.b16 %v6944
        %v7073 = vunpack.c.l.b16 %v6945
        %v7074 = vunpack.c.l.b16 %v6946
        %v7075 = vunpack.c.l.b16 %v6947
        %v7076 = vunpack.c.l.b16 %v6948
        %v7077 = vpack.c.b16 %v7062, %v7061
        %v7078 = vpack.c.b16 %v7064, %v7063
        %v7079 = vpack.c.b16 %v7066, %v7065
        %v7080 = vpack.c.b16 %v7068, %v7067
        %v7081 = vpack.c.b16 %v7070, %v7069
        %v7082 = vpack.c.b16 %v7072, %v7071
        %v7083 = vpack.c.b16 %v7074, %v7073
        %v7084 = vpack.c.b16 %v7076, %v7075
        %7093 = vmatpush.bf16.msra.mxu0 %v7084
        %7094 = vmatpush.bf16.msra.mxu0 %v7083
        %7095 = vmatpush.bf16.msra.mxu0 %v7082
        %7096 = vmatpush.bf16.msra.mxu0 %v7081
        %7097 = vmatpush.bf16.msra.mxu0 %v7080
        %7098 = vmatpush.bf16.msra.mxu0 %v7079
        %7099 = vmatpush.bf16.msra.mxu0 %v7078
        %7100 = vmatpush.bf16.msra.mxu0 %v7077
        %7101 = vmatmul.bf16.gmra.mxu0 %v7013
        %v7102 = vpop.f32.mrf.mxu0
        %v7103 = vadd.f32 0.0, %v7102
        %v7104 = vpop.f32.mrf.mxu0
        %v7105 = vadd.f32 0.0, %v7104
        %7106 = vmatmul.bf16.gmra.mxu0 %v7014
        %v7107 = vpop.f32.mrf.mxu0
        %v7108 = vadd.f32 0.0, %v7107
        %v7109 = vpop.f32.mrf.mxu0
        %v7110 = vadd.f32 0.0, %v7109
        %7111 = vmatmul.bf16.gmra.mxu0 %v7015
        %v7112 = vpop.f32.mrf.mxu0
        %v7113 = vadd.f32 0.0, %v7112
        %v7114 = vpop.f32.mrf.mxu0
        %v7115 = vadd.f32 0.0, %v7114
        %7116 = vmatmul.bf16.gmra.mxu0 %v7016
        %v7117 = vpop.f32.mrf.mxu0
        %v7118 = vadd.f32 0.0, %v7117
        %v7119 = vpop.f32.mrf.mxu0
        %v7120 = vadd.f32 0.0, %v7119
        %7121 = vmatmul.bf16.gmra.mxu0 %v7017
        %v7122 = vpop.f32.mrf.mxu0
        %v7123 = vadd.f32 0.0, %v7122
        %v7124 = vpop.f32.mrf.mxu0
        %v7125 = vadd.f32 0.0, %v7124
        %7126 = vmatmul.bf16.gmra.mxu0 %v7018
        %v7127 = vpop.f32.mrf.mxu0
        %v7128 = vadd.f32 0.0, %v7127
        %v7129 = vpop.f32.mrf.mxu0
        %v7130 = vadd.f32 0.0, %v7129
        %7131 = vmatmul.bf16.gmra.mxu0 %v7019
        %v7132 = vpop.f32.mrf.mxu0
        %v7133 = vadd.f32 0.0, %v7132
        %v7134 = vpop.f32.mrf.mxu0
        %v7135 = vadd.f32 0.0, %v7134
        %7136 = vmatmul.bf16.gmra.mxu0 %v7020
        %v7137 = vpop.f32.mrf.mxu0
        %v7138 = vadd.f32 0.0, %v7137
        %v7139 = vpop.f32.mrf.mxu0
        %v7140 = vadd.f32 0.0, %v7139
        %7141 = vmatmul.bf16.gmra.mxu0 %v7021
        %v7142 = vpop.f32.mrf.mxu0
        %v7143 = vadd.f32 0.0, %v7142
        %v7144 = vpop.f32.mrf.mxu0
        %v7145 = vadd.f32 0.0, %v7144
        %7146 = vmatmul.bf16.gmra.mxu0 %v7022
        %v7147 = vpop.f32.mrf.mxu0
        %v7148 = vadd.f32 0.0, %v7147
        %v7149 = vpop.f32.mrf.mxu0
        %v7150 = vadd.f32 0.0, %v7149
        %7151 = vmatmul.bf16.gmra.mxu0 %v7023
        %v7152 = vpop.f32.mrf.mxu0
        %v7153 = vadd.f32 0.0, %v7152
        %v7154 = vpop.f32.mrf.mxu0
        %v7155 = vadd.f32 0.0, %v7154
        %7156 = vmatmul.bf16.gmra.mxu0 %v7024
        %v7157 = vpop.f32.mrf.mxu0
        %v7158 = vadd.f32 0.0, %v7157
        %v7159 = vpop.f32.mrf.mxu0
        %v7160 = vadd.f32 0.0, %v7159
        %7161 = vmatmul.bf16.gmra.mxu0 %v7025
        %v7162 = vpop.f32.mrf.mxu0
        %v7163 = vadd.f32 0.0, %v7162
        %v7164 = vpop.f32.mrf.mxu0
        %v7165 = vadd.f32 0.0, %v7164
        %7166 = vmatmul.bf16.gmra.mxu0 %v7026
        %v7167 = vpop.f32.mrf.mxu0
        %v7168 = vadd.f32 0.0, %v7167
        %v7169 = vpop.f32.mrf.mxu0
        %v7170 = vadd.f32 0.0, %v7169
        %7171 = vmatmul.bf16.gmra.mxu0 %v7027
        %v7172 = vpop.f32.mrf.mxu0
        %v7173 = vadd.f32 0.0, %v7172
        %v7174 = vpop.f32.mrf.mxu0
        %v7175 = vadd.f32 0.0, %v7174
        %7176 = vmatmul.bf16.gmra.mxu0 %v7028
        %v7177 = vpop.f32.mrf.mxu0
        %v7178 = vadd.f32 0.0, %v7177
        %v7179 = vpop.f32.mrf.mxu0
        %v7180 = vadd.f32 0.0, %v7179
        %7181 = vdwg.mxu0
        %v7182 = vadd.f32 %v6868, %v7103
        %v7183 = vadd.f32 %v6869, %v7105
        %v7184 = vadd.f32 %v6870, %v7108
        %v7185 = vadd.f32 %v6871, %v7110
        %v7186 = vadd.f32 %v6872, %v7113
        %v7187 = vadd.f32 %v6873, %v7115
        %v7188 = vadd.f32 %v6874, %v7118
        %v7189 = vadd.f32 %v6875, %v7120
        %v7190 = vadd.f32 %v6876, %v7123
        %v7191 = vadd.f32 %v6877, %v7125
        %v7192 = vadd.f32 %v6878, %v7128
        %v7193 = vadd.f32 %v6879, %v7130
        %v7194 = vadd.f32 %v6880, %v7133
        %v7195 = vadd.f32 %v6881, %v7135
        %v7196 = vadd.f32 %v6882, %v7138
        %v7197 = vadd.f32 %v6883, %v7140
        %v7198 = vadd.f32 %v6884, %v7143
        %v7199 = vadd.f32 %v6885, %v7145
        %v7200 = vadd.f32 %v6886, %v7148
        %v7201 = vadd.f32 %v6887, %v7150
        %v7202 = vadd.f32 %v6888, %v7153
        %v7203 = vadd.f32 %v6889, %v7155
        %v7204 = vadd.f32 %v6890, %v7158
        %v7205 = vadd.f32 %v6891, %v7160
        %v7206 = vadd.f32 %v6892, %v7163
        %v7207 = vadd.f32 %v6893, %v7165
        %v7208 = vadd.f32 %v6894, %v7168
        %v7209 = vadd.f32 %v6895, %v7170
        %v7210 = vadd.f32 %v6896, %v7173
        %v7211 = vadd.f32 %v6897, %v7175
        %v7212 = vadd.f32 %v6898, %v7178
        %v7213 = vadd.f32 %v6899, %v7180
        %v7214 = vld [vmem:[%s785] sm:$0xf]
        %v7215 = vld [vmem:[%s785 + $0x4] sm:$0xf]
        %v7216 = vld [vmem:[%s785 + $0x8] sm:$0x1]
        %v7217 = vld [vmem:[%s785 + $0xc] sm:$0xf]
        %v7218 = vld [vmem:[%s785 + $0x10] sm:$0xf]
        %v7219 = vld [vmem:[%s785 + $0x14] sm:$0x1]
        %v7220 = vld [vmem:[%s785 + $0x18] sm:$0xf]
        %v7221 = vld [vmem:[%s785 + $0x1c] sm:$0xf]
        %v7222 = vld [vmem:[%s785 + $0x20] sm:$0x1]
        %v7223 = vld [vmem:[%s785 + $0x24] sm:$0xf]
        %v7224 = vld [vmem:[%s785 + $0x28] sm:$0xf]
        %v7225 = vld [vmem:[%s785 + $0x2c] sm:$0x1]
        %v7226 = vld [vmem:[%s785 + $0x30] sm:$0xf]
        %v7227 = vld [vmem:[%s785 + $0x34] sm:$0xf]
        %v7228 = vld [vmem:[%s785 + $0x38] sm:$0x1]
        %v7229 = vld [vmem:[%s785 + $0x3c] sm:$0xf]
        %v7230 = vld [vmem:[%s785 + $0x40] sm:$0xf]
        %v7231 = vld [vmem:[%s785 + $0x44] sm:$0x1]
        %v7232 = vld [vmem:[%s785 + $0x48] sm:$0xf]
        %v7233 = vld [vmem:[%s785 + $0x4c] sm:$0xf]
        %v7234 = vld [vmem:[%s785 + $0x50] sm:$0x1]
        %v7235 = vld [vmem:[%s785 + $0x54] sm:$0xf]
        %v7236 = vld [vmem:[%s785 + $0x58] sm:$0xf]
        %v7237 = vld [vmem:[%s785 + $0x5c] sm:$0x1]
        %v7238 = vld [vmem:[%s785 + $0x60] sm:$0xf]
        %v7239 = vld [vmem:[%s785 + $0x64] sm:$0xf]
        %v7240 = vld [vmem:[%s785 + $0x68] sm:$0x1]
        %v7241 = vld [vmem:[%s785 + $0x6c] sm:$0xf]
        %v7242 = vld [vmem:[%s785 + $0x70] sm:$0xf]
        %v7243 = vld [vmem:[%s785 + $0x74] sm:$0x1]
        %v7244 = vld [vmem:[%s785 + $0x78] sm:$0xf]
        %v7245 = vld [vmem:[%s785 + $0x7c] sm:$0xf]
        %v7246 = vld [vmem:[%s785 + $0x80] sm:$0x1]
        %v7247 = vld [vmem:[%s785 + $0x84] sm:$0xf]
        %v7248 = vld [vmem:[%s785 + $0x88] sm:$0xf]
        %v7249 = vld [vmem:[%s785 + $0x8c] sm:$0x1]
        %v7250 = vld [vmem:[%s785 + $0x90] sm:$0xf]
        %v7251 = vld [vmem:[%s785 + $0x94] sm:$0xf]
        %v7252 = vld [vmem:[%s785 + $0x98] sm:$0x1]
        %v7253 = vld [vmem:[%s785 + $0x9c] sm:$0xf]
        %v7254 = vld [vmem:[%s785 + $0xa0] sm:$0xf]
        %v7255 = vld [vmem:[%s785 + $0xa4] sm:$0x1]
        %v7256 = vld [vmem:[%s785 + $0xa8] sm:$0xf]
        %v7257 = vld [vmem:[%s785 + $0xac] sm:$0xf]
        %v7258 = vld [vmem:[%s785 + $0xb0] sm:$0x1]
        %v7259 = vld [vmem:[%s785 + $0xb4] sm:$0xf]
        %v7260 = vld [vmem:[%s785 + $0xb8] sm:$0xf]
        %v7261 = vld [vmem:[%s785 + $0xbc] sm:$0x1]
        %v7263 = vshrl.u32 %v7214, 16
        %v7265 = vrot.slane %v7263, 4
        %v7266 = vshll.u32 %v7214, 16
        %v7268 = vrot.slane %v7266, 5
        %v7269 = vor.u32 %v7265, %v7268
        %v7270 = vrot.slane %v7269, 4
        %v7272 = vshll.u32 %v7215, 16
        %v7274 = vrot.slane %v7272, 5
        %v7275 = vsel %vm966, %v7270, %v7274
        %v7276 = vshrl.u32 %v7215, 16
        %v7278 = vrot.slane %v7276, 4
        %v7279 = vor.u32 %v7278, %v7274
        %v7280 = vrot.slane %v7279, 4
        %v7282 = vshll.u32 %v7216, 16
        %v7284 = vrot.slane %v7282, 5
        %v7285 = vsel %vm966, %v7280, %v7284
        %v7287 = vshrl.u32 %v7217, 16
        %v7289 = vrot.slane %v7287, 4
        %v7290 = vshll.u32 %v7217, 16
        %v7292 = vrot.slane %v7290, 5
        %v7293 = vor.u32 %v7289, %v7292
        %v7294 = vrot.slane %v7293, 4
        %v7296 = vshll.u32 %v7218, 16
        %v7298 = vrot.slane %v7296, 5
        %v7299 = vsel %vm966, %v7294, %v7298
        %v7300 = vshrl.u32 %v7218, 16
        %v7302 = vrot.slane %v7300, 4
        %v7303 = vor.u32 %v7302, %v7298
        %v7304 = vrot.slane %v7303, 4
        %v7306 = vshll.u32 %v7219, 16
        %v7308 = vrot.slane %v7306, 5
        %v7309 = vsel %vm966, %v7304, %v7308
        %v7311 = vshrl.u32 %v7220, 16
        %v7313 = vrot.slane %v7311, 4
        %v7314 = vshll.u32 %v7220, 16
        %v7316 = vrot.slane %v7314, 5
        %v7317 = vor.u32 %v7313, %v7316
        %v7318 = vrot.slane %v7317, 4
        %v7320 = vshll.u32 %v7221, 16
        %v7322 = vrot.slane %v7320, 5
        %v7323 = vsel %vm966, %v7318, %v7322
        %v7324 = vshrl.u32 %v7221, 16
        %v7326 = vrot.slane %v7324, 4
        %v7327 = vor.u32 %v7326, %v7322
        %v7328 = vrot.slane %v7327, 4
        %v7330 = vshll.u32 %v7222, 16
        %v7332 = vrot.slane %v7330, 5
        %v7333 = vsel %vm966, %v7328, %v7332
        %v7335 = vshrl.u32 %v7223, 16
        %v7337 = vrot.slane %v7335, 4
        %v7338 = vshll.u32 %v7223, 16
        %v7340 = vrot.slane %v7338, 5
        %v7341 = vor.u32 %v7337, %v7340
        %v7342 = vrot.slane %v7341, 4
        %v7344 = vshll.u32 %v7224, 16
        %v7346 = vrot.slane %v7344, 5
        %v7347 = vsel %vm966, %v7342, %v7346
        %v7348 = vshrl.u32 %v7224, 16
        %v7350 = vrot.slane %v7348, 4
        %v7351 = vor.u32 %v7350, %v7346
        %v7352 = vrot.slane %v7351, 4
        %v7354 = vshll.u32 %v7225, 16
        %v7356 = vrot.slane %v7354, 5
        %v7357 = vsel %vm966, %v7352, %v7356
        %v7359 = vshrl.u32 %v7226, 16
        %v7361 = vrot.slane %v7359, 4
        %v7362 = vshll.u32 %v7226, 16
        %v7364 = vrot.slane %v7362, 5
        %v7365 = vor.u32 %v7361, %v7364
        %v7366 = vrot.slane %v7365, 4
        %v7368 = vshll.u32 %v7227, 16
        %v7370 = vrot.slane %v7368, 5
        %v7371 = vsel %vm966, %v7366, %v7370
        %v7372 = vshrl.u32 %v7227, 16
        %v7374 = vrot.slane %v7372, 4
        %v7375 = vor.u32 %v7374, %v7370
        %v7376 = vrot.slane %v7375, 4
        %v7378 = vshll.u32 %v7228, 16
        %v7380 = vrot.slane %v7378, 5
        %v7381 = vsel %vm966, %v7376, %v7380
        %v7383 = vshrl.u32 %v7229, 16
        %v7385 = vrot.slane %v7383, 4
        %v7386 = vshll.u32 %v7229, 16
        %v7388 = vrot.slane %v7386, 5
        %v7389 = vor.u32 %v7385, %v7388
        %v7390 = vrot.slane %v7389, 4
        %v7392 = vshll.u32 %v7230, 16
        %v7394 = vrot.slane %v7392, 5
        %v7395 = vsel %vm966, %v7390, %v7394
        %v7396 = vshrl.u32 %v7230, 16
        %v7398 = vrot.slane %v7396, 4
        %v7399 = vor.u32 %v7398, %v7394
        %v7400 = vrot.slane %v7399, 4
        %v7402 = vshll.u32 %v7231, 16
        %v7404 = vrot.slane %v7402, 5
        %v7405 = vsel %vm966, %v7400, %v7404
        %v7407 = vshrl.u32 %v7232, 16
        %v7409 = vrot.slane %v7407, 4
        %v7410 = vshll.u32 %v7232, 16
        %v7412 = vrot.slane %v7410, 5
        %v7413 = vor.u32 %v7409, %v7412
        %v7414 = vrot.slane %v7413, 4
        %v7416 = vshll.u32 %v7233, 16
        %v7418 = vrot.slane %v7416, 5
        %v7419 = vsel %vm966, %v7414, %v7418
        %v7420 = vshrl.u32 %v7233, 16
        %v7422 = vrot.slane %v7420, 4
        %v7423 = vor.u32 %v7422, %v7418
        %v7424 = vrot.slane %v7423, 4
        %v7426 = vshll.u32 %v7234, 16
        %v7428 = vrot.slane %v7426, 5
        %v7429 = vsel %vm966, %v7424, %v7428
        %v7431 = vshrl.u32 %v7235, 16
        %v7433 = vrot.slane %v7431, 4
        %v7434 = vshll.u32 %v7235, 16
        %v7436 = vrot.slane %v7434, 5
        %v7437 = vor.u32 %v7433, %v7436
        %v7438 = vrot.slane %v7437, 4
        %v7440 = vshll.u32 %v7236, 16
        %v7442 = vrot.slane %v7440, 5
        %v7443 = vsel %vm966, %v7438, %v7442
        %v7444 = vshrl.u32 %v7236, 16
        %v7446 = vrot.slane %v7444, 4
        %v7447 = vor.u32 %v7446, %v7442
        %v7448 = vrot.slane %v7447, 4
        %v7450 = vshll.u32 %v7237, 16
        %v7452 = vrot.slane %v7450, 5
        %v7453 = vsel %vm966, %v7448, %v7452
        %v7455 = vshrl.u32 %v7238, 16
        %v7457 = vrot.slane %v7455, 4
        %v7458 = vshll.u32 %v7238, 16
        %v7460 = vrot.slane %v7458, 5
        %v7461 = vor.u32 %v7457, %v7460
        %v7462 = vrot.slane %v7461, 4
        %v7464 = vshll.u32 %v7239, 16
        %v7466 = vrot.slane %v7464, 5
        %v7467 = vsel %vm966, %v7462, %v7466
        %v7468 = vshrl.u32 %v7239, 16
        %v7470 = vrot.slane %v7468, 4
        %v7471 = vor.u32 %v7470, %v7466
        %v7472 = vrot.slane %v7471, 4
        %v7474 = vshll.u32 %v7240, 16
        %v7476 = vrot.slane %v7474, 5
        %v7477 = vsel %vm966, %v7472, %v7476
        %v7479 = vshrl.u32 %v7241, 16
        %v7481 = vrot.slane %v7479, 4
        %v7482 = vshll.u32 %v7241, 16
        %v7484 = vrot.slane %v7482, 5
        %v7485 = vor.u32 %v7481, %v7484
        %v7486 = vrot.slane %v7485, 4
        %v7488 = vshll.u32 %v7242, 16
        %v7490 = vrot.slane %v7488, 5
        %v7491 = vsel %vm966, %v7486, %v7490
        %v7492 = vshrl.u32 %v7242, 16
        %v7494 = vrot.slane %v7492, 4
        %v7495 = vor.u32 %v7494, %v7490
        %v7496 = vrot.slane %v7495, 4
        %v7498 = vshll.u32 %v7243, 16
        %v7500 = vrot.slane %v7498, 5
        %v7501 = vsel %vm966, %v7496, %v7500
        %v7503 = vshrl.u32 %v7244, 16
        %v7505 = vrot.slane %v7503, 4
        %v7506 = vshll.u32 %v7244, 16
        %v7508 = vrot.slane %v7506, 5
        %v7509 = vor.u32 %v7505, %v7508
        %v7510 = vrot.slane %v7509, 4
        %v7512 = vshll.u32 %v7245, 16
        %v7514 = vrot.slane %v7512, 5
        %v7515 = vsel %vm966, %v7510, %v7514
        %v7516 = vshrl.u32 %v7245, 16
        %v7518 = vrot.slane %v7516, 4
        %v7519 = vor.u32 %v7518, %v7514
        %v7520 = vrot.slane %v7519, 4
        %v7522 = vshll.u32 %v7246, 16
        %v7524 = vrot.slane %v7522, 5
        %v7525 = vsel %vm966, %v7520, %v7524
        %v7527 = vshrl.u32 %v7247, 16
        %v7529 = vrot.slane %v7527, 4
        %v7530 = vshll.u32 %v7247, 16
        %v7532 = vrot.slane %v7530, 5
        %v7533 = vor.u32 %v7529, %v7532
        %v7534 = vrot.slane %v7533, 4
        %v7536 = vshll.u32 %v7248, 16
        %v7538 = vrot.slane %v7536, 5
        %v7539 = vsel %vm966, %v7534, %v7538
        %v7540 = vshrl.u32 %v7248, 16
        %v7542 = vrot.slane %v7540, 4
        %v7543 = vor.u32 %v7542, %v7538
        %v7544 = vrot.slane %v7543, 4
        %v7546 = vshll.u32 %v7249, 16
        %v7548 = vrot.slane %v7546, 5
        %v7549 = vsel %vm966, %v7544, %v7548
        %v7551 = vshrl.u32 %v7250, 16
        %v7553 = vrot.slane %v7551, 4
        %v7554 = vshll.u32 %v7250, 16
        %v7556 = vrot.slane %v7554, 5
        %v7557 = vor.u32 %v7553, %v7556
        %v7558 = vrot.slane %v7557, 4
        %v7560 = vshll.u32 %v7251, 16
        %v7562 = vrot.slane %v7560, 5
        %v7563 = vsel %vm966, %v7558, %v7562
        %v7564 = vshrl.u32 %v7251, 16
        %v7566 = vrot.slane %v7564, 4
        %v7567 = vor.u32 %v7566, %v7562
        %v7568 = vrot.slane %v7567, 4
        %v7570 = vshll.u32 %v7252, 16
        %v7572 = vrot.slane %v7570, 5
        %v7573 = vsel %vm966, %v7568, %v7572
        %v7575 = vshrl.u32 %v7253, 16
        %v7577 = vrot.slane %v7575, 4
        %v7578 = vshll.u32 %v7253, 16
        %v7580 = vrot.slane %v7578, 5
        %v7581 = vor.u32 %v7577, %v7580
        %v7582 = vrot.slane %v7581, 4
        %v7584 = vshll.u32 %v7254, 16
        %v7586 = vrot.slane %v7584, 5
        %v7587 = vsel %vm966, %v7582, %v7586
        %v7588 = vshrl.u32 %v7254, 16
        %v7590 = vrot.slane %v7588, 4
        %v7591 = vor.u32 %v7590, %v7586
        %v7592 = vrot.slane %v7591, 4
        %v7594 = vshll.u32 %v7255, 16
        %v7596 = vrot.slane %v7594, 5
        %v7597 = vsel %vm966, %v7592, %v7596
        %v7599 = vshrl.u32 %v7256, 16
        %v7601 = vrot.slane %v7599, 4
        %v7602 = vshll.u32 %v7256, 16
        %v7604 = vrot.slane %v7602, 5
        %v7605 = vor.u32 %v7601, %v7604
        %v7606 = vrot.slane %v7605, 4
        %v7608 = vshll.u32 %v7257, 16
        %v7610 = vrot.slane %v7608, 5
        %v7611 = vsel %vm966, %v7606, %v7610
        %v7612 = vshrl.u32 %v7257, 16
        %v7614 = vrot.slane %v7612, 4
        %v7615 = vor.u32 %v7614, %v7610
        %v7616 = vrot.slane %v7615, 4
        %v7618 = vshll.u32 %v7258, 16
        %v7620 = vrot.slane %v7618, 5
        %v7621 = vsel %vm966, %v7616, %v7620
        %v7623 = vshrl.u32 %v7259, 16
        %v7625 = vrot.slane %v7623, 4
        %v7626 = vshll.u32 %v7259, 16
        %v7628 = vrot.slane %v7626, 5
        %v7629 = vor.u32 %v7625, %v7628
        %v7630 = vrot.slane %v7629, 4
        %v7632 = vshll.u32 %v7260, 16
        %v7634 = vrot.slane %v7632, 5
        %v7635 = vsel %vm966, %v7630, %v7634
        %v7636 = vshrl.u32 %v7260, 16
        %v7638 = vrot.slane %v7636, 4
        %v7639 = vor.u32 %v7638, %v7634
        %v7640 = vrot.slane %v7639, 4
        %v7642 = vshll.u32 %v7261, 16
        %v7644 = vrot.slane %v7642, 5
        %v7645 = vsel %vm966, %v7640, %v7644
        %s7646 = scalar_lea.vmem [#allocation8], 256
        %v7647 = vld [vmem:[%s7646] sm:$0xf]
        %v7648 = vld [vmem:[%s7646 + $0x4] sm:$0xf]
        %v7649 = vld [vmem:[%s7646 + $0x8] sm:$0xf]
        %v7650 = vld [vmem:[%s7646 + $0xc] sm:$0xf]
        %v7651 = vld [vmem:[%s7646 + $0x10] sm:$0xf]
        %v7652 = vld [vmem:[%s7646 + $0x14] sm:$0xf]
        %v7653 = vld [vmem:[%s7646 + $0x18] sm:$0xf]
        %v7654 = vld [vmem:[%s7646 + $0x1c] sm:$0xf]
        %v7655 = vld [vmem:[%s7646 + $0x20] sm:$0xf]
        %v7656 = vld [vmem:[%s7646 + $0x24] sm:$0xf]
        %v7657 = vld [vmem:[%s7646 + $0x28] sm:$0xf]
        %v7658 = vld [vmem:[%s7646 + $0x2c] sm:$0xf]
        %v7659 = vld [vmem:[%s7646 + $0x30] sm:$0xf]
        %v7660 = vld [vmem:[%s7646 + $0x34] sm:$0xf]
        %v7661 = vld [vmem:[%s7646 + $0x38] sm:$0xf]
        %v7662 = vld [vmem:[%s7646 + $0x3c] sm:$0xf]
        %v7663 = vunpack.c.l.b16 %v7275
        %v7664 = vunpack.c.l.b16 %v7285
        %v7665 = vunpack.c.l.b16 %v7299
        %v7666 = vunpack.c.l.b16 %v7309
        %v7667 = vunpack.c.l.b16 %v7323
        %v7668 = vunpack.c.l.b16 %v7333
        %v7669 = vunpack.c.l.b16 %v7347
        %v7670 = vunpack.c.l.b16 %v7357
        %v7671 = vunpack.c.l.b16 %v7371
        %v7672 = vunpack.c.l.b16 %v7381
        %v7673 = vunpack.c.l.b16 %v7395
        %v7674 = vunpack.c.l.b16 %v7405
        %v7675 = vunpack.c.l.b16 %v7419
        %v7676 = vunpack.c.l.b16 %v7429
        %v7677 = vunpack.c.l.b16 %v7443
        %v7678 = vunpack.c.l.b16 %v7453
        %v7679 = vunpack.c.l.b16 %v7467
        %v7680 = vunpack.c.l.b16 %v7477
        %v7681 = vunpack.c.l.b16 %v7491
        %v7682 = vunpack.c.l.b16 %v7501
        %v7683 = vunpack.c.l.b16 %v7515
        %v7684 = vunpack.c.l.b16 %v7525
        %v7685 = vunpack.c.l.b16 %v7539
        %v7686 = vunpack.c.l.b16 %v7549
        %v7687 = vunpack.c.l.b16 %v7563
        %v7688 = vunpack.c.l.b16 %v7573
        %v7689 = vunpack.c.l.b16 %v7587
        %v7690 = vunpack.c.l.b16 %v7597
        %v7691 = vunpack.c.l.b16 %v7611
        %v7692 = vunpack.c.l.b16 %v7621
        %v7693 = vunpack.c.l.b16 %v7635
        %v7694 = vunpack.c.l.b16 %v7645
        %v7695 = vpack.c.b16 %v7664, %v7663
        %v7696 = vpack.c.b16 %v7666, %v7665
        %v7697 = vpack.c.b16 %v7668, %v7667
        %v7698 = vpack.c.b16 %v7670, %v7669
        %v7699 = vpack.c.b16 %v7672, %v7671
        %v7700 = vpack.c.b16 %v7674, %v7673
        %v7701 = vpack.c.b16 %v7676, %v7675
        %v7702 = vpack.c.b16 %v7678, %v7677
        %v7703 = vpack.c.b16 %v7680, %v7679
        %v7704 = vpack.c.b16 %v7682, %v7681
        %v7705 = vpack.c.b16 %v7684, %v7683
        %v7706 = vpack.c.b16 %v7686, %v7685
        %v7707 = vpack.c.b16 %v7688, %v7687
        %v7708 = vpack.c.b16 %v7690, %v7689
        %v7709 = vpack.c.b16 %v7692, %v7691
        %v7710 = vpack.c.b16 %v7694, %v7693
        %v7743 = vunpack.c.l.b16 %v7647
        %v7744 = vunpack.c.l.b16 %v7648
        %v7745 = vunpack.c.l.b16 %v7649
        %v7746 = vunpack.c.l.b16 %v7650
        %v7747 = vunpack.c.l.b16 %v7651
        %v7748 = vunpack.c.l.b16 %v7652
        %v7749 = vunpack.c.l.b16 %v7653
        %v7750 = vunpack.c.l.b16 %v7654
        %v7751 = vunpack.c.l.b16 %v7655
        %v7752 = vunpack.c.l.b16 %v7656
        %v7753 = vunpack.c.l.b16 %v7657
        %v7754 = vunpack.c.l.b16 %v7658
        %v7755 = vunpack.c.l.b16 %v7659
        %v7756 = vunpack.c.l.b16 %v7660
        %v7757 = vunpack.c.l.b16 %v7661
        %v7758 = vunpack.c.l.b16 %v7662
        %v7759 = vpack.c.b16 %v7744, %v7743
        %v7760 = vpack.c.b16 %v7746, %v7745
        %v7761 = vpack.c.b16 %v7748, %v7747
        %v7762 = vpack.c.b16 %v7750, %v7749
        %v7763 = vpack.c.b16 %v7752, %v7751
        %v7764 = vpack.c.b16 %v7754, %v7753
        %v7765 = vpack.c.b16 %v7756, %v7755
        %v7766 = vpack.c.b16 %v7758, %v7757
        %7775 = vmatpush.bf16.msra.mxu0 %v7766
        %7776 = vmatpush.bf16.msra.mxu0 %v7765
        %7777 = vmatpush.bf16.msra.mxu0 %v7764
        %7778 = vmatpush.bf16.msra.mxu0 %v7763
        %7779 = vmatpush.bf16.msra.mxu0 %v7762
        %7780 = vmatpush.bf16.msra.mxu0 %v7761
        %7781 = vmatpush.bf16.msra.mxu0 %v7760
        %7782 = vmatpush.bf16.msra.mxu0 %v7759
        %7783 = vmatmul.bf16.gmra.mxu0 %v7695
        %v7784 = vpop.f32.mrf.mxu0
        %v7785 = vadd.f32 0.0, %v7784
        %v7786 = vpop.f32.mrf.mxu0
        %v7787 = vadd.f32 0.0, %v7786
        %7788 = vmatmul.bf16.gmra.mxu0 %v7696
        %v7789 = vpop.f32.mrf.mxu0
        %v7790 = vadd.f32 0.0, %v7789
        %v7791 = vpop.f32.mrf.mxu0
        %v7792 = vadd.f32 0.0, %v7791
        %7793 = vmatmul.bf16.gmra.mxu0 %v7697
        %v7794 = vpop.f32.mrf.mxu0
        %v7795 = vadd.f32 0.0, %v7794
        %v7796 = vpop.f32.mrf.mxu0
        %v7797 = vadd.f32 0.0, %v7796
        %7798 = vmatmul.bf16.gmra.mxu0 %v7698
        %v7799 = vpop.f32.mrf.mxu0
        %v7800 = vadd.f32 0.0, %v7799
        %v7801 = vpop.f32.mrf.mxu0
        %v7802 = vadd.f32 0.0, %v7801
        %7803 = vmatmul.bf16.gmra.mxu0 %v7699
        %v7804 = vpop.f32.mrf.mxu0
        %v7805 = vadd.f32 0.0, %v7804
        %v7806 = vpop.f32.mrf.mxu0
        %v7807 = vadd.f32 0.0, %v7806
        %7808 = vmatmul.bf16.gmra.mxu0 %v7700
        %v7809 = vpop.f32.mrf.mxu0
        %v7810 = vadd.f32 0.0, %v7809
        %v7811 = vpop.f32.mrf.mxu0
        %v7812 = vadd.f32 0.0, %v7811
        %7813 = vmatmul.bf16.gmra.mxu0 %v7701
        %v7814 = vpop.f32.mrf.mxu0
        %v7815 = vadd.f32 0.0, %v7814
        %v7816 = vpop.f32.mrf.mxu0
        %v7817 = vadd.f32 0.0, %v7816
        %7818 = vmatmul.bf16.gmra.mxu0 %v7702
        %v7819 = vpop.f32.mrf.mxu0
        %v7820 = vadd.f32 0.0, %v7819
        %v7821 = vpop.f32.mrf.mxu0
        %v7822 = vadd.f32 0.0, %v7821
        %7823 = vmatmul.bf16.gmra.mxu0 %v7703
        %v7824 = vpop.f32.mrf.mxu0
        %v7825 = vadd.f32 0.0, %v7824
        %v7826 = vpop.f32.mrf.mxu0
        %v7827 = vadd.f32 0.0, %v7826
        %7828 = vmatmul.bf16.gmra.mxu0 %v7704
        %v7829 = vpop.f32.mrf.mxu0
        %v7830 = vadd.f32 0.0, %v7829
        %v7831 = vpop.f32.mrf.mxu0
        %v7832 = vadd.f32 0.0, %v7831
        %7833 = vmatmul.bf16.gmra.mxu0 %v7705
        %v7834 = vpop.f32.mrf.mxu0
        %v7835 = vadd.f32 0.0, %v7834
        %v7836 = vpop.f32.mrf.mxu0
        %v7837 = vadd.f32 0.0, %v7836
        %7838 = vmatmul.bf16.gmra.mxu0 %v7706
        %v7839 = vpop.f32.mrf.mxu0
        %v7840 = vadd.f32 0.0, %v7839
        %v7841 = vpop.f32.mrf.mxu0
        %v7842 = vadd.f32 0.0, %v7841
        %7843 = vmatmul.bf16.gmra.mxu0 %v7707
        %v7844 = vpop.f32.mrf.mxu0
        %v7845 = vadd.f32 0.0, %v7844
        %v7846 = vpop.f32.mrf.mxu0
        %v7847 = vadd.f32 0.0, %v7846
        %7848 = vmatmul.bf16.gmra.mxu0 %v7708
        %v7849 = vpop.f32.mrf.mxu0
        %v7850 = vadd.f32 0.0, %v7849
        %v7851 = vpop.f32.mrf.mxu0
        %v7852 = vadd.f32 0.0, %v7851
        %7853 = vmatmul.bf16.gmra.mxu0 %v7709
        %v7854 = vpop.f32.mrf.mxu0
        %v7855 = vadd.f32 0.0, %v7854
        %v7856 = vpop.f32.mrf.mxu0
        %v7857 = vadd.f32 0.0, %v7856
        %7858 = vmatmul.bf16.gmra.mxu0 %v7710
        %v7859 = vpop.f32.mrf.mxu0
        %v7860 = vadd.f32 0.0, %v7859
        %v7861 = vpop.f32.mrf.mxu0
        %v7862 = vadd.f32 0.0, %v7861
        %7863 = vdwg.mxu0
        %v7864 = vadd.f32 %v7182, %v7785
        %v7865 = vadd.f32 %v7183, %v7787
        %v7866 = vadd.f32 %v7184, %v7790
        %v7867 = vadd.f32 %v7185, %v7792
        %v7868 = vadd.f32 %v7186, %v7795
        %v7869 = vadd.f32 %v7187, %v7797
        %v7870 = vadd.f32 %v7188, %v7800
        %v7871 = vadd.f32 %v7189, %v7802
        %v7872 = vadd.f32 %v7190, %v7805
        %v7873 = vadd.f32 %v7191, %v7807
        %v7874 = vadd.f32 %v7192, %v7810
        %v7875 = vadd.f32 %v7193, %v7812
        %v7876 = vadd.f32 %v7194, %v7815
        %v7877 = vadd.f32 %v7195, %v7817
        %v7878 = vadd.f32 %v7196, %v7820
        %v7879 = vadd.f32 %v7197, %v7822
        %v7880 = vadd.f32 %v7198, %v7825
        %v7881 = vadd.f32 %v7199, %v7827
        %v7882 = vadd.f32 %v7200, %v7830
        %v7883 = vadd.f32 %v7201, %v7832
        %v7884 = vadd.f32 %v7202, %v7835
        %v7885 = vadd.f32 %v7203, %v7837
        %v7886 = vadd.f32 %v7204, %v7840
        %v7887 = vadd.f32 %v7205, %v7842
        %v7888 = vadd.f32 %v7206, %v7845
        %v7889 = vadd.f32 %v7207, %v7847
        %v7890 = vadd.f32 %v7208, %v7850
        %v7891 = vadd.f32 %v7209, %v7852
        %v7892 = vadd.f32 %v7210, %v7855
        %v7893 = vadd.f32 %v7211, %v7857
        %v7894 = vadd.f32 %v7212, %v7860
        %v7895 = vadd.f32 %v7213, %v7862
        %v7896 = vld [vmem:[%s785] sm:$0xe]
        %v7897 = vld [vmem:[%s785 + $0xc] sm:$0xe]
        %v7898 = vld [vmem:[%s785 + $0x18] sm:$0xe]
        %v7899 = vld [vmem:[%s785 + $0x24] sm:$0xe]
        %v7900 = vld [vmem:[%s785 + $0x30] sm:$0xe]
        %v7901 = vld [vmem:[%s785 + $0x3c] sm:$0xe]
        %v7902 = vld [vmem:[%s785 + $0x48] sm:$0xe]
        %v7903 = vld [vmem:[%s785 + $0x54] sm:$0xe]
        %v7904 = vld [vmem:[%s785 + $0x60] sm:$0xe]
        %v7905 = vld [vmem:[%s785 + $0x6c] sm:$0xe]
        %v7906 = vld [vmem:[%s785 + $0x78] sm:$0xe]
        %v7907 = vld [vmem:[%s785 + $0x84] sm:$0xe]
        %v7908 = vld [vmem:[%s785 + $0x90] sm:$0xe]
        %v7909 = vld [vmem:[%s785 + $0x9c] sm:$0xe]
        %v7910 = vld [vmem:[%s785 + $0xa8] sm:$0xe]
        %v7911 = vld [vmem:[%s785 + $0xb4] sm:$0xe]
        %v7960 = vrot.slane %v7896, 5
        %v7961 = vrot.slane %v7960, 4
        %v7962 = vrot.slane %v7215, 5
        %v7963 = vsel %vm1852, %v7961, %v7962
        %v7964 = vrot.slane %v7962, 4
        %v7965 = vrot.slane %v7216, 5
        %v7966 = vsel %vm1852, %v7964, %v7965
        %v7967 = vrot.slane %v7897, 5
        %v7968 = vrot.slane %v7967, 4
        %v7969 = vrot.slane %v7218, 5
        %v7970 = vsel %vm1852, %v7968, %v7969
        %v7971 = vrot.slane %v7969, 4
        %v7972 = vrot.slane %v7219, 5
        %v7973 = vsel %vm1852, %v7971, %v7972
        %v7974 = vrot.slane %v7898, 5
        %v7975 = vrot.slane %v7974, 4
        %v7976 = vrot.slane %v7221, 5
        %v7977 = vsel %vm1852, %v7975, %v7976
        %v7978 = vrot.slane %v7976, 4
        %v7979 = vrot.slane %v7222, 5
        %v7980 = vsel %vm1852, %v7978, %v7979
        %v7981 = vrot.slane %v7899, 5
        %v7982 = vrot.slane %v7981, 4
        %v7983 = vrot.slane %v7224, 5
        %v7984 = vsel %vm1852, %v7982, %v7983
        %v7985 = vrot.slane %v7983, 4
        %v7986 = vrot.slane %v7225, 5
        %v7987 = vsel %vm1852, %v7985, %v7986
        %v7988 = vrot.slane %v7900, 5
        %v7989 = vrot.slane %v7988, 4
        %v7990 = vrot.slane %v7227, 5
        %v7991 = vsel %vm1852, %v7989, %v7990
        %v7992 = vrot.slane %v7990, 4
        %v7993 = vrot.slane %v7228, 5
        %v7994 = vsel %vm1852, %v7992, %v7993
        %v7995 = vrot.slane %v7901, 5
        %v7996 = vrot.slane %v7995, 4
        %v7997 = vrot.slane %v7230, 5
        %v7998 = vsel %vm1852, %v7996, %v7997
        %v7999 = vrot.slane %v7997, 4
        %v8000 = vrot.slane %v7231, 5
        %v8001 = vsel %vm1852, %v7999, %v8000
        %v8002 = vrot.slane %v7902, 5
        %v8003 = vrot.slane %v8002, 4
        %v8004 = vrot.slane %v7233, 5
        %v8005 = vsel %vm1852, %v8003, %v8004
        %v8006 = vrot.slane %v8004, 4
        %v8007 = vrot.slane %v7234, 5
        %v8008 = vsel %vm1852, %v8006, %v8007
        %v8009 = vrot.slane %v7903, 5
        %v8010 = vrot.slane %v8009, 4
        %v8011 = vrot.slane %v7236, 5
        %v8012 = vsel %vm1852, %v8010, %v8011
        %v8013 = vrot.slane %v8011, 4
        %v8014 = vrot.slane %v7237, 5
        %v8015 = vsel %vm1852, %v8013, %v8014
        %v8016 = vrot.slane %v7904, 5
        %v8017 = vrot.slane %v8016, 4
        %v8018 = vrot.slane %v7239, 5
        %v8019 = vsel %vm1852, %v8017, %v8018
        %v8020 = vrot.slane %v8018, 4
        %v8021 = vrot.slane %v7240, 5
        %v8022 = vsel %vm1852, %v8020, %v8021
        %v8023 = vrot.slane %v7905, 5
        %v8024 = vrot.slane %v8023, 4
        %v8025 = vrot.slane %v7242, 5
        %v8026 = vsel %vm1852, %v8024, %v8025
        %v8027 = vrot.slane %v8025, 4
        %v8028 = vrot.slane %v7243, 5
        %v8029 = vsel %vm1852, %v8027, %v8028
        %v8030 = vrot.slane %v7906, 5
        %v8031 = vrot.slane %v8030, 4
        %v8032 = vrot.slane %v7245, 5
        %v8033 = vsel %vm1852, %v8031, %v8032
        %v8034 = vrot.slane %v8032, 4
        %v8035 = vrot.slane %v7246, 5
        %v8036 = vsel %vm1852, %v8034, %v8035
        %v8037 = vrot.slane %v7907, 5
        %v8038 = vrot.slane %v8037, 4
        %v8039 = vrot.slane %v7248, 5
        %v8040 = vsel %vm1852, %v8038, %v8039
        %v8041 = vrot.slane %v8039, 4
        %v8042 = vrot.slane %v7249, 5
        %v8043 = vsel %vm1852, %v8041, %v8042
        %v8044 = vrot.slane %v7908, 5
        %v8045 = vrot.slane %v8044, 4
        %v8046 = vrot.slane %v7251, 5
        %v8047 = vsel %vm1852, %v8045, %v8046
        %v8048 = vrot.slane %v8046, 4
        %v8049 = vrot.slane %v7252, 5
        %v8050 = vsel %vm1852, %v8048, %v8049
        %v8051 = vrot.slane %v7909, 5
        %v8052 = vrot.slane %v8051, 4
        %v8053 = vrot.slane %v7254, 5
        %v8054 = vsel %vm1852, %v8052, %v8053
        %v8055 = vrot.slane %v8053, 4
        %v8056 = vrot.slane %v7255, 5
        %v8057 = vsel %vm1852, %v8055, %v8056
        %v8058 = vrot.slane %v7910, 5
        %v8059 = vrot.slane %v8058, 4
        %v8060 = vrot.slane %v7257, 5
        %v8061 = vsel %vm1852, %v8059, %v8060
        %v8062 = vrot.slane %v8060, 4
        %v8063 = vrot.slane %v7258, 5
        %v8064 = vsel %vm1852, %v8062, %v8063
        %v8065 = vrot.slane %v7911, 5
        %v8066 = vrot.slane %v8065, 4
        %v8067 = vrot.slane %v7260, 5
        %v8068 = vsel %vm1852, %v8066, %v8067
        %v8069 = vrot.slane %v8067, 4
        %v8070 = vrot.slane %v7261, 5
        %v8071 = vsel %vm1852, %v8069, %v8070
        %s8072 = scalar_lea.vmem [#allocation8], 320
        %v8073 = vld [vmem:[%s8072] sm:$0xf]
        %v8074 = vld [vmem:[%s8072 + $0x4] sm:$0xf]
        %v8075 = vld [vmem:[%s8072 + $0x8] sm:$0xf]
        %v8076 = vld [vmem:[%s8072 + $0xc] sm:$0xf]
        %v8077 = vld [vmem:[%s8072 + $0x10] sm:$0xf]
        %v8078 = vld [vmem:[%s8072 + $0x14] sm:$0xf]
        %v8079 = vld [vmem:[%s8072 + $0x18] sm:$0xf]
        %v8080 = vld [vmem:[%s8072 + $0x1c] sm:$0xf]
        %v8081 = vld [vmem:[%s8072 + $0x20] sm:$0xf]
        %v8082 = vld [vmem:[%s8072 + $0x24] sm:$0xf]
        %v8083 = vld [vmem:[%s8072 + $0x28] sm:$0xf]
        %v8084 = vld [vmem:[%s8072 + $0x2c] sm:$0xf]
        %v8085 = vld [vmem:[%s8072 + $0x30] sm:$0xf]
        %v8086 = vld [vmem:[%s8072 + $0x34] sm:$0xf]
        %v8087 = vld [vmem:[%s8072 + $0x38] sm:$0xf]
        %v8088 = vld [vmem:[%s8072 + $0x3c] sm:$0xf]
        %v8089 = vunpack.c.l.b16 %v7963
        %v8090 = vunpack.c.l.b16 %v7966
        %v8091 = vunpack.c.l.b16 %v7970
        %v8092 = vunpack.c.l.b16 %v7973
        %v8093 = vunpack.c.l.b16 %v7977
        %v8094 = vunpack.c.l.b16 %v7980
        %v8095 = vunpack.c.l.b16 %v7984
        %v8096 = vunpack.c.l.b16 %v7987
        %v8097 = vunpack.c.l.b16 %v7991
        %v8098 = vunpack.c.l.b16 %v7994
        %v8099 = vunpack.c.l.b16 %v7998
        %v8100 = vunpack.c.l.b16 %v8001
        %v8101 = vunpack.c.l.b16 %v8005
        %v8102 = vunpack.c.l.b16 %v8008
        %v8103 = vunpack.c.l.b16 %v8012
        %v8104 = vunpack.c.l.b16 %v8015
        %v8105 = vunpack.c.l.b16 %v8019
        %v8106 = vunpack.c.l.b16 %v8022
        %v8107 = vunpack.c.l.b16 %v8026
        %v8108 = vunpack.c.l.b16 %v8029
        %v8109 = vunpack.c.l.b16 %v8033
        %v8110 = vunpack.c.l.b16 %v8036
        %v8111 = vunpack.c.l.b16 %v8040
        %v8112 = vunpack.c.l.b16 %v8043
        %v8113 = vunpack.c.l.b16 %v8047
        %v8114 = vunpack.c.l.b16 %v8050
        %v8115 = vunpack.c.l.b16 %v8054
        %v8116 = vunpack.c.l.b16 %v8057
        %v8117 = vunpack.c.l.b16 %v8061
        %v8118 = vunpack.c.l.b16 %v8064
        %v8119 = vunpack.c.l.b16 %v8068
        %v8120 = vunpack.c.l.b16 %v8071
        %v8121 = vpack.c.b16 %v8090, %v8089
        %v8122 = vpack.c.b16 %v8092, %v8091
        %v8123 = vpack.c.b16 %v8094, %v8093
        %v8124 = vpack.c.b16 %v8096, %v8095
        %v8125 = vpack.c.b16 %v8098, %v8097
        %v8126 = vpack.c.b16 %v8100, %v8099
        %v8127 = vpack.c.b16 %v8102, %v8101
        %v8128 = vpack.c.b16 %v8104, %v8103
        %v8129 = vpack.c.b16 %v8106, %v8105
        %v8130 = vpack.c.b16 %v8108, %v8107
        %v8131 = vpack.c.b16 %v8110, %v8109
        %v8132 = vpack.c.b16 %v8112, %v8111
        %v8133 = vpack.c.b16 %v8114, %v8113
        %v8134 = vpack.c.b16 %v8116, %v8115
        %v8135 = vpack.c.b16 %v8118, %v8117
        %v8136 = vpack.c.b16 %v8120, %v8119
        %v8169 = vunpack.c.l.b16 %v8073
        %v8170 = vunpack.c.l.b16 %v8074
        %v8171 = vunpack.c.l.b16 %v8075
        %v8172 = vunpack.c.l.b16 %v8076
        %v8173 = vunpack.c.l.b16 %v8077
        %v8174 = vunpack.c.l.b16 %v8078
        %v8175 = vunpack.c.l.b16 %v8079
        %v8176 = vunpack.c.l.b16 %v8080
        %v8177 = vunpack.c.l.b16 %v8081
        %v8178 = vunpack.c.l.b16 %v8082
        %v8179 = vunpack.c.l.b16 %v8083
        %v8180 = vunpack.c.l.b16 %v8084
        %v8181 = vunpack.c.l.b16 %v8085
        %v8182 = vunpack.c.l.b16 %v8086
        %v8183 = vunpack.c.l.b16 %v8087
        %v8184 = vunpack.c.l.b16 %v8088
        %v8185 = vpack.c.b16 %v8170, %v8169
        %v8186 = vpack.c.b16 %v8172, %v8171
        %v8187 = vpack.c.b16 %v8174, %v8173
        %v8188 = vpack.c.b16 %v8176, %v8175
        %v8189 = vpack.c.b16 %v8178, %v8177
        %v8190 = vpack.c.b16 %v8180, %v8179
        %v8191 = vpack.c.b16 %v8182, %v8181
        %v8192 = vpack.c.b16 %v8184, %v8183
        %8201 = vmatpush.bf16.msra.mxu0 %v8192
        %8202 = vmatpush.bf16.msra.mxu0 %v8191
        %8203 = vmatpush.bf16.msra.mxu0 %v8190
        %8204 = vmatpush.bf16.msra.mxu0 %v8189
        %8205 = vmatpush.bf16.msra.mxu0 %v8188
        %8206 = vmatpush.bf16.msra.mxu0 %v8187
        %8207 = vmatpush.bf16.msra.mxu0 %v8186
        %8208 = vmatpush.bf16.msra.mxu0 %v8185
        %8209 = vmatmul.bf16.gmra.mxu0 %v8121
        %v8210 = vpop.f32.mrf.mxu0
        %v8211 = vadd.f32 0.0, %v8210
        %v8212 = vpop.f32.mrf.mxu0
        %v8213 = vadd.f32 0.0, %v8212
        %8214 = vmatmul.bf16.gmra.mxu0 %v8122
        %v8215 = vpop.f32.mrf.mxu0
        %v8216 = vadd.f32 0.0, %v8215
        %v8217 = vpop.f32.mrf.mxu0
        %v8218 = vadd.f32 0.0, %v8217
        %8219 = vmatmul.bf16.gmra.mxu0 %v8123
        %v8220 = vpop.f32.mrf.mxu0
        %v8221 = vadd.f32 0.0, %v8220
        %v8222 = vpop.f32.mrf.mxu0
        %v8223 = vadd.f32 0.0, %v8222
        %8224 = vmatmul.bf16.gmra.mxu0 %v8124
        %v8225 = vpop.f32.mrf.mxu0
        %v8226 = vadd.f32 0.0, %v8225
        %v8227 = vpop.f32.mrf.mxu0
        %v8228 = vadd.f32 0.0, %v8227
        %8229 = vmatmul.bf16.gmra.mxu0 %v8125
        %v8230 = vpop.f32.mrf.mxu0
        %v8231 = vadd.f32 0.0, %v8230
        %v8232 = vpop.f32.mrf.mxu0
        %v8233 = vadd.f32 0.0, %v8232
        %8234 = vmatmul.bf16.gmra.mxu0 %v8126
        %v8235 = vpop.f32.mrf.mxu0
        %v8236 = vadd.f32 0.0, %v8235
        %v8237 = vpop.f32.mrf.mxu0
        %v8238 = vadd.f32 0.0, %v8237
        %8239 = vmatmul.bf16.gmra.mxu0 %v8127
        %v8240 = vpop.f32.mrf.mxu0
        %v8241 = vadd.f32 0.0, %v8240
        %v8242 = vpop.f32.mrf.mxu0
        %v8243 = vadd.f32 0.0, %v8242
        %8244 = vmatmul.bf16.gmra.mxu0 %v8128
        %v8245 = vpop.f32.mrf.mxu0
        %v8246 = vadd.f32 0.0, %v8245
        %v8247 = vpop.f32.mrf.mxu0
        %v8248 = vadd.f32 0.0, %v8247
        %8249 = vmatmul.bf16.gmra.mxu0 %v8129
        %v8250 = vpop.f32.mrf.mxu0
        %v8251 = vadd.f32 0.0, %v8250
        %v8252 = vpop.f32.mrf.mxu0
        %v8253 = vadd.f32 0.0, %v8252
        %8254 = vmatmul.bf16.gmra.mxu0 %v8130
        %v8255 = vpop.f32.mrf.mxu0
        %v8256 = vadd.f32 0.0, %v8255
        %v8257 = vpop.f32.mrf.mxu0
        %v8258 = vadd.f32 0.0, %v8257
        %8259 = vmatmul.bf16.gmra.mxu0 %v8131
        %v8260 = vpop.f32.mrf.mxu0
        %v8261 = vadd.f32 0.0, %v8260
        %v8262 = vpop.f32.mrf.mxu0
        %v8263 = vadd.f32 0.0, %v8262
        %8264 = vmatmul.bf16.gmra.mxu0 %v8132
        %v8265 = vpop.f32.mrf.mxu0
        %v8266 = vadd.f32 0.0, %v8265
        %v8267 = vpop.f32.mrf.mxu0
        %v8268 = vadd.f32 0.0, %v8267
        %8269 = vmatmul.bf16.gmra.mxu0 %v8133
        %v8270 = vpop.f32.mrf.mxu0
        %v8271 = vadd.f32 0.0, %v8270
        %v8272 = vpop.f32.mrf.mxu0
        %v8273 = vadd.f32 0.0, %v8272
        %8274 = vmatmul.bf16.gmra.mxu0 %v8134
        %v8275 = vpop.f32.mrf.mxu0
        %v8276 = vadd.f32 0.0, %v8275
        %v8277 = vpop.f32.mrf.mxu0
        %v8278 = vadd.f32 0.0, %v8277
        %8279 = vmatmul.bf16.gmra.mxu0 %v8135
        %v8280 = vpop.f32.mrf.mxu0
        %v8281 = vadd.f32 0.0, %v8280
        %v8282 = vpop.f32.mrf.mxu0
        %v8283 = vadd.f32 0.0, %v8282
        %8284 = vmatmul.bf16.gmra.mxu0 %v8136
        %v8285 = vpop.f32.mrf.mxu0
        %v8286 = vadd.f32 0.0, %v8285
        %v8287 = vpop.f32.mrf.mxu0
        %v8288 = vadd.f32 0.0, %v8287
        %8289 = vdwg.mxu0
        %v8290 = vadd.f32 %v7864, %v8211
        %v8291 = vadd.f32 %v7865, %v8213
        %v8292 = vadd.f32 %v7866, %v8216
        %v8293 = vadd.f32 %v7867, %v8218
        %v8294 = vadd.f32 %v7868, %v8221
        %v8295 = vadd.f32 %v7869, %v8223
        %v8296 = vadd.f32 %v7870, %v8226
        %v8297 = vadd.f32 %v7871, %v8228
        %v8298 = vadd.f32 %v7872, %v8231
        %v8299 = vadd.f32 %v7873, %v8233
        %v8300 = vadd.f32 %v7874, %v8236
        %v8301 = vadd.f32 %v7875, %v8238
        %v8302 = vadd.f32 %v7876, %v8241
        %v8303 = vadd.f32 %v7877, %v8243
        %v8304 = vadd.f32 %v7878, %v8246
        %v8305 = vadd.f32 %v7879, %v8248
        %v8306 = vadd.f32 %v7880, %v8251
        %v8307 = vadd.f32 %v7881, %v8253
        %v8308 = vadd.f32 %v7882, %v8256
        %v8309 = vadd.f32 %v7883, %v8258
        %v8310 = vadd.f32 %v7884, %v8261
        %v8311 = vadd.f32 %v7885, %v8263
        %v8312 = vadd.f32 %v7886, %v8266
        %v8313 = vadd.f32 %v7887, %v8268
        %v8314 = vadd.f32 %v7888, %v8271
        %v8315 = vadd.f32 %v7889, %v8273
        %v8316 = vadd.f32 %v7890, %v8276
        %v8317 = vadd.f32 %v7891, %v8278
        %v8318 = vadd.f32 %v7892, %v8281
        %v8319 = vadd.f32 %v7893, %v8283
        %v8320 = vadd.f32 %v7894, %v8286
        %v8321 = vadd.f32 %v7895, %v8288
        %v8322 = vld [vmem:[%s3637] sm:$0xf]
        %v8323 = vld [vmem:[%s3637 + $0x4] sm:$0xf]
        %v8324 = vld [vmem:[%s3637 + $0xc] sm:$0xf]
        %v8325 = vld [vmem:[%s3637 + $0x10] sm:$0xf]
        %v8326 = vld [vmem:[%s3637 + $0x18] sm:$0xf]
        %v8327 = vld [vmem:[%s3637 + $0x1c] sm:$0xf]
        %v8328 = vld [vmem:[%s3637 + $0x24] sm:$0xf]
        %v8329 = vld [vmem:[%s3637 + $0x28] sm:$0xf]
        %v8330 = vld [vmem:[%s3637 + $0x30] sm:$0xf]
        %v8331 = vld [vmem:[%s3637 + $0x34] sm:$0xf]
        %v8332 = vld [vmem:[%s3637 + $0x3c] sm:$0xf]
        %v8333 = vld [vmem:[%s3637 + $0x40] sm:$0xf]
        %v8334 = vld [vmem:[%s3637 + $0x48] sm:$0xf]
        %v8335 = vld [vmem:[%s3637 + $0x4c] sm:$0xf]
        %v8336 = vld [vmem:[%s3637 + $0x54] sm:$0xf]
        %v8337 = vld [vmem:[%s3637 + $0x58] sm:$0xf]
        %v8338 = vld [vmem:[%s3637 + $0x60] sm:$0xf]
        %v8339 = vld [vmem:[%s3637 + $0x64] sm:$0xf]
        %v8340 = vld [vmem:[%s3637 + $0x6c] sm:$0xf]
        %v8341 = vld [vmem:[%s3637 + $0x70] sm:$0xf]
        %v8342 = vld [vmem:[%s3637 + $0x78] sm:$0xf]
        %v8343 = vld [vmem:[%s3637 + $0x7c] sm:$0xf]
        %v8344 = vld [vmem:[%s3637 + $0x84] sm:$0xf]
        %v8345 = vld [vmem:[%s3637 + $0x88] sm:$0xf]
        %v8346 = vld [vmem:[%s3637 + $0x90] sm:$0xf]
        %v8347 = vld [vmem:[%s3637 + $0x94] sm:$0xf]
        %v8348 = vld [vmem:[%s3637 + $0x9c] sm:$0xf]
        %v8349 = vld [vmem:[%s3637 + $0xa0] sm:$0xf]
        %v8350 = vld [vmem:[%s3637 + $0xa8] sm:$0xf]
        %v8351 = vld [vmem:[%s3637 + $0xac] sm:$0xf]
        %v8352 = vld [vmem:[%s3637 + $0xb4] sm:$0xf]
        %v8353 = vld [vmem:[%s3637 + $0xb8] sm:$0xf]
        %s8354 = scalar_lea.vmem [#allocation8], 384
        %v8355 = vld [vmem:[%s8354] sm:$0xf]
        %v8356 = vld [vmem:[%s8354 + $0x4] sm:$0xf]
        %v8357 = vld [vmem:[%s8354 + $0x8] sm:$0xf]
        %v8358 = vld [vmem:[%s8354 + $0xc] sm:$0xf]
        %v8359 = vld [vmem:[%s8354 + $0x10] sm:$0xf]
        %v8360 = vld [vmem:[%s8354 + $0x14] sm:$0xf]
        %v8361 = vld [vmem:[%s8354 + $0x18] sm:$0xf]
        %v8362 = vld [vmem:[%s8354 + $0x1c] sm:$0xf]
        %v8363 = vld [vmem:[%s8354 + $0x20] sm:$0xf]
        %v8364 = vld [vmem:[%s8354 + $0x24] sm:$0xf]
        %v8365 = vld [vmem:[%s8354 + $0x28] sm:$0xf]
        %v8366 = vld [vmem:[%s8354 + $0x2c] sm:$0xf]
        %v8367 = vld [vmem:[%s8354 + $0x30] sm:$0xf]
        %v8368 = vld [vmem:[%s8354 + $0x34] sm:$0xf]
        %v8369 = vld [vmem:[%s8354 + $0x38] sm:$0xf]
        %v8370 = vld [vmem:[%s8354 + $0x3c] sm:$0xf]
        %v8403 = vunpack.c.l.b16 %v8322
        %v8404 = vunpack.c.l.b16 %v8323
        %v8405 = vunpack.c.l.b16 %v8324
        %v8406 = vunpack.c.l.b16 %v8325
        %v8407 = vunpack.c.l.b16 %v8326
        %v8408 = vunpack.c.l.b16 %v8327
        %v8409 = vunpack.c.l.b16 %v8328
        %v8410 = vunpack.c.l.b16 %v8329
        %v8411 = vunpack.c.l.b16 %v8330
        %v8412 = vunpack.c.l.b16 %v8331
        %v8413 = vunpack.c.l.b16 %v8332
        %v8414 = vunpack.c.l.b16 %v8333
        %v8415 = vunpack.c.l.b16 %v8334
        %v8416 = vunpack.c.l.b16 %v8335
        %v8417 = vunpack.c.l.b16 %v8336
        %v8418 = vunpack.c.l.b16 %v8337
        %v8419 = vunpack.c.l.b16 %v8338
        %v8420 = vunpack.c.l.b16 %v8339
        %v8421 = vunpack.c.l.b16 %v8340
        %v8422 = vunpack.c.l.b16 %v8341
        %v8423 = vunpack.c.l.b16 %v8342
        %v8424 = vunpack.c.l.b16 %v8343
        %v8425 = vunpack.c.l.b16 %v8344
        %v8426 = vunpack.c.l.b16 %v8345
        %v8427 = vunpack.c.l.b16 %v8346
        %v8428 = vunpack.c.l.b16 %v8347
        %v8429 = vunpack.c.l.b16 %v8348
        %v8430 = vunpack.c.l.b16 %v8349
        %v8431 = vunpack.c.l.b16 %v8350
        %v8432 = vunpack.c.l.b16 %v8351
        %v8433 = vunpack.c.l.b16 %v8352
        %v8434 = vunpack.c.l.b16 %v8353
        %v8435 = vpack.c.b16 %v8404, %v8403
        %v8436 = vpack.c.b16 %v8406, %v8405
        %v8437 = vpack.c.b16 %v8408, %v8407
        %v8438 = vpack.c.b16 %v8410, %v8409
        %v8439 = vpack.c.b16 %v8412, %v8411
        %v8440 = vpack.c.b16 %v8414, %v8413
        %v8441 = vpack.c.b16 %v8416, %v8415
        %v8442 = vpack.c.b16 %v8418, %v8417
        %v8443 = vpack.c.b16 %v8420, %v8419
        %v8444 = vpack.c.b16 %v8422, %v8421
        %v8445 = vpack.c.b16 %v8424, %v8423
        %v8446 = vpack.c.b16 %v8426, %v8425
        %v8447 = vpack.c.b16 %v8428, %v8427
        %v8448 = vpack.c.b16 %v8430, %v8429
        %v8449 = vpack.c.b16 %v8432, %v8431
        %v8450 = vpack.c.b16 %v8434, %v8433
        %v8483 = vunpack.c.l.b16 %v8355
        %v8484 = vunpack.c.l.b16 %v8356
        %v8485 = vunpack.c.l.b16 %v8357
        %v8486 = vunpack.c.l.b16 %v8358
        %v8487 = vunpack.c.l.b16 %v8359
        %v8488 = vunpack.c.l.b16 %v8360
        %v8489 = vunpack.c.l.b16 %v8361
        %v8490 = vunpack.c.l.b16 %v8362
        %v8491 = vunpack.c.l.b16 %v8363
        %v8492 = vunpack.c.l.b16 %v8364
        %v8493 = vunpack.c.l.b16 %v8365
        %v8494 = vunpack.c.l.b16 %v8366
        %v8495 = vunpack.c.l.b16 %v8367
        %v8496 = vunpack.c.l.b16 %v8368
        %v8497 = vunpack.c.l.b16 %v8369
        %v8498 = vunpack.c.l.b16 %v8370
        %v8499 = vpack.c.b16 %v8484, %v8483
        %v8500 = vpack.c.b16 %v8486, %v8485
        %v8501 = vpack.c.b16 %v8488, %v8487
        %v8502 = vpack.c.b16 %v8490, %v8489
        %v8503 = vpack.c.b16 %v8492, %v8491
        %v8504 = vpack.c.b16 %v8494, %v8493
        %v8505 = vpack.c.b16 %v8496, %v8495
        %v8506 = vpack.c.b16 %v8498, %v8497
        %8515 = vmatpush.bf16.msra.mxu0 %v8506
        %8516 = vmatpush.bf16.msra.mxu0 %v8505
        %8517 = vmatpush.bf16.msra.mxu0 %v8504
        %8518 = vmatpush.bf16.msra.mxu0 %v8503
        %8519 = vmatpush.bf16.msra.mxu0 %v8502
        %8520 = vmatpush.bf16.msra.mxu0 %v8501
        %8521 = vmatpush.bf16.msra.mxu0 %v8500
        %8522 = vmatpush.bf16.msra.mxu0 %v8499
        %8523 = vmatmul.bf16.gmra.mxu0 %v8435
        %v8524 = vpop.f32.mrf.mxu0
        %v8525 = vadd.f32 0.0, %v8524
        %v8526 = vpop.f32.mrf.mxu0
        %v8527 = vadd.f32 0.0, %v8526
        %8528 = vmatmul.bf16.gmra.mxu0 %v8436
        %v8529 = vpop.f32.mrf.mxu0
        %v8530 = vadd.f32 0.0, %v8529
        %v8531 = vpop.f32.mrf.mxu0
        %v8532 = vadd.f32 0.0, %v8531
        %8533 = vmatmul.bf16.gmra.mxu0 %v8437
        %v8534 = vpop.f32.mrf.mxu0
        %v8535 = vadd.f32 0.0, %v8534
        %v8536 = vpop.f32.mrf.mxu0
        %v8537 = vadd.f32 0.0, %v8536
        %8538 = vmatmul.bf16.gmra.mxu0 %v8438
        %v8539 = vpop.f32.mrf.mxu0
        %v8540 = vadd.f32 0.0, %v8539
        %v8541 = vpop.f32.mrf.mxu0
        %v8542 = vadd.f32 0.0, %v8541
        %8543 = vmatmul.bf16.gmra.mxu0 %v8439
        %v8544 = vpop.f32.mrf.mxu0
        %v8545 = vadd.f32 0.0, %v8544
        %v8546 = vpop.f32.mrf.mxu0
        %v8547 = vadd.f32 0.0, %v8546
        %8548 = vmatmul.bf16.gmra.mxu0 %v8440
        %v8549 = vpop.f32.mrf.mxu0
        %v8550 = vadd.f32 0.0, %v8549
        %v8551 = vpop.f32.mrf.mxu0
        %v8552 = vadd.f32 0.0, %v8551
        %8553 = vmatmul.bf16.gmra.mxu0 %v8441
        %v8554 = vpop.f32.mrf.mxu0
        %v8555 = vadd.f32 0.0, %v8554
        %v8556 = vpop.f32.mrf.mxu0
        %v8557 = vadd.f32 0.0, %v8556
        %8558 = vmatmul.bf16.gmra.mxu0 %v8442
        %v8559 = vpop.f32.mrf.mxu0
        %v8560 = vadd.f32 0.0, %v8559
        %v8561 = vpop.f32.mrf.mxu0
        %v8562 = vadd.f32 0.0, %v8561
        %8563 = vmatmul.bf16.gmra.mxu0 %v8443
        %v8564 = vpop.f32.mrf.mxu0
        %v8565 = vadd.f32 0.0, %v8564
        %v8566 = vpop.f32.mrf.mxu0
        %v8567 = vadd.f32 0.0, %v8566
        %8568 = vmatmul.bf16.gmra.mxu0 %v8444
        %v8569 = vpop.f32.mrf.mxu0
        %v8570 = vadd.f32 0.0, %v8569
        %v8571 = vpop.f32.mrf.mxu0
        %v8572 = vadd.f32 0.0, %v8571
        %8573 = vmatmul.bf16.gmra.mxu0 %v8445
        %v8574 = vpop.f32.mrf.mxu0
        %v8575 = vadd.f32 0.0, %v8574
        %v8576 = vpop.f32.mrf.mxu0
        %v8577 = vadd.f32 0.0, %v8576
        %8578 = vmatmul.bf16.gmra.mxu0 %v8446
        %v8579 = vpop.f32.mrf.mxu0
        %v8580 = vadd.f32 0.0, %v8579
        %v8581 = vpop.f32.mrf.mxu0
        %v8582 = vadd.f32 0.0, %v8581
        %8583 = vmatmul.bf16.gmra.mxu0 %v8447
        %v8584 = vpop.f32.mrf.mxu0
        %v8585 = vadd.f32 0.0, %v8584
        %v8586 = vpop.f32.mrf.mxu0
        %v8587 = vadd.f32 0.0, %v8586
        %8588 = vmatmul.bf16.gmra.mxu0 %v8448
        %v8589 = vpop.f32.mrf.mxu0
        %v8590 = vadd.f32 0.0, %v8589
        %v8591 = vpop.f32.mrf.mxu0
        %v8592 = vadd.f32 0.0, %v8591
        %8593 = vmatmul.bf16.gmra.mxu0 %v8449
        %v8594 = vpop.f32.mrf.mxu0
        %v8595 = vadd.f32 0.0, %v8594
        %v8596 = vpop.f32.mrf.mxu0
        %v8597 = vadd.f32 0.0, %v8596
        %8598 = vmatmul.bf16.gmra.mxu0 %v8450
        %v8599 = vpop.f32.mrf.mxu0
        %v8600 = vadd.f32 0.0, %v8599
        %v8601 = vpop.f32.mrf.mxu0
        %v8602 = vadd.f32 0.0, %v8601
        %8603 = vdwg.mxu0
        %v8604 = vadd.f32 %v8290, %v8525
        %v8605 = vadd.f32 %v8291, %v8527
        %v8606 = vadd.f32 %v8292, %v8530
        %v8607 = vadd.f32 %v8293, %v8532
        %v8608 = vadd.f32 %v8294, %v8535
        %v8609 = vadd.f32 %v8295, %v8537
        %v8610 = vadd.f32 %v8296, %v8540
        %v8611 = vadd.f32 %v8297, %v8542
        %v8612 = vadd.f32 %v8298, %v8545
        %v8613 = vadd.f32 %v8299, %v8547
        %v8614 = vadd.f32 %v8300, %v8550
        %v8615 = vadd.f32 %v8301, %v8552
        %v8616 = vadd.f32 %v8302, %v8555
        %v8617 = vadd.f32 %v8303, %v8557
        %v8618 = vadd.f32 %v8304, %v8560
        %v8619 = vadd.f32 %v8305, %v8562
        %v8620 = vadd.f32 %v8306, %v8565
        %v8621 = vadd.f32 %v8307, %v8567
        %v8622 = vadd.f32 %v8308, %v8570
        %v8623 = vadd.f32 %v8309, %v8572
        %v8624 = vadd.f32 %v8310, %v8575
        %v8625 = vadd.f32 %v8311, %v8577
        %v8626 = vadd.f32 %v8312, %v8580
        %v8627 = vadd.f32 %v8313, %v8582
        %v8628 = vadd.f32 %v8314, %v8585
        %v8629 = vadd.f32 %v8315, %v8587
        %v8630 = vadd.f32 %v8316, %v8590
        %v8631 = vadd.f32 %v8317, %v8592
        %v8632 = vadd.f32 %v8318, %v8595
        %v8633 = vadd.f32 %v8319, %v8597
        %v8634 = vadd.f32 %v8320, %v8600
        %v8635 = vadd.f32 %v8321, %v8602
        %v8636 = vld [vmem:[%s3637] sm:$0xf]
        %v8637 = vld [vmem:[%s3637 + $0x4] sm:$0xf]
        %v8638 = vld [vmem:[%s3637 + $0x8] sm:$0x1]
        %v8639 = vld [vmem:[%s3637 + $0xc] sm:$0xf]
        %v8640 = vld [vmem:[%s3637 + $0x10] sm:$0xf]
        %v8641 = vld [vmem:[%s3637 + $0x14] sm:$0x1]
        %v8642 = vld [vmem:[%s3637 + $0x18] sm:$0xf]
        %v8643 = vld [vmem:[%s3637 + $0x1c] sm:$0xf]
        %v8644 = vld [vmem:[%s3637 + $0x20] sm:$0x1]
        %v8645 = vld [vmem:[%s3637 + $0x24] sm:$0xf]
        %v8646 = vld [vmem:[%s3637 + $0x28] sm:$0xf]
        %v8647 = vld [vmem:[%s3637 + $0x2c] sm:$0x1]
        %v8648 = vld [vmem:[%s3637 + $0x30] sm:$0xf]
        %v8649 = vld [vmem:[%s3637 + $0x34] sm:$0xf]
        %v8650 = vld [vmem:[%s3637 + $0x38] sm:$0x1]
        %v8651 = vld [vmem:[%s3637 + $0x3c] sm:$0xf]
        %v8652 = vld [vmem:[%s3637 + $0x40] sm:$0xf]
        %v8653 = vld [vmem:[%s3637 + $0x44] sm:$0x1]
        %v8654 = vld [vmem:[%s3637 + $0x48] sm:$0xf]
        %v8655 = vld [vmem:[%s3637 + $0x4c] sm:$0xf]
        %v8656 = vld [vmem:[%s3637 + $0x50] sm:$0x1]
        %v8657 = vld [vmem:[%s3637 + $0x54] sm:$0xf]
        %v8658 = vld [vmem:[%s3637 + $0x58] sm:$0xf]
        %v8659 = vld [vmem:[%s3637 + $0x5c] sm:$0x1]
        %v8660 = vld [vmem:[%s3637 + $0x60] sm:$0xf]
        %v8661 = vld [vmem:[%s3637 + $0x64] sm:$0xf]
        %v8662 = vld [vmem:[%s3637 + $0x68] sm:$0x1]
        %v8663 = vld [vmem:[%s3637 + $0x6c] sm:$0xf]
        %v8664 = vld [vmem:[%s3637 + $0x70] sm:$0xf]
        %v8665 = vld [vmem:[%s3637 + $0x74] sm:$0x1]
        %v8666 = vld [vmem:[%s3637 + $0x78] sm:$0xf]
        %v8667 = vld [vmem:[%s3637 + $0x7c] sm:$0xf]
        %v8668 = vld [vmem:[%s3637 + $0x80] sm:$0x1]
        %v8669 = vld [vmem:[%s3637 + $0x84] sm:$0xf]
        %v8670 = vld [vmem:[%s3637 + $0x88] sm:$0xf]
        %v8671 = vld [vmem:[%s3637 + $0x8c] sm:$0x1]
        %v8672 = vld [vmem:[%s3637 + $0x90] sm:$0xf]
        %v8673 = vld [vmem:[%s3637 + $0x94] sm:$0xf]
        %v8674 = vld [vmem:[%s3637 + $0x98] sm:$0x1]
        %v8675 = vld [vmem:[%s3637 + $0x9c] sm:$0xf]
        %v8676 = vld [vmem:[%s3637 + $0xa0] sm:$0xf]
        %v8677 = vld [vmem:[%s3637 + $0xa4] sm:$0x1]
        %v8678 = vld [vmem:[%s3637 + $0xa8] sm:$0xf]
        %v8679 = vld [vmem:[%s3637 + $0xac] sm:$0xf]
        %v8680 = vld [vmem:[%s3637 + $0xb0] sm:$0x1]
        %v8681 = vld [vmem:[%s3637 + $0xb4] sm:$0xf]
        %v8682 = vld [vmem:[%s3637 + $0xb8] sm:$0xf]
        %v8683 = vld [vmem:[%s3637 + $0xbc] sm:$0x1]
        %v8685 = vshrl.u32 %v8636, 16
        %v8687 = vrot.slane %v8685, 4
        %v8688 = vshll.u32 %v8636, 16
        %v8690 = vrot.slane %v8688, 5
        %v8691 = vor.u32 %v8687, %v8690
        %v8692 = vrot.slane %v8691, 4
        %v8694 = vshll.u32 %v8637, 16
        %v8696 = vrot.slane %v8694, 5
        %v8697 = vsel %vm966, %v8692, %v8696
        %v8698 = vshrl.u32 %v8637, 16
        %v8700 = vrot.slane %v8698, 4
        %v8701 = vor.u32 %v8700, %v8696
        %v8702 = vrot.slane %v8701, 4
        %v8704 = vshll.u32 %v8638, 16
        %v8706 = vrot.slane %v8704, 5
        %v8707 = vsel %vm966, %v8702, %v8706
        %v8709 = vshrl.u32 %v8639, 16
        %v8711 = vrot.slane %v8709, 4
        %v8712 = vshll.u32 %v8639, 16
        %v8714 = vrot.slane %v8712, 5
        %v8715 = vor.u32 %v8711, %v8714
        %v8716 = vrot.slane %v8715, 4
        %v8718 = vshll.u32 %v8640, 16
        %v8720 = vrot.slane %v8718, 5
        %v8721 = vsel %vm966, %v8716, %v8720
        %v8722 = vshrl.u32 %v8640, 16
        %v8724 = vrot.slane %v8722, 4
        %v8725 = vor.u32 %v8724, %v8720
        %v8726 = vrot.slane %v8725, 4
        %v8728 = vshll.u32 %v8641, 16
        %v8730 = vrot.slane %v8728, 5
        %v8731 = vsel %vm966, %v8726, %v8730
        %v8733 = vshrl.u32 %v8642, 16
        %v8735 = vrot.slane %v8733, 4
        %v8736 = vshll.u32 %v8642, 16
        %v8738 = vrot.slane %v8736, 5
        %v8739 = vor.u32 %v8735, %v8738
        %v8740 = vrot.slane %v8739, 4
        %v8742 = vshll.u32 %v8643, 16
        %v8744 = vrot.slane %v8742, 5
        %v8745 = vsel %vm966, %v8740, %v8744
        %v8746 = vshrl.u32 %v8643, 16
        %v8748 = vrot.slane %v8746, 4
        %v8749 = vor.u32 %v8748, %v8744
        %v8750 = vrot.slane %v8749, 4
        %v8752 = vshll.u32 %v8644, 16
        %v8754 = vrot.slane %v8752, 5
        %v8755 = vsel %vm966, %v8750, %v8754
        %v8757 = vshrl.u32 %v8645, 16
        %v8759 = vrot.slane %v8757, 4
        %v8760 = vshll.u32 %v8645, 16
        %v8762 = vrot.slane %v8760, 5
        %v8763 = vor.u32 %v8759, %v8762
        %v8764 = vrot.slane %v8763, 4
        %v8766 = vshll.u32 %v8646, 16
        %v8768 = vrot.slane %v8766, 5
        %v8769 = vsel %vm966, %v8764, %v8768
        %v8770 = vshrl.u32 %v8646, 16
        %v8772 = vrot.slane %v8770, 4
        %v8773 = vor.u32 %v8772, %v8768
        %v8774 = vrot.slane %v8773, 4
        %v8776 = vshll.u32 %v8647, 16
        %v8778 = vrot.slane %v8776, 5
        %v8779 = vsel %vm966, %v8774, %v8778
        %v8781 = vshrl.u32 %v8648, 16
        %v8783 = vrot.slane %v8781, 4
        %v8784 = vshll.u32 %v8648, 16
        %v8786 = vrot.slane %v8784, 5
        %v8787 = vor.u32 %v8783, %v8786
        %v8788 = vrot.slane %v8787, 4
        %v8790 = vshll.u32 %v8649, 16
        %v8792 = vrot.slane %v8790, 5
        %v8793 = vsel %vm966, %v8788, %v8792
        %v8794 = vshrl.u32 %v8649, 16
        %v8796 = vrot.slane %v8794, 4
        %v8797 = vor.u32 %v8796, %v8792
        %v8798 = vrot.slane %v8797, 4
        %v8800 = vshll.u32 %v8650, 16
        %v8802 = vrot.slane %v8800, 5
        %v8803 = vsel %vm966, %v8798, %v8802
        %v8805 = vshrl.u32 %v8651, 16
        %v8807 = vrot.slane %v8805, 4
        %v8808 = vshll.u32 %v8651, 16
        %v8810 = vrot.slane %v8808, 5
        %v8811 = vor.u32 %v8807, %v8810
        %v8812 = vrot.slane %v8811, 4
        %v8814 = vshll.u32 %v8652, 16
        %v8816 = vrot.slane %v8814, 5
        %v8817 = vsel %vm966, %v8812, %v8816
        %v8818 = vshrl.u32 %v8652, 16
        %v8820 = vrot.slane %v8818, 4
        %v8821 = vor.u32 %v8820, %v8816
        %v8822 = vrot.slane %v8821, 4
        %v8824 = vshll.u32 %v8653, 16
        %v8826 = vrot.slane %v8824, 5
        %v8827 = vsel %vm966, %v8822, %v8826
        %v8829 = vshrl.u32 %v8654, 16
        %v8831 = vrot.slane %v8829, 4
        %v8832 = vshll.u32 %v8654, 16
        %v8834 = vrot.slane %v8832, 5
        %v8835 = vor.u32 %v8831, %v8834
        %v8836 = vrot.slane %v8835, 4
        %v8838 = vshll.u32 %v8655, 16
        %v8840 = vrot.slane %v8838, 5
        %v8841 = vsel %vm966, %v8836, %v8840
        %v8842 = vshrl.u32 %v8655, 16
        %v8844 = vrot.slane %v8842, 4
        %v8845 = vor.u32 %v8844, %v8840
        %v8846 = vrot.slane %v8845, 4
        %v8848 = vshll.u32 %v8656, 16
        %v8850 = vrot.slane %v8848, 5
        %v8851 = vsel %vm966, %v8846, %v8850
        %v8853 = vshrl.u32 %v8657, 16
        %v8855 = vrot.slane %v8853, 4
        %v8856 = vshll.u32 %v8657, 16
        %v8858 = vrot.slane %v8856, 5
        %v8859 = vor.u32 %v8855, %v8858
        %v8860 = vrot.slane %v8859, 4
        %v8862 = vshll.u32 %v8658, 16
        %v8864 = vrot.slane %v8862, 5
        %v8865 = vsel %vm966, %v8860, %v8864
        %v8866 = vshrl.u32 %v8658, 16
        %v8868 = vrot.slane %v8866, 4
        %v8869 = vor.u32 %v8868, %v8864
        %v8870 = vrot.slane %v8869, 4
        %v8872 = vshll.u32 %v8659, 16
        %v8874 = vrot.slane %v8872, 5
        %v8875 = vsel %vm966, %v8870, %v8874
        %v8877 = vshrl.u32 %v8660, 16
        %v8879 = vrot.slane %v8877, 4
        %v8880 = vshll.u32 %v8660, 16
        %v8882 = vrot.slane %v8880, 5
        %v8883 = vor.u32 %v8879, %v8882
        %v8884 = vrot.slane %v8883, 4
        %v8886 = vshll.u32 %v8661, 16
        %v8888 = vrot.slane %v8886, 5
        %v8889 = vsel %vm966, %v8884, %v8888
        %v8890 = vshrl.u32 %v8661, 16
        %v8892 = vrot.slane %v8890, 4
        %v8893 = vor.u32 %v8892, %v8888
        %v8894 = vrot.slane %v8893, 4
        %v8896 = vshll.u32 %v8662, 16
        %v8898 = vrot.slane %v8896, 5
        %v8899 = vsel %vm966, %v8894, %v8898
        %v8901 = vshrl.u32 %v8663, 16
        %v8903 = vrot.slane %v8901, 4
        %v8904 = vshll.u32 %v8663, 16
        %v8906 = vrot.slane %v8904, 5
        %v8907 = vor.u32 %v8903, %v8906
        %v8908 = vrot.slane %v8907, 4
        %v8910 = vshll.u32 %v8664, 16
        %v8912 = vrot.slane %v8910, 5
        %v8913 = vsel %vm966, %v8908, %v8912
        %v8914 = vshrl.u32 %v8664, 16
        %v8916 = vrot.slane %v8914, 4
        %v8917 = vor.u32 %v8916, %v8912
        %v8918 = vrot.slane %v8917, 4
        %v8920 = vshll.u32 %v8665, 16
        %v8922 = vrot.slane %v8920, 5
        %v8923 = vsel %vm966, %v8918, %v8922
        %v8925 = vshrl.u32 %v8666, 16
        %v8927 = vrot.slane %v8925, 4
        %v8928 = vshll.u32 %v8666, 16
        %v8930 = vrot.slane %v8928, 5
        %v8931 = vor.u32 %v8927, %v8930
        %v8932 = vrot.slane %v8931, 4
        %v8934 = vshll.u32 %v8667, 16
        %v8936 = vrot.slane %v8934, 5
        %v8937 = vsel %vm966, %v8932, %v8936
        %v8938 = vshrl.u32 %v8667, 16
        %v8940 = vrot.slane %v8938, 4
        %v8941 = vor.u32 %v8940, %v8936
        %v8942 = vrot.slane %v8941, 4
        %v8944 = vshll.u32 %v8668, 16
        %v8946 = vrot.slane %v8944, 5
        %v8947 = vsel %vm966, %v8942, %v8946
        %v8949 = vshrl.u32 %v8669, 16
        %v8951 = vrot.slane %v8949, 4
        %v8952 = vshll.u32 %v8669, 16
        %v8954 = vrot.slane %v8952, 5
        %v8955 = vor.u32 %v8951, %v8954
        %v8956 = vrot.slane %v8955, 4
        %v8958 = vshll.u32 %v8670, 16
        %v8960 = vrot.slane %v8958, 5
        %v8961 = vsel %vm966, %v8956, %v8960
        %v8962 = vshrl.u32 %v8670, 16
        %v8964 = vrot.slane %v8962, 4
        %v8965 = vor.u32 %v8964, %v8960
        %v8966 = vrot.slane %v8965, 4
        %v8968 = vshll.u32 %v8671, 16
        %v8970 = vrot.slane %v8968, 5
        %v8971 = vsel %vm966, %v8966, %v8970
        %v8973 = vshrl.u32 %v8672, 16
        %v8975 = vrot.slane %v8973, 4
        %v8976 = vshll.u32 %v8672, 16
        %v8978 = vrot.slane %v8976, 5
        %v8979 = vor.u32 %v8975, %v8978
        %v8980 = vrot.slane %v8979, 4
        %v8982 = vshll.u32 %v8673, 16
        %v8984 = vrot.slane %v8982, 5
        %v8985 = vsel %vm966, %v8980, %v8984
        %v8986 = vshrl.u32 %v8673, 16
        %v8988 = vrot.slane %v8986, 4
        %v8989 = vor.u32 %v8988, %v8984
        %v8990 = vrot.slane %v8989, 4
        %v8992 = vshll.u32 %v8674, 16
        %v8994 = vrot.slane %v8992, 5
        %v8995 = vsel %vm966, %v8990, %v8994
        %v8997 = vshrl.u32 %v8675, 16
        %v8999 = vrot.slane %v8997, 4
        %v9000 = vshll.u32 %v8675, 16
        %v9002 = vrot.slane %v9000, 5
        %v9003 = vor.u32 %v8999, %v9002
        %v9004 = vrot.slane %v9003, 4
        %v9006 = vshll.u32 %v8676, 16
        %v9008 = vrot.slane %v9006, 5
        %v9009 = vsel %vm966, %v9004, %v9008
        %v9010 = vshrl.u32 %v8676, 16
        %v9012 = vrot.slane %v9010, 4
        %v9013 = vor.u32 %v9012, %v9008
        %v9014 = vrot.slane %v9013, 4
        %v9016 = vshll.u32 %v8677, 16
        %v9018 = vrot.slane %v9016, 5
        %v9019 = vsel %vm966, %v9014, %v9018
        %v9021 = vshrl.u32 %v8678, 16
        %v9023 = vrot.slane %v9021, 4
        %v9024 = vshll.u32 %v8678, 16
        %v9026 = vrot.slane %v9024, 5
        %v9027 = vor.u32 %v9023, %v9026
        %v9028 = vrot.slane %v9027, 4
        %v9030 = vshll.u32 %v8679, 16
        %v9032 = vrot.slane %v9030, 5
        %v9033 = vsel %vm966, %v9028, %v9032
        %v9034 = vshrl.u32 %v8679, 16
        %v9036 = vrot.slane %v9034, 4
        %v9037 = vor.u32 %v9036, %v9032
        %v9038 = vrot.slane %v9037, 4
        %v9040 = vshll.u32 %v8680, 16
        %v9042 = vrot.slane %v9040, 5
        %v9043 = vsel %vm966, %v9038, %v9042
        %v9045 = vshrl.u32 %v8681, 16
        %v9047 = vrot.slane %v9045, 4
        %v9048 = vshll.u32 %v8681, 16
        %v9050 = vrot.slane %v9048, 5
        %v9051 = vor.u32 %v9047, %v9050
        %v9052 = vrot.slane %v9051, 4
        %v9054 = vshll.u32 %v8682, 16
        %v9056 = vrot.slane %v9054, 5
        %v9057 = vsel %vm966, %v9052, %v9056
        %v9058 = vshrl.u32 %v8682, 16
        %v9060 = vrot.slane %v9058, 4
        %v9061 = vor.u32 %v9060, %v9056
        %v9062 = vrot.slane %v9061, 4
        %v9064 = vshll.u32 %v8683, 16
        %v9066 = vrot.slane %v9064, 5
        %v9067 = vsel %vm966, %v9062, %v9066
        %s9068 = scalar_lea.vmem [#allocation8], 448
        %v9069 = vld [vmem:[%s9068] sm:$0xf]
        %v9070 = vld [vmem:[%s9068 + $0x4] sm:$0xf]
        %v9071 = vld [vmem:[%s9068 + $0x8] sm:$0xf]
        %v9072 = vld [vmem:[%s9068 + $0xc] sm:$0xf]
        %v9073 = vld [vmem:[%s9068 + $0x10] sm:$0xf]
        %v9074 = vld [vmem:[%s9068 + $0x14] sm:$0xf]
        %v9075 = vld [vmem:[%s9068 + $0x18] sm:$0xf]
        %v9076 = vld [vmem:[%s9068 + $0x1c] sm:$0xf]
        %v9077 = vld [vmem:[%s9068 + $0x20] sm:$0xf]
        %v9078 = vld [vmem:[%s9068 + $0x24] sm:$0xf]
        %v9079 = vld [vmem:[%s9068 + $0x28] sm:$0xf]
        %v9080 = vld [vmem:[%s9068 + $0x2c] sm:$0xf]
        %v9081 = vld [vmem:[%s9068 + $0x30] sm:$0xf]
        %v9082 = vld [vmem:[%s9068 + $0x34] sm:$0xf]
        %v9083 = vld [vmem:[%s9068 + $0x38] sm:$0xf]
        %v9084 = vld [vmem:[%s9068 + $0x3c] sm:$0xf]
        %v9085 = vunpack.c.l.b16 %v8697
        %v9086 = vunpack.c.l.b16 %v8707
        %v9087 = vunpack.c.l.b16 %v8721
        %v9088 = vunpack.c.l.b16 %v8731
        %v9089 = vunpack.c.l.b16 %v8745
        %v9090 = vunpack.c.l.b16 %v8755
        %v9091 = vunpack.c.l.b16 %v8769
        %v9092 = vunpack.c.l.b16 %v8779
        %v9093 = vunpack.c.l.b16 %v8793
        %v9094 = vunpack.c.l.b16 %v8803
        %v9095 = vunpack.c.l.b16 %v8817
        %v9096 = vunpack.c.l.b16 %v8827
        %v9097 = vunpack.c.l.b16 %v8841
        %v9098 = vunpack.c.l.b16 %v8851
        %v9099 = vunpack.c.l.b16 %v8865
        %v9100 = vunpack.c.l.b16 %v8875
        %v9101 = vunpack.c.l.b16 %v8889
        %v9102 = vunpack.c.l.b16 %v8899
        %v9103 = vunpack.c.l.b16 %v8913
        %v9104 = vunpack.c.l.b16 %v8923
        %v9105 = vunpack.c.l.b16 %v8937
        %v9106 = vunpack.c.l.b16 %v8947
        %v9107 = vunpack.c.l.b16 %v8961
        %v9108 = vunpack.c.l.b16 %v8971
        %v9109 = vunpack.c.l.b16 %v8985
        %v9110 = vunpack.c.l.b16 %v8995
        %v9111 = vunpack.c.l.b16 %v9009
        %v9112 = vunpack.c.l.b16 %v9019
        %v9113 = vunpack.c.l.b16 %v9033
        %v9114 = vunpack.c.l.b16 %v9043
        %v9115 = vunpack.c.l.b16 %v9057
        %v9116 = vunpack.c.l.b16 %v9067
        %v9117 = vpack.c.b16 %v9086, %v9085
        %v9118 = vpack.c.b16 %v9088, %v9087
        %v9119 = vpack.c.b16 %v9090, %v9089
        %v9120 = vpack.c.b16 %v9092, %v9091
        %v9121 = vpack.c.b16 %v9094, %v9093
        %v9122 = vpack.c.b16 %v9096, %v9095
        %v9123 = vpack.c.b16 %v9098, %v9097
        %v9124 = vpack.c.b16 %v9100, %v9099
        %v9125 = vpack.c.b16 %v9102, %v9101
        %v9126 = vpack.c.b16 %v9104, %v9103
        %v9127 = vpack.c.b16 %v9106, %v9105
        %v9128 = vpack.c.b16 %v9108, %v9107
        %v9129 = vpack.c.b16 %v9110, %v9109
        %v9130 = vpack.c.b16 %v9112, %v9111
        %v9131 = vpack.c.b16 %v9114, %v9113
        %v9132 = vpack.c.b16 %v9116, %v9115
        %v9165 = vunpack.c.l.b16 %v9069
        %v9166 = vunpack.c.l.b16 %v9070
        %v9167 = vunpack.c.l.b16 %v9071
        %v9168 = vunpack.c.l.b16 %v9072
        %v9169 = vunpack.c.l.b16 %v9073
        %v9170 = vunpack.c.l.b16 %v9074
        %v9171 = vunpack.c.l.b16 %v9075
        %v9172 = vunpack.c.l.b16 %v9076
        %v9173 = vunpack.c.l.b16 %v9077
        %v9174 = vunpack.c.l.b16 %v9078
        %v9175 = vunpack.c.l.b16 %v9079
        %v9176 = vunpack.c.l.b16 %v9080
        %v9177 = vunpack.c.l.b16 %v9081
        %v9178 = vunpack.c.l.b16 %v9082
        %v9179 = vunpack.c.l.b16 %v9083
        %v9180 = vunpack.c.l.b16 %v9084
        %v9181 = vpack.c.b16 %v9166, %v9165
        %v9182 = vpack.c.b16 %v9168, %v9167
        %v9183 = vpack.c.b16 %v9170, %v9169
        %v9184 = vpack.c.b16 %v9172, %v9171
        %v9185 = vpack.c.b16 %v9174, %v9173
        %v9186 = vpack.c.b16 %v9176, %v9175
        %v9187 = vpack.c.b16 %v9178, %v9177
        %v9188 = vpack.c.b16 %v9180, %v9179
        %9197 = vmatpush.bf16.msra.mxu0 %v9188
        %9198 = vmatpush.bf16.msra.mxu0 %v9187
        %9199 = vmatpush.bf16.msra.mxu0 %v9186
        %9200 = vmatpush.bf16.msra.mxu0 %v9185
        %9201 = vmatpush.bf16.msra.mxu0 %v9184
        %9202 = vmatpush.bf16.msra.mxu0 %v9183
        %9203 = vmatpush.bf16.msra.mxu0 %v9182
        %9204 = vmatpush.bf16.msra.mxu0 %v9181
        %9205 = vmatmul.bf16.gmra.mxu0 %v9117
        %v9206 = vpop.f32.mrf.mxu0
        %v9207 = vadd.f32 0.0, %v9206
        %v9208 = vpop.f32.mrf.mxu0
        %v9209 = vadd.f32 0.0, %v9208
        %9210 = vmatmul.bf16.gmra.mxu0 %v9118
        %v9211 = vpop.f32.mrf.mxu0
        %v9212 = vadd.f32 0.0, %v9211
        %v9213 = vpop.f32.mrf.mxu0
        %v9214 = vadd.f32 0.0, %v9213
        %9215 = vmatmul.bf16.gmra.mxu0 %v9119
        %v9216 = vpop.f32.mrf.mxu0
        %v9217 = vadd.f32 0.0, %v9216
        %v9218 = vpop.f32.mrf.mxu0
        %v9219 = vadd.f32 0.0, %v9218
        %9220 = vmatmul.bf16.gmra.mxu0 %v9120
        %v9221 = vpop.f32.mrf.mxu0
        %v9222 = vadd.f32 0.0, %v9221
        %v9223 = vpop.f32.mrf.mxu0
        %v9224 = vadd.f32 0.0, %v9223
        %9225 = vmatmul.bf16.gmra.mxu0 %v9121
        %v9226 = vpop.f32.mrf.mxu0
        %v9227 = vadd.f32 0.0, %v9226
        %v9228 = vpop.f32.mrf.mxu0
        %v9229 = vadd.f32 0.0, %v9228
        %9230 = vmatmul.bf16.gmra.mxu0 %v9122
        %v9231 = vpop.f32.mrf.mxu0
        %v9232 = vadd.f32 0.0, %v9231
        %v9233 = vpop.f32.mrf.mxu0
        %v9234 = vadd.f32 0.0, %v9233
        %9235 = vmatmul.bf16.gmra.mxu0 %v9123
        %v9236 = vpop.f32.mrf.mxu0
        %v9237 = vadd.f32 0.0, %v9236
        %v9238 = vpop.f32.mrf.mxu0
        %v9239 = vadd.f32 0.0, %v9238
        %9240 = vmatmul.bf16.gmra.mxu0 %v9124
        %v9241 = vpop.f32.mrf.mxu0
        %v9242 = vadd.f32 0.0, %v9241
        %v9243 = vpop.f32.mrf.mxu0
        %v9244 = vadd.f32 0.0, %v9243
        %9245 = vmatmul.bf16.gmra.mxu0 %v9125
        %v9246 = vpop.f32.mrf.mxu0
        %v9247 = vadd.f32 0.0, %v9246
        %v9248 = vpop.f32.mrf.mxu0
        %v9249 = vadd.f32 0.0, %v9248
        %9250 = vmatmul.bf16.gmra.mxu0 %v9126
        %v9251 = vpop.f32.mrf.mxu0
        %v9252 = vadd.f32 0.0, %v9251
        %v9253 = vpop.f32.mrf.mxu0
        %v9254 = vadd.f32 0.0, %v9253
        %9255 = vmatmul.bf16.gmra.mxu0 %v9127
        %v9256 = vpop.f32.mrf.mxu0
        %v9257 = vadd.f32 0.0, %v9256
        %v9258 = vpop.f32.mrf.mxu0
        %v9259 = vadd.f32 0.0, %v9258
        %9260 = vmatmul.bf16.gmra.mxu0 %v9128
        %v9261 = vpop.f32.mrf.mxu0
        %v9262 = vadd.f32 0.0, %v9261
        %v9263 = vpop.f32.mrf.mxu0
        %v9264 = vadd.f32 0.0, %v9263
        %9265 = vmatmul.bf16.gmra.mxu0 %v9129
        %v9266 = vpop.f32.mrf.mxu0
        %v9267 = vadd.f32 0.0, %v9266
        %v9268 = vpop.f32.mrf.mxu0
        %v9269 = vadd.f32 0.0, %v9268
        %9270 = vmatmul.bf16.gmra.mxu0 %v9130
        %v9271 = vpop.f32.mrf.mxu0
        %v9272 = vadd.f32 0.0, %v9271
        %v9273 = vpop.f32.mrf.mxu0
        %v9274 = vadd.f32 0.0, %v9273
        %9275 = vmatmul.bf16.gmra.mxu0 %v9131
        %v9276 = vpop.f32.mrf.mxu0
        %v9277 = vadd.f32 0.0, %v9276
        %v9278 = vpop.f32.mrf.mxu0
        %v9279 = vadd.f32 0.0, %v9278
        %9280 = vmatmul.bf16.gmra.mxu0 %v9132
        %v9281 = vpop.f32.mrf.mxu0
        %v9282 = vadd.f32 0.0, %v9281
        %v9283 = vpop.f32.mrf.mxu0
        %v9284 = vadd.f32 0.0, %v9283
        %9285 = vdwg.mxu0
        %v9286 = vadd.f32 %v8604, %v9207
        %v9287 = vadd.f32 %v8605, %v9209
        %v9288 = vadd.f32 %v8606, %v9212
        %v9289 = vadd.f32 %v8607, %v9214
        %v9290 = vadd.f32 %v8608, %v9217
        %v9291 = vadd.f32 %v8609, %v9219
        %v9292 = vadd.f32 %v8610, %v9222
        %v9293 = vadd.f32 %v8611, %v9224
        %v9294 = vadd.f32 %v8612, %v9227
        %v9295 = vadd.f32 %v8613, %v9229
        %v9296 = vadd.f32 %v8614, %v9232
        %v9297 = vadd.f32 %v8615, %v9234
        %v9298 = vadd.f32 %v8616, %v9237
        %v9299 = vadd.f32 %v8617, %v9239
        %v9300 = vadd.f32 %v8618, %v9242
        %v9301 = vadd.f32 %v8619, %v9244
        %v9302 = vadd.f32 %v8620, %v9247
        %v9303 = vadd.f32 %v8621, %v9249
        %v9304 = vadd.f32 %v8622, %v9252
        %v9305 = vadd.f32 %v8623, %v9254
        %v9306 = vadd.f32 %v8624, %v9257
        %v9307 = vadd.f32 %v8625, %v9259
        %v9308 = vadd.f32 %v8626, %v9262
        %v9309 = vadd.f32 %v8627, %v9264
        %v9310 = vadd.f32 %v8628, %v9267
        %v9311 = vadd.f32 %v8629, %v9269
        %v9312 = vadd.f32 %v8630, %v9272
        %v9313 = vadd.f32 %v8631, %v9274
        %v9314 = vadd.f32 %v8632, %v9277
        %v9315 = vadd.f32 %v8633, %v9279
        %v9316 = vadd.f32 %v8634, %v9282
        %v9317 = vadd.f32 %v8635, %v9284
        %v9318 = vld [vmem:[%s3637] sm:$0xe]
        %v9319 = vld [vmem:[%s3637 + $0xc] sm:$0xe]
        %v9320 = vld [vmem:[%s3637 + $0x18] sm:$0xe]
        %v9321 = vld [vmem:[%s3637 + $0x24] sm:$0xe]
        %v9322 = vld [vmem:[%s3637 + $0x30] sm:$0xe]
        %v9323 = vld [vmem:[%s3637 + $0x3c] sm:$0xe]
        %v9324 = vld [vmem:[%s3637 + $0x48] sm:$0xe]
        %v9325 = vld [vmem:[%s3637 + $0x54] sm:$0xe]
        %v9326 = vld [vmem:[%s3637 + $0x60] sm:$0xe]
        %v9327 = vld [vmem:[%s3637 + $0x6c] sm:$0xe]
        %v9328 = vld [vmem:[%s3637 + $0x78] sm:$0xe]
        %v9329 = vld [vmem:[%s3637 + $0x84] sm:$0xe]
        %v9330 = vld [vmem:[%s3637 + $0x90] sm:$0xe]
        %v9331 = vld [vmem:[%s3637 + $0x9c] sm:$0xe]
        %v9332 = vld [vmem:[%s3637 + $0xa8] sm:$0xe]
        %v9333 = vld [vmem:[%s3637 + $0xb4] sm:$0xe]
        %v9382 = vrot.slane %v9318, 5
        %v9383 = vrot.slane %v9382, 4
        %v9384 = vrot.slane %v8637, 5
        %v9385 = vsel %vm1852, %v9383, %v9384
        %v9386 = vrot.slane %v9384, 4
        %v9387 = vrot.slane %v8638, 5
        %v9388 = vsel %vm1852, %v9386, %v9387
        %v9389 = vrot.slane %v9319, 5
        %v9390 = vrot.slane %v9389, 4
        %v9391 = vrot.slane %v8640, 5
        %v9392 = vsel %vm1852, %v9390, %v9391
        %v9393 = vrot.slane %v9391, 4
        %v9394 = vrot.slane %v8641, 5
        %v9395 = vsel %vm1852, %v9393, %v9394
        %v9396 = vrot.slane %v9320, 5
        %v9397 = vrot.slane %v9396, 4
        %v9398 = vrot.slane %v8643, 5
        %v9399 = vsel %vm1852, %v9397, %v9398
        %v9400 = vrot.slane %v9398, 4
        %v9401 = vrot.slane %v8644, 5
        %v9402 = vsel %vm1852, %v9400, %v9401
        %v9403 = vrot.slane %v9321, 5
        %v9404 = vrot.slane %v9403, 4
        %v9405 = vrot.slane %v8646, 5
        %v9406 = vsel %vm1852, %v9404, %v9405
        %v9407 = vrot.slane %v9405, 4
        %v9408 = vrot.slane %v8647, 5
        %v9409 = vsel %vm1852, %v9407, %v9408
        %v9410 = vrot.slane %v9322, 5
        %v9411 = vrot.slane %v9410, 4
        %v9412 = vrot.slane %v8649, 5
        %v9413 = vsel %vm1852, %v9411, %v9412
        %v9414 = vrot.slane %v9412, 4
        %v9415 = vrot.slane %v8650, 5
        %v9416 = vsel %vm1852, %v9414, %v9415
        %v9417 = vrot.slane %v9323, 5
        %v9418 = vrot.slane %v9417, 4
        %v9419 = vrot.slane %v8652, 5
        %v9420 = vsel %vm1852, %v9418, %v9419
        %v9421 = vrot.slane %v9419, 4
        %v9422 = vrot.slane %v8653, 5
        %v9423 = vsel %vm1852, %v9421, %v9422
        %v9424 = vrot.slane %v9324, 5
        %v9425 = vrot.slane %v9424, 4
        %v9426 = vrot.slane %v8655, 5
        %v9427 = vsel %vm1852, %v9425, %v9426
        %v9428 = vrot.slane %v9426, 4
        %v9429 = vrot.slane %v8656, 5
        %v9430 = vsel %vm1852, %v9428, %v9429
        %v9431 = vrot.slane %v9325, 5
        %v9432 = vrot.slane %v9431, 4
        %v9433 = vrot.slane %v8658, 5
        %v9434 = vsel %vm1852, %v9432, %v9433
        %v9435 = vrot.slane %v9433, 4
        %v9436 = vrot.slane %v8659, 5
        %v9437 = vsel %vm1852, %v9435, %v9436
        %v9438 = vrot.slane %v9326, 5
        %v9439 = vrot.slane %v9438, 4
        %v9440 = vrot.slane %v8661, 5
        %v9441 = vsel %vm1852, %v9439, %v9440
        %v9442 = vrot.slane %v9440, 4
        %v9443 = vrot.slane %v8662, 5
        %v9444 = vsel %vm1852, %v9442, %v9443
        %v9445 = vrot.slane %v9327, 5
        %v9446 = vrot.slane %v9445, 4
        %v9447 = vrot.slane %v8664, 5
        %v9448 = vsel %vm1852, %v9446, %v9447
        %v9449 = vrot.slane %v9447, 4
        %v9450 = vrot.slane %v8665, 5
        %v9451 = vsel %vm1852, %v9449, %v9450
        %v9452 = vrot.slane %v9328, 5
        %v9453 = vrot.slane %v9452, 4
        %v9454 = vrot.slane %v8667, 5
        %v9455 = vsel %vm1852, %v9453, %v9454
        %v9456 = vrot.slane %v9454, 4
        %v9457 = vrot.slane %v8668, 5
        %v9458 = vsel %vm1852, %v9456, %v9457
        %v9459 = vrot.slane %v9329, 5
        %v9460 = vrot.slane %v9459, 4
        %v9461 = vrot.slane %v8670, 5
        %v9462 = vsel %vm1852, %v9460, %v9461
        %v9463 = vrot.slane %v9461, 4
        %v9464 = vrot.slane %v8671, 5
        %v9465 = vsel %vm1852, %v9463, %v9464
        %v9466 = vrot.slane %v9330, 5
        %v9467 = vrot.slane %v9466, 4
        %v9468 = vrot.slane %v8673, 5
        %v9469 = vsel %vm1852, %v9467, %v9468
        %v9470 = vrot.slane %v9468, 4
        %v9471 = vrot.slane %v8674, 5
        %v9472 = vsel %vm1852, %v9470, %v9471
        %v9473 = vrot.slane %v9331, 5
        %v9474 = vrot.slane %v9473, 4
        %v9475 = vrot.slane %v8676, 5
        %v9476 = vsel %vm1852, %v9474, %v9475
        %v9477 = vrot.slane %v9475, 4
        %v9478 = vrot.slane %v8677, 5
        %v9479 = vsel %vm1852, %v9477, %v9478
        %v9480 = vrot.slane %v9332, 5
        %v9481 = vrot.slane %v9480, 4
        %v9482 = vrot.slane %v8679, 5
        %v9483 = vsel %vm1852, %v9481, %v9482
        %v9484 = vrot.slane %v9482, 4
        %v9485 = vrot.slane %v8680, 5
        %v9486 = vsel %vm1852, %v9484, %v9485
        %v9487 = vrot.slane %v9333, 5
        %v9488 = vrot.slane %v9487, 4
        %v9489 = vrot.slane %v8682, 5
        %v9490 = vsel %vm1852, %v9488, %v9489
        %v9491 = vrot.slane %v9489, 4
        %v9492 = vrot.slane %v8683, 5
        %v9493 = vsel %vm1852, %v9491, %v9492
        %s9494 = scalar_lea.vmem [#allocation8], 512
        %v9495 = vld [vmem:[%s9494] sm:$0xf]
        %v9496 = vld [vmem:[%s9494 + $0x4] sm:$0xf]
        %v9497 = vld [vmem:[%s9494 + $0x8] sm:$0xf]
        %v9498 = vld [vmem:[%s9494 + $0xc] sm:$0xf]
        %v9499 = vld [vmem:[%s9494 + $0x10] sm:$0xf]
        %v9500 = vld [vmem:[%s9494 + $0x14] sm:$0xf]
        %v9501 = vld [vmem:[%s9494 + $0x18] sm:$0xf]
        %v9502 = vld [vmem:[%s9494 + $0x1c] sm:$0xf]
        %v9503 = vld [vmem:[%s9494 + $0x20] sm:$0xf]
        %v9504 = vld [vmem:[%s9494 + $0x24] sm:$0xf]
        %v9505 = vld [vmem:[%s9494 + $0x28] sm:$0xf]
        %v9506 = vld [vmem:[%s9494 + $0x2c] sm:$0xf]
        %v9507 = vld [vmem:[%s9494 + $0x30] sm:$0xf]
        %v9508 = vld [vmem:[%s9494 + $0x34] sm:$0xf]
        %v9509 = vld [vmem:[%s9494 + $0x38] sm:$0xf]
        %v9510 = vld [vmem:[%s9494 + $0x3c] sm:$0xf]
        %v9511 = vunpack.c.l.b16 %v9385
        %v9512 = vunpack.c.l.b16 %v9388
        %v9513 = vunpack.c.l.b16 %v9392
        %v9514 = vunpack.c.l.b16 %v9395
        %v9515 = vunpack.c.l.b16 %v9399
        %v9516 = vunpack.c.l.b16 %v9402
        %v9517 = vunpack.c.l.b16 %v9406
        %v9518 = vunpack.c.l.b16 %v9409
        %v9519 = vunpack.c.l.b16 %v9413
        %v9520 = vunpack.c.l.b16 %v9416
        %v9521 = vunpack.c.l.b16 %v9420
        %v9522 = vunpack.c.l.b16 %v9423
        %v9523 = vunpack.c.l.b16 %v9427
        %v9524 = vunpack.c.l.b16 %v9430
        %v9525 = vunpack.c.l.b16 %v9434
        %v9526 = vunpack.c.l.b16 %v9437
        %v9527 = vunpack.c.l.b16 %v9441
        %v9528 = vunpack.c.l.b16 %v9444
        %v9529 = vunpack.c.l.b16 %v9448
        %v9530 = vunpack.c.l.b16 %v9451
        %v9531 = vunpack.c.l.b16 %v9455
        %v9532 = vunpack.c.l.b16 %v9458
        %v9533 = vunpack.c.l.b16 %v9462
        %v9534 = vunpack.c.l.b16 %v9465
        %v9535 = vunpack.c.l.b16 %v9469
        %v9536 = vunpack.c.l.b16 %v9472
        %v9537 = vunpack.c.l.b16 %v9476
        %v9538 = vunpack.c.l.b16 %v9479
        %v9539 = vunpack.c.l.b16 %v9483
        %v9540 = vunpack.c.l.b16 %v9486
        %v9541 = vunpack.c.l.b16 %v9490
        %v9542 = vunpack.c.l.b16 %v9493
        %v9543 = vpack.c.b16 %v9512, %v9511
        %v9544 = vpack.c.b16 %v9514, %v9513
        %v9545 = vpack.c.b16 %v9516, %v9515
        %v9546 = vpack.c.b16 %v9518, %v9517
        %v9547 = vpack.c.b16 %v9520, %v9519
        %v9548 = vpack.c.b16 %v9522, %v9521
        %v9549 = vpack.c.b16 %v9524, %v9523
        %v9550 = vpack.c.b16 %v9526, %v9525
        %v9551 = vpack.c.b16 %v9528, %v9527
        %v9552 = vpack.c.b16 %v9530, %v9529
        %v9553 = vpack.c.b16 %v9532, %v9531
        %v9554 = vpack.c.b16 %v9534, %v9533
        %v9555 = vpack.c.b16 %v9536, %v9535
        %v9556 = vpack.c.b16 %v9538, %v9537
        %v9557 = vpack.c.b16 %v9540, %v9539
        %v9558 = vpack.c.b16 %v9542, %v9541
        %v9591 = vunpack.c.l.b16 %v9495
        %v9592 = vunpack.c.l.b16 %v9496
        %v9593 = vunpack.c.l.b16 %v9497
        %v9594 = vunpack.c.l.b16 %v9498
        %v9595 = vunpack.c.l.b16 %v9499
        %v9596 = vunpack.c.l.b16 %v9500
        %v9597 = vunpack.c.l.b16 %v9501
        %v9598 = vunpack.c.l.b16 %v9502
        %v9599 = vunpack.c.l.b16 %v9503
        %v9600 = vunpack.c.l.b16 %v9504
        %v9601 = vunpack.c.l.b16 %v9505
        %v9602 = vunpack.c.l.b16 %v9506
        %v9603 = vunpack.c.l.b16 %v9507
        %v9604 = vunpack.c.l.b16 %v9508
        %v9605 = vunpack.c.l.b16 %v9509
        %v9606 = vunpack.c.l.b16 %v9510
        %v9607 = vpack.c.b16 %v9592, %v9591
        %v9608 = vpack.c.b16 %v9594, %v9593
        %v9609 = vpack.c.b16 %v9596, %v9595
        %v9610 = vpack.c.b16 %v9598, %v9597
        %v9611 = vpack.c.b16 %v9600, %v9599
        %v9612 = vpack.c.b16 %v9602, %v9601
        %v9613 = vpack.c.b16 %v9604, %v9603
        %v9614 = vpack.c.b16 %v9606, %v9605
        %9623 = vmatpush.bf16.msra.mxu0 %v9614
        %9624 = vmatpush.bf16.msra.mxu0 %v9613
        %9625 = vmatpush.bf16.msra.mxu0 %v9612
        %9626 = vmatpush.bf16.msra.mxu0 %v9611
        %9627 = vmatpush.bf16.msra.mxu0 %v9610
        %9628 = vmatpush.bf16.msra.mxu0 %v9609
        %9629 = vmatpush.bf16.msra.mxu0 %v9608
        %9630 = vmatpush.bf16.msra.mxu0 %v9607
        %9631 = vmatmul.bf16.gmra.mxu0 %v9543
        %v9632 = vpop.f32.mrf.mxu0
        %v9633 = vadd.f32 0.0, %v9632
        %v9634 = vpop.f32.mrf.mxu0
        %v9635 = vadd.f32 0.0, %v9634
        %9636 = vmatmul.bf16.gmra.mxu0 %v9544
        %v9637 = vpop.f32.mrf.mxu0
        %v9638 = vadd.f32 0.0, %v9637
        %v9639 = vpop.f32.mrf.mxu0
        %v9640 = vadd.f32 0.0, %v9639
        %9641 = vmatmul.bf16.gmra.mxu0 %v9545
        %v9642 = vpop.f32.mrf.mxu0
        %v9643 = vadd.f32 0.0, %v9642
        %v9644 = vpop.f32.mrf.mxu0
        %v9645 = vadd.f32 0.0, %v9644
        %9646 = vmatmul.bf16.gmra.mxu0 %v9546
        %v9647 = vpop.f32.mrf.mxu0
        %v9648 = vadd.f32 0.0, %v9647
        %v9649 = vpop.f32.mrf.mxu0
        %v9650 = vadd.f32 0.0, %v9649
        %9651 = vmatmul.bf16.gmra.mxu0 %v9547
        %v9652 = vpop.f32.mrf.mxu0
        %v9653 = vadd.f32 0.0, %v9652
        %v9654 = vpop.f32.mrf.mxu0
        %v9655 = vadd.f32 0.0, %v9654
        %9656 = vmatmul.bf16.gmra.mxu0 %v9548
        %v9657 = vpop.f32.mrf.mxu0
        %v9658 = vadd.f32 0.0, %v9657
        %v9659 = vpop.f32.mrf.mxu0
        %v9660 = vadd.f32 0.0, %v9659
        %9661 = vmatmul.bf16.gmra.mxu0 %v9549
        %v9662 = vpop.f32.mrf.mxu0
        %v9663 = vadd.f32 0.0, %v9662
        %v9664 = vpop.f32.mrf.mxu0
        %v9665 = vadd.f32 0.0, %v9664
        %9666 = vmatmul.bf16.gmra.mxu0 %v9550
        %v9667 = vpop.f32.mrf.mxu0
        %v9668 = vadd.f32 0.0, %v9667
        %v9669 = vpop.f32.mrf.mxu0
        %v9670 = vadd.f32 0.0, %v9669
        %9671 = vmatmul.bf16.gmra.mxu0 %v9551
        %v9672 = vpop.f32.mrf.mxu0
        %v9673 = vadd.f32 0.0, %v9672
        %v9674 = vpop.f32.mrf.mxu0
        %v9675 = vadd.f32 0.0, %v9674
        %9676 = vmatmul.bf16.gmra.mxu0 %v9552
        %v9677 = vpop.f32.mrf.mxu0
        %v9678 = vadd.f32 0.0, %v9677
        %v9679 = vpop.f32.mrf.mxu0
        %v9680 = vadd.f32 0.0, %v9679
        %9681 = vmatmul.bf16.gmra.mxu0 %v9553
        %v9682 = vpop.f32.mrf.mxu0
        %v9683 = vadd.f32 0.0, %v9682
        %v9684 = vpop.f32.mrf.mxu0
        %v9685 = vadd.f32 0.0, %v9684
        %9686 = vmatmul.bf16.gmra.mxu0 %v9554
        %v9687 = vpop.f32.mrf.mxu0
        %v9688 = vadd.f32 0.0, %v9687
        %v9689 = vpop.f32.mrf.mxu0
        %v9690 = vadd.f32 0.0, %v9689
        %9691 = vmatmul.bf16.gmra.mxu0 %v9555
        %v9692 = vpop.f32.mrf.mxu0
        %v9693 = vadd.f32 0.0, %v9692
        %v9694 = vpop.f32.mrf.mxu0
        %v9695 = vadd.f32 0.0, %v9694
        %9696 = vmatmul.bf16.gmra.mxu0 %v9556
        %v9697 = vpop.f32.mrf.mxu0
        %v9698 = vadd.f32 0.0, %v9697
        %v9699 = vpop.f32.mrf.mxu0
        %v9700 = vadd.f32 0.0, %v9699
        %9701 = vmatmul.bf16.gmra.mxu0 %v9557
        %v9702 = vpop.f32.mrf.mxu0
        %v9703 = vadd.f32 0.0, %v9702
        %v9704 = vpop.f32.mrf.mxu0
        %v9705 = vadd.f32 0.0, %v9704
        %9706 = vmatmul.bf16.gmra.mxu0 %v9558
        %v9707 = vpop.f32.mrf.mxu0
        %v9708 = vadd.f32 0.0, %v9707
        %v9709 = vpop.f32.mrf.mxu0
        %v9710 = vadd.f32 0.0, %v9709
        %9711 = vdwg.mxu0
        %v9712 = vadd.f32 %v9286, %v9633
        %v9713 = vadd.f32 %v9287, %v9635
        %v9714 = vadd.f32 %v9288, %v9638
        %v9715 = vadd.f32 %v9289, %v9640
        %v9716 = vadd.f32 %v9290, %v9643
        %v9717 = vadd.f32 %v9291, %v9645
        %v9718 = vadd.f32 %v9292, %v9648
        %v9719 = vadd.f32 %v9293, %v9650
        %v9720 = vadd.f32 %v9294, %v9653
        %v9721 = vadd.f32 %v9295, %v9655
        %v9722 = vadd.f32 %v9296, %v9658
        %v9723 = vadd.f32 %v9297, %v9660
        %v9724 = vadd.f32 %v9298, %v9663
        %v9725 = vadd.f32 %v9299, %v9665
        %v9726 = vadd.f32 %v9300, %v9668
        %v9727 = vadd.f32 %v9301, %v9670
        %v9728 = vadd.f32 %v9302, %v9673
        %v9729 = vadd.f32 %v9303, %v9675
        %v9730 = vadd.f32 %v9304, %v9678
        %v9731 = vadd.f32 %v9305, %v9680
        %v9732 = vadd.f32 %v9306, %v9683
        %v9733 = vadd.f32 %v9307, %v9685
        %v9734 = vadd.f32 %v9308, %v9688
        %v9735 = vadd.f32 %v9309, %v9690
        %v9736 = vadd.f32 %v9310, %v9693
        %v9737 = vadd.f32 %v9311, %v9695
        %v9738 = vadd.f32 %v9312, %v9698
        %v9739 = vadd.f32 %v9313, %v9700
        %v9740 = vadd.f32 %v9314, %v9703
        %v9741 = vadd.f32 %v9315, %v9705
        %v9742 = vadd.f32 %v9316, %v9708
        %v9743 = vadd.f32 %v9317, %v9710
        %v9744 = vld [vmem:[%s4] sm:$0x1]
        %v9746 = vperm.slane %v9744, 0
        %v9748 = vadd.f32 %v9712, %v9746
        %v9749 = vadd.f32 %v9713, %v9746
        %v9750 = vadd.f32 %v9714, %v9746
        %v9751 = vadd.f32 %v9715, %v9746
        %v9752 = vadd.f32 %v9716, %v9746
        %v9753 = vadd.f32 %v9717, %v9746
        %v9754 = vadd.f32 %v9718, %v9746
        %v9755 = vadd.f32 %v9719, %v9746
        %v9756 = vadd.f32 %v9720, %v9746
        %v9757 = vadd.f32 %v9721, %v9746
        %v9758 = vadd.f32 %v9722, %v9746
        %v9759 = vadd.f32 %v9723, %v9746
        %v9760 = vadd.f32 %v9724, %v9746
        %v9761 = vadd.f32 %v9725, %v9746
        %v9762 = vadd.f32 %v9726, %v9746
        %v9763 = vadd.f32 %v9727, %v9746
        %v9764 = vadd.f32 %v9728, %v9746
        %v9765 = vadd.f32 %v9729, %v9746
        %v9766 = vadd.f32 %v9730, %v9746
        %v9767 = vadd.f32 %v9731, %v9746
        %v9768 = vadd.f32 %v9732, %v9746
        %v9769 = vadd.f32 %v9733, %v9746
        %v9770 = vadd.f32 %v9734, %v9746
        %v9771 = vadd.f32 %v9735, %v9746
        %v9772 = vadd.f32 %v9736, %v9746
        %v9773 = vadd.f32 %v9737, %v9746
        %v9774 = vadd.f32 %v9738, %v9746
        %v9775 = vadd.f32 %v9739, %v9746
        %v9776 = vadd.f32 %v9740, %v9746
        %v9777 = vadd.f32 %v9741, %v9746
        %v9778 = vadd.f32 %v9742, %v9746
        %v9779 = vadd.f32 %v9743, %v9746
        %v9780 = vld [vmem:[%s240] sm:$0xff]
        %v9781 = vld [vmem:[%s240 + $0x8] sm:$0xff]
        %v9782 = vld [vmem:[%s240 + $0x10] sm:$0xff]
        %v9783 = vld [vmem:[%s240 + $0x18] sm:$0xff]
        %v9784 = vld [vmem:[%s240 + $0x20] sm:$0xff]
        %v9785 = vld [vmem:[%s240 + $0x28] sm:$0xff]
        %v9786 = vld [vmem:[%s240 + $0x30] sm:$0xff]
        %v9787 = vld [vmem:[%s240 + $0x38] sm:$0xff]
        %v9788 = vld [vmem:[%s240 + $0x40] sm:$0xff]
        %v9789 = vld [vmem:[%s240 + $0x48] sm:$0xff]
        %v9790 = vld [vmem:[%s240 + $0x50] sm:$0xff]
        %v9791 = vld [vmem:[%s240 + $0x58] sm:$0xff]
        %v9792 = vld [vmem:[%s240 + $0x60] sm:$0xff]
        %v9793 = vld [vmem:[%s240 + $0x68] sm:$0xff]
        %v9794 = vld [vmem:[%s240 + $0x70] sm:$0xff]
        %v9795 = vld [vmem:[%s240 + $0x78] sm:$0xff]
        %v9796 = vld [vmem:[%s240 + $0x80] sm:$0xff]
        %v9797 = vld [vmem:[%s240 + $0x88] sm:$0xff]
        %v9798 = vld [vmem:[%s240 + $0x90] sm:$0xff]
        %v9799 = vld [vmem:[%s240 + $0x98] sm:$0xff]
        %v9800 = vld [vmem:[%s240 + $0xa0] sm:$0xff]
        %v9801 = vld [vmem:[%s240 + $0xa8] sm:$0xff]
        %v9802 = vld [vmem:[%s240 + $0xb0] sm:$0xff]
        %v9803 = vld [vmem:[%s240 + $0xb8] sm:$0xff]
        %v9804 = vld [vmem:[%s240 + $0xc0] sm:$0xff]
        %v9805 = vld [vmem:[%s240 + $0xc8] sm:$0xff]
        %v9806 = vld [vmem:[%s240 + $0xd0] sm:$0xff]
        %v9807 = vld [vmem:[%s240 + $0xd8] sm:$0xff]
        %v9808 = vld [vmem:[%s240 + $0xe0] sm:$0xff]
        %v9809 = vld [vmem:[%s240 + $0xe8] sm:$0xff]
        %v9810 = vld [vmem:[%s240 + $0xf0] sm:$0xff]
        %v9811 = vld [vmem:[%s240 + $0xf8] sm:$0xff]
        %v9812 = vadd.f32 %v9748, %v9780
        %v9813 = vadd.f32 %v9749, %v9781
        %v9814 = vadd.f32 %v9750, %v9782
        %v9815 = vadd.f32 %v9751, %v9783
        %v9816 = vadd.f32 %v9752, %v9784
        %v9817 = vadd.f32 %v9753, %v9785
        %v9818 = vadd.f32 %v9754, %v9786
        %v9819 = vadd.f32 %v9755, %v9787
        %v9820 = vadd.f32 %v9756, %v9788
        %v9821 = vadd.f32 %v9757, %v9789
        %v9822 = vadd.f32 %v9758, %v9790
        %v9823 = vadd.f32 %v9759, %v9791
        %v9824 = vadd.f32 %v9760, %v9792
        %v9825 = vadd.f32 %v9761, %v9793
        %v9826 = vadd.f32 %v9762, %v9794
        %v9827 = vadd.f32 %v9763, %v9795
        %v9828 = vadd.f32 %v9764, %v9796
        %v9829 = vadd.f32 %v9765, %v9797
        %v9830 = vadd.f32 %v9766, %v9798
        %v9831 = vadd.f32 %v9767, %v9799
        %v9832 = vadd.f32 %v9768, %v9800
        %v9833 = vadd.f32 %v9769, %v9801
        %v9834 = vadd.f32 %v9770, %v9802
        %v9835 = vadd.f32 %v9771, %v9803
        %v9836 = vadd.f32 %v9772, %v9804
        %v9837 = vadd.f32 %v9773, %v9805
        %v9838 = vadd.f32 %v9774, %v9806
        %v9839 = vadd.f32 %v9775, %v9807
        %v9840 = vadd.f32 %v9776, %v9808
        %v9841 = vadd.f32 %v9777, %v9809
        %v9842 = vadd.f32 %v9778, %v9810
        %v9843 = vadd.f32 %v9779, %v9811
        %v9844 = vmax.f32 %v9812, 0.0
        %v9845 = vmax.f32 %v9813, 0.0
        %v9846 = vmax.f32 %v9814, 0.0
        %v9847 = vmax.f32 %v9815, 0.0
        %v9848 = vmax.f32 %v9816, 0.0
        %v9849 = vmax.f32 %v9817, 0.0
        %v9850 = vmax.f32 %v9818, 0.0
        %v9851 = vmax.f32 %v9819, 0.0
        %v9852 = vmax.f32 %v9820, 0.0
        %v9853 = vmax.f32 %v9821, 0.0
        %v9854 = vmax.f32 %v9822, 0.0
        %v9855 = vmax.f32 %v9823, 0.0
        %v9856 = vmax.f32 %v9824, 0.0
        %v9857 = vmax.f32 %v9825, 0.0
        %v9858 = vmax.f32 %v9826, 0.0
        %v9859 = vmax.f32 %v9827, 0.0
        %v9860 = vmax.f32 %v9828, 0.0
        %v9861 = vmax.f32 %v9829, 0.0
        %v9862 = vmax.f32 %v9830, 0.0
        %v9863 = vmax.f32 %v9831, 0.0
        %v9864 = vmax.f32 %v9832, 0.0
        %v9865 = vmax.f32 %v9833, 0.0
        %v9866 = vmax.f32 %v9834, 0.0
        %v9867 = vmax.f32 %v9835, 0.0
        %v9868 = vmax.f32 %v9836, 0.0
        %v9869 = vmax.f32 %v9837, 0.0
        %v9870 = vmax.f32 %v9838, 0.0
        %v9871 = vmax.f32 %v9839, 0.0
        %v9872 = vmax.f32 %v9840, 0.0
        %v9873 = vmax.f32 %v9841, 0.0
        %v9874 = vmax.f32 %v9842, 0.0
        %v9875 = vmax.f32 %v9843, 0.0
        %9876 = vst [vmem:[%s277] sm:$0xff] %v9844
        %9877 = vst [vmem:[%s277 + $0x8] sm:$0xff] %v9845
        %9878 = vst [vmem:[%s277 + $0x10] sm:$0xff] %v9846
        %9879 = vst [vmem:[%s277 + $0x18] sm:$0xff] %v9847
        %9880 = vst [vmem:[%s277 + $0x20] sm:$0xff] %v9848
        %9881 = vst [vmem:[%s277 + $0x28] sm:$0xff] %v9849
        %9882 = vst [vmem:[%s277 + $0x30] sm:$0xff] %v9850
        %9883 = vst [vmem:[%s277 + $0x38] sm:$0xff] %v9851
        %9884 = vst [vmem:[%s277 + $0x40] sm:$0xff] %v9852
        %9885 = vst [vmem:[%s277 + $0x48] sm:$0xff] %v9853
        %9886 = vst [vmem:[%s277 + $0x50] sm:$0xff] %v9854
        %9887 = vst [vmem:[%s277 + $0x58] sm:$0xff] %v9855
        %9888 = vst [vmem:[%s277 + $0x60] sm:$0xff] %v9856
        %9889 = vst [vmem:[%s277 + $0x68] sm:$0xff] %v9857
        %9890 = vst [vmem:[%s277 + $0x70] sm:$0xff] %v9858
        %9891 = vst [vmem:[%s277 + $0x78] sm:$0xff] %v9859
        %9892 = vst [vmem:[%s277 + $0x80] sm:$0xff] %v9860
        %9893 = vst [vmem:[%s277 + $0x88] sm:$0xff] %v9861
        %9894 = vst [vmem:[%s277 + $0x90] sm:$0xff] %v9862
        %9895 = vst [vmem:[%s277 + $0x98] sm:$0xff] %v9863
        %9896 = vst [vmem:[%s277 + $0xa0] sm:$0xff] %v9864
        %9897 = vst [vmem:[%s277 + $0xa8] sm:$0xff] %v9865
        %9898 = vst [vmem:[%s277 + $0xb0] sm:$0xff] %v9866
        %9899 = vst [vmem:[%s277 + $0xb8] sm:$0xff] %v9867
        %9900 = vst [vmem:[%s277 + $0xc0] sm:$0xff] %v9868
        %9901 = vst [vmem:[%s277 + $0xc8] sm:$0xff] %v9869
        %9902 = vst [vmem:[%s277 + $0xd0] sm:$0xff] %v9870
        %9903 = vst [vmem:[%s277 + $0xd8] sm:$0xff] %v9871
        %9904 = vst [vmem:[%s277 + $0xe0] sm:$0xff] %v9872
        %9905 = vst [vmem:[%s277 + $0xe8] sm:$0xff] %v9873
        %9906 = vst [vmem:[%s277 + $0xf0] sm:$0xff] %v9874
        %9907 = vst [vmem:[%s277 + $0xf8] sm:$0xff] %v9875
        %s9908 = sand.u32 %s141, 1
        %s9909 = scalar_lea.sflag [#allocation5], %s9908
        %s9910 = sand.u32 %s141, 1
        %s9911 = smul.addr %s9910, 256
        %s9912 = scalar_lea.vmem [#allocation9], %s9911
        // Predicated region
        $region53: #{tpu_custom_call.1} parent=39 // pred_check
          %p9913 = pneg %p151
        $region54: #{tpu_custom_call.1} parent=39 // pred_check_branch
          %9915 = sbr.rel (%p9913) target = $region56
        $region55: #{tpu_custom_call.1} parent=39 // pred_region
          %9917 = vsyncadd %s9909, 0
          %s9918 = smul.addr %s23, 32
          %s9919 = smul.addr %s9918, 8
          %s9920 = scalar_lea.hbm %s5, %s9919
          %s9921 = sshll.u32 %s9912, 4
          %s9922 = int_to_ptr.vmem [resolvable:$true] %s9921
          %s9923 = sshll.u32 %s9920, 4
          %s9924 = int_to_ptr.hbm [resolvable:$true] %s9923
          %9929 = dma.vmem_to_hbm [thread:$0]  %s9922, 4096, %s9924, %s9909, 128, 128, 8
        $region56: #{tpu_custom_call.1} parent=39 // pred_fallthru
          _
      $region40: #{tpu_custom_call.1} parent=5 // pred_fallthru
        _
      %p9930 = scmp.le.s32.totalorder 2, %s18
      // Predicated region
      $region57: #{tpu_custom_call.1} parent=5 // pred_check
        %p9931 = pneg %p9930
      $region58: #{tpu_custom_call.1} parent=5 // pred_check_branch
        %9933 = sbr.rel (%p9931) target = $region60
      $region59: #{tpu_custom_call.1} parent=5 // pred_region
        %s9934 = ssub.s32 %s18, 2
        // Predicated region
        $region61: #{tpu_custom_call.1} parent=59 // pred_check
          %p9935 = pneg %p157
        $region62: #{tpu_custom_call.1} parent=59 // pred_check_branch
          %9937 = sbr.rel (%p9935) target = $region64
        $region63: #{tpu_custom_call.1} parent=59 // pred_region
          %s9938 = sand.u32 %s142, 1
          %s9939 = scalar_lea.sflag [#allocation5], %s9938
          %s9940 = sand.u32 %s142, 1
          %s9941 = smul.addr %s9940, 256
          %s9942 = scalar_lea.vmem [#allocation9], %s9941
          %9944 = dma.done %s9939, 4096
        $region64: #{tpu_custom_call.1} parent=59 // pred_fallthru
          _
      $region60: #{tpu_custom_call.1} parent=5 // pred_fallthru
        _
    $region6: #{tpu_custom_call.1} parent=1 // loop_footer
      %s22 = sadd.s32 1, %s18
    $region7: #{tpu_custom_call.1} parent=1 // loop_footer_branch
      %17 = sbr.rel target = $region3
    $region8: #{tpu_custom_call.1} parent=1 // loop_exit
      _
    %9945 = vsyncpa [#allocation4], 1
    %s9946 = scalar_lea.sflag [#allocation4], 1
    %9947 = vsyncpa %s9946, 1
    %9948 = vsyncpa [#allocation7], 1
    %9949 = vsyncpa [#allocation5], 1
    %s9950 = scalar_lea.sflag [#allocation5], 1
    %9951 = vsyncpa %s9950, 1

</llo_original>
